<compile_context>
chip_gen: v7x
topology: tpu7x:2x2x1
jax: 0.10.0
libtpu: 0.0.40
codegen_flags: <defaults>
</compile_context>

<pallas_src>
import functools

import jax
import jax.numpy as jnp
from jax.experimental import pallas as pl
from jax.experimental.pallas import tpu as pltpu

HIDDEN_DIM = 6          # hiddenDIM in the torch module
OUTPUT_DIM = 8          # outputDIM
IN_DIM = 32
BN_EPS = 1e-5
HEAD_PAD = 128          # lane-dense padded width of the output head
DEFAULT_TILE_B = 1024   # batch rows per grid step (review: raised from 256)
FUSED_MAX_ROWS = 2048   # fused single-kernel path up to this many padded rows

# The kernel structure assumes the only BatchNorm sits immediately before the
# output head, which holds for hiddenDIM=6 (BN appended only at i=5).
_BN_LAYERS = tuple(i for i in range(HIDDEN_DIM) if i % 5 == 0 and i > 4)
assert _BN_LAYERS == (HIDDEN_DIM - 1,), "kernel assumes BN right before the head"


def _round_up(n, m):
    return ((n + m - 1) // m) * m


# ---------------------------------------------------------------------------
# Shared in-kernel helpers
# ---------------------------------------------------------------------------
def _mlp_trunk(x_f32, w1_ref, b1_ref, w2_ref, b2_ref, wh_ref, bh_ref, n_hidden):
    """Linear(32,64)+ReLU -> Linear(64,128)+ReLU -> n_hidden x [Linear+ReLU].

    bf16 weights on the MXU, f32 accumulation, f32 bias/ReLU. Statically
    unrolled (trip count 6) for LLO scheduler visibility."""
    h = jnp.maximum(
        jnp.dot(x_f32.astype(jnp.bfloat16), w1_ref[...],
                preferred_element_type=jnp.float32) + b1_ref[...], 0.0)
    h = jnp.maximum(
        jnp.dot(h.astype(jnp.bfloat16), w2_ref[...],
                preferred_element_type=jnp.float32) + b2_ref[...], 0.0)
    for i in range(n_hidden):
        h = jnp.maximum(
            jnp.dot(h.astype(jnp.bfloat16), wh_ref[i],
                    preferred_element_type=jnp.float32) + bh_ref[i], 0.0)
    return h


def _moment_sums(h_f32, n_valid, masked, row_offset):
    """Per-feature sum and sum-of-squares (f32).  Zero-padded batch rows are
    excluded when masked: they are NOT zero after layer 1 (ReLU(bias)
    propagates through the trunk), so the mask must stay tied to b_pad != B."""
    if masked:
        rows = row_offset + jax.lax.broadcasted_iota(jnp.int32, h_f32.shape, 0)
        hm = jnp.where(rows < n_valid, h_f32, 0.0)
    else:
        hm = h_f32
    return (jnp.sum(hm, axis=0, keepdims=True),
            jnp.sum(hm * hm, axis=0, keepdims=True))


# ---------------------------------------------------------------------------
# Fast path: fused single kernel (trunk + whole-batch BN + head), no HBM h.
# ---------------------------------------------------------------------------
def fused_kernel(x_ref, w1_ref, b1_ref, w2_ref, b2_ref, wh_ref, bh_ref,
                 gamma_ref, beta_ref, wo_ref, bo_ref, o_ref, *,
                 n_hidden, n_valid, masked):
    x = x_ref[...].astype(jnp.float32)   # mirrors x.float(); .type(...) is a no-op
    h = _mlp_trunk(x, w1_ref, b1_ref, w2_ref, b2_ref, wh_ref, bh_ref, n_hidden)
    s1, s2 = _moment_sums(h, n_valid, masked, 0)
    inv_n = jnp.float32(1.0 / n_valid)
    mean = s1 * inv_n
    var = jnp.maximum(s2 * inv_n - mean * mean, 0.0)       # biased var, clamped
    scale = gamma_ref[...] * jax.lax.rsqrt(var + BN_EPS)   # EUP rsqrt
    shift = beta_ref[...] - mean * scale
    hn = h * scale + shift                                 # BN affine in f32
    o_ref[...] = (jnp.dot(hn.astype(jnp.bfloat16), wo_ref[...],
                          preferred_element_type=jnp.float32) + bo_ref[...])


# ---------------------------------------------------------------------------
# Large-batch path, kernel 1: trunk (Linear/ReLU stack) + BN partial moments.
# ---------------------------------------------------------------------------
def trunk_kernel(x_ref, w1_ref, b1_ref, w2_ref, b2_ref, wh_ref, bh_ref,
                 h_ref, sum_ref, sq_ref, *, n_hidden, n_valid, tile_rows, masked):
    x = x_ref[...].astype(jnp.float32)
    h = _mlp_trunk(x, w1_ref, b1_ref, w2_ref, b2_ref, wh_ref, bh_ref, n_hidden)
    # Partial BN moments computed on the f32 value BEFORE the bf16 downcast.
    row0 = pl.program_id(0) * tile_rows
    s1, s2 = _moment_sums(h, n_valid, masked, row0)
    sum_ref[...] = s1.reshape(1, 1, 128)
    sq_ref[...] = s2.reshape(1, 1, 128)
    h_ref[...] = h.astype(jnp.bfloat16)     # bf16 activation storage (HBM saving)


# ---------------------------------------------------------------------------
# Large-batch path, kernel 2: head = one matmul with BN folded into weights.
# ---------------------------------------------------------------------------
def head_kernel(h_ref, wo_ref, bo_ref, o_ref):
    o_ref[...] = (jnp.dot(h_ref[...], wo_ref[...],
                          preferred_element_type=jnp.float32) + bo_ref[...])


# ---------------------------------------------------------------------------
# Wrapper
# ---------------------------------------------------------------------------
def dumb_nn_forward(x, params, *, tile_b=DEFAULT_TILE_B,
                    fused_max_rows=FUSED_MAX_ROWS, force_two_pass=False):
    (w1, b1, w2, b2, wh, bh, gamma, beta, wo, bo) = params
    B = x.shape[0]
    n_out = wo.shape[1]
    assert n_out <= HEAD_PAD

    # Zero-pad the output head to a lane-dense 128-wide slab (sliced back below).
    wo_p = jnp.zeros((128, HEAD_PAD), jnp.bfloat16).at[:, :n_out].set(wo)
    bo_p = jnp.zeros((1, HEAD_PAD), jnp.float32).at[:, :n_out].set(bo)

    parallel = pltpu.CompilerParams(dimension_semantics=("parallel",))

    # ----------------------- fused fast path (moderate batches) -------------
    if not force_two_pass and _round_up(B, 8) <= fused_max_rows:
        b_pad = _round_up(B, 8)
        xp = x if b_pad == B else jnp.pad(x, ((0, b_pad - B), (0, 0)))
        out_pad = pl.pallas_call(
            functools.partial(fused_kernel, n_hidden=HIDDEN_DIM, n_valid=B,
                              masked=(b_pad != B)),
            out_shape=jax.ShapeDtypeStruct((b_pad, HEAD_PAD), jnp.float32),
            grid=(1,),
            in_specs=[
                pl.BlockSpec((b_pad, IN_DIM), lambda i: (0, 0)),
                pl.BlockSpec((IN_DIM, 64), lambda i: (0, 0)),
                pl.BlockSpec((1, 64), lambda i: (0, 0)),
                pl.BlockSpec((64, 128), lambda i: (0, 0)),
                pl.BlockSpec((1, 128), lambda i: (0, 0)),
                pl.BlockSpec((HIDDEN_DIM, 128, 128), lambda i: (0, 0, 0)),
                pl.BlockSpec((HIDDEN_DIM, 1, 128), lambda i: (0, 0, 0)),
                pl.BlockSpec((1, 128), lambda i: (0, 0)),          # gamma
                pl.BlockSpec((1, 128), lambda i: (0, 0)),          # beta
                pl.BlockSpec((128, HEAD_PAD), lambda i: (0, 0)),   # padded head W
                pl.BlockSpec((1, HEAD_PAD), lambda i: (0, 0)),     # padded head b
            ],
            out_specs=pl.BlockSpec((b_pad, HEAD_PAD), lambda i: (0, 0)),
        )(xp, w1, b1, w2, b2, wh, bh, gamma, beta, wo_p, bo_p)
        return out_pad[:B, :n_out]

    # ----------------------- large-batch two-pass path ----------------------
    tb = min(tile_b, _round_up(B, 16))
    tb = _round_up(tb, 16)                 # bf16 h tiles: sublane multiple of 16
    num_tiles = (B + tb - 1) // tb
    b_pad = num_tiles * tb
    xp = x if b_pad == B else jnp.pad(x, ((0, b_pad - B), (0, 0)))
    masked = b_pad != B

    # Trunk: tiled over batch, weights resident (constant index maps), emits
    # bf16 h plus per-tile BN partial moments.
    h_bf16, psum, psq = pl.pallas_call(
        functools.partial(trunk_kernel, n_hidden=HIDDEN_DIM, n_valid=B,
                          tile_rows=tb, masked=masked),
        out_shape=(jax.ShapeDtypeStruct((b_pad, 128), jnp.bfloat16),
                   jax.ShapeDtypeStruct((num_tiles, 1, 128), jnp.float32),
                   jax.ShapeDtypeStruct((num_tiles, 1, 128), jnp.float32)),
        grid=(num_tiles,),
        in_specs=[
            pl.BlockSpec((tb, IN_DIM), lambda i: (i, 0)),           # x tile streams
            pl.BlockSpec((IN_DIM, 64), lambda i: (0, 0)),           # params resident
            pl.BlockSpec((1, 64), lambda i: (0, 0)),
            pl.BlockSpec((64, 128), lambda i: (0, 0)),
            pl.BlockSpec((1, 128), lambda i: (0, 0)),
            pl.BlockSpec((HIDDEN_DIM, 128, 128), lambda i: (0, 0, 0)),
            pl.BlockSpec((HIDDEN_DIM, 1, 128), lambda i: (0, 0, 0)),
        ],
        out_specs=(
            pl.BlockSpec((tb, 128), lambda i: (i, 0)),
            pl.BlockSpec((1, 1, 128), lambda i: (i, 0, 0)),
            pl.BlockSpec((1, 1, 128), lambda i: (i, 0, 0)),
        ),
        compiler_params=parallel,
    )(xp, w1, b1, w2, b2, wh, bh)

    # Tiny O(num_tiles*128) reduction + BN fold in plain JAX (outside kernels).
    s1 = jnp.sum(psum[:, 0, :], axis=0, keepdims=True)              # (1,128)
    s2 = jnp.sum(psq[:, 0, :], axis=0, keepdims=True)
    mean = s1 / B
    var = jnp.maximum(s2 / B - mean * mean, 0.0)                    # clamped
    scale = gamma * jax.lax.rsqrt(var + BN_EPS)                     # (1,128)
    shift = beta - mean * scale                                     # (1,128)
    wo_f32 = wo_p.astype(jnp.float32)
    wo_eff = (wo_f32 * scale.reshape(128, 1)).astype(jnp.bfloat16)  # BN folded
    bo_eff = bo_p + jnp.dot(shift, wo_f32)                          # (1,HEAD_PAD)

    # Head: pure matmul + bias, tiled over batch, megacore-parallel.
    out_pad = pl.pallas_call(
        head_kernel,
        out_shape=jax.ShapeDtypeStruct((b_pad, HEAD_PAD), jnp.float32),
        grid=(num_tiles,),
        in_specs=[
            pl.BlockSpec((tb, 128), lambda i: (i, 0)),
            pl.BlockSpec((128, HEAD_PAD), lambda i: (0, 0)),
            pl.BlockSpec((1, HEAD_PAD), lambda i: (0, 0)),
        ],
        out_specs=pl.BlockSpec((tb, HEAD_PAD), lambda i: (i, 0)),
        compiler_params=parallel,
    )(h_bf16, wo_eff, bo_eff)

    return out_pad[:B, :n_out]


# ---------------------------------------------------------------------------
# Parameters (synthetic, deterministic; shapes match the torch module).
# Matmul weights are bf16 (f32 accumulation); biases / BN params stay f32.
# ---------------------------------------------------------------------------
def init_params(key):
    ks = jax.random.split(key, 5)

    def lin(k, fan_in, fan_out):
        bound = fan_in ** -0.5
        kw, kb = jax.random.split(k)
        w = jax.random.uniform(kw, (fan_in, fan_out), jnp.float32,
                               -bound, bound).astype(jnp.bfloat16)
        b = jax.random.uniform(kb, (1, fan_out), jnp.float32, -bound, bound)
        return w, b

    w1, b1 = lin(ks[0], 32, 64)
    w2, b2 = lin(ks[1], 64, 128)

    bound = 128.0 ** -0.5
    wh = jax.random.uniform(ks[2], (HIDDEN_DIM, 128, 128), jnp.float32,
                            -bound, bound).astype(jnp.bfloat16)
    bh = jax.random.uniform(ks[3], (HIDDEN_DIM, 1, 128), jnp.float32,
                            -bound, bound)

    gamma = jnp.ones((1, 128), jnp.float32)    # BatchNorm1d weight init
    beta = jnp.zeros((1, 128), jnp.float32)    # BatchNorm1d bias init

    wo, bo = lin(ks[4], 128, OUTPUT_DIM)
    return (w1, b1, w2, b2, wh, bh, gamma, beta, wo, bo)


def reference_forward(x, params, *, bf16_h=False):
    """Pure-JAX reference with matching bf16-weight numerics.

    bf16_h=True mirrors the tiled two-pass kernel numerics (bf16 activation
    storage + BN folded into the head weights); bf16_h=False is the clean
    f32-activation reference used to check the fused path."""
    (w1, b1, w2, b2, wh, bh, gamma, beta, wo, bo) = params

    def mm(a, w):
        return jnp.dot(a.astype(jnp.bfloat16), w,
                       preferred_element_type=jnp.float32)

    h = jnp.maximum(mm(x.astype(jnp.float32), w1) + b1, 0.0)
    h = jnp.maximum(mm(h, w2) + b2, 0.0)
    for i in range(HIDDEN_DIM):
        h = jnp.maximum(mm(h, wh[i]) + bh[i], 0.0)

    mean = jnp.mean(h, axis=0, keepdims=True)
    var = jnp.maximum(jnp.mean(h * h, axis=0, keepdims=True) - mean * mean, 0.0)
    scale = gamma * jax.lax.rsqrt(var + BN_EPS)        # biased var (training mode)
    shift = beta - mean * scale

    if bf16_h:
        wo_f32 = wo.astype(jnp.float32)
        wo_eff = (wo_f32 * scale.reshape(-1, 1)).astype(jnp.bfloat16)
        bo_eff = bo + jnp.dot(shift, wo_f32)
        return jnp.dot(h.astype(jnp.bfloat16), wo_eff,
                       preferred_element_type=jnp.float32) + bo_eff

    hn = h * scale + shift
    return mm(hn, wo) + bo


if __name__ == "__main__":
    key = jax.random.PRNGKey(0)
    k_x, k_p = jax.random.split(key)
    params = init_params(k_p)

    # ---- main demo: fused single-kernel path (moderate batch) -------------
    B1 = 1024
    x1 = jax.random.normal(k_x, (B1, IN_DIM), jnp.float32)
    out1 = jax.block_until_ready(dumb_nn_forward(x1, params))
    assert out1.shape == (B1, OUTPUT_DIM) and out1.dtype == jnp.float32
    assert bool(jnp.all(jnp.isfinite(out1)))
    ref1 = reference_forward(x1, params)
    err1 = float(jnp.max(jnp.abs(out1 - ref1)))
    assert err1 < 5e-2, f"fused path mismatch vs reference: max abs err {err1}"

    # ---- large-batch (tiled two-pass) path, exercised at an awkward size ---
    # 137 rows with 128-row tiles -> 2 tiles, 119 masked pad rows: validates
    # batch tiling, masked partial moments, and the BN-folded head.
    B2 = 137
    x2 = x1[:B2]
    out2 = jax.block_until_ready(
        dumb_nn_forward(x2, params, tile_b=128, force_two_pass=True))
    assert out2.shape == (B2, OUTPUT_DIM) and out2.dtype == jnp.float32
    assert bool(jnp.all(jnp.isfinite(out2)))
    ref2 = reference_forward(x2, params, bf16_h=True)   # numerics-matched ref
    err2 = float(jnp.max(jnp.abs(out2 - ref2)))
    assert err2 < 5e-2, f"tiled path mismatch vs matched reference: max abs err {err2}"

    print("KERNEL_OK")
</pallas_src>

<mosaic_0001>
module attributes {stable_mosaic.version = 11 : i64} {
  func.func @fused_kernel(%arg0: i32, %arg1: memref<1024x32xf32, #tpu.memory_space<vmem>>, %arg2: memref<32x64xbf16, #tpu.memory_space<vmem>>, %arg3: memref<1x64xf32, #tpu.memory_space<vmem>>, %arg4: memref<64x128xbf16, #tpu.memory_space<vmem>>, %arg5: memref<1x128xf32, #tpu.memory_space<vmem>>, %arg6: memref<6x128x128xbf16, #tpu.memory_space<vmem>>, %arg7: memref<6x1x128xf32, #tpu.memory_space<vmem>>, %arg8: memref<1x128xf32, #tpu.memory_space<vmem>>, %arg9: memref<1x128xf32, #tpu.memory_space<vmem>>, %arg10: memref<128x128xbf16, #tpu.memory_space<vmem>>, %arg11: memref<1x128xf32, #tpu.memory_space<vmem>>, %arg12: memref<1024x128xf32, #tpu.memory_space<vmem>>) attributes {dimension_semantics = [#tpu.dimension_semantics<arbitrary>], iteration_bounds = array<i64: 1>, scalar_prefetch = 0 : i64, scratch_operands = 0 : i64, tpu.core_type = #tpu.core_type<tc>, window_params = [{pipeline_mode = #tpu.pipeline_mode<synchronous>, transform_indices = @transform_0, window_bounds = array<i64: 1024, 32>}, {pipeline_mode = #tpu.pipeline_mode<synchronous>, transform_indices = @transform_1, window_bounds = array<i64: 32, 64>}, {pipeline_mode = #tpu.pipeline_mode<synchronous>, transform_indices = @transform_2, window_bounds = array<i64: 1, 64>}, {pipeline_mode = #tpu.pipeline_mode<synchronous>, transform_indices = @transform_3, window_bounds = array<i64: 64, 128>}, {pipeline_mode = #tpu.pipeline_mode<synchronous>, transform_indices = @transform_4, window_bounds = array<i64: 1, 128>}, {pipeline_mode = #tpu.pipeline_mode<synchronous>, transform_indices = @transform_5, window_bounds = array<i64: 6, 128, 128>}, {pipeline_mode = #tpu.pipeline_mode<synchronous>, transform_indices = @transform_6, window_bounds = array<i64: 6, 1, 128>}, {pipeline_mode = #tpu.pipeline_mode<synchronous>, transform_indices = @transform_7, window_bounds = array<i64: 1, 128>}, {pipeline_mode = #tpu.pipeline_mode<synchronous>, transform_indices = @transform_8, window_bounds = array<i64: 1, 128>}, {pipeline_mode = #tpu.pipeline_mode<synchronous>, transform_indices = @transform_9, window_bounds = array<i64: 128, 128>}, {pipeline_mode = #tpu.pipeline_mode<synchronous>, transform_indices = @transform_10, window_bounds = array<i64: 1, 128>}, {pipeline_mode = #tpu.pipeline_mode<synchronous>, transform_indices = @transform_11, window_bounds = array<i64: 1024, 128>}]} {
    %c0 = arith.constant 0 : index
    %c0_0 = arith.constant 0 : index
    %0 = vector.load %arg1[%c0, %c0_0] : memref<1024x32xf32, #tpu.memory_space<vmem>>, vector<1024x32xf32>
    %1 = arith.truncf %0 : vector<1024x32xf32> to vector<1024x32xbf16>
    %c0_1 = arith.constant 0 : index
    %c0_2 = arith.constant 0 : index
    %2 = vector.load %arg2[%c0_1, %c0_2] : memref<32x64xbf16, #tpu.memory_space<vmem>>, vector<32x64xbf16>
    %cst = arith.constant dense<0.000000e+00> : vector<1024x64xf32>
    %3 = tpu.matmul %1, %2, %cst {dimension_numbers = #tpu.dot_dimension_numbers<[1], [0], [0], [1], [0, 0, 1, 1], [], []>} : vector<1024x32xbf16>, vector<32x64xbf16>, vector<1024x64xf32> -> vector<1024x64xf32>
    %c0_3 = arith.constant 0 : index
    %c0_4 = arith.constant 0 : index
    %4 = vector.load %arg3[%c0_3, %c0_4] : memref<1x64xf32, #tpu.memory_space<vmem>>, vector<1x64xf32>
    %5 = vector.broadcast %4 : vector<1x64xf32> to vector<1024x64xf32>
    %6 = arith.addf %3, %5 : vector<1024x64xf32>
    %cst_5 = arith.constant 0.000000e+00 : f32
    %7 = vector.broadcast %cst_5 : f32 to vector<1024x64xf32>
    %8 = arith.maximumf %6, %7 : vector<1024x64xf32>
    %9 = arith.truncf %8 : vector<1024x64xf32> to vector<1024x64xbf16>
    %c0_6 = arith.constant 0 : index
    %c0_7 = arith.constant 0 : index
    %10 = vector.load %arg4[%c0_6, %c0_7] : memref<64x128xbf16, #tpu.memory_space<vmem>>, vector<64x128xbf16>
    %cst_8 = arith.constant dense<0.000000e+00> : vector<1024x128xf32>
    %11 = tpu.matmul %9, %10, %cst_8 {dimension_numbers = #tpu.dot_dimension_numbers<[1], [0], [0], [1], [0, 0, 1, 1], [], []>} : vector<1024x64xbf16>, vector<64x128xbf16>, vector<1024x128xf32> -> vector<1024x128xf32>
    %c0_9 = arith.constant 0 : index
    %c0_10 = arith.constant 0 : index
    %12 = vector.load %arg5[%c0_9, %c0_10] : memref<1x128xf32, #tpu.memory_space<vmem>>, vector<1x128xf32>
    %13 = vector.broadcast %12 : vector<1x128xf32> to vector<1024x128xf32>
    %14 = arith.addf %11, %13 : vector<1024x128xf32>
    %cst_11 = arith.constant 0.000000e+00 : f32
    %15 = vector.broadcast %cst_11 : f32 to vector<1024x128xf32>
    %16 = arith.maximumf %14, %15 : vector<1024x128xf32>
    %17 = arith.truncf %16 : vector<1024x128xf32> to vector<1024x128xbf16>
    %c0_12 = arith.constant 0 : index
    %c0_13 = arith.constant 0 : index
    %c0_14 = arith.constant 0 : index
    %18 = vector.load %arg6[%c0_12, %c0_13, %c0_14] : memref<6x128x128xbf16, #tpu.memory_space<vmem>>, vector<1x128x128xbf16>
    %19 = vector.shape_cast %18 : vector<1x128x128xbf16> to vector<128x128xbf16>
    %cst_15 = arith.constant dense<0.000000e+00> : vector<1024x128xf32>
    %20 = tpu.matmul %17, %19, %cst_15 {dimension_numbers = #tpu.dot_dimension_numbers<[1], [0], [0], [1], [0, 0, 1, 1], [], []>} : vector<1024x128xbf16>, vector<128x128xbf16>, vector<1024x128xf32> -> vector<1024x128xf32>
    %c0_16 = arith.constant 0 : index
    %c0_17 = arith.constant 0 : index
    %c0_18 = arith.constant 0 : index
    %21 = vector.load %arg7[%c0_16, %c0_17, %c0_18] : memref<6x1x128xf32, #tpu.memory_space<vmem>>, vector<1x1x128xf32>
    %22 = vector.shape_cast %21 : vector<1x1x128xf32> to vector<1x128xf32>
    %23 = vector.broadcast %22 : vector<1x128xf32> to vector<1024x128xf32>
    %24 = arith.addf %20, %23 : vector<1024x128xf32>
    %cst_19 = arith.constant 0.000000e+00 : f32
    %25 = vector.broadcast %cst_19 : f32 to vector<1024x128xf32>
    %26 = arith.maximumf %24, %25 : vector<1024x128xf32>
    %27 = arith.truncf %26 : vector<1024x128xf32> to vector<1024x128xbf16>
    %c1 = arith.constant 1 : index
    %c0_20 = arith.constant 0 : index
    %c0_21 = arith.constant 0 : index
    %28 = vector.load %arg6[%c1, %c0_20, %c0_21] : memref<6x128x128xbf16, #tpu.memory_space<vmem>>, vector<1x128x128xbf16>
    %29 = vector.shape_cast %28 : vector<1x128x128xbf16> to vector<128x128xbf16>
    %cst_22 = arith.constant dense<0.000000e+00> : vector<1024x128xf32>
    %30 = tpu.matmul %27, %29, %cst_22 {dimension_numbers = #tpu.dot_dimension_numbers<[1], [0], [0], [1], [0, 0, 1, 1], [], []>} : vector<1024x128xbf16>, vector<128x128xbf16>, vector<1024x128xf32> -> vector<1024x128xf32>
    %c1_23 = arith.constant 1 : index
    %c0_24 = arith.constant 0 : index
    %c0_25 = arith.constant 0 : index
    %31 = vector.load %arg7[%c1_23, %c0_24, %c0_25] : memref<6x1x128xf32, #tpu.memory_space<vmem>>, vector<1x1x128xf32>
    %32 = vector.shape_cast %31 : vector<1x1x128xf32> to vector<1x128xf32>
    %33 = vector.broadcast %32 : vector<1x128xf32> to vector<1024x128xf32>
    %34 = arith.addf %30, %33 : vector<1024x128xf32>
    %cst_26 = arith.constant 0.000000e+00 : f32
    %35 = vector.broadcast %cst_26 : f32 to vector<1024x128xf32>
    %36 = arith.maximumf %34, %35 : vector<1024x128xf32>
    %37 = arith.truncf %36 : vector<1024x128xf32> to vector<1024x128xbf16>
    %c2 = arith.constant 2 : index
    %c0_27 = arith.constant 0 : index
    %c0_28 = arith.constant 0 : index
    %38 = vector.load %arg6[%c2, %c0_27, %c0_28] : memref<6x128x128xbf16, #tpu.memory_space<vmem>>, vector<1x128x128xbf16>
    %39 = vector.shape_cast %38 : vector<1x128x128xbf16> to vector<128x128xbf16>
    %cst_29 = arith.constant dense<0.000000e+00> : vector<1024x128xf32>
    %40 = tpu.matmul %37, %39, %cst_29 {dimension_numbers = #tpu.dot_dimension_numbers<[1], [0], [0], [1], [0, 0, 1, 1], [], []>} : vector<1024x128xbf16>, vector<128x128xbf16>, vector<1024x128xf32> -> vector<1024x128xf32>
    %c2_30 = arith.constant 2 : index
    %c0_31 = arith.constant 0 : index
    %c0_32 = arith.constant 0 : index
    %41 = vector.load %arg7[%c2_30, %c0_31, %c0_32] : memref<6x1x128xf32, #tpu.memory_space<vmem>>, vector<1x1x128xf32>
    %42 = vector.shape_cast %41 : vector<1x1x128xf32> to vector<1x128xf32>
    %43 = vector.broadcast %42 : vector<1x128xf32> to vector<1024x128xf32>
    %44 = arith.addf %40, %43 : vector<1024x128xf32>
    %cst_33 = arith.constant 0.000000e+00 : f32
    %45 = vector.broadcast %cst_33 : f32 to vector<1024x128xf32>
    %46 = arith.maximumf %44, %45 : vector<1024x128xf32>
    %47 = arith.truncf %46 : vector<1024x128xf32> to vector<1024x128xbf16>
    %c3 = arith.constant 3 : index
    %c0_34 = arith.constant 0 : index
    %c0_35 = arith.constant 0 : index
    %48 = vector.load %arg6[%c3, %c0_34, %c0_35] : memref<6x128x128xbf16, #tpu.memory_space<vmem>>, vector<1x128x128xbf16>
    %49 = vector.shape_cast %48 : vector<1x128x128xbf16> to vector<128x128xbf16>
    %cst_36 = arith.constant dense<0.000000e+00> : vector<1024x128xf32>
    %50 = tpu.matmul %47, %49, %cst_36 {dimension_numbers = #tpu.dot_dimension_numbers<[1], [0], [0], [1], [0, 0, 1, 1], [], []>} : vector<1024x128xbf16>, vector<128x128xbf16>, vector<1024x128xf32> -> vector<1024x128xf32>
    %c3_37 = arith.constant 3 : index
    %c0_38 = arith.constant 0 : index
    %c0_39 = arith.constant 0 : index
    %51 = vector.load %arg7[%c3_37, %c0_38, %c0_39] : memref<6x1x128xf32, #tpu.memory_space<vmem>>, vector<1x1x128xf32>
    %52 = vector.shape_cast %51 : vector<1x1x128xf32> to vector<1x128xf32>
    %53 = vector.broadcast %52 : vector<1x128xf32> to vector<1024x128xf32>
    %54 = arith.addf %50, %53 : vector<1024x128xf32>
    %cst_40 = arith.constant 0.000000e+00 : f32
    %55 = vector.broadcast %cst_40 : f32 to vector<1024x128xf32>
    %56 = arith.maximumf %54, %55 : vector<1024x128xf32>
    %57 = arith.truncf %56 : vector<1024x128xf32> to vector<1024x128xbf16>
    %c4 = arith.constant 4 : index
    %c0_41 = arith.constant 0 : index
    %c0_42 = arith.constant 0 : index
    %58 = vector.load %arg6[%c4, %c0_41, %c0_42] : memref<6x128x128xbf16, #tpu.memory_space<vmem>>, vector<1x128x128xbf16>
    %59 = vector.shape_cast %58 : vector<1x128x128xbf16> to vector<128x128xbf16>
    %cst_43 = arith.constant dense<0.000000e+00> : vector<1024x128xf32>
    %60 = tpu.matmul %57, %59, %cst_43 {dimension_numbers = #tpu.dot_dimension_numbers<[1], [0], [0], [1], [0, 0, 1, 1], [], []>} : vector<1024x128xbf16>, vector<128x128xbf16>, vector<1024x128xf32> -> vector<1024x128xf32>
    %c4_44 = arith.constant 4 : index
    %c0_45 = arith.constant 0 : index
    %c0_46 = arith.constant 0 : index
    %61 = vector.load %arg7[%c4_44, %c0_45, %c0_46] : memref<6x1x128xf32, #tpu.memory_space<vmem>>, vector<1x1x128xf32>
    %62 = vector.shape_cast %61 : vector<1x1x128xf32> to vector<1x128xf32>
    %63 = vector.broadcast %62 : vector<1x128xf32> to vector<1024x128xf32>
    %64 = arith.addf %60, %63 : vector<1024x128xf32>
    %cst_47 = arith.constant 0.000000e+00 : f32
    %65 = vector.broadcast %cst_47 : f32 to vector<1024x128xf32>
    %66 = arith.maximumf %64, %65 : vector<1024x128xf32>
    %67 = arith.truncf %66 : vector<1024x128xf32> to vector<1024x128xbf16>
    %c5 = arith.constant 5 : index
    %c0_48 = arith.constant 0 : index
    %c0_49 = arith.constant 0 : index
    %68 = vector.load %arg6[%c5, %c0_48, %c0_49] : memref<6x128x128xbf16, #tpu.memory_space<vmem>>, vector<1x128x128xbf16>
    %69 = vector.shape_cast %68 : vector<1x128x128xbf16> to vector<128x128xbf16>
    %cst_50 = arith.constant dense<0.000000e+00> : vector<1024x128xf32>
    %70 = tpu.matmul %67, %69, %cst_50 {dimension_numbers = #tpu.dot_dimension_numbers<[1], [0], [0], [1], [0, 0, 1, 1], [], []>} : vector<1024x128xbf16>, vector<128x128xbf16>, vector<1024x128xf32> -> vector<1024x128xf32>
    %c5_51 = arith.constant 5 : index
    %c0_52 = arith.constant 0 : index
    %c0_53 = arith.constant 0 : index
    %71 = vector.load %arg7[%c5_51, %c0_52, %c0_53] : memref<6x1x128xf32, #tpu.memory_space<vmem>>, vector<1x1x128xf32>
    %72 = vector.shape_cast %71 : vector<1x1x128xf32> to vector<1x128xf32>
    %73 = vector.broadcast %72 : vector<1x128xf32> to vector<1024x128xf32>
    %74 = arith.addf %70, %73 : vector<1024x128xf32>
    %cst_54 = arith.constant 0.000000e+00 : f32
    %75 = vector.broadcast %cst_54 : f32 to vector<1024x128xf32>
    %76 = arith.maximumf %74, %75 : vector<1024x128xf32>
    %cst_55 = arith.constant dense<0.000000e+00> : vector<128xf32>
    %77 = vector.multi_reduction <add>, %76, %cst_55 [0] : vector<1024x128xf32> to vector<128xf32>
    %78 = vector.shape_cast %77 : vector<128xf32> to vector<1x128xf32>
    %79 = arith.mulf %76, %76 : vector<1024x128xf32>
    %cst_56 = arith.constant dense<0.000000e+00> : vector<128xf32>
    %80 = vector.multi_reduction <add>, %79, %cst_56 [0] : vector<1024x128xf32> to vector<128xf32>
    %81 = vector.shape_cast %80 : vector<128xf32> to vector<1x128xf32>
    %cst_57 = arith.constant 9.765625E-4 : f32
    %82 = vector.broadcast %cst_57 : f32 to vector<1x128xf32>
    %83 = arith.mulf %78, %82 : vector<1x128xf32>
    %cst_58 = arith.constant 9.765625E-4 : f32
    %84 = vector.broadcast %cst_58 : f32 to vector<1x128xf32>
    %85 = arith.mulf %81, %84 : vector<1x128xf32>
    %86 = arith.mulf %83, %83 : vector<1x128xf32>
    %87 = arith.subf %85, %86 : vector<1x128xf32>
    %cst_59 = arith.constant 0.000000e+00 : f32
    %88 = vector.broadcast %cst_59 : f32 to vector<1x128xf32>
    %89 = arith.maximumf %87, %88 : vector<1x128xf32>
    %c0_60 = arith.constant 0 : index
    %c0_61 = arith.constant 0 : index
    %90 = vector.load %arg8[%c0_60, %c0_61] : memref<1x128xf32, #tpu.memory_space<vmem>>, vector<1x128xf32>
    %cst_62 = arith.constant 9.99999974E-6 : f32
    %91 = vector.broadcast %cst_62 : f32 to vector<1x128xf32>
    %92 = arith.addf %89, %91 : vector<1x128xf32>
    %93 = math.rsqrt %92 : vector<1x128xf32>
    %94 = arith.mulf %90, %93 : vector<1x128xf32>
    %c0_63 = arith.constant 0 : index
    %c0_64 = arith.constant 0 : index
    %95 = vector.load %arg9[%c0_63, %c0_64] : memref<1x128xf32, #tpu.memory_space<vmem>>, vector<1x128xf32>
    %96 = arith.mulf %83, %94 : vector<1x128xf32>
    %97 = arith.subf %95, %96 : vector<1x128xf32>
    %98 = vector.broadcast %94 : vector<1x128xf32> to vector<1024x128xf32>
    %99 = arith.mulf %76, %98 : vector<1024x128xf32>
    %100 = vector.broadcast %97 : vector<1x128xf32> to vector<1024x128xf32>
    %101 = arith.addf %99, %100 : vector<1024x128xf32>
    %102 = arith.truncf %101 : vector<1024x128xf32> to vector<1024x128xbf16>
    %c0_65 = arith.constant 0 : index
    %c0_66 = arith.constant 0 : index
    %103 = vector.load %arg10[%c0_65, %c0_66] : memref<128x128xbf16, #tpu.memory_space<vmem>>, vector<128x128xbf16>
    %cst_67 = arith.constant dense<0.000000e+00> : vector<1024x128xf32>
    %104 = tpu.matmul %102, %103, %cst_67 {dimension_numbers = #tpu.dot_dimension_numbers<[1], [0], [0], [1], [0, 0, 1, 1], [], []>} : vector<1024x128xbf16>, vector<128x128xbf16>, vector<1024x128xf32> -> vector<1024x128xf32>
    %c0_68 = arith.constant 0 : index
    %c0_69 = arith.constant 0 : index
    %105 = vector.load %arg11[%c0_68, %c0_69] : memref<1x128xf32, #tpu.memory_space<vmem>>, vector<1x128xf32>
    %106 = vector.broadcast %105 : vector<1x128xf32> to vector<1024x128xf32>
    %107 = arith.addf %104, %106 : vector<1024x128xf32>
    %c0_70 = arith.constant 0 : index
    %c0_71 = arith.constant 0 : index
    %108 = vector.load %arg12[%c0_70, %c0_71] : memref<1024x128xf32, #tpu.memory_space<vmem>>, vector<1024x128xf32>
    tpu.vector_store %arg12[%c0_70, %c0_71], %107 {strides = array<i32>} : memref<1024x128xf32, #tpu.memory_space<vmem>>, vector<1024x128xf32>,
    return
  }
  func.func @transform_0(%arg0: i32) -> (i32, i32) {
    %c0_i32 = arith.constant 0 : i32
    %c0_i32_0 = arith.constant 0 : i32
    %c0_i32_1 = arith.constant 0 : i32
    return %c0_i32, %c0_i32_0 : i32, i32
  }
  func.func @transform_1(%arg0: i32) -> (i32, i32) {
    %c0_i32 = arith.constant 0 : i32
    %c0_i32_0 = arith.constant 0 : i32
    %c0_i32_1 = arith.constant 0 : i32
    return %c0_i32, %c0_i32_0 : i32, i32
  }
  func.func @transform_2(%arg0: i32) -> (i32, i32) {
    %c0_i32 = arith.constant 0 : i32
    %c0_i32_0 = arith.constant 0 : i32
    %c0_i32_1 = arith.constant 0 : i32
    return %c0_i32, %c0_i32_0 : i32, i32
  }
  func.func @transform_3(%arg0: i32) -> (i32, i32) {
    %c0_i32 = arith.constant 0 : i32
    %c0_i32_0 = arith.constant 0 : i32
    %c0_i32_1 = arith.constant 0 : i32
    return %c0_i32, %c0_i32_0 : i32, i32
  }
  func.func @transform_4(%arg0: i32) -> (i32, i32) {
    %c0_i32 = arith.constant 0 : i32
    %c0_i32_0 = arith.constant 0 : i32
    %c0_i32_1 = arith.constant 0 : i32
    return %c0_i32, %c0_i32_0 : i32, i32
  }
  func.func @transform_5(%arg0: i32) -> (i32, i32, i32) {
    %c0_i32 = arith.constant 0 : i32
    %c0_i32_0 = arith.constant 0 : i32
    %c0_i32_1 = arith.constant 0 : i32
    %c0_i32_2 = arith.constant 0 : i32
    return %c0_i32, %c0_i32_0, %c0_i32_1 : i32, i32, i32
  }
  func.func @transform_6(%arg0: i32) -> (i32, i32, i32) {
    %c0_i32 = arith.constant 0 : i32
    %c0_i32_0 = arith.constant 0 : i32
    %c0_i32_1 = arith.constant 0 : i32
    %c0_i32_2 = arith.constant 0 : i32
    return %c0_i32, %c0_i32_0, %c0_i32_1 : i32, i32, i32
  }
  func.func @transform_7(%arg0: i32) -> (i32, i32) {
    %c0_i32 = arith.constant 0 : i32
    %c0_i32_0 = arith.constant 0 : i32
    %c0_i32_1 = arith.constant 0 : i32
    return %c0_i32, %c0_i32_0 : i32, i32
  }
  func.func @transform_8(%arg0: i32) -> (i32, i32) {
    %c0_i32 = arith.constant 0 : i32
    %c0_i32_0 = arith.constant 0 : i32
    %c0_i32_1 = arith.constant 0 : i32
    return %c0_i32, %c0_i32_0 : i32, i32
  }
  func.func @transform_9(%arg0: i32) -> (i32, i32) {
    %c0_i32 = arith.constant 0 : i32
    %c0_i32_0 = arith.constant 0 : i32
    %c0_i32_1 = arith.constant 0 : i32
    return %c0_i32, %c0_i32_0 : i32, i32
  }
  func.func @transform_10(%arg0: i32) -> (i32, i32) {
    %c0_i32 = arith.constant 0 : i32
    %c0_i32_0 = arith.constant 0 : i32
    %c0_i32_1 = arith.constant 0 : i32
    return %c0_i32, %c0_i32_0 : i32, i32
  }
  func.func @transform_11(%arg0: i32) -> (i32, i32) {
    %c0_i32 = arith.constant 0 : i32
    %c0_i32_0 = arith.constant 0 : i32
    %c0_i32_1 = arith.constant 0 : i32
    return %c0_i32, %c0_i32_0 : i32, i32
  }
}

</mosaic_0001>

<llo_original>
// kernel: tpu_custom_call.1
$region0: #{tpu_custom_call.1}
  #allocation0 [shape = 'u32[]', space=smem, size = 0x4, offset = 0x4, fixed_abs, tag = 'smem constant byte address 0x4 - core index']
  #allocation1 [shape = 'u32[144,128]{1,0:T(1,128)}', space=vmem, size = 0x12000, scoped, tag = 'internal scratch']
  %s0 = inlined_call_operand.vmem [shape: f32[1024,32], index: 0, kind: input, shape index: {}]
  %s1 = inlined_call_operand.vmem [shape: bf16[32,64], index: 1, kind: input, shape index: {}]
  %s2 = inlined_call_operand.vmem [shape: f32[1,64], index: 2, kind: input, shape index: {}]
  %s3 = inlined_call_operand.vmem [shape: bf16[64,128], index: 3, kind: input, shape index: {}]
  %s4 = inlined_call_operand.vmem [shape: f32[1,128], index: 4, kind: input, shape index: {}]
  %s5 = inlined_call_operand.vmem [shape: bf16[6,128,128], index: 5, kind: input, shape index: {}]
  %s6 = inlined_call_operand.vmem [shape: f32[6,1,128], index: 6, kind: input, shape index: {}]
  %s7 = inlined_call_operand.vmem [shape: f32[1,128], index: 7, kind: input, shape index: {}]
  %s8 = inlined_call_operand.vmem [shape: f32[1,128], index: 8, kind: input, shape index: {}]
  %s9 = inlined_call_operand.vmem [shape: bf16[128,128], index: 9, kind: input, shape index: {}]
  %s10 = inlined_call_operand.vmem [shape: f32[1,128], index: 10, kind: input, shape index: {}]
  %s11 = inlined_call_operand.hbm [shape: f32[1024,128], index: 11, kind: output, shape index: {}]
  %s12 = sld [smem:[#allocation0]]
  $region54: #{tpu_custom_call.1} parent=0
    _
  %s14 = ssub.s32 1, %s12
  %s15 = scalar_select 0, %s14, %s12
  $region1: #{tpu_custom_call.1} parent=0
    #allocation2 [shape = 'u8[524288]{0}', space=vmem, size = 0x80000, scoped, tag = 'output window, operand 0, single buffered']
    #allocation3 [shape = 's32[1]{0}', space=sflag, size = 0x4, scoped, tag = 'scoped memory for tpu_custom_call.1']
    %16 = vsyncpa [#allocation3], 0
    // Predicated region
    $region2: #{tpu_custom_call.1} parent=1 // pred_check
      _
    $region3: #{tpu_custom_call.1} parent=1 // pred_check_branch
      %18 = sbr.rel (0) target = $region5
    $region4: #{tpu_custom_call.1} parent=1 // pred_region
      _
    $region5: #{tpu_custom_call.1} parent=1 // pred_fallthru
      _
    // Predicated region
    $region6: #{tpu_custom_call.1} parent=1 // pred_check
      _
    $region7: #{tpu_custom_call.1} parent=1 // pred_check_branch
      %20 = sbr.rel (0) target = $region9
    $region8: #{tpu_custom_call.1} parent=1 // pred_region
      _
    $region9: #{tpu_custom_call.1} parent=1 // pred_fallthru
      _
    // Predicated region
    $region10: #{tpu_custom_call.1} parent=1 // pred_check
      _
    $region11: #{tpu_custom_call.1} parent=1 // pred_check_branch
      %22 = sbr.rel (0) target = $region13
    $region12: #{tpu_custom_call.1} parent=1 // pred_region
      _
    $region13: #{tpu_custom_call.1} parent=1 // pred_fallthru
      _
    // Predicated region
    $region14: #{tpu_custom_call.1} parent=1 // pred_check
      _
    $region15: #{tpu_custom_call.1} parent=1 // pred_check_branch
      %24 = sbr.rel (0) target = $region17
    $region16: #{tpu_custom_call.1} parent=1 // pred_region
      _
    $region17: #{tpu_custom_call.1} parent=1 // pred_fallthru
      _
    // Predicated region
    $region18: #{tpu_custom_call.1} parent=1 // pred_check
      _
    $region19: #{tpu_custom_call.1} parent=1 // pred_check_branch
      %26 = sbr.rel (0) target = $region21
    $region20: #{tpu_custom_call.1} parent=1 // pred_region
      _
    $region21: #{tpu_custom_call.1} parent=1 // pred_fallthru
      _
    // Predicated region
    $region22: #{tpu_custom_call.1} parent=1 // pred_check
      _
    $region23: #{tpu_custom_call.1} parent=1 // pred_check_branch
      %28 = sbr.rel (0) target = $region25
    $region24: #{tpu_custom_call.1} parent=1 // pred_region
      _
    $region25: #{tpu_custom_call.1} parent=1 // pred_fallthru
      _
    // Predicated region
    $region26: #{tpu_custom_call.1} parent=1 // pred_check
      _
    $region27: #{tpu_custom_call.1} parent=1 // pred_check_branch
      %30 = sbr.rel (0) target = $region29
    $region28: #{tpu_custom_call.1} parent=1 // pred_region
      _
    $region29: #{tpu_custom_call.1} parent=1 // pred_fallthru
      _
    // Predicated region
    $region30: #{tpu_custom_call.1} parent=1 // pred_check
      _
    $region31: #{tpu_custom_call.1} parent=1 // pred_check_branch
      %32 = sbr.rel (0) target = $region33
    $region32: #{tpu_custom_call.1} parent=1 // pred_region
      _
    $region33: #{tpu_custom_call.1} parent=1 // pred_fallthru
      _
    // Predicated region
    $region34: #{tpu_custom_call.1} parent=1 // pred_check
      _
    $region35: #{tpu_custom_call.1} parent=1 // pred_check_branch
      %34 = sbr.rel (0) target = $region37
    $region36: #{tpu_custom_call.1} parent=1 // pred_region
      _
    $region37: #{tpu_custom_call.1} parent=1 // pred_fallthru
      _
    // Predicated region
    $region38: #{tpu_custom_call.1} parent=1 // pred_check
      _
    $region39: #{tpu_custom_call.1} parent=1 // pred_check_branch
      %36 = sbr.rel (0) target = $region41
    $region40: #{tpu_custom_call.1} parent=1 // pred_region
      _
    $region41: #{tpu_custom_call.1} parent=1 // pred_fallthru
      _
    // Predicated region
    $region42: #{tpu_custom_call.1} parent=1 // pred_check
      _
    $region43: #{tpu_custom_call.1} parent=1 // pred_check_branch
      %38 = sbr.rel (0) target = $region45
    $region44: #{tpu_custom_call.1} parent=1 // pred_region
      _
    $region45: #{tpu_custom_call.1} parent=1 // pred_fallthru
      _
    %v40 = vld [vmem:[%s0] sm:$0xff]
    %v41 = vld [vmem:[%s0 + $0x8] sm:$0xff]
    %v42 = vld [vmem:[%s0 + $0x10] sm:$0xff]
    %v43 = vld [vmem:[%s0 + $0x18] sm:$0xff]
    %v44 = vld [vmem:[%s0 + $0x20] sm:$0xff]
    %v45 = vld [vmem:[%s0 + $0x28] sm:$0xff]
    %v46 = vld [vmem:[%s0 + $0x30] sm:$0xff]
    %v47 = vld [vmem:[%s0 + $0x38] sm:$0xff]
    %v48 = vld [vmem:[%s0 + $0x40] sm:$0xff]
    %v49 = vld [vmem:[%s0 + $0x48] sm:$0xff]
    %v50 = vld [vmem:[%s0 + $0x50] sm:$0xff]
    %v51 = vld [vmem:[%s0 + $0x58] sm:$0xff]
    %v52 = vld [vmem:[%s0 + $0x60] sm:$0xff]
    %v53 = vld [vmem:[%s0 + $0x68] sm:$0xff]
    %v54 = vld [vmem:[%s0 + $0x70] sm:$0xff]
    %v55 = vld [vmem:[%s0 + $0x78] sm:$0xff]
    %v56 = vld [vmem:[%s0 + $0x80] sm:$0xff]
    %v57 = vld [vmem:[%s0 + $0x88] sm:$0xff]
    %v58 = vld [vmem:[%s0 + $0x90] sm:$0xff]
    %v59 = vld [vmem:[%s0 + $0x98] sm:$0xff]
    %v60 = vld [vmem:[%s0 + $0xa0] sm:$0xff]
    %v61 = vld [vmem:[%s0 + $0xa8] sm:$0xff]
    %v62 = vld [vmem:[%s0 + $0xb0] sm:$0xff]
    %v63 = vld [vmem:[%s0 + $0xb8] sm:$0xff]
    %v64 = vld [vmem:[%s0 + $0xc0] sm:$0xff]
    %v65 = vld [vmem:[%s0 + $0xc8] sm:$0xff]
    %v66 = vld [vmem:[%s0 + $0xd0] sm:$0xff]
    %v67 = vld [vmem:[%s0 + $0xd8] sm:$0xff]
    %v68 = vld [vmem:[%s0 + $0xe0] sm:$0xff]
    %v69 = vld [vmem:[%s0 + $0xe8] sm:$0xff]
    %v70 = vld [vmem:[%s0 + $0xf0] sm:$0xff]
    %v71 = vld [vmem:[%s0 + $0xf8] sm:$0xff]
    %v72 = vld [vmem:[%s0 + $0x100] sm:$0xff]
    %v73 = vld [vmem:[%s0 + $0x108] sm:$0xff]
    %v74 = vld [vmem:[%s0 + $0x110] sm:$0xff]
    %v75 = vld [vmem:[%s0 + $0x118] sm:$0xff]
    %v76 = vld [vmem:[%s0 + $0x120] sm:$0xff]
    %v77 = vld [vmem:[%s0 + $0x128] sm:$0xff]
    %v78 = vld [vmem:[%s0 + $0x130] sm:$0xff]
    %v79 = vld [vmem:[%s0 + $0x138] sm:$0xff]
    %v80 = vld [vmem:[%s0 + $0x140] sm:$0xff]
    %v81 = vld [vmem:[%s0 + $0x148] sm:$0xff]
    %v82 = vld [vmem:[%s0 + $0x150] sm:$0xff]
    %v83 = vld [vmem:[%s0 + $0x158] sm:$0xff]
    %v84 = vld [vmem:[%s0 + $0x160] sm:$0xff]
    %v85 = vld [vmem:[%s0 + $0x168] sm:$0xff]
    %v86 = vld [vmem:[%s0 + $0x170] sm:$0xff]
    %v87 = vld [vmem:[%s0 + $0x178] sm:$0xff]
    %v88 = vld [vmem:[%s0 + $0x180] sm:$0xff]
    %v89 = vld [vmem:[%s0 + $0x188] sm:$0xff]
    %v90 = vld [vmem:[%s0 + $0x190] sm:$0xff]
    %v91 = vld [vmem:[%s0 + $0x198] sm:$0xff]
    %v92 = vld [vmem:[%s0 + $0x1a0] sm:$0xff]
    %v93 = vld [vmem:[%s0 + $0x1a8] sm:$0xff]
    %v94 = vld [vmem:[%s0 + $0x1b0] sm:$0xff]
    %v95 = vld [vmem:[%s0 + $0x1b8] sm:$0xff]
    %v96 = vld [vmem:[%s0 + $0x1c0] sm:$0xff]
    %v97 = vld [vmem:[%s0 + $0x1c8] sm:$0xff]
    %v98 = vld [vmem:[%s0 + $0x1d0] sm:$0xff]
    %v99 = vld [vmem:[%s0 + $0x1d8] sm:$0xff]
    %v100 = vld [vmem:[%s0 + $0x1e0] sm:$0xff]
    %v101 = vld [vmem:[%s0 + $0x1e8] sm:$0xff]
    %v102 = vld [vmem:[%s0 + $0x1f0] sm:$0xff]
    %v103 = vld [vmem:[%s0 + $0x1f8] sm:$0xff]
    %v104 = vld [vmem:[%s0 + $0x200] sm:$0xff]
    %v105 = vld [vmem:[%s0 + $0x208] sm:$0xff]
    %v106 = vld [vmem:[%s0 + $0x210] sm:$0xff]
    %v107 = vld [vmem:[%s0 + $0x218] sm:$0xff]
    %v108 = vld [vmem:[%s0 + $0x220] sm:$0xff]
    %v109 = vld [vmem:[%s0 + $0x228] sm:$0xff]
    %v110 = vld [vmem:[%s0 + $0x230] sm:$0xff]
    %v111 = vld [vmem:[%s0 + $0x238] sm:$0xff]
    %v112 = vld [vmem:[%s0 + $0x240] sm:$0xff]
    %v113 = vld [vmem:[%s0 + $0x248] sm:$0xff]
    %v114 = vld [vmem:[%s0 + $0x250] sm:$0xff]
    %v115 = vld [vmem:[%s0 + $0x258] sm:$0xff]
    %v116 = vld [vmem:[%s0 + $0x260] sm:$0xff]
    %v117 = vld [vmem:[%s0 + $0x268] sm:$0xff]
    %v118 = vld [vmem:[%s0 + $0x270] sm:$0xff]
    %v119 = vld [vmem:[%s0 + $0x278] sm:$0xff]
    %v120 = vld [vmem:[%s0 + $0x280] sm:$0xff]
    %v121 = vld [vmem:[%s0 + $0x288] sm:$0xff]
    %v122 = vld [vmem:[%s0 + $0x290] sm:$0xff]
    %v123 = vld [vmem:[%s0 + $0x298] sm:$0xff]
    %v124 = vld [vmem:[%s0 + $0x2a0] sm:$0xff]
    %v125 = vld [vmem:[%s0 + $0x2a8] sm:$0xff]
    %v126 = vld [vmem:[%s0 + $0x2b0] sm:$0xff]
    %v127 = vld [vmem:[%s0 + $0x2b8] sm:$0xff]
    %v128 = vld [vmem:[%s0 + $0x2c0] sm:$0xff]
    %v129 = vld [vmem:[%s0 + $0x2c8] sm:$0xff]
    %v130 = vld [vmem:[%s0 + $0x2d0] sm:$0xff]
    %v131 = vld [vmem:[%s0 + $0x2d8] sm:$0xff]
    %v132 = vld [vmem:[%s0 + $0x2e0] sm:$0xff]
    %v133 = vld [vmem:[%s0 + $0x2e8] sm:$0xff]
    %v134 = vld [vmem:[%s0 + $0x2f0] sm:$0xff]
    %v135 = vld [vmem:[%s0 + $0x2f8] sm:$0xff]
    %v136 = vld [vmem:[%s0 + $0x300] sm:$0xff]
    %v137 = vld [vmem:[%s0 + $0x308] sm:$0xff]
    %v138 = vld [vmem:[%s0 + $0x310] sm:$0xff]
    %v139 = vld [vmem:[%s0 + $0x318] sm:$0xff]
    %v140 = vld [vmem:[%s0 + $0x320] sm:$0xff]
    %v141 = vld [vmem:[%s0 + $0x328] sm:$0xff]
    %v142 = vld [vmem:[%s0 + $0x330] sm:$0xff]
    %v143 = vld [vmem:[%s0 + $0x338] sm:$0xff]
    %v144 = vld [vmem:[%s0 + $0x340] sm:$0xff]
    %v145 = vld [vmem:[%s0 + $0x348] sm:$0xff]
    %v146 = vld [vmem:[%s0 + $0x350] sm:$0xff]
    %v147 = vld [vmem:[%s0 + $0x358] sm:$0xff]
    %v148 = vld [vmem:[%s0 + $0x360] sm:$0xff]
    %v149 = vld [vmem:[%s0 + $0x368] sm:$0xff]
    %v150 = vld [vmem:[%s0 + $0x370] sm:$0xff]
    %v151 = vld [vmem:[%s0 + $0x378] sm:$0xff]
    %v152 = vld [vmem:[%s0 + $0x380] sm:$0xff]
    %v153 = vld [vmem:[%s0 + $0x388] sm:$0xff]
    %v154 = vld [vmem:[%s0 + $0x390] sm:$0xff]
    %v155 = vld [vmem:[%s0 + $0x398] sm:$0xff]
    %v156 = vld [vmem:[%s0 + $0x3a0] sm:$0xff]
    %v157 = vld [vmem:[%s0 + $0x3a8] sm:$0xff]
    %v158 = vld [vmem:[%s0 + $0x3b0] sm:$0xff]
    %v159 = vld [vmem:[%s0 + $0x3b8] sm:$0xff]
    %v160 = vld [vmem:[%s0 + $0x3c0] sm:$0xff]
    %v161 = vld [vmem:[%s0 + $0x3c8] sm:$0xff]
    %v162 = vld [vmem:[%s0 + $0x3d0] sm:$0xff]
    %v163 = vld [vmem:[%s0 + $0x3d8] sm:$0xff]
    %v164 = vld [vmem:[%s0 + $0x3e0] sm:$0xff]
    %v165 = vld [vmem:[%s0 + $0x3e8] sm:$0xff]
    %v166 = vld [vmem:[%s0 + $0x3f0] sm:$0xff]
    %v167 = vld [vmem:[%s0 + $0x3f8] sm:$0xff]
    %v168 = vpack.c.bf16 %v41, %v40
    %v169 = vpack.c.bf16 %v43, %v42
    %v170 = vpack.c.bf16 %v45, %v44
    %v171 = vpack.c.bf16 %v47, %v46
    %v172 = vpack.c.bf16 %v49, %v48
    %v173 = vpack.c.bf16 %v51, %v50
    %v174 = vpack.c.bf16 %v53, %v52
    %v175 = vpack.c.bf16 %v55, %v54
    %v176 = vpack.c.bf16 %v57, %v56
    %v177 = vpack.c.bf16 %v59, %v58
    %v178 = vpack.c.bf16 %v61, %v60
    %v179 = vpack.c.bf16 %v63, %v62
    %v180 = vpack.c.bf16 %v65, %v64
    %v181 = vpack.c.bf16 %v67, %v66
    %v182 = vpack.c.bf16 %v69, %v68
    %v183 = vpack.c.bf16 %v71, %v70
    %v184 = vpack.c.bf16 %v73, %v72
    %v185 = vpack.c.bf16 %v75, %v74
    %v186 = vpack.c.bf16 %v77, %v76
    %v187 = vpack.c.bf16 %v79, %v78
    %v188 = vpack.c.bf16 %v81, %v80
    %v189 = vpack.c.bf16 %v83, %v82
    %v190 = vpack.c.bf16 %v85, %v84
    %v191 = vpack.c.bf16 %v87, %v86
    %v192 = vpack.c.bf16 %v89, %v88
    %v193 = vpack.c.bf16 %v91, %v90
    %v194 = vpack.c.bf16 %v93, %v92
    %v195 = vpack.c.bf16 %v95, %v94
    %v196 = vpack.c.bf16 %v97, %v96
    %v197 = vpack.c.bf16 %v99, %v98
    %v198 = vpack.c.bf16 %v101, %v100
    %v199 = vpack.c.bf16 %v103, %v102
    %v200 = vpack.c.bf16 %v105, %v104
    %v201 = vpack.c.bf16 %v107, %v106
    %v202 = vpack.c.bf16 %v109, %v108
    %v203 = vpack.c.bf16 %v111, %v110
    %v204 = vpack.c.bf16 %v113, %v112
    %v205 = vpack.c.bf16 %v115, %v114
    %v206 = vpack.c.bf16 %v117, %v116
    %v207 = vpack.c.bf16 %v119, %v118
    %v208 = vpack.c.bf16 %v121, %v120
    %v209 = vpack.c.bf16 %v123, %v122
    %v210 = vpack.c.bf16 %v125, %v124
    %v211 = vpack.c.bf16 %v127, %v126
    %v212 = vpack.c.bf16 %v129, %v128
    %v213 = vpack.c.bf16 %v131, %v130
    %v214 = vpack.c.bf16 %v133, %v132
    %v215 = vpack.c.bf16 %v135, %v134
    %v216 = vpack.c.bf16 %v137, %v136
    %v217 = vpack.c.bf16 %v139, %v138
    %v218 = vpack.c.bf16 %v141, %v140
    %v219 = vpack.c.bf16 %v143, %v142
    %v220 = vpack.c.bf16 %v145, %v144
    %v221 = vpack.c.bf16 %v147, %v146
    %v222 = vpack.c.bf16 %v149, %v148
    %v223 = vpack.c.bf16 %v151, %v150
    %v224 = vpack.c.bf16 %v153, %v152
    %v225 = vpack.c.bf16 %v155, %v154
    %v226 = vpack.c.bf16 %v157, %v156
    %v227 = vpack.c.bf16 %v159, %v158
    %v228 = vpack.c.bf16 %v161, %v160
    %v229 = vpack.c.bf16 %v163, %v162
    %v230 = vpack.c.bf16 %v165, %v164
    %v231 = vpack.c.bf16 %v167, %v166
    %v232 = vld [vmem:[%s1] sm:$0xf]
    %v233 = vld [vmem:[%s1 + $0x4] sm:$0xf]
    %v234 = vld [vmem:[%s1 + $0x8] sm:$0xf]
    %v235 = vld [vmem:[%s1 + $0xc] sm:$0xf]
    %v236 = vld [vmem:[%s2] sm:$0x1]
    %v238 = vlaneseq
    %v239 = vshrl.u32 %v238, 7
    %v240 = vsub.s32 0, %v239
    %v241 = vrot.slane %v236, %v240
    %v247 = vunpack.c.l.b16 %v232
    %v248 = vunpack.c.l.b16 %v233
    %v249 = vunpack.c.l.b16 %v234
    %v250 = vunpack.c.l.b16 %v235
    %v251 = vpack.c.b16 %v248, %v247
    %v252 = vpack.c.b16 %v250, %v249
    %vm255 = vcmask 261120
    %v257 = vsel %vm255, %v168, 0
    %v260 = vsel %vm255, %v169, 0
    %v263 = vsel %vm255, %v170, 0
    %v266 = vsel %vm255, %v171, 0
    %v269 = vsel %vm255, %v172, 0
    %v272 = vsel %vm255, %v173, 0
    %v275 = vsel %vm255, %v174, 0
    %v278 = vsel %vm255, %v175, 0
    %v281 = vsel %vm255, %v176, 0
    %v284 = vsel %vm255, %v177, 0
    %v287 = vsel %vm255, %v178, 0
    %v290 = vsel %vm255, %v179, 0
    %v293 = vsel %vm255, %v180, 0
    %v296 = vsel %vm255, %v181, 0
    %v299 = vsel %vm255, %v182, 0
    %v302 = vsel %vm255, %v183, 0
    %v305 = vsel %vm255, %v184, 0
    %v308 = vsel %vm255, %v185, 0
    %v311 = vsel %vm255, %v186, 0
    %v314 = vsel %vm255, %v187, 0
    %v317 = vsel %vm255, %v188, 0
    %v320 = vsel %vm255, %v189, 0
    %v323 = vsel %vm255, %v190, 0
    %v326 = vsel %vm255, %v191, 0
    %v329 = vsel %vm255, %v192, 0
    %v332 = vsel %vm255, %v193, 0
    %v335 = vsel %vm255, %v194, 0
    %v338 = vsel %vm255, %v195, 0
    %v341 = vsel %vm255, %v196, 0
    %v344 = vsel %vm255, %v197, 0
    %v347 = vsel %vm255, %v198, 0
    %v350 = vsel %vm255, %v199, 0
    %v353 = vsel %vm255, %v200, 0
    %v356 = vsel %vm255, %v201, 0
    %v359 = vsel %vm255, %v202, 0
    %v362 = vsel %vm255, %v203, 0
    %v365 = vsel %vm255, %v204, 0
    %v368 = vsel %vm255, %v205, 0
    %v371 = vsel %vm255, %v206, 0
    %v374 = vsel %vm255, %v207, 0
    %v377 = vsel %vm255, %v208, 0
    %v380 = vsel %vm255, %v209, 0
    %v383 = vsel %vm255, %v210, 0
    %v386 = vsel %vm255, %v211, 0
    %v389 = vsel %vm255, %v212, 0
    %v392 = vsel %vm255, %v213, 0
    %v395 = vsel %vm255, %v214, 0
    %v398 = vsel %vm255, %v215, 0
    %v401 = vsel %vm255, %v216, 0
    %v404 = vsel %vm255, %v217, 0
    %v407 = vsel %vm255, %v218, 0
    %v410 = vsel %vm255, %v219, 0
    %v413 = vsel %vm255, %v220, 0
    %v416 = vsel %vm255, %v221, 0
    %v419 = vsel %vm255, %v222, 0
    %v422 = vsel %vm255, %v223, 0
    %v425 = vsel %vm255, %v224, 0
    %v428 = vsel %vm255, %v225, 0
    %v431 = vsel %vm255, %v226, 0
    %v434 = vsel %vm255, %v227, 0
    %v437 = vsel %vm255, %v228, 0
    %v440 = vsel %vm255, %v229, 0
    %v443 = vsel %vm255, %v230, 0
    %v446 = vsel %vm255, %v231, 0
    %448 = vmatprep.subr.bf16.mxu0 0
    %449 = vmatpush1.bf16.msra.mxu0 %v251
    %450 = vmatprep.subr.bf16.mxu0 0
    %451 = vmatpush1.bf16.msra.mxu0 %v252
    %452 = vmatprep.subr.bf16.mxu0 0
    %453 = vmatpush1.bf16.msra.mxu0 0
    %454 = vmatprep.subr.bf16.mxu0 0
    %455 = vmatpush1.bf16.msra.mxu0 0
    %456 = vmatprep.subr.bf16.mxu0 0
    %457 = vmatpush1.bf16.msra.mxu0 0
    %458 = vmatprep.subr.bf16.mxu0 0
    %459 = vmatpush1.bf16.msra.mxu0 0
    %460 = vmatprep.subr.bf16.mxu0 0
    %461 = vmatpush1.bf16.msra.mxu0 0
    %462 = vmatprep.subr.bf16.mxu0 0
    %463 = vmatpush1.bf16.msra.mxu0 0
    %464 = vmatprep.subr.bf16.mxu0 0
    %465 = vmatpush1.bf16.msra.mxu0 0
    %466 = vmatprep.subr.bf16.mxu0 0
    %467 = vmatpush1.bf16.msra.mxu0 0
    %468 = vmatprep.subr.bf16.mxu0 0
    %469 = vmatpush1.bf16.msra.mxu0 0
    %470 = vmatprep.subr.bf16.mxu0 0
    %471 = vmatpush1.bf16.msra.mxu0 0
    %472 = vmatprep.subr.bf16.mxu0 0
    %473 = vmatpush1.bf16.msra.mxu0 0
    %474 = vmatprep.subr.bf16.mxu0 0
    %475 = vmatpush1.bf16.msra.mxu0 0
    %476 = vmatprep.subr.bf16.mxu0 0
    %477 = vmatpush1.bf16.msra.mxu0 0
    %478 = vmatprep.subr.bf16.mxu0 0
    %479 = vmatpush1.bf16.msra.mxu0 0
    %480 = vmatprep.mubr.bf16.mxu0 0
    %481 = vmatmul.mubr.bf16.gmra.mrb[0].mxu0 %v257
    %v482 = vpop.f32.mrb[0].mxu0
    %v483 = vadd.f32 %v241, %v482
    %v484 = vpop.f32.mrb[0].mxu0
    %v485 = vpop.f32.mrb[0].mxu0
    %v486 = vadd.f32 %v241, %v485
    %v487 = vpop.f32.mrb[0].mxu0
    %488 = vmatprep.mubr.bf16.mxu0 0
    %489 = vmatmul.mubr.bf16.gmra.mrb[0].mxu0 %v260
    %v490 = vpop.f32.mrb[0].mxu0
    %v491 = vadd.f32 %v241, %v490
    %v492 = vpop.f32.mrb[0].mxu0
    %v493 = vpop.f32.mrb[0].mxu0
    %v494 = vadd.f32 %v241, %v493
    %v495 = vpop.f32.mrb[0].mxu0
    %496 = vmatprep.mubr.bf16.mxu0 0
    %497 = vmatmul.mubr.bf16.gmra.mrb[0].mxu0 %v263
    %v498 = vpop.f32.mrb[0].mxu0
    %v499 = vadd.f32 %v241, %v498
    %v500 = vpop.f32.mrb[0].mxu0
    %v501 = vpop.f32.mrb[0].mxu0
    %v502 = vadd.f32 %v241, %v501
    %v503 = vpop.f32.mrb[0].mxu0
    %504 = vmatprep.mubr.bf16.mxu0 0
    %505 = vmatmul.mubr.bf16.gmra.mrb[0].mxu0 %v266
    %v506 = vpop.f32.mrb[0].mxu0
    %v507 = vadd.f32 %v241, %v506
    %v508 = vpop.f32.mrb[0].mxu0
    %v509 = vpop.f32.mrb[0].mxu0
    %v510 = vadd.f32 %v241, %v509
    %v511 = vpop.f32.mrb[0].mxu0
    %512 = vmatprep.mubr.bf16.mxu0 0
    %513 = vmatmul.mubr.bf16.gmra.mrb[0].mxu0 %v269
    %v514 = vpop.f32.mrb[0].mxu0
    %v515 = vadd.f32 %v241, %v514
    %v516 = vpop.f32.mrb[0].mxu0
    %v517 = vpop.f32.mrb[0].mxu0
    %v518 = vadd.f32 %v241, %v517
    %v519 = vpop.f32.mrb[0].mxu0
    %520 = vmatprep.mubr.bf16.mxu0 0
    %521 = vmatmul.mubr.bf16.gmra.mrb[0].mxu0 %v272
    %v522 = vpop.f32.mrb[0].mxu0
    %v523 = vadd.f32 %v241, %v522
    %v524 = vpop.f32.mrb[0].mxu0
    %v525 = vpop.f32.mrb[0].mxu0
    %v526 = vadd.f32 %v241, %v525
    %v527 = vpop.f32.mrb[0].mxu0
    %528 = vmatprep.mubr.bf16.mxu0 0
    %529 = vmatmul.mubr.bf16.gmra.mrb[0].mxu0 %v275
    %v530 = vpop.f32.mrb[0].mxu0
    %v531 = vadd.f32 %v241, %v530
    %v532 = vpop.f32.mrb[0].mxu0
    %v533 = vpop.f32.mrb[0].mxu0
    %v534 = vadd.f32 %v241, %v533
    %v535 = vpop.f32.mrb[0].mxu0
    %536 = vmatprep.mubr.bf16.mxu0 0
    %537 = vmatmul.mubr.bf16.gmra.mrb[0].mxu0 %v278
    %v538 = vpop.f32.mrb[0].mxu0
    %v539 = vadd.f32 %v241, %v538
    %v540 = vpop.f32.mrb[0].mxu0
    %v541 = vpop.f32.mrb[0].mxu0
    %v542 = vadd.f32 %v241, %v541
    %v543 = vpop.f32.mrb[0].mxu0
    %544 = vmatprep.mubr.bf16.mxu0 0
    %545 = vmatmul.mubr.bf16.gmra.mrb[0].mxu0 %v281
    %v546 = vpop.f32.mrb[0].mxu0
    %v547 = vadd.f32 %v241, %v546
    %v548 = vpop.f32.mrb[0].mxu0
    %v549 = vpop.f32.mrb[0].mxu0
    %v550 = vadd.f32 %v241, %v549
    %v551 = vpop.f32.mrb[0].mxu0
    %552 = vmatprep.mubr.bf16.mxu0 0
    %553 = vmatmul.mubr.bf16.gmra.mrb[0].mxu0 %v284
    %v554 = vpop.f32.mrb[0].mxu0
    %v555 = vadd.f32 %v241, %v554
    %v556 = vpop.f32.mrb[0].mxu0
    %v557 = vpop.f32.mrb[0].mxu0
    %v558 = vadd.f32 %v241, %v557
    %v559 = vpop.f32.mrb[0].mxu0
    %560 = vmatprep.mubr.bf16.mxu0 0
    %561 = vmatmul.mubr.bf16.gmra.mrb[0].mxu0 %v287
    %v562 = vpop.f32.mrb[0].mxu0
    %v563 = vadd.f32 %v241, %v562
    %v564 = vpop.f32.mrb[0].mxu0
    %v565 = vpop.f32.mrb[0].mxu0
    %v566 = vadd.f32 %v241, %v565
    %v567 = vpop.f32.mrb[0].mxu0
    %568 = vmatprep.mubr.bf16.mxu0 0
    %569 = vmatmul.mubr.bf16.gmra.mrb[0].mxu0 %v290
    %v570 = vpop.f32.mrb[0].mxu0
    %v571 = vadd.f32 %v241, %v570
    %v572 = vpop.f32.mrb[0].mxu0
    %v573 = vpop.f32.mrb[0].mxu0
    %v574 = vadd.f32 %v241, %v573
    %v575 = vpop.f32.mrb[0].mxu0
    %576 = vmatprep.mubr.bf16.mxu0 0
    %577 = vmatmul.mubr.bf16.gmra.mrb[0].mxu0 %v293
    %v578 = vpop.f32.mrb[0].mxu0
    %v579 = vadd.f32 %v241, %v578
    %v580 = vpop.f32.mrb[0].mxu0
    %v581 = vpop.f32.mrb[0].mxu0
    %v582 = vadd.f32 %v241, %v581
    %v583 = vpop.f32.mrb[0].mxu0
    %584 = vmatprep.mubr.bf16.mxu0 0
    %585 = vmatmul.mubr.bf16.gmra.mrb[0].mxu0 %v296
    %v586 = vpop.f32.mrb[0].mxu0
    %v587 = vadd.f32 %v241, %v586
    %v588 = vpop.f32.mrb[0].mxu0
    %v589 = vpop.f32.mrb[0].mxu0
    %v590 = vadd.f32 %v241, %v589
    %v591 = vpop.f32.mrb[0].mxu0
    %592 = vmatprep.mubr.bf16.mxu0 0
    %593 = vmatmul.mubr.bf16.gmra.mrb[0].mxu0 %v299
    %v594 = vpop.f32.mrb[0].mxu0
    %v595 = vadd.f32 %v241, %v594
    %v596 = vpop.f32.mrb[0].mxu0
    %v597 = vpop.f32.mrb[0].mxu0
    %v598 = vadd.f32 %v241, %v597
    %v599 = vpop.f32.mrb[0].mxu0
    %600 = vmatprep.mubr.bf16.mxu0 0
    %601 = vmatmul.mubr.bf16.gmra.mrb[0].mxu0 %v302
    %v602 = vpop.f32.mrb[0].mxu0
    %v603 = vadd.f32 %v241, %v602
    %v604 = vpop.f32.mrb[0].mxu0
    %v605 = vpop.f32.mrb[0].mxu0
    %v606 = vadd.f32 %v241, %v605
    %v607 = vpop.f32.mrb[0].mxu0
    %608 = vmatprep.mubr.bf16.mxu0 0
    %609 = vmatmul.mubr.bf16.gmra.mrb[0].mxu0 %v305
    %v610 = vpop.f32.mrb[0].mxu0
    %v611 = vadd.f32 %v241, %v610
    %v612 = vpop.f32.mrb[0].mxu0
    %v613 = vpop.f32.mrb[0].mxu0
    %v614 = vadd.f32 %v241, %v613
    %v615 = vpop.f32.mrb[0].mxu0
    %616 = vmatprep.mubr.bf16.mxu0 0
    %617 = vmatmul.mubr.bf16.gmra.mrb[0].mxu0 %v308
    %v618 = vpop.f32.mrb[0].mxu0
    %v619 = vadd.f32 %v241, %v618
    %v620 = vpop.f32.mrb[0].mxu0
    %v621 = vpop.f32.mrb[0].mxu0
    %v622 = vadd.f32 %v241, %v621
    %v623 = vpop.f32.mrb[0].mxu0
    %624 = vmatprep.mubr.bf16.mxu0 0
    %625 = vmatmul.mubr.bf16.gmra.mrb[0].mxu0 %v311
    %v626 = vpop.f32.mrb[0].mxu0
    %v627 = vadd.f32 %v241, %v626
    %v628 = vpop.f32.mrb[0].mxu0
    %v629 = vpop.f32.mrb[0].mxu0
    %v630 = vadd.f32 %v241, %v629
    %v631 = vpop.f32.mrb[0].mxu0
    %632 = vmatprep.mubr.bf16.mxu0 0
    %633 = vmatmul.mubr.bf16.gmra.mrb[0].mxu0 %v314
    %v634 = vpop.f32.mrb[0].mxu0
    %v635 = vadd.f32 %v241, %v634
    %v636 = vpop.f32.mrb[0].mxu0
    %v637 = vpop.f32.mrb[0].mxu0
    %v638 = vadd.f32 %v241, %v637
    %v639 = vpop.f32.mrb[0].mxu0
    %640 = vmatprep.mubr.bf16.mxu0 0
    %641 = vmatmul.mubr.bf16.gmra.mrb[0].mxu0 %v317
    %v642 = vpop.f32.mrb[0].mxu0
    %v643 = vadd.f32 %v241, %v642
    %v644 = vpop.f32.mrb[0].mxu0
    %v645 = vpop.f32.mrb[0].mxu0
    %v646 = vadd.f32 %v241, %v645
    %v647 = vpop.f32.mrb[0].mxu0
    %648 = vmatprep.mubr.bf16.mxu0 0
    %649 = vmatmul.mubr.bf16.gmra.mrb[0].mxu0 %v320
    %v650 = vpop.f32.mrb[0].mxu0
    %v651 = vadd.f32 %v241, %v650
    %v652 = vpop.f32.mrb[0].mxu0
    %v653 = vpop.f32.mrb[0].mxu0
    %v654 = vadd.f32 %v241, %v653
    %v655 = vpop.f32.mrb[0].mxu0
    %656 = vmatprep.mubr.bf16.mxu0 0
    %657 = vmatmul.mubr.bf16.gmra.mrb[0].mxu0 %v323
    %v658 = vpop.f32.mrb[0].mxu0
    %v659 = vadd.f32 %v241, %v658
    %v660 = vpop.f32.mrb[0].mxu0
    %v661 = vpop.f32.mrb[0].mxu0
    %v662 = vadd.f32 %v241, %v661
    %v663 = vpop.f32.mrb[0].mxu0
    %664 = vmatprep.mubr.bf16.mxu0 0
    %665 = vmatmul.mubr.bf16.gmra.mrb[0].mxu0 %v326
    %v666 = vpop.f32.mrb[0].mxu0
    %v667 = vadd.f32 %v241, %v666
    %v668 = vpop.f32.mrb[0].mxu0
    %v669 = vpop.f32.mrb[0].mxu0
    %v670 = vadd.f32 %v241, %v669
    %v671 = vpop.f32.mrb[0].mxu0
    %672 = vmatprep.mubr.bf16.mxu0 0
    %673 = vmatmul.mubr.bf16.gmra.mrb[0].mxu0 %v329
    %v674 = vpop.f32.mrb[0].mxu0
    %v675 = vadd.f32 %v241, %v674
    %v676 = vpop.f32.mrb[0].mxu0
    %v677 = vpop.f32.mrb[0].mxu0
    %v678 = vadd.f32 %v241, %v677
    %v679 = vpop.f32.mrb[0].mxu0
    %680 = vmatprep.mubr.bf16.mxu0 0
    %681 = vmatmul.mubr.bf16.gmra.mrb[0].mxu0 %v332
    %v682 = vpop.f32.mrb[0].mxu0
    %v683 = vadd.f32 %v241, %v682
    %v684 = vpop.f32.mrb[0].mxu0
    %v685 = vpop.f32.mrb[0].mxu0
    %v686 = vadd.f32 %v241, %v685
    %v687 = vpop.f32.mrb[0].mxu0
    %688 = vmatprep.mubr.bf16.mxu0 0
    %689 = vmatmul.mubr.bf16.gmra.mrb[0].mxu0 %v335
    %v690 = vpop.f32.mrb[0].mxu0
    %v691 = vadd.f32 %v241, %v690
    %v692 = vpop.f32.mrb[0].mxu0
    %v693 = vpop.f32.mrb[0].mxu0
    %v694 = vadd.f32 %v241, %v693
    %v695 = vpop.f32.mrb[0].mxu0
    %696 = vmatprep.mubr.bf16.mxu0 0
    %697 = vmatmul.mubr.bf16.gmra.mrb[0].mxu0 %v338
    %v698 = vpop.f32.mrb[0].mxu0
    %v699 = vadd.f32 %v241, %v698
    %v700 = vpop.f32.mrb[0].mxu0
    %v701 = vpop.f32.mrb[0].mxu0
    %v702 = vadd.f32 %v241, %v701
    %v703 = vpop.f32.mrb[0].mxu0
    %704 = vmatprep.mubr.bf16.mxu0 0
    %705 = vmatmul.mubr.bf16.gmra.mrb[0].mxu0 %v341
    %v706 = vpop.f32.mrb[0].mxu0
    %v707 = vadd.f32 %v241, %v706
    %v708 = vpop.f32.mrb[0].mxu0
    %v709 = vpop.f32.mrb[0].mxu0
    %v710 = vadd.f32 %v241, %v709
    %v711 = vpop.f32.mrb[0].mxu0
    %712 = vmatprep.mubr.bf16.mxu0 0
    %713 = vmatmul.mubr.bf16.gmra.mrb[0].mxu0 %v344
    %v714 = vpop.f32.mrb[0].mxu0
    %v715 = vadd.f32 %v241, %v714
    %v716 = vpop.f32.mrb[0].mxu0
    %v717 = vpop.f32.mrb[0].mxu0
    %v718 = vadd.f32 %v241, %v717
    %v719 = vpop.f32.mrb[0].mxu0
    %720 = vmatprep.mubr.bf16.mxu0 0
    %721 = vmatmul.mubr.bf16.gmra.mrb[0].mxu0 %v347
    %v722 = vpop.f32.mrb[0].mxu0
    %v723 = vadd.f32 %v241, %v722
    %v724 = vpop.f32.mrb[0].mxu0
    %v725 = vpop.f32.mrb[0].mxu0
    %v726 = vadd.f32 %v241, %v725
    %v727 = vpop.f32.mrb[0].mxu0
    %728 = vmatprep.mubr.bf16.mxu0 0
    %729 = vmatmul.mubr.bf16.gmra.mrb[0].mxu0 %v350
    %v730 = vpop.f32.mrb[0].mxu0
    %v731 = vadd.f32 %v241, %v730
    %v732 = vpop.f32.mrb[0].mxu0
    %v733 = vpop.f32.mrb[0].mxu0
    %v734 = vadd.f32 %v241, %v733
    %v735 = vpop.f32.mrb[0].mxu0
    %736 = vmatprep.mubr.bf16.mxu0 0
    %737 = vmatmul.mubr.bf16.gmra.mrb[0].mxu0 %v353
    %v738 = vpop.f32.mrb[0].mxu0
    %v739 = vadd.f32 %v241, %v738
    %v740 = vpop.f32.mrb[0].mxu0
    %v741 = vpop.f32.mrb[0].mxu0
    %v742 = vadd.f32 %v241, %v741
    %v743 = vpop.f32.mrb[0].mxu0
    %744 = vmatprep.mubr.bf16.mxu0 0
    %745 = vmatmul.mubr.bf16.gmra.mrb[0].mxu0 %v356
    %v746 = vpop.f32.mrb[0].mxu0
    %v747 = vadd.f32 %v241, %v746
    %v748 = vpop.f32.mrb[0].mxu0
    %v749 = vpop.f32.mrb[0].mxu0
    %v750 = vadd.f32 %v241, %v749
    %v751 = vpop.f32.mrb[0].mxu0
    %752 = vmatprep.mubr.bf16.mxu0 0
    %753 = vmatmul.mubr.bf16.gmra.mrb[0].mxu0 %v359
    %v754 = vpop.f32.mrb[0].mxu0
    %v755 = vadd.f32 %v241, %v754
    %v756 = vpop.f32.mrb[0].mxu0
    %v757 = vpop.f32.mrb[0].mxu0
    %v758 = vadd.f32 %v241, %v757
    %v759 = vpop.f32.mrb[0].mxu0
    %760 = vmatprep.mubr.bf16.mxu0 0
    %761 = vmatmul.mubr.bf16.gmra.mrb[0].mxu0 %v362
    %v762 = vpop.f32.mrb[0].mxu0
    %v763 = vadd.f32 %v241, %v762
    %v764 = vpop.f32.mrb[0].mxu0
    %v765 = vpop.f32.mrb[0].mxu0
    %v766 = vadd.f32 %v241, %v765
    %v767 = vpop.f32.mrb[0].mxu0
    %768 = vmatprep.mubr.bf16.mxu0 0
    %769 = vmatmul.mubr.bf16.gmra.mrb[0].mxu0 %v365
    %v770 = vpop.f32.mrb[0].mxu0
    %v771 = vadd.f32 %v241, %v770
    %v772 = vpop.f32.mrb[0].mxu0
    %v773 = vpop.f32.mrb[0].mxu0
    %v774 = vadd.f32 %v241, %v773
    %v775 = vpop.f32.mrb[0].mxu0
    %776 = vmatprep.mubr.bf16.mxu0 0
    %777 = vmatmul.mubr.bf16.gmra.mrb[0].mxu0 %v368
    %v778 = vpop.f32.mrb[0].mxu0
    %v779 = vadd.f32 %v241, %v778
    %v780 = vpop.f32.mrb[0].mxu0
    %v781 = vpop.f32.mrb[0].mxu0
    %v782 = vadd.f32 %v241, %v781
    %v783 = vpop.f32.mrb[0].mxu0
    %784 = vmatprep.mubr.bf16.mxu0 0
    %785 = vmatmul.mubr.bf16.gmra.mrb[0].mxu0 %v371
    %v786 = vpop.f32.mrb[0].mxu0
    %v787 = vadd.f32 %v241, %v786
    %v788 = vpop.f32.mrb[0].mxu0
    %v789 = vpop.f32.mrb[0].mxu0
    %v790 = vadd.f32 %v241, %v789
    %v791 = vpop.f32.mrb[0].mxu0
    %792 = vmatprep.mubr.bf16.mxu0 0
    %793 = vmatmul.mubr.bf16.gmra.mrb[0].mxu0 %v374
    %v794 = vpop.f32.mrb[0].mxu0
    %v795 = vadd.f32 %v241, %v794
    %v796 = vpop.f32.mrb[0].mxu0
    %v797 = vpop.f32.mrb[0].mxu0
    %v798 = vadd.f32 %v241, %v797
    %v799 = vpop.f32.mrb[0].mxu0
    %800 = vmatprep.mubr.bf16.mxu0 0
    %801 = vmatmul.mubr.bf16.gmra.mrb[0].mxu0 %v377
    %v802 = vpop.f32.mrb[0].mxu0
    %v803 = vadd.f32 %v241, %v802
    %v804 = vpop.f32.mrb[0].mxu0
    %v805 = vpop.f32.mrb[0].mxu0
    %v806 = vadd.f32 %v241, %v805
    %v807 = vpop.f32.mrb[0].mxu0
    %808 = vmatprep.mubr.bf16.mxu0 0
    %809 = vmatmul.mubr.bf16.gmra.mrb[0].mxu0 %v380
    %v810 = vpop.f32.mrb[0].mxu0
    %v811 = vadd.f32 %v241, %v810
    %v812 = vpop.f32.mrb[0].mxu0
    %v813 = vpop.f32.mrb[0].mxu0
    %v814 = vadd.f32 %v241, %v813
    %v815 = vpop.f32.mrb[0].mxu0
    %816 = vmatprep.mubr.bf16.mxu0 0
    %817 = vmatmul.mubr.bf16.gmra.mrb[0].mxu0 %v383
    %v818 = vpop.f32.mrb[0].mxu0
    %v819 = vadd.f32 %v241, %v818
    %v820 = vpop.f32.mrb[0].mxu0
    %v821 = vpop.f32.mrb[0].mxu0
    %v822 = vadd.f32 %v241, %v821
    %v823 = vpop.f32.mrb[0].mxu0
    %824 = vmatprep.mubr.bf16.mxu0 0
    %825 = vmatmul.mubr.bf16.gmra.mrb[0].mxu0 %v386
    %v826 = vpop.f32.mrb[0].mxu0
    %v827 = vadd.f32 %v241, %v826
    %v828 = vpop.f32.mrb[0].mxu0
    %v829 = vpop.f32.mrb[0].mxu0
    %v830 = vadd.f32 %v241, %v829
    %v831 = vpop.f32.mrb[0].mxu0
    %832 = vmatprep.mubr.bf16.mxu0 0
    %833 = vmatmul.mubr.bf16.gmra.mrb[0].mxu0 %v389
    %v834 = vpop.f32.mrb[0].mxu0
    %v835 = vadd.f32 %v241, %v834
    %v836 = vpop.f32.mrb[0].mxu0
    %v837 = vpop.f32.mrb[0].mxu0
    %v838 = vadd.f32 %v241, %v837
    %v839 = vpop.f32.mrb[0].mxu0
    %840 = vmatprep.mubr.bf16.mxu0 0
    %841 = vmatmul.mubr.bf16.gmra.mrb[0].mxu0 %v392
    %v842 = vpop.f32.mrb[0].mxu0
    %v843 = vadd.f32 %v241, %v842
    %v844 = vpop.f32.mrb[0].mxu0
    %v845 = vpop.f32.mrb[0].mxu0
    %v846 = vadd.f32 %v241, %v845
    %v847 = vpop.f32.mrb[0].mxu0
    %848 = vmatprep.mubr.bf16.mxu0 0
    %849 = vmatmul.mubr.bf16.gmra.mrb[0].mxu0 %v395
    %v850 = vpop.f32.mrb[0].mxu0
    %v851 = vadd.f32 %v241, %v850
    %v852 = vpop.f32.mrb[0].mxu0
    %v853 = vpop.f32.mrb[0].mxu0
    %v854 = vadd.f32 %v241, %v853
    %v855 = vpop.f32.mrb[0].mxu0
    %856 = vmatprep.mubr.bf16.mxu0 0
    %857 = vmatmul.mubr.bf16.gmra.mrb[0].mxu0 %v398
    %v858 = vpop.f32.mrb[0].mxu0
    %v859 = vadd.f32 %v241, %v858
    %v860 = vpop.f32.mrb[0].mxu0
    %v861 = vpop.f32.mrb[0].mxu0
    %v862 = vadd.f32 %v241, %v861
    %v863 = vpop.f32.mrb[0].mxu0
    %864 = vmatprep.mubr.bf16.mxu0 0
    %865 = vmatmul.mubr.bf16.gmra.mrb[0].mxu0 %v401
    %v866 = vpop.f32.mrb[0].mxu0
    %v867 = vadd.f32 %v241, %v866
    %v868 = vpop.f32.mrb[0].mxu0
    %v869 = vpop.f32.mrb[0].mxu0
    %v870 = vadd.f32 %v241, %v869
    %v871 = vpop.f32.mrb[0].mxu0
    %872 = vmatprep.mubr.bf16.mxu0 0
    %873 = vmatmul.mubr.bf16.gmra.mrb[0].mxu0 %v404
    %v874 = vpop.f32.mrb[0].mxu0
    %v875 = vadd.f32 %v241, %v874
    %v876 = vpop.f32.mrb[0].mxu0
    %v877 = vpop.f32.mrb[0].mxu0
    %v878 = vadd.f32 %v241, %v877
    %v879 = vpop.f32.mrb[0].mxu0
    %880 = vmatprep.mubr.bf16.mxu0 0
    %881 = vmatmul.mubr.bf16.gmra.mrb[0].mxu0 %v407
    %v882 = vpop.f32.mrb[0].mxu0
    %v883 = vadd.f32 %v241, %v882
    %v884 = vpop.f32.mrb[0].mxu0
    %v885 = vpop.f32.mrb[0].mxu0
    %v886 = vadd.f32 %v241, %v885
    %v887 = vpop.f32.mrb[0].mxu0
    %888 = vmatprep.mubr.bf16.mxu0 0
    %889 = vmatmul.mubr.bf16.gmra.mrb[0].mxu0 %v410
    %v890 = vpop.f32.mrb[0].mxu0
    %v891 = vadd.f32 %v241, %v890
    %v892 = vpop.f32.mrb[0].mxu0
    %v893 = vpop.f32.mrb[0].mxu0
    %v894 = vadd.f32 %v241, %v893
    %v895 = vpop.f32.mrb[0].mxu0
    %896 = vmatprep.mubr.bf16.mxu0 0
    %897 = vmatmul.mubr.bf16.gmra.mrb[0].mxu0 %v413
    %v898 = vpop.f32.mrb[0].mxu0
    %v899 = vadd.f32 %v241, %v898
    %v900 = vpop.f32.mrb[0].mxu0
    %v901 = vpop.f32.mrb[0].mxu0
    %v902 = vadd.f32 %v241, %v901
    %v903 = vpop.f32.mrb[0].mxu0
    %904 = vmatprep.mubr.bf16.mxu0 0
    %905 = vmatmul.mubr.bf16.gmra.mrb[0].mxu0 %v416
    %v906 = vpop.f32.mrb[0].mxu0
    %v907 = vadd.f32 %v241, %v906
    %v908 = vpop.f32.mrb[0].mxu0
    %v909 = vpop.f32.mrb[0].mxu0
    %v910 = vadd.f32 %v241, %v909
    %v911 = vpop.f32.mrb[0].mxu0
    %912 = vmatprep.mubr.bf16.mxu0 0
    %913 = vmatmul.mubr.bf16.gmra.mrb[0].mxu0 %v419
    %v914 = vpop.f32.mrb[0].mxu0
    %v915 = vadd.f32 %v241, %v914
    %v916 = vpop.f32.mrb[0].mxu0
    %v917 = vpop.f32.mrb[0].mxu0
    %v918 = vadd.f32 %v241, %v917
    %v919 = vpop.f32.mrb[0].mxu0
    %920 = vmatprep.mubr.bf16.mxu0 0
    %921 = vmatmul.mubr.bf16.gmra.mrb[0].mxu0 %v422
    %v922 = vpop.f32.mrb[0].mxu0
    %v923 = vadd.f32 %v241, %v922
    %v924 = vpop.f32.mrb[0].mxu0
    %v925 = vpop.f32.mrb[0].mxu0
    %v926 = vadd.f32 %v241, %v925
    %v927 = vpop.f32.mrb[0].mxu0
    %928 = vmatprep.mubr.bf16.mxu0 0
    %929 = vmatmul.mubr.bf16.gmra.mrb[0].mxu0 %v425
    %v930 = vpop.f32.mrb[0].mxu0
    %v931 = vadd.f32 %v241, %v930
    %v932 = vpop.f32.mrb[0].mxu0
    %v933 = vpop.f32.mrb[0].mxu0
    %v934 = vadd.f32 %v241, %v933
    %v935 = vpop.f32.mrb[0].mxu0
    %936 = vmatprep.mubr.bf16.mxu0 0
    %937 = vmatmul.mubr.bf16.gmra.mrb[0].mxu0 %v428
    %v938 = vpop.f32.mrb[0].mxu0
    %v939 = vadd.f32 %v241, %v938
    %v940 = vpop.f32.mrb[0].mxu0
    %v941 = vpop.f32.mrb[0].mxu0
    %v942 = vadd.f32 %v241, %v941
    %v943 = vpop.f32.mrb[0].mxu0
    %944 = vmatprep.mubr.bf16.mxu0 0
    %945 = vmatmul.mubr.bf16.gmra.mrb[0].mxu0 %v431
    %v946 = vpop.f32.mrb[0].mxu0
    %v947 = vadd.f32 %v241, %v946
    %v948 = vpop.f32.mrb[0].mxu0
    %v949 = vpop.f32.mrb[0].mxu0
    %v950 = vadd.f32 %v241, %v949
    %v951 = vpop.f32.mrb[0].mxu0
    %952 = vmatprep.mubr.bf16.mxu0 0
    %953 = vmatmul.mubr.bf16.gmra.mrb[0].mxu0 %v434
    %v954 = vpop.f32.mrb[0].mxu0
    %v955 = vadd.f32 %v241, %v954
    %v956 = vpop.f32.mrb[0].mxu0
    %v957 = vpop.f32.mrb[0].mxu0
    %v958 = vadd.f32 %v241, %v957
    %v959 = vpop.f32.mrb[0].mxu0
    %960 = vmatprep.mubr.bf16.mxu0 0
    %961 = vmatmul.mubr.bf16.gmra.mrb[0].mxu0 %v437
    %v962 = vpop.f32.mrb[0].mxu0
    %v963 = vadd.f32 %v241, %v962
    %v964 = vpop.f32.mrb[0].mxu0
    %v965 = vpop.f32.mrb[0].mxu0
    %v966 = vadd.f32 %v241, %v965
    %v967 = vpop.f32.mrb[0].mxu0
    %968 = vmatprep.mubr.bf16.mxu0 0
    %969 = vmatmul.mubr.bf16.gmra.mrb[0].mxu0 %v440
    %v970 = vpop.f32.mrb[0].mxu0
    %v971 = vadd.f32 %v241, %v970
    %v972 = vpop.f32.mrb[0].mxu0
    %v973 = vpop.f32.mrb[0].mxu0
    %v974 = vadd.f32 %v241, %v973
    %v975 = vpop.f32.mrb[0].mxu0
    %976 = vmatprep.mubr.bf16.mxu0 0
    %977 = vmatmul.mubr.bf16.gmra.mrb[0].mxu0 %v443
    %v978 = vpop.f32.mrb[0].mxu0
    %v979 = vadd.f32 %v241, %v978
    %v980 = vpop.f32.mrb[0].mxu0
    %v981 = vpop.f32.mrb[0].mxu0
    %v982 = vadd.f32 %v241, %v981
    %v983 = vpop.f32.mrb[0].mxu0
    %984 = vmatprep.mubr.bf16.mxu0 0
    %985 = vmatmul.mubr.bf16.gmra.mrb[0].mxu0 %v446
    %v986 = vpop.f32.mrb[0].mxu0
    %v987 = vadd.f32 %v241, %v986
    %v988 = vpop.f32.mrb[0].mxu0
    %v989 = vpop.f32.mrb[0].mxu0
    %v990 = vadd.f32 %v241, %v989
    %v991 = vpop.f32.mrb[0].mxu0
    %992 = vdwg.mxu0
    %v993 = vmax.f32 %v483, 0.0
    %v994 = vmax.f32 %v486, 0.0
    %v995 = vmax.f32 %v491, 0.0
    %v996 = vmax.f32 %v494, 0.0
    %v997 = vmax.f32 %v499, 0.0
    %v998 = vmax.f32 %v502, 0.0
    %v999 = vmax.f32 %v507, 0.0
    %v1000 = vmax.f32 %v510, 0.0
    %v1001 = vmax.f32 %v515, 0.0
    %v1002 = vmax.f32 %v518, 0.0
    %v1003 = vmax.f32 %v523, 0.0
    %v1004 = vmax.f32 %v526, 0.0
    %v1005 = vmax.f32 %v531, 0.0
    %v1006 = vmax.f32 %v534, 0.0
    %v1007 = vmax.f32 %v539, 0.0
    %v1008 = vmax.f32 %v542, 0.0
    %v1009 = vmax.f32 %v547, 0.0
    %v1010 = vmax.f32 %v550, 0.0
    %v1011 = vmax.f32 %v555, 0.0
    %v1012 = vmax.f32 %v558, 0.0
    %v1013 = vmax.f32 %v563, 0.0
    %v1014 = vmax.f32 %v566, 0.0
    %v1015 = vmax.f32 %v571, 0.0
    %v1016 = vmax.f32 %v574, 0.0
    %v1017 = vmax.f32 %v579, 0.0
    %v1018 = vmax.f32 %v582, 0.0
    %v1019 = vmax.f32 %v587, 0.0
    %v1020 = vmax.f32 %v590, 0.0
    %v1021 = vmax.f32 %v595, 0.0
    %v1022 = vmax.f32 %v598, 0.0
    %v1023 = vmax.f32 %v603, 0.0
    %v1024 = vmax.f32 %v606, 0.0
    %v1025 = vmax.f32 %v611, 0.0
    %v1026 = vmax.f32 %v614, 0.0
    %v1027 = vmax.f32 %v619, 0.0
    %v1028 = vmax.f32 %v622, 0.0
    %v1029 = vmax.f32 %v627, 0.0
    %v1030 = vmax.f32 %v630, 0.0
    %v1031 = vmax.f32 %v635, 0.0
    %v1032 = vmax.f32 %v638, 0.0
    %v1033 = vmax.f32 %v643, 0.0
    %v1034 = vmax.f32 %v646, 0.0
    %v1035 = vmax.f32 %v651, 0.0
    %v1036 = vmax.f32 %v654, 0.0
    %v1037 = vmax.f32 %v659, 0.0
    %v1038 = vmax.f32 %v662, 0.0
    %v1039 = vmax.f32 %v667, 0.0
    %v1040 = vmax.f32 %v670, 0.0
    %v1041 = vmax.f32 %v675, 0.0
    %v1042 = vmax.f32 %v678, 0.0
    %v1043 = vmax.f32 %v683, 0.0
    %v1044 = vmax.f32 %v686, 0.0
    %v1045 = vmax.f32 %v691, 0.0
    %v1046 = vmax.f32 %v694, 0.0
    %v1047 = vmax.f32 %v699, 0.0
    %v1048 = vmax.f32 %v702, 0.0
    %v1049 = vmax.f32 %v707, 0.0
    %v1050 = vmax.f32 %v710, 0.0
    %v1051 = vmax.f32 %v715, 0.0
    %v1052 = vmax.f32 %v718, 0.0
    %v1053 = vmax.f32 %v723, 0.0
    %v1054 = vmax.f32 %v726, 0.0
    %v1055 = vmax.f32 %v731, 0.0
    %v1056 = vmax.f32 %v734, 0.0
    %v1057 = vmax.f32 %v739, 0.0
    %v1058 = vmax.f32 %v742, 0.0
    %v1059 = vmax.f32 %v747, 0.0
    %v1060 = vmax.f32 %v750, 0.0
    %v1061 = vmax.f32 %v755, 0.0
    %v1062 = vmax.f32 %v758, 0.0
    %v1063 = vmax.f32 %v763, 0.0
    %v1064 = vmax.f32 %v766, 0.0
    %v1065 = vmax.f32 %v771, 0.0
    %v1066 = vmax.f32 %v774, 0.0
    %v1067 = vmax.f32 %v779, 0.0
    %v1068 = vmax.f32 %v782, 0.0
    %v1069 = vmax.f32 %v787, 0.0
    %v1070 = vmax.f32 %v790, 0.0
    %v1071 = vmax.f32 %v795, 0.0
    %v1072 = vmax.f32 %v798, 0.0
    %v1073 = vmax.f32 %v803, 0.0
    %v1074 = vmax.f32 %v806, 0.0
    %v1075 = vmax.f32 %v811, 0.0
    %v1076 = vmax.f32 %v814, 0.0
    %v1077 = vmax.f32 %v819, 0.0
    %v1078 = vmax.f32 %v822, 0.0
    %v1079 = vmax.f32 %v827, 0.0
    %v1080 = vmax.f32 %v830, 0.0
    %v1081 = vmax.f32 %v835, 0.0
    %v1082 = vmax.f32 %v838, 0.0
    %v1083 = vmax.f32 %v843, 0.0
    %v1084 = vmax.f32 %v846, 0.0
    %v1085 = vmax.f32 %v851, 0.0
    %v1086 = vmax.f32 %v854, 0.0
    %v1087 = vmax.f32 %v859, 0.0
    %v1088 = vmax.f32 %v862, 0.0
    %v1089 = vmax.f32 %v867, 0.0
    %v1090 = vmax.f32 %v870, 0.0
    %v1091 = vmax.f32 %v875, 0.0
    %v1092 = vmax.f32 %v878, 0.0
    %v1093 = vmax.f32 %v883, 0.0
    %v1094 = vmax.f32 %v886, 0.0
    %v1095 = vmax.f32 %v891, 0.0
    %v1096 = vmax.f32 %v894, 0.0
    %v1097 = vmax.f32 %v899, 0.0
    %v1098 = vmax.f32 %v902, 0.0
    %v1099 = vmax.f32 %v907, 0.0
    %v1100 = vmax.f32 %v910, 0.0
    %v1101 = vmax.f32 %v915, 0.0
    %v1102 = vmax.f32 %v918, 0.0
    %v1103 = vmax.f32 %v923, 0.0
    %v1104 = vmax.f32 %v926, 0.0
    %v1105 = vmax.f32 %v931, 0.0
    %v1106 = vmax.f32 %v934, 0.0
    %v1107 = vmax.f32 %v939, 0.0
    %v1108 = vmax.f32 %v942, 0.0
    %v1109 = vmax.f32 %v947, 0.0
    %v1110 = vmax.f32 %v950, 0.0
    %v1111 = vmax.f32 %v955, 0.0
    %v1112 = vmax.f32 %v958, 0.0
    %v1113 = vmax.f32 %v963, 0.0
    %v1114 = vmax.f32 %v966, 0.0
    %v1115 = vmax.f32 %v971, 0.0
    %v1116 = vmax.f32 %v974, 0.0
    %v1117 = vmax.f32 %v979, 0.0
    %v1118 = vmax.f32 %v982, 0.0
    %v1119 = vmax.f32 %v987, 0.0
    %v1120 = vmax.f32 %v990, 0.0
    %v1121 = vpack.c.bf16 %v994, %v993
    %v1122 = vpack.c.bf16 %v996, %v995
    %v1123 = vpack.c.bf16 %v998, %v997
    %v1124 = vpack.c.bf16 %v1000, %v999
    %v1125 = vpack.c.bf16 %v1002, %v1001
    %v1126 = vpack.c.bf16 %v1004, %v1003
    %v1127 = vpack.c.bf16 %v1006, %v1005
    %v1128 = vpack.c.bf16 %v1008, %v1007
    %v1129 = vpack.c.bf16 %v1010, %v1009
    %v1130 = vpack.c.bf16 %v1012, %v1011
    %v1131 = vpack.c.bf16 %v1014, %v1013
    %v1132 = vpack.c.bf16 %v1016, %v1015
    %v1133 = vpack.c.bf16 %v1018, %v1017
    %v1134 = vpack.c.bf16 %v1020, %v1019
    %v1135 = vpack.c.bf16 %v1022, %v1021
    %v1136 = vpack.c.bf16 %v1024, %v1023
    %v1137 = vpack.c.bf16 %v1026, %v1025
    %v1138 = vpack.c.bf16 %v1028, %v1027
    %v1139 = vpack.c.bf16 %v1030, %v1029
    %v1140 = vpack.c.bf16 %v1032, %v1031
    %v1141 = vpack.c.bf16 %v1034, %v1033
    %v1142 = vpack.c.bf16 %v1036, %v1035
    %v1143 = vpack.c.bf16 %v1038, %v1037
    %v1144 = vpack.c.bf16 %v1040, %v1039
    %v1145 = vpack.c.bf16 %v1042, %v1041
    %v1146 = vpack.c.bf16 %v1044, %v1043
    %v1147 = vpack.c.bf16 %v1046, %v1045
    %v1148 = vpack.c.bf16 %v1048, %v1047
    %v1149 = vpack.c.bf16 %v1050, %v1049
    %v1150 = vpack.c.bf16 %v1052, %v1051
    %v1151 = vpack.c.bf16 %v1054, %v1053
    %v1152 = vpack.c.bf16 %v1056, %v1055
    %v1153 = vpack.c.bf16 %v1058, %v1057
    %v1154 = vpack.c.bf16 %v1060, %v1059
    %v1155 = vpack.c.bf16 %v1062, %v1061
    %v1156 = vpack.c.bf16 %v1064, %v1063
    %v1157 = vpack.c.bf16 %v1066, %v1065
    %v1158 = vpack.c.bf16 %v1068, %v1067
    %v1159 = vpack.c.bf16 %v1070, %v1069
    %v1160 = vpack.c.bf16 %v1072, %v1071
    %v1161 = vpack.c.bf16 %v1074, %v1073
    %v1162 = vpack.c.bf16 %v1076, %v1075
    %v1163 = vpack.c.bf16 %v1078, %v1077
    %v1164 = vpack.c.bf16 %v1080, %v1079
    %v1165 = vpack.c.bf16 %v1082, %v1081
    %v1166 = vpack.c.bf16 %v1084, %v1083
    %v1167 = vpack.c.bf16 %v1086, %v1085
    %v1168 = vpack.c.bf16 %v1088, %v1087
    %v1169 = vpack.c.bf16 %v1090, %v1089
    %v1170 = vpack.c.bf16 %v1092, %v1091
    %v1171 = vpack.c.bf16 %v1094, %v1093
    %v1172 = vpack.c.bf16 %v1096, %v1095
    %v1173 = vpack.c.bf16 %v1098, %v1097
    %v1174 = vpack.c.bf16 %v1100, %v1099
    %v1175 = vpack.c.bf16 %v1102, %v1101
    %v1176 = vpack.c.bf16 %v1104, %v1103
    %v1177 = vpack.c.bf16 %v1106, %v1105
    %v1178 = vpack.c.bf16 %v1108, %v1107
    %v1179 = vpack.c.bf16 %v1110, %v1109
    %v1180 = vpack.c.bf16 %v1112, %v1111
    %v1181 = vpack.c.bf16 %v1114, %v1113
    %v1182 = vpack.c.bf16 %v1116, %v1115
    %v1183 = vpack.c.bf16 %v1118, %v1117
    %v1184 = vpack.c.bf16 %v1120, %v1119
    %v1185 = vld [vmem:[%s3] sm:$0xf]
    %v1186 = vld [vmem:[%s3 + $0x4] sm:$0xf]
    %v1187 = vld [vmem:[%s3 + $0x8] sm:$0xf]
    %v1188 = vld [vmem:[%s3 + $0xc] sm:$0xf]
    %v1189 = vld [vmem:[%s3 + $0x10] sm:$0xf]
    %v1190 = vld [vmem:[%s3 + $0x14] sm:$0xf]
    %v1191 = vld [vmem:[%s3 + $0x18] sm:$0xf]
    %v1192 = vld [vmem:[%s3 + $0x1c] sm:$0xf]
    %v1193 = vld [vmem:[%s4] sm:$0x1]
    %v1195 = vlaneseq
    %v1196 = vshrl.u32 %v1195, 7
    %v1197 = vsub.s32 0, %v1196
    %v1198 = vrot.slane %v1193, %v1197
    %v1208 = vunpack.c.l.b16 %v1185
    %v1209 = vunpack.c.l.b16 %v1186
    %v1210 = vunpack.c.l.b16 %v1187
    %v1211 = vunpack.c.l.b16 %v1188
    %v1212 = vunpack.c.l.b16 %v1189
    %v1213 = vunpack.c.l.b16 %v1190
    %v1214 = vunpack.c.l.b16 %v1191
    %v1215 = vunpack.c.l.b16 %v1192
    %v1216 = vpack.c.b16 %v1209, %v1208
    %v1217 = vpack.c.b16 %v1211, %v1210
    %v1218 = vpack.c.b16 %v1213, %v1212
    %v1219 = vpack.c.b16 %v1215, %v1214
    %vm1224 = vcmask 523264
    %v1226 = vsel %vm1224, %v1121, 0
    %v1229 = vsel %vm1224, %v1122, 0
    %v1232 = vsel %vm1224, %v1123, 0
    %v1235 = vsel %vm1224, %v1124, 0
    %v1238 = vsel %vm1224, %v1125, 0
    %v1241 = vsel %vm1224, %v1126, 0
    %v1244 = vsel %vm1224, %v1127, 0
    %v1247 = vsel %vm1224, %v1128, 0
    %v1250 = vsel %vm1224, %v1129, 0
    %v1253 = vsel %vm1224, %v1130, 0
    %v1256 = vsel %vm1224, %v1131, 0
    %v1259 = vsel %vm1224, %v1132, 0
    %v1262 = vsel %vm1224, %v1133, 0
    %v1265 = vsel %vm1224, %v1134, 0
    %v1268 = vsel %vm1224, %v1135, 0
    %v1271 = vsel %vm1224, %v1136, 0
    %v1274 = vsel %vm1224, %v1137, 0
    %v1277 = vsel %vm1224, %v1138, 0
    %v1280 = vsel %vm1224, %v1139, 0
    %v1283 = vsel %vm1224, %v1140, 0
    %v1286 = vsel %vm1224, %v1141, 0
    %v1289 = vsel %vm1224, %v1142, 0
    %v1292 = vsel %vm1224, %v1143, 0
    %v1295 = vsel %vm1224, %v1144, 0
    %v1298 = vsel %vm1224, %v1145, 0
    %v1301 = vsel %vm1224, %v1146, 0
    %v1304 = vsel %vm1224, %v1147, 0
    %v1307 = vsel %vm1224, %v1148, 0
    %v1310 = vsel %vm1224, %v1149, 0
    %v1313 = vsel %vm1224, %v1150, 0
    %v1316 = vsel %vm1224, %v1151, 0
    %v1319 = vsel %vm1224, %v1152, 0
    %v1322 = vsel %vm1224, %v1153, 0
    %v1325 = vsel %vm1224, %v1154, 0
    %v1328 = vsel %vm1224, %v1155, 0
    %v1331 = vsel %vm1224, %v1156, 0
    %v1334 = vsel %vm1224, %v1157, 0
    %v1337 = vsel %vm1224, %v1158, 0
    %v1340 = vsel %vm1224, %v1159, 0
    %v1343 = vsel %vm1224, %v1160, 0
    %v1346 = vsel %vm1224, %v1161, 0
    %v1349 = vsel %vm1224, %v1162, 0
    %v1352 = vsel %vm1224, %v1163, 0
    %v1355 = vsel %vm1224, %v1164, 0
    %v1358 = vsel %vm1224, %v1165, 0
    %v1361 = vsel %vm1224, %v1166, 0
    %v1364 = vsel %vm1224, %v1167, 0
    %v1367 = vsel %vm1224, %v1168, 0
    %v1370 = vsel %vm1224, %v1169, 0
    %v1373 = vsel %vm1224, %v1170, 0
    %v1376 = vsel %vm1224, %v1171, 0
    %v1379 = vsel %vm1224, %v1172, 0
    %v1382 = vsel %vm1224, %v1173, 0
    %v1385 = vsel %vm1224, %v1174, 0
    %v1388 = vsel %vm1224, %v1175, 0
    %v1391 = vsel %vm1224, %v1176, 0
    %v1394 = vsel %vm1224, %v1177, 0
    %v1397 = vsel %vm1224, %v1178, 0
    %v1400 = vsel %vm1224, %v1179, 0
    %v1403 = vsel %vm1224, %v1180, 0
    %v1406 = vsel %vm1224, %v1181, 0
    %v1409 = vsel %vm1224, %v1182, 0
    %v1412 = vsel %vm1224, %v1183, 0
    %v1415 = vsel %vm1224, %v1184, 0
    %1417 = vmatprep.subr.bf16.mxu0 0
    %1418 = vmatpush1.bf16.msra.mxu0 %v1216
    %1419 = vmatprep.subr.bf16.mxu0 0
    %1420 = vmatpush1.bf16.msra.mxu0 %v1217
    %1421 = vmatprep.subr.bf16.mxu0 0
    %1422 = vmatpush1.bf16.msra.mxu0 %v1218
    %1423 = vmatprep.subr.bf16.mxu0 0
    %1424 = vmatpush1.bf16.msra.mxu0 %v1219
    %1425 = vmatprep.subr.bf16.mxu0 0
    %1426 = vmatpush1.bf16.msra.mxu0 0
    %1427 = vmatprep.subr.bf16.mxu0 0
    %1428 = vmatpush1.bf16.msra.mxu0 0
    %1429 = vmatprep.subr.bf16.mxu0 0
    %1430 = vmatpush1.bf16.msra.mxu0 0
    %1431 = vmatprep.subr.bf16.mxu0 0
    %1432 = vmatpush1.bf16.msra.mxu0 0
    %1433 = vmatprep.subr.bf16.mxu0 0
    %1434 = vmatpush1.bf16.msra.mxu0 0
    %1435 = vmatprep.subr.bf16.mxu0 0
    %1436 = vmatpush1.bf16.msra.mxu0 0
    %1437 = vmatprep.subr.bf16.mxu0 0
    %1438 = vmatpush1.bf16.msra.mxu0 0
    %1439 = vmatprep.subr.bf16.mxu0 0
    %1440 = vmatpush1.bf16.msra.mxu0 0
    %1441 = vmatprep.subr.bf16.mxu0 0
    %1442 = vmatpush1.bf16.msra.mxu0 0
    %1443 = vmatprep.subr.bf16.mxu0 0
    %1444 = vmatpush1.bf16.msra.mxu0 0
    %1445 = vmatprep.subr.bf16.mxu0 0
    %1446 = vmatpush1.bf16.msra.mxu0 0
    %1447 = vmatprep.subr.bf16.mxu0 0
    %1448 = vmatpush1.bf16.msra.mxu0 0
    %1449 = vmatprep.mubr.bf16.mxu0 0
    %1450 = vmatmul.mubr.bf16.gmra.mrb[0].mxu0 %v1226
    %v1451 = vpop.f32.mrb[0].mxu0
    %v1452 = vadd.f32 %v1198, %v1451
    %v1453 = vpop.f32.mrb[0].mxu0
    %v1454 = vpop.f32.mrb[0].mxu0
    %v1455 = vadd.f32 %v1198, %v1454
    %v1456 = vpop.f32.mrb[0].mxu0
    %1457 = vmatprep.mubr.bf16.mxu0 0
    %1458 = vmatmul.mubr.bf16.gmra.mrb[0].mxu0 %v1229
    %v1459 = vpop.f32.mrb[0].mxu0
    %v1460 = vadd.f32 %v1198, %v1459
    %v1461 = vpop.f32.mrb[0].mxu0
    %v1462 = vpop.f32.mrb[0].mxu0
    %v1463 = vadd.f32 %v1198, %v1462
    %v1464 = vpop.f32.mrb[0].mxu0
    %1465 = vmatprep.mubr.bf16.mxu0 0
    %1466 = vmatmul.mubr.bf16.gmra.mrb[0].mxu0 %v1232
    %v1467 = vpop.f32.mrb[0].mxu0
    %v1468 = vadd.f32 %v1198, %v1467
    %v1469 = vpop.f32.mrb[0].mxu0
    %v1470 = vpop.f32.mrb[0].mxu0
    %v1471 = vadd.f32 %v1198, %v1470
    %v1472 = vpop.f32.mrb[0].mxu0
    %1473 = vmatprep.mubr.bf16.mxu0 0
    %1474 = vmatmul.mubr.bf16.gmra.mrb[0].mxu0 %v1235
    %v1475 = vpop.f32.mrb[0].mxu0
    %v1476 = vadd.f32 %v1198, %v1475
    %v1477 = vpop.f32.mrb[0].mxu0
    %v1478 = vpop.f32.mrb[0].mxu0
    %v1479 = vadd.f32 %v1198, %v1478
    %v1480 = vpop.f32.mrb[0].mxu0
    %1481 = vmatprep.mubr.bf16.mxu0 0
    %1482 = vmatmul.mubr.bf16.gmra.mrb[0].mxu0 %v1238
    %v1483 = vpop.f32.mrb[0].mxu0
    %v1484 = vadd.f32 %v1198, %v1483
    %v1485 = vpop.f32.mrb[0].mxu0
    %v1486 = vpop.f32.mrb[0].mxu0
    %v1487 = vadd.f32 %v1198, %v1486
    %v1488 = vpop.f32.mrb[0].mxu0
    %1489 = vmatprep.mubr.bf16.mxu0 0
    %1490 = vmatmul.mubr.bf16.gmra.mrb[0].mxu0 %v1241
    %v1491 = vpop.f32.mrb[0].mxu0
    %v1492 = vadd.f32 %v1198, %v1491
    %v1493 = vpop.f32.mrb[0].mxu0
    %v1494 = vpop.f32.mrb[0].mxu0
    %v1495 = vadd.f32 %v1198, %v1494
    %v1496 = vpop.f32.mrb[0].mxu0
    %1497 = vmatprep.mubr.bf16.mxu0 0
    %1498 = vmatmul.mubr.bf16.gmra.mrb[0].mxu0 %v1244
    %v1499 = vpop.f32.mrb[0].mxu0
    %v1500 = vadd.f32 %v1198, %v1499
    %v1501 = vpop.f32.mrb[0].mxu0
    %v1502 = vpop.f32.mrb[0].mxu0
    %v1503 = vadd.f32 %v1198, %v1502
    %v1504 = vpop.f32.mrb[0].mxu0
    %1505 = vmatprep.mubr.bf16.mxu0 0
    %1506 = vmatmul.mubr.bf16.gmra.mrb[0].mxu0 %v1247
    %v1507 = vpop.f32.mrb[0].mxu0
    %v1508 = vadd.f32 %v1198, %v1507
    %v1509 = vpop.f32.mrb[0].mxu0
    %v1510 = vpop.f32.mrb[0].mxu0
    %v1511 = vadd.f32 %v1198, %v1510
    %v1512 = vpop.f32.mrb[0].mxu0
    %1513 = vmatprep.mubr.bf16.mxu0 0
    %1514 = vmatmul.mubr.bf16.gmra.mrb[0].mxu0 %v1250
    %v1515 = vpop.f32.mrb[0].mxu0
    %v1516 = vadd.f32 %v1198, %v1515
    %v1517 = vpop.f32.mrb[0].mxu0
    %v1518 = vpop.f32.mrb[0].mxu0
    %v1519 = vadd.f32 %v1198, %v1518
    %v1520 = vpop.f32.mrb[0].mxu0
    %1521 = vmatprep.mubr.bf16.mxu0 0
    %1522 = vmatmul.mubr.bf16.gmra.mrb[0].mxu0 %v1253
    %v1523 = vpop.f32.mrb[0].mxu0
    %v1524 = vadd.f32 %v1198, %v1523
    %v1525 = vpop.f32.mrb[0].mxu0
    %v1526 = vpop.f32.mrb[0].mxu0
    %v1527 = vadd.f32 %v1198, %v1526
    %v1528 = vpop.f32.mrb[0].mxu0
    %1529 = vmatprep.mubr.bf16.mxu0 0
    %1530 = vmatmul.mubr.bf16.gmra.mrb[0].mxu0 %v1256
    %v1531 = vpop.f32.mrb[0].mxu0
    %v1532 = vadd.f32 %v1198, %v1531
    %v1533 = vpop.f32.mrb[0].mxu0
    %v1534 = vpop.f32.mrb[0].mxu0
    %v1535 = vadd.f32 %v1198, %v1534
    %v1536 = vpop.f32.mrb[0].mxu0
    %1537 = vmatprep.mubr.bf16.mxu0 0
    %1538 = vmatmul.mubr.bf16.gmra.mrb[0].mxu0 %v1259
    %v1539 = vpop.f32.mrb[0].mxu0
    %v1540 = vadd.f32 %v1198, %v1539
    %v1541 = vpop.f32.mrb[0].mxu0
    %v1542 = vpop.f32.mrb[0].mxu0
    %v1543 = vadd.f32 %v1198, %v1542
    %v1544 = vpop.f32.mrb[0].mxu0
    %1545 = vmatprep.mubr.bf16.mxu0 0
    %1546 = vmatmul.mubr.bf16.gmra.mrb[0].mxu0 %v1262
    %v1547 = vpop.f32.mrb[0].mxu0
    %v1548 = vadd.f32 %v1198, %v1547
    %v1549 = vpop.f32.mrb[0].mxu0
    %v1550 = vpop.f32.mrb[0].mxu0
    %v1551 = vadd.f32 %v1198, %v1550
    %v1552 = vpop.f32.mrb[0].mxu0
    %1553 = vmatprep.mubr.bf16.mxu0 0
    %1554 = vmatmul.mubr.bf16.gmra.mrb[0].mxu0 %v1265
    %v1555 = vpop.f32.mrb[0].mxu0
    %v1556 = vadd.f32 %v1198, %v1555
    %v1557 = vpop.f32.mrb[0].mxu0
    %v1558 = vpop.f32.mrb[0].mxu0
    %v1559 = vadd.f32 %v1198, %v1558
    %v1560 = vpop.f32.mrb[0].mxu0
    %1561 = vmatprep.mubr.bf16.mxu0 0
    %1562 = vmatmul.mubr.bf16.gmra.mrb[0].mxu0 %v1268
    %v1563 = vpop.f32.mrb[0].mxu0
    %v1564 = vadd.f32 %v1198, %v1563
    %v1565 = vpop.f32.mrb[0].mxu0
    %v1566 = vpop.f32.mrb[0].mxu0
    %v1567 = vadd.f32 %v1198, %v1566
    %v1568 = vpop.f32.mrb[0].mxu0
    %1569 = vmatprep.mubr.bf16.mxu0 0
    %1570 = vmatmul.mubr.bf16.gmra.mrb[0].mxu0 %v1271
    %v1571 = vpop.f32.mrb[0].mxu0
    %v1572 = vadd.f32 %v1198, %v1571
    %v1573 = vpop.f32.mrb[0].mxu0
    %v1574 = vpop.f32.mrb[0].mxu0
    %v1575 = vadd.f32 %v1198, %v1574
    %v1576 = vpop.f32.mrb[0].mxu0
    %1577 = vmatprep.mubr.bf16.mxu0 0
    %1578 = vmatmul.mubr.bf16.gmra.mrb[0].mxu0 %v1274
    %v1579 = vpop.f32.mrb[0].mxu0
    %v1580 = vadd.f32 %v1198, %v1579
    %v1581 = vpop.f32.mrb[0].mxu0
    %v1582 = vpop.f32.mrb[0].mxu0
    %v1583 = vadd.f32 %v1198, %v1582
    %v1584 = vpop.f32.mrb[0].mxu0
    %1585 = vmatprep.mubr.bf16.mxu0 0
    %1586 = vmatmul.mubr.bf16.gmra.mrb[0].mxu0 %v1277
    %v1587 = vpop.f32.mrb[0].mxu0
    %v1588 = vadd.f32 %v1198, %v1587
    %v1589 = vpop.f32.mrb[0].mxu0
    %v1590 = vpop.f32.mrb[0].mxu0
    %v1591 = vadd.f32 %v1198, %v1590
    %v1592 = vpop.f32.mrb[0].mxu0
    %1593 = vmatprep.mubr.bf16.mxu0 0
    %1594 = vmatmul.mubr.bf16.gmra.mrb[0].mxu0 %v1280
    %v1595 = vpop.f32.mrb[0].mxu0
    %v1596 = vadd.f32 %v1198, %v1595
    %v1597 = vpop.f32.mrb[0].mxu0
    %v1598 = vpop.f32.mrb[0].mxu0
    %v1599 = vadd.f32 %v1198, %v1598
    %v1600 = vpop.f32.mrb[0].mxu0
    %1601 = vmatprep.mubr.bf16.mxu0 0
    %1602 = vmatmul.mubr.bf16.gmra.mrb[0].mxu0 %v1283
    %v1603 = vpop.f32.mrb[0].mxu0
    %v1604 = vadd.f32 %v1198, %v1603
    %v1605 = vpop.f32.mrb[0].mxu0
    %v1606 = vpop.f32.mrb[0].mxu0
    %v1607 = vadd.f32 %v1198, %v1606
    %v1608 = vpop.f32.mrb[0].mxu0
    %1609 = vmatprep.mubr.bf16.mxu0 0
    %1610 = vmatmul.mubr.bf16.gmra.mrb[0].mxu0 %v1286
    %v1611 = vpop.f32.mrb[0].mxu0
    %v1612 = vadd.f32 %v1198, %v1611
    %v1613 = vpop.f32.mrb[0].mxu0
    %v1614 = vpop.f32.mrb[0].mxu0
    %v1615 = vadd.f32 %v1198, %v1614
    %v1616 = vpop.f32.mrb[0].mxu0
    %1617 = vmatprep.mubr.bf16.mxu0 0
    %1618 = vmatmul.mubr.bf16.gmra.mrb[0].mxu0 %v1289
    %v1619 = vpop.f32.mrb[0].mxu0
    %v1620 = vadd.f32 %v1198, %v1619
    %v1621 = vpop.f32.mrb[0].mxu0
    %v1622 = vpop.f32.mrb[0].mxu0
    %v1623 = vadd.f32 %v1198, %v1622
    %v1624 = vpop.f32.mrb[0].mxu0
    %1625 = vmatprep.mubr.bf16.mxu0 0
    %1626 = vmatmul.mubr.bf16.gmra.mrb[0].mxu0 %v1292
    %v1627 = vpop.f32.mrb[0].mxu0
    %v1628 = vadd.f32 %v1198, %v1627
    %v1629 = vpop.f32.mrb[0].mxu0
    %v1630 = vpop.f32.mrb[0].mxu0
    %v1631 = vadd.f32 %v1198, %v1630
    %v1632 = vpop.f32.mrb[0].mxu0
    %1633 = vmatprep.mubr.bf16.mxu0 0
    %1634 = vmatmul.mubr.bf16.gmra.mrb[0].mxu0 %v1295
    %v1635 = vpop.f32.mrb[0].mxu0
    %v1636 = vadd.f32 %v1198, %v1635
    %v1637 = vpop.f32.mrb[0].mxu0
    %v1638 = vpop.f32.mrb[0].mxu0
    %v1639 = vadd.f32 %v1198, %v1638
    %v1640 = vpop.f32.mrb[0].mxu0
    %1641 = vmatprep.mubr.bf16.mxu0 0
    %1642 = vmatmul.mubr.bf16.gmra.mrb[0].mxu0 %v1298
    %v1643 = vpop.f32.mrb[0].mxu0
    %v1644 = vadd.f32 %v1198, %v1643
    %v1645 = vpop.f32.mrb[0].mxu0
    %v1646 = vpop.f32.mrb[0].mxu0
    %v1647 = vadd.f32 %v1198, %v1646
    %v1648 = vpop.f32.mrb[0].mxu0
    %1649 = vmatprep.mubr.bf16.mxu0 0
    %1650 = vmatmul.mubr.bf16.gmra.mrb[0].mxu0 %v1301
    %v1651 = vpop.f32.mrb[0].mxu0
    %v1652 = vadd.f32 %v1198, %v1651
    %v1653 = vpop.f32.mrb[0].mxu0
    %v1654 = vpop.f32.mrb[0].mxu0
    %v1655 = vadd.f32 %v1198, %v1654
    %v1656 = vpop.f32.mrb[0].mxu0
    %1657 = vmatprep.mubr.bf16.mxu0 0
    %1658 = vmatmul.mubr.bf16.gmra.mrb[0].mxu0 %v1304
    %v1659 = vpop.f32.mrb[0].mxu0
    %v1660 = vadd.f32 %v1198, %v1659
    %v1661 = vpop.f32.mrb[0].mxu0
    %v1662 = vpop.f32.mrb[0].mxu0
    %v1663 = vadd.f32 %v1198, %v1662
    %v1664 = vpop.f32.mrb[0].mxu0
    %1665 = vmatprep.mubr.bf16.mxu0 0
    %1666 = vmatmul.mubr.bf16.gmra.mrb[0].mxu0 %v1307
    %v1667 = vpop.f32.mrb[0].mxu0
    %v1668 = vadd.f32 %v1198, %v1667
    %v1669 = vpop.f32.mrb[0].mxu0
    %v1670 = vpop.f32.mrb[0].mxu0
    %v1671 = vadd.f32 %v1198, %v1670
    %v1672 = vpop.f32.mrb[0].mxu0
    %1673 = vmatprep.mubr.bf16.mxu0 0
    %1674 = vmatmul.mubr.bf16.gmra.mrb[0].mxu0 %v1310
    %v1675 = vpop.f32.mrb[0].mxu0
    %v1676 = vadd.f32 %v1198, %v1675
    %v1677 = vpop.f32.mrb[0].mxu0
    %v1678 = vpop.f32.mrb[0].mxu0
    %v1679 = vadd.f32 %v1198, %v1678
    %v1680 = vpop.f32.mrb[0].mxu0
    %1681 = vmatprep.mubr.bf16.mxu0 0
    %1682 = vmatmul.mubr.bf16.gmra.mrb[0].mxu0 %v1313
    %v1683 = vpop.f32.mrb[0].mxu0
    %v1684 = vadd.f32 %v1198, %v1683
    %v1685 = vpop.f32.mrb[0].mxu0
    %v1686 = vpop.f32.mrb[0].mxu0
    %v1687 = vadd.f32 %v1198, %v1686
    %v1688 = vpop.f32.mrb[0].mxu0
    %1689 = vmatprep.mubr.bf16.mxu0 0
    %1690 = vmatmul.mubr.bf16.gmra.mrb[0].mxu0 %v1316
    %v1691 = vpop.f32.mrb[0].mxu0
    %v1692 = vadd.f32 %v1198, %v1691
    %v1693 = vpop.f32.mrb[0].mxu0
    %v1694 = vpop.f32.mrb[0].mxu0
    %v1695 = vadd.f32 %v1198, %v1694
    %v1696 = vpop.f32.mrb[0].mxu0
    %1697 = vmatprep.mubr.bf16.mxu0 0
    %1698 = vmatmul.mubr.bf16.gmra.mrb[0].mxu0 %v1319
    %v1699 = vpop.f32.mrb[0].mxu0
    %v1700 = vadd.f32 %v1198, %v1699
    %v1701 = vpop.f32.mrb[0].mxu0
    %v1702 = vpop.f32.mrb[0].mxu0
    %v1703 = vadd.f32 %v1198, %v1702
    %v1704 = vpop.f32.mrb[0].mxu0
    %1705 = vmatprep.mubr.bf16.mxu0 0
    %1706 = vmatmul.mubr.bf16.gmra.mrb[0].mxu0 %v1322
    %v1707 = vpop.f32.mrb[0].mxu0
    %v1708 = vadd.f32 %v1198, %v1707
    %v1709 = vpop.f32.mrb[0].mxu0
    %v1710 = vpop.f32.mrb[0].mxu0
    %v1711 = vadd.f32 %v1198, %v1710
    %v1712 = vpop.f32.mrb[0].mxu0
    %1713 = vmatprep.mubr.bf16.mxu0 0
    %1714 = vmatmul.mubr.bf16.gmra.mrb[0].mxu0 %v1325
    %v1715 = vpop.f32.mrb[0].mxu0
    %v1716 = vadd.f32 %v1198, %v1715
    %v1717 = vpop.f32.mrb[0].mxu0
    %v1718 = vpop.f32.mrb[0].mxu0
    %v1719 = vadd.f32 %v1198, %v1718
    %v1720 = vpop.f32.mrb[0].mxu0
    %1721 = vmatprep.mubr.bf16.mxu0 0
    %1722 = vmatmul.mubr.bf16.gmra.mrb[0].mxu0 %v1328
    %v1723 = vpop.f32.mrb[0].mxu0
    %v1724 = vadd.f32 %v1198, %v1723
    %v1725 = vpop.f32.mrb[0].mxu0
    %v1726 = vpop.f32.mrb[0].mxu0
    %v1727 = vadd.f32 %v1198, %v1726
    %v1728 = vpop.f32.mrb[0].mxu0
    %1729 = vmatprep.mubr.bf16.mxu0 0
    %1730 = vmatmul.mubr.bf16.gmra.mrb[0].mxu0 %v1331
    %v1731 = vpop.f32.mrb[0].mxu0
    %v1732 = vadd.f32 %v1198, %v1731
    %v1733 = vpop.f32.mrb[0].mxu0
    %v1734 = vpop.f32.mrb[0].mxu0
    %v1735 = vadd.f32 %v1198, %v1734
    %v1736 = vpop.f32.mrb[0].mxu0
    %1737 = vmatprep.mubr.bf16.mxu0 0
    %1738 = vmatmul.mubr.bf16.gmra.mrb[0].mxu0 %v1334
    %v1739 = vpop.f32.mrb[0].mxu0
    %v1740 = vadd.f32 %v1198, %v1739
    %v1741 = vpop.f32.mrb[0].mxu0
    %v1742 = vpop.f32.mrb[0].mxu0
    %v1743 = vadd.f32 %v1198, %v1742
    %v1744 = vpop.f32.mrb[0].mxu0
    %1745 = vmatprep.mubr.bf16.mxu0 0
    %1746 = vmatmul.mubr.bf16.gmra.mrb[0].mxu0 %v1337
    %v1747 = vpop.f32.mrb[0].mxu0
    %v1748 = vadd.f32 %v1198, %v1747
    %v1749 = vpop.f32.mrb[0].mxu0
    %v1750 = vpop.f32.mrb[0].mxu0
    %v1751 = vadd.f32 %v1198, %v1750
    %v1752 = vpop.f32.mrb[0].mxu0
    %1753 = vmatprep.mubr.bf16.mxu0 0
    %1754 = vmatmul.mubr.bf16.gmra.mrb[0].mxu0 %v1340
    %v1755 = vpop.f32.mrb[0].mxu0
    %v1756 = vadd.f32 %v1198, %v1755
    %v1757 = vpop.f32.mrb[0].mxu0
    %v1758 = vpop.f32.mrb[0].mxu0
    %v1759 = vadd.f32 %v1198, %v1758
    %v1760 = vpop.f32.mrb[0].mxu0
    %1761 = vmatprep.mubr.bf16.mxu0 0
    %1762 = vmatmul.mubr.bf16.gmra.mrb[0].mxu0 %v1343
    %v1763 = vpop.f32.mrb[0].mxu0
    %v1764 = vadd.f32 %v1198, %v1763
    %v1765 = vpop.f32.mrb[0].mxu0
    %v1766 = vpop.f32.mrb[0].mxu0
    %v1767 = vadd.f32 %v1198, %v1766
    %v1768 = vpop.f32.mrb[0].mxu0
    %1769 = vmatprep.mubr.bf16.mxu0 0
    %1770 = vmatmul.mubr.bf16.gmra.mrb[0].mxu0 %v1346
    %v1771 = vpop.f32.mrb[0].mxu0
    %v1772 = vadd.f32 %v1198, %v1771
    %v1773 = vpop.f32.mrb[0].mxu0
    %v1774 = vpop.f32.mrb[0].mxu0
    %v1775 = vadd.f32 %v1198, %v1774
    %v1776 = vpop.f32.mrb[0].mxu0
    %1777 = vmatprep.mubr.bf16.mxu0 0
    %1778 = vmatmul.mubr.bf16.gmra.mrb[0].mxu0 %v1349
    %v1779 = vpop.f32.mrb[0].mxu0
    %v1780 = vadd.f32 %v1198, %v1779
    %v1781 = vpop.f32.mrb[0].mxu0
    %v1782 = vpop.f32.mrb[0].mxu0
    %v1783 = vadd.f32 %v1198, %v1782
    %v1784 = vpop.f32.mrb[0].mxu0
    %1785 = vmatprep.mubr.bf16.mxu0 0
    %1786 = vmatmul.mubr.bf16.gmra.mrb[0].mxu0 %v1352
    %v1787 = vpop.f32.mrb[0].mxu0
    %v1788 = vadd.f32 %v1198, %v1787
    %v1789 = vpop.f32.mrb[0].mxu0
    %v1790 = vpop.f32.mrb[0].mxu0
    %v1791 = vadd.f32 %v1198, %v1790
    %v1792 = vpop.f32.mrb[0].mxu0
    %1793 = vmatprep.mubr.bf16.mxu0 0
    %1794 = vmatmul.mubr.bf16.gmra.mrb[0].mxu0 %v1355
    %v1795 = vpop.f32.mrb[0].mxu0
    %v1796 = vadd.f32 %v1198, %v1795
    %v1797 = vpop.f32.mrb[0].mxu0
    %v1798 = vpop.f32.mrb[0].mxu0
    %v1799 = vadd.f32 %v1198, %v1798
    %v1800 = vpop.f32.mrb[0].mxu0
    %1801 = vmatprep.mubr.bf16.mxu0 0
    %1802 = vmatmul.mubr.bf16.gmra.mrb[0].mxu0 %v1358
    %v1803 = vpop.f32.mrb[0].mxu0
    %v1804 = vadd.f32 %v1198, %v1803
    %v1805 = vpop.f32.mrb[0].mxu0
    %v1806 = vpop.f32.mrb[0].mxu0
    %v1807 = vadd.f32 %v1198, %v1806
    %v1808 = vpop.f32.mrb[0].mxu0
    %1809 = vmatprep.mubr.bf16.mxu0 0
    %1810 = vmatmul.mubr.bf16.gmra.mrb[0].mxu0 %v1361
    %v1811 = vpop.f32.mrb[0].mxu0
    %v1812 = vadd.f32 %v1198, %v1811
    %v1813 = vpop.f32.mrb[0].mxu0
    %v1814 = vpop.f32.mrb[0].mxu0
    %v1815 = vadd.f32 %v1198, %v1814
    %v1816 = vpop.f32.mrb[0].mxu0
    %1817 = vmatprep.mubr.bf16.mxu0 0
    %1818 = vmatmul.mubr.bf16.gmra.mrb[0].mxu0 %v1364
    %v1819 = vpop.f32.mrb[0].mxu0
    %v1820 = vadd.f32 %v1198, %v1819
    %v1821 = vpop.f32.mrb[0].mxu0
    %v1822 = vpop.f32.mrb[0].mxu0
    %v1823 = vadd.f32 %v1198, %v1822
    %v1824 = vpop.f32.mrb[0].mxu0
    %1825 = vmatprep.mubr.bf16.mxu0 0
    %1826 = vmatmul.mubr.bf16.gmra.mrb[0].mxu0 %v1367
    %v1827 = vpop.f32.mrb[0].mxu0
    %v1828 = vadd.f32 %v1198, %v1827
    %v1829 = vpop.f32.mrb[0].mxu0
    %v1830 = vpop.f32.mrb[0].mxu0
    %v1831 = vadd.f32 %v1198, %v1830
    %v1832 = vpop.f32.mrb[0].mxu0
    %1833 = vmatprep.mubr.bf16.mxu0 0
    %1834 = vmatmul.mubr.bf16.gmra.mrb[0].mxu0 %v1370
    %v1835 = vpop.f32.mrb[0].mxu0
    %v1836 = vadd.f32 %v1198, %v1835
    %v1837 = vpop.f32.mrb[0].mxu0
    %v1838 = vpop.f32.mrb[0].mxu0
    %v1839 = vadd.f32 %v1198, %v1838
    %v1840 = vpop.f32.mrb[0].mxu0
    %1841 = vmatprep.mubr.bf16.mxu0 0
    %1842 = vmatmul.mubr.bf16.gmra.mrb[0].mxu0 %v1373
    %v1843 = vpop.f32.mrb[0].mxu0
    %v1844 = vadd.f32 %v1198, %v1843
    %v1845 = vpop.f32.mrb[0].mxu0
    %v1846 = vpop.f32.mrb[0].mxu0
    %v1847 = vadd.f32 %v1198, %v1846
    %v1848 = vpop.f32.mrb[0].mxu0
    %1849 = vmatprep.mubr.bf16.mxu0 0
    %1850 = vmatmul.mubr.bf16.gmra.mrb[0].mxu0 %v1376
    %v1851 = vpop.f32.mrb[0].mxu0
    %v1852 = vadd.f32 %v1198, %v1851
    %v1853 = vpop.f32.mrb[0].mxu0
    %v1854 = vpop.f32.mrb[0].mxu0
    %v1855 = vadd.f32 %v1198, %v1854
    %v1856 = vpop.f32.mrb[0].mxu0
    %1857 = vmatprep.mubr.bf16.mxu0 0
    %1858 = vmatmul.mubr.bf16.gmra.mrb[0].mxu0 %v1379
    %v1859 = vpop.f32.mrb[0].mxu0
    %v1860 = vadd.f32 %v1198, %v1859
    %v1861 = vpop.f32.mrb[0].mxu0
    %v1862 = vpop.f32.mrb[0].mxu0
    %v1863 = vadd.f32 %v1198, %v1862
    %v1864 = vpop.f32.mrb[0].mxu0
    %1865 = vmatprep.mubr.bf16.mxu0 0
    %1866 = vmatmul.mubr.bf16.gmra.mrb[0].mxu0 %v1382
    %v1867 = vpop.f32.mrb[0].mxu0
    %v1868 = vadd.f32 %v1198, %v1867
    %v1869 = vpop.f32.mrb[0].mxu0
    %v1870 = vpop.f32.mrb[0].mxu0
    %v1871 = vadd.f32 %v1198, %v1870
    %v1872 = vpop.f32.mrb[0].mxu0
    %1873 = vmatprep.mubr.bf16.mxu0 0
    %1874 = vmatmul.mubr.bf16.gmra.mrb[0].mxu0 %v1385
    %v1875 = vpop.f32.mrb[0].mxu0
    %v1876 = vadd.f32 %v1198, %v1875
    %v1877 = vpop.f32.mrb[0].mxu0
    %v1878 = vpop.f32.mrb[0].mxu0
    %v1879 = vadd.f32 %v1198, %v1878
    %v1880 = vpop.f32.mrb[0].mxu0
    %1881 = vmatprep.mubr.bf16.mxu0 0
    %1882 = vmatmul.mubr.bf16.gmra.mrb[0].mxu0 %v1388
    %v1883 = vpop.f32.mrb[0].mxu0
    %v1884 = vadd.f32 %v1198, %v1883
    %v1885 = vpop.f32.mrb[0].mxu0
    %v1886 = vpop.f32.mrb[0].mxu0
    %v1887 = vadd.f32 %v1198, %v1886
    %v1888 = vpop.f32.mrb[0].mxu0
    %1889 = vmatprep.mubr.bf16.mxu0 0
    %1890 = vmatmul.mubr.bf16.gmra.mrb[0].mxu0 %v1391
    %v1891 = vpop.f32.mrb[0].mxu0
    %v1892 = vadd.f32 %v1198, %v1891
    %v1893 = vpop.f32.mrb[0].mxu0
    %v1894 = vpop.f32.mrb[0].mxu0
    %v1895 = vadd.f32 %v1198, %v1894
    %v1896 = vpop.f32.mrb[0].mxu0
    %1897 = vmatprep.mubr.bf16.mxu0 0
    %1898 = vmatmul.mubr.bf16.gmra.mrb[0].mxu0 %v1394
    %v1899 = vpop.f32.mrb[0].mxu0
    %v1900 = vadd.f32 %v1198, %v1899
    %v1901 = vpop.f32.mrb[0].mxu0
    %v1902 = vpop.f32.mrb[0].mxu0
    %v1903 = vadd.f32 %v1198, %v1902
    %v1904 = vpop.f32.mrb[0].mxu0
    %1905 = vmatprep.mubr.bf16.mxu0 0
    %1906 = vmatmul.mubr.bf16.gmra.mrb[0].mxu0 %v1397
    %v1907 = vpop.f32.mrb[0].mxu0
    %v1908 = vadd.f32 %v1198, %v1907
    %v1909 = vpop.f32.mrb[0].mxu0
    %v1910 = vpop.f32.mrb[0].mxu0
    %v1911 = vadd.f32 %v1198, %v1910
    %v1912 = vpop.f32.mrb[0].mxu0
    %1913 = vmatprep.mubr.bf16.mxu0 0
    %1914 = vmatmul.mubr.bf16.gmra.mrb[0].mxu0 %v1400
    %v1915 = vpop.f32.mrb[0].mxu0
    %v1916 = vadd.f32 %v1198, %v1915
    %v1917 = vpop.f32.mrb[0].mxu0
    %v1918 = vpop.f32.mrb[0].mxu0
    %v1919 = vadd.f32 %v1198, %v1918
    %v1920 = vpop.f32.mrb[0].mxu0
    %1921 = vmatprep.mubr.bf16.mxu0 0
    %1922 = vmatmul.mubr.bf16.gmra.mrb[0].mxu0 %v1403
    %v1923 = vpop.f32.mrb[0].mxu0
    %v1924 = vadd.f32 %v1198, %v1923
    %v1925 = vpop.f32.mrb[0].mxu0
    %v1926 = vpop.f32.mrb[0].mxu0
    %v1927 = vadd.f32 %v1198, %v1926
    %v1928 = vpop.f32.mrb[0].mxu0
    %1929 = vmatprep.mubr.bf16.mxu0 0
    %1930 = vmatmul.mubr.bf16.gmra.mrb[0].mxu0 %v1406
    %v1931 = vpop.f32.mrb[0].mxu0
    %v1932 = vadd.f32 %v1198, %v1931
    %v1933 = vpop.f32.mrb[0].mxu0
    %v1934 = vpop.f32.mrb[0].mxu0
    %v1935 = vadd.f32 %v1198, %v1934
    %v1936 = vpop.f32.mrb[0].mxu0
    %1937 = vmatprep.mubr.bf16.mxu0 0
    %1938 = vmatmul.mubr.bf16.gmra.mrb[0].mxu0 %v1409
    %v1939 = vpop.f32.mrb[0].mxu0
    %v1940 = vadd.f32 %v1198, %v1939
    %v1941 = vpop.f32.mrb[0].mxu0
    %v1942 = vpop.f32.mrb[0].mxu0
    %v1943 = vadd.f32 %v1198, %v1942
    %v1944 = vpop.f32.mrb[0].mxu0
    %1945 = vmatprep.mubr.bf16.mxu0 0
    %1946 = vmatmul.mubr.bf16.gmra.mrb[0].mxu0 %v1412
    %v1947 = vpop.f32.mrb[0].mxu0
    %v1948 = vadd.f32 %v1198, %v1947
    %v1949 = vpop.f32.mrb[0].mxu0
    %v1950 = vpop.f32.mrb[0].mxu0
    %v1951 = vadd.f32 %v1198, %v1950
    %v1952 = vpop.f32.mrb[0].mxu0
    %1953 = vmatprep.mubr.bf16.mxu0 0
    %1954 = vmatmul.mubr.bf16.gmra.mrb[0].mxu0 %v1415
    %v1955 = vpop.f32.mrb[0].mxu0
    %v1956 = vadd.f32 %v1198, %v1955
    %v1957 = vpop.f32.mrb[0].mxu0
    %v1958 = vpop.f32.mrb[0].mxu0
    %v1959 = vadd.f32 %v1198, %v1958
    %v1960 = vpop.f32.mrb[0].mxu0
    %1961 = vdwg.mxu0
    %v1962 = vmax.f32 %v1452, 0.0
    %v1963 = vmax.f32 %v1455, 0.0
    %v1964 = vmax.f32 %v1460, 0.0
    %v1965 = vmax.f32 %v1463, 0.0
    %v1966 = vmax.f32 %v1468, 0.0
    %v1967 = vmax.f32 %v1471, 0.0
    %v1968 = vmax.f32 %v1476, 0.0
    %v1969 = vmax.f32 %v1479, 0.0
    %v1970 = vmax.f32 %v1484, 0.0
    %v1971 = vmax.f32 %v1487, 0.0
    %v1972 = vmax.f32 %v1492, 0.0
    %v1973 = vmax.f32 %v1495, 0.0
    %v1974 = vmax.f32 %v1500, 0.0
    %v1975 = vmax.f32 %v1503, 0.0
    %v1976 = vmax.f32 %v1508, 0.0
    %v1977 = vmax.f32 %v1511, 0.0
    %v1978 = vmax.f32 %v1516, 0.0
    %v1979 = vmax.f32 %v1519, 0.0
    %v1980 = vmax.f32 %v1524, 0.0
    %v1981 = vmax.f32 %v1527, 0.0
    %v1982 = vmax.f32 %v1532, 0.0
    %v1983 = vmax.f32 %v1535, 0.0
    %v1984 = vmax.f32 %v1540, 0.0
    %v1985 = vmax.f32 %v1543, 0.0
    %v1986 = vmax.f32 %v1548, 0.0
    %v1987 = vmax.f32 %v1551, 0.0
    %v1988 = vmax.f32 %v1556, 0.0
    %v1989 = vmax.f32 %v1559, 0.0
    %v1990 = vmax.f32 %v1564, 0.0
    %v1991 = vmax.f32 %v1567, 0.0
    %v1992 = vmax.f32 %v1572, 0.0
    %v1993 = vmax.f32 %v1575, 0.0
    %v1994 = vmax.f32 %v1580, 0.0
    %v1995 = vmax.f32 %v1583, 0.0
    %v1996 = vmax.f32 %v1588, 0.0
    %v1997 = vmax.f32 %v1591, 0.0
    %v1998 = vmax.f32 %v1596, 0.0
    %v1999 = vmax.f32 %v1599, 0.0
    %v2000 = vmax.f32 %v1604, 0.0
    %v2001 = vmax.f32 %v1607, 0.0
    %v2002 = vmax.f32 %v1612, 0.0
    %v2003 = vmax.f32 %v1615, 0.0
    %v2004 = vmax.f32 %v1620, 0.0
    %v2005 = vmax.f32 %v1623, 0.0
    %v2006 = vmax.f32 %v1628, 0.0
    %v2007 = vmax.f32 %v1631, 0.0
    %v2008 = vmax.f32 %v1636, 0.0
    %v2009 = vmax.f32 %v1639, 0.0
    %v2010 = vmax.f32 %v1644, 0.0
    %v2011 = vmax.f32 %v1647, 0.0
    %v2012 = vmax.f32 %v1652, 0.0
    %v2013 = vmax.f32 %v1655, 0.0
    %v2014 = vmax.f32 %v1660, 0.0
    %v2015 = vmax.f32 %v1663, 0.0
    %v2016 = vmax.f32 %v1668, 0.0
    %v2017 = vmax.f32 %v1671, 0.0
    %v2018 = vmax.f32 %v1676, 0.0
    %v2019 = vmax.f32 %v1679, 0.0
    %v2020 = vmax.f32 %v1684, 0.0
    %v2021 = vmax.f32 %v1687, 0.0
    %v2022 = vmax.f32 %v1692, 0.0
    %v2023 = vmax.f32 %v1695, 0.0
    %v2024 = vmax.f32 %v1700, 0.0
    %v2025 = vmax.f32 %v1703, 0.0
    %v2026 = vmax.f32 %v1708, 0.0
    %v2027 = vmax.f32 %v1711, 0.0
    %v2028 = vmax.f32 %v1716, 0.0
    %v2029 = vmax.f32 %v1719, 0.0
    %v2030 = vmax.f32 %v1724, 0.0
    %v2031 = vmax.f32 %v1727, 0.0
    %v2032 = vmax.f32 %v1732, 0.0
    %v2033 = vmax.f32 %v1735, 0.0
    %v2034 = vmax.f32 %v1740, 0.0
    %v2035 = vmax.f32 %v1743, 0.0
    %v2036 = vmax.f32 %v1748, 0.0
    %v2037 = vmax.f32 %v1751, 0.0
    %v2038 = vmax.f32 %v1756, 0.0
    %v2039 = vmax.f32 %v1759, 0.0
    %v2040 = vmax.f32 %v1764, 0.0
    %v2041 = vmax.f32 %v1767, 0.0
    %v2042 = vmax.f32 %v1772, 0.0
    %v2043 = vmax.f32 %v1775, 0.0
    %v2044 = vmax.f32 %v1780, 0.0
    %v2045 = vmax.f32 %v1783, 0.0
    %v2046 = vmax.f32 %v1788, 0.0
    %v2047 = vmax.f32 %v1791, 0.0
    %v2048 = vmax.f32 %v1796, 0.0
    %v2049 = vmax.f32 %v1799, 0.0
    %v2050 = vmax.f32 %v1804, 0.0
    %v2051 = vmax.f32 %v1807, 0.0
    %v2052 = vmax.f32 %v1812, 0.0
    %v2053 = vmax.f32 %v1815, 0.0
    %v2054 = vmax.f32 %v1820, 0.0
    %v2055 = vmax.f32 %v1823, 0.0
    %v2056 = vmax.f32 %v1828, 0.0
    %v2057 = vmax.f32 %v1831, 0.0
    %v2058 = vmax.f32 %v1836, 0.0
    %v2059 = vmax.f32 %v1839, 0.0
    %v2060 = vmax.f32 %v1844, 0.0
    %v2061 = vmax.f32 %v1847, 0.0
    %v2062 = vmax.f32 %v1852, 0.0
    %v2063 = vmax.f32 %v1855, 0.0
    %v2064 = vmax.f32 %v1860, 0.0
    %v2065 = vmax.f32 %v1863, 0.0
    %v2066 = vmax.f32 %v1868, 0.0
    %v2067 = vmax.f32 %v1871, 0.0
    %v2068 = vmax.f32 %v1876, 0.0
    %v2069 = vmax.f32 %v1879, 0.0
    %v2070 = vmax.f32 %v1884, 0.0
    %v2071 = vmax.f32 %v1887, 0.0
    %v2072 = vmax.f32 %v1892, 0.0
    %v2073 = vmax.f32 %v1895, 0.0
    %v2074 = vmax.f32 %v1900, 0.0
    %v2075 = vmax.f32 %v1903, 0.0
    %v2076 = vmax.f32 %v1908, 0.0
    %v2077 = vmax.f32 %v1911, 0.0
    %v2078 = vmax.f32 %v1916, 0.0
    %v2079 = vmax.f32 %v1919, 0.0
    %v2080 = vmax.f32 %v1924, 0.0
    %v2081 = vmax.f32 %v1927, 0.0
    %v2082 = vmax.f32 %v1932, 0.0
    %v2083 = vmax.f32 %v1935, 0.0
    %v2084 = vmax.f32 %v1940, 0.0
    %v2085 = vmax.f32 %v1943, 0.0
    %v2086 = vmax.f32 %v1948, 0.0
    %v2087 = vmax.f32 %v1951, 0.0
    %v2088 = vmax.f32 %v1956, 0.0
    %v2089 = vmax.f32 %v1959, 0.0
    %v2090 = vpack.c.bf16 %v1963, %v1962
    %v2091 = vpack.c.bf16 %v1965, %v1964
    %v2092 = vpack.c.bf16 %v1967, %v1966
    %v2093 = vpack.c.bf16 %v1969, %v1968
    %v2094 = vpack.c.bf16 %v1971, %v1970
    %v2095 = vpack.c.bf16 %v1973, %v1972
    %v2096 = vpack.c.bf16 %v1975, %v1974
    %v2097 = vpack.c.bf16 %v1977, %v1976
    %v2098 = vpack.c.bf16 %v1979, %v1978
    %v2099 = vpack.c.bf16 %v1981, %v1980
    %v2100 = vpack.c.bf16 %v1983, %v1982
    %v2101 = vpack.c.bf16 %v1985, %v1984
    %v2102 = vpack.c.bf16 %v1987, %v1986
    %v2103 = vpack.c.bf16 %v1989, %v1988
    %v2104 = vpack.c.bf16 %v1991, %v1990
    %v2105 = vpack.c.bf16 %v1993, %v1992
    %v2106 = vpack.c.bf16 %v1995, %v1994
    %v2107 = vpack.c.bf16 %v1997, %v1996
    %v2108 = vpack.c.bf16 %v1999, %v1998
    %v2109 = vpack.c.bf16 %v2001, %v2000
    %v2110 = vpack.c.bf16 %v2003, %v2002
    %v2111 = vpack.c.bf16 %v2005, %v2004
    %v2112 = vpack.c.bf16 %v2007, %v2006
    %v2113 = vpack.c.bf16 %v2009, %v2008
    %v2114 = vpack.c.bf16 %v2011, %v2010
    %v2115 = vpack.c.bf16 %v2013, %v2012
    %v2116 = vpack.c.bf16 %v2015, %v2014
    %v2117 = vpack.c.bf16 %v2017, %v2016
    %v2118 = vpack.c.bf16 %v2019, %v2018
    %v2119 = vpack.c.bf16 %v2021, %v2020
    %v2120 = vpack.c.bf16 %v2023, %v2022
    %v2121 = vpack.c.bf16 %v2025, %v2024
    %v2122 = vpack.c.bf16 %v2027, %v2026
    %v2123 = vpack.c.bf16 %v2029, %v2028
    %v2124 = vpack.c.bf16 %v2031, %v2030
    %v2125 = vpack.c.bf16 %v2033, %v2032
    %v2126 = vpack.c.bf16 %v2035, %v2034
    %v2127 = vpack.c.bf16 %v2037, %v2036
    %v2128 = vpack.c.bf16 %v2039, %v2038
    %v2129 = vpack.c.bf16 %v2041, %v2040
    %v2130 = vpack.c.bf16 %v2043, %v2042
    %v2131 = vpack.c.bf16 %v2045, %v2044
    %v2132 = vpack.c.bf16 %v2047, %v2046
    %v2133 = vpack.c.bf16 %v2049, %v2048
    %v2134 = vpack.c.bf16 %v2051, %v2050
    %v2135 = vpack.c.bf16 %v2053, %v2052
    %v2136 = vpack.c.bf16 %v2055, %v2054
    %v2137 = vpack.c.bf16 %v2057, %v2056
    %v2138 = vpack.c.bf16 %v2059, %v2058
    %v2139 = vpack.c.bf16 %v2061, %v2060
    %v2140 = vpack.c.bf16 %v2063, %v2062
    %v2141 = vpack.c.bf16 %v2065, %v2064
    %v2142 = vpack.c.bf16 %v2067, %v2066
    %v2143 = vpack.c.bf16 %v2069, %v2068
    %v2144 = vpack.c.bf16 %v2071, %v2070
    %v2145 = vpack.c.bf16 %v2073, %v2072
    %v2146 = vpack.c.bf16 %v2075, %v2074
    %v2147 = vpack.c.bf16 %v2077, %v2076
    %v2148 = vpack.c.bf16 %v2079, %v2078
    %v2149 = vpack.c.bf16 %v2081, %v2080
    %v2150 = vpack.c.bf16 %v2083, %v2082
    %v2151 = vpack.c.bf16 %v2085, %v2084
    %v2152 = vpack.c.bf16 %v2087, %v2086
    %v2153 = vpack.c.bf16 %v2089, %v2088
    %v2154 = vld [vmem:[%s5] sm:$0xf]
    %v2155 = vld [vmem:[%s5 + $0x4] sm:$0xf]
    %v2156 = vld [vmem:[%s5 + $0x8] sm:$0xf]
    %v2157 = vld [vmem:[%s5 + $0xc] sm:$0xf]
    %v2158 = vld [vmem:[%s5 + $0x10] sm:$0xf]
    %v2159 = vld [vmem:[%s5 + $0x14] sm:$0xf]
    %v2160 = vld [vmem:[%s5 + $0x18] sm:$0xf]
    %v2161 = vld [vmem:[%s5 + $0x1c] sm:$0xf]
    %v2162 = vld [vmem:[%s5 + $0x20] sm:$0xf]
    %v2163 = vld [vmem:[%s5 + $0x24] sm:$0xf]
    %v2164 = vld [vmem:[%s5 + $0x28] sm:$0xf]
    %v2165 = vld [vmem:[%s5 + $0x2c] sm:$0xf]
    %v2166 = vld [vmem:[%s5 + $0x30] sm:$0xf]
    %v2167 = vld [vmem:[%s5 + $0x34] sm:$0xf]
    %v2168 = vld [vmem:[%s5 + $0x38] sm:$0xf]
    %v2169 = vld [vmem:[%s5 + $0x3c] sm:$0xf]
    %v2170 = vld [vmem:[%s6] sm:$0x1]
    %v2172 = vlaneseq
    %v2173 = vshrl.u32 %v2172, 7
    %v2174 = vsub.s32 0, %v2173
    %v2175 = vrot.slane %v2170, %v2174
    %v2193 = vunpack.c.l.b16 %v2154
    %v2194 = vunpack.c.l.b16 %v2155
    %v2195 = vunpack.c.l.b16 %v2156
    %v2196 = vunpack.c.l.b16 %v2157
    %v2197 = vunpack.c.l.b16 %v2158
    %v2198 = vunpack.c.l.b16 %v2159
    %v2199 = vunpack.c.l.b16 %v2160
    %v2200 = vunpack.c.l.b16 %v2161
    %v2201 = vunpack.c.l.b16 %v2162
    %v2202 = vunpack.c.l.b16 %v2163
    %v2203 = vunpack.c.l.b16 %v2164
    %v2204 = vunpack.c.l.b16 %v2165
    %v2205 = vunpack.c.l.b16 %v2166
    %v2206 = vunpack.c.l.b16 %v2167
    %v2207 = vunpack.c.l.b16 %v2168
    %v2208 = vunpack.c.l.b16 %v2169
    %v2209 = vpack.c.b16 %v2194, %v2193
    %v2210 = vpack.c.b16 %v2196, %v2195
    %v2211 = vpack.c.b16 %v2198, %v2197
    %v2212 = vpack.c.b16 %v2200, %v2199
    %v2213 = vpack.c.b16 %v2202, %v2201
    %v2214 = vpack.c.b16 %v2204, %v2203
    %v2215 = vpack.c.b16 %v2206, %v2205
    %v2216 = vpack.c.b16 %v2208, %v2207
    %2225 = vmatprep.subr.bf16.mxu0 0
    %2226 = vmatpush1.bf16.msra.mxu0 %v2209
    %2227 = vmatprep.subr.bf16.mxu0 0
    %2228 = vmatpush1.bf16.msra.mxu0 %v2210
    %2229 = vmatprep.subr.bf16.mxu0 0
    %2230 = vmatpush1.bf16.msra.mxu0 %v2211
    %2231 = vmatprep.subr.bf16.mxu0 0
    %2232 = vmatpush1.bf16.msra.mxu0 %v2212
    %2233 = vmatprep.subr.bf16.mxu0 0
    %2234 = vmatpush1.bf16.msra.mxu0 %v2213
    %2235 = vmatprep.subr.bf16.mxu0 0
    %2236 = vmatpush1.bf16.msra.mxu0 %v2214
    %2237 = vmatprep.subr.bf16.mxu0 0
    %2238 = vmatpush1.bf16.msra.mxu0 %v2215
    %2239 = vmatprep.subr.bf16.mxu0 0
    %2240 = vmatpush1.bf16.msra.mxu0 %v2216
    %2241 = vmatprep.subr.bf16.mxu0 0
    %2242 = vmatpush1.bf16.msra.mxu0 0
    %2243 = vmatprep.subr.bf16.mxu0 0
    %2244 = vmatpush1.bf16.msra.mxu0 0
    %2245 = vmatprep.subr.bf16.mxu0 0
    %2246 = vmatpush1.bf16.msra.mxu0 0
    %2247 = vmatprep.subr.bf16.mxu0 0
    %2248 = vmatpush1.bf16.msra.mxu0 0
    %2249 = vmatprep.subr.bf16.mxu0 0
    %2250 = vmatpush1.bf16.msra.mxu0 0
    %2251 = vmatprep.subr.bf16.mxu0 0
    %2252 = vmatpush1.bf16.msra.mxu0 0
    %2253 = vmatprep.subr.bf16.mxu0 0
    %2254 = vmatpush1.bf16.msra.mxu0 0
    %2255 = vmatprep.subr.bf16.mxu0 0
    %2256 = vmatpush1.bf16.msra.mxu0 0
    %2257 = vmatprep.mubr.bf16.mxu0 0
    %2258 = vmatmul.mubr.bf16.gmra.mrb[0].mxu0 %v2090
    %v2259 = vpop.f32.mrb[0].mxu0
    %v2260 = vadd.f32 %v2175, %v2259
    %v2261 = vpop.f32.mrb[0].mxu0
    %v2262 = vpop.f32.mrb[0].mxu0
    %v2263 = vadd.f32 %v2175, %v2262
    %v2264 = vpop.f32.mrb[0].mxu0
    %2265 = vmatprep.mubr.bf16.mxu0 0
    %2266 = vmatmul.mubr.bf16.gmra.mrb[0].mxu0 %v2091
    %v2267 = vpop.f32.mrb[0].mxu0
    %v2268 = vadd.f32 %v2175, %v2267
    %v2269 = vpop.f32.mrb[0].mxu0
    %v2270 = vpop.f32.mrb[0].mxu0
    %v2271 = vadd.f32 %v2175, %v2270
    %v2272 = vpop.f32.mrb[0].mxu0
    %2273 = vmatprep.mubr.bf16.mxu0 0
    %2274 = vmatmul.mubr.bf16.gmra.mrb[0].mxu0 %v2092
    %v2275 = vpop.f32.mrb[0].mxu0
    %v2276 = vadd.f32 %v2175, %v2275
    %v2277 = vpop.f32.mrb[0].mxu0
    %v2278 = vpop.f32.mrb[0].mxu0
    %v2279 = vadd.f32 %v2175, %v2278
    %v2280 = vpop.f32.mrb[0].mxu0
    %2281 = vmatprep.mubr.bf16.mxu0 0
    %2282 = vmatmul.mubr.bf16.gmra.mrb[0].mxu0 %v2093
    %v2283 = vpop.f32.mrb[0].mxu0
    %v2284 = vadd.f32 %v2175, %v2283
    %v2285 = vpop.f32.mrb[0].mxu0
    %v2286 = vpop.f32.mrb[0].mxu0
    %v2287 = vadd.f32 %v2175, %v2286
    %v2288 = vpop.f32.mrb[0].mxu0
    %2289 = vmatprep.mubr.bf16.mxu0 0
    %2290 = vmatmul.mubr.bf16.gmra.mrb[0].mxu0 %v2094
    %v2291 = vpop.f32.mrb[0].mxu0
    %v2292 = vadd.f32 %v2175, %v2291
    %v2293 = vpop.f32.mrb[0].mxu0
    %v2294 = vpop.f32.mrb[0].mxu0
    %v2295 = vadd.f32 %v2175, %v2294
    %v2296 = vpop.f32.mrb[0].mxu0
    %2297 = vmatprep.mubr.bf16.mxu0 0
    %2298 = vmatmul.mubr.bf16.gmra.mrb[0].mxu0 %v2095
    %v2299 = vpop.f32.mrb[0].mxu0
    %v2300 = vadd.f32 %v2175, %v2299
    %v2301 = vpop.f32.mrb[0].mxu0
    %v2302 = vpop.f32.mrb[0].mxu0
    %v2303 = vadd.f32 %v2175, %v2302
    %v2304 = vpop.f32.mrb[0].mxu0
    %2305 = vmatprep.mubr.bf16.mxu0 0
    %2306 = vmatmul.mubr.bf16.gmra.mrb[0].mxu0 %v2096
    %v2307 = vpop.f32.mrb[0].mxu0
    %v2308 = vadd.f32 %v2175, %v2307
    %v2309 = vpop.f32.mrb[0].mxu0
    %v2310 = vpop.f32.mrb[0].mxu0
    %v2311 = vadd.f32 %v2175, %v2310
    %v2312 = vpop.f32.mrb[0].mxu0
    %2313 = vmatprep.mubr.bf16.mxu0 0
    %2314 = vmatmul.mubr.bf16.gmra.mrb[0].mxu0 %v2097
    %v2315 = vpop.f32.mrb[0].mxu0
    %v2316 = vadd.f32 %v2175, %v2315
    %v2317 = vpop.f32.mrb[0].mxu0
    %v2318 = vpop.f32.mrb[0].mxu0
    %v2319 = vadd.f32 %v2175, %v2318
    %v2320 = vpop.f32.mrb[0].mxu0
    %2321 = vmatprep.mubr.bf16.mxu0 0
    %2322 = vmatmul.mubr.bf16.gmra.mrb[0].mxu0 %v2098
    %v2323 = vpop.f32.mrb[0].mxu0
    %v2324 = vadd.f32 %v2175, %v2323
    %v2325 = vpop.f32.mrb[0].mxu0
    %v2326 = vpop.f32.mrb[0].mxu0
    %v2327 = vadd.f32 %v2175, %v2326
    %v2328 = vpop.f32.mrb[0].mxu0
    %2329 = vmatprep.mubr.bf16.mxu0 0
    %2330 = vmatmul.mubr.bf16.gmra.mrb[0].mxu0 %v2099
    %v2331 = vpop.f32.mrb[0].mxu0
    %v2332 = vadd.f32 %v2175, %v2331
    %v2333 = vpop.f32.mrb[0].mxu0
    %v2334 = vpop.f32.mrb[0].mxu0
    %v2335 = vadd.f32 %v2175, %v2334
    %v2336 = vpop.f32.mrb[0].mxu0
    %2337 = vmatprep.mubr.bf16.mxu0 0
    %2338 = vmatmul.mubr.bf16.gmra.mrb[0].mxu0 %v2100
    %v2339 = vpop.f32.mrb[0].mxu0
    %v2340 = vadd.f32 %v2175, %v2339
    %v2341 = vpop.f32.mrb[0].mxu0
    %v2342 = vpop.f32.mrb[0].mxu0
    %v2343 = vadd.f32 %v2175, %v2342
    %v2344 = vpop.f32.mrb[0].mxu0
    %2345 = vmatprep.mubr.bf16.mxu0 0
    %2346 = vmatmul.mubr.bf16.gmra.mrb[0].mxu0 %v2101
    %v2347 = vpop.f32.mrb[0].mxu0
    %v2348 = vadd.f32 %v2175, %v2347
    %v2349 = vpop.f32.mrb[0].mxu0
    %v2350 = vpop.f32.mrb[0].mxu0
    %v2351 = vadd.f32 %v2175, %v2350
    %v2352 = vpop.f32.mrb[0].mxu0
    %2353 = vmatprep.mubr.bf16.mxu0 0
    %2354 = vmatmul.mubr.bf16.gmra.mrb[0].mxu0 %v2102
    %v2355 = vpop.f32.mrb[0].mxu0
    %v2356 = vadd.f32 %v2175, %v2355
    %v2357 = vpop.f32.mrb[0].mxu0
    %v2358 = vpop.f32.mrb[0].mxu0
    %v2359 = vadd.f32 %v2175, %v2358
    %v2360 = vpop.f32.mrb[0].mxu0
    %2361 = vmatprep.mubr.bf16.mxu0 0
    %2362 = vmatmul.mubr.bf16.gmra.mrb[0].mxu0 %v2103
    %v2363 = vpop.f32.mrb[0].mxu0
    %v2364 = vadd.f32 %v2175, %v2363
    %v2365 = vpop.f32.mrb[0].mxu0
    %v2366 = vpop.f32.mrb[0].mxu0
    %v2367 = vadd.f32 %v2175, %v2366
    %v2368 = vpop.f32.mrb[0].mxu0
    %2369 = vmatprep.mubr.bf16.mxu0 0
    %2370 = vmatmul.mubr.bf16.gmra.mrb[0].mxu0 %v2104
    %v2371 = vpop.f32.mrb[0].mxu0
    %v2372 = vadd.f32 %v2175, %v2371
    %v2373 = vpop.f32.mrb[0].mxu0
    %v2374 = vpop.f32.mrb[0].mxu0
    %v2375 = vadd.f32 %v2175, %v2374
    %v2376 = vpop.f32.mrb[0].mxu0
    %2377 = vmatprep.mubr.bf16.mxu0 0
    %2378 = vmatmul.mubr.bf16.gmra.mrb[0].mxu0 %v2105
    %v2379 = vpop.f32.mrb[0].mxu0
    %v2380 = vadd.f32 %v2175, %v2379
    %v2381 = vpop.f32.mrb[0].mxu0
    %v2382 = vpop.f32.mrb[0].mxu0
    %v2383 = vadd.f32 %v2175, %v2382
    %v2384 = vpop.f32.mrb[0].mxu0
    %2385 = vmatprep.mubr.bf16.mxu0 0
    %2386 = vmatmul.mubr.bf16.gmra.mrb[0].mxu0 %v2106
    %v2387 = vpop.f32.mrb[0].mxu0
    %v2388 = vadd.f32 %v2175, %v2387
    %v2389 = vpop.f32.mrb[0].mxu0
    %v2390 = vpop.f32.mrb[0].mxu0
    %v2391 = vadd.f32 %v2175, %v2390
    %v2392 = vpop.f32.mrb[0].mxu0
    %2393 = vmatprep.mubr.bf16.mxu0 0
    %2394 = vmatmul.mubr.bf16.gmra.mrb[0].mxu0 %v2107
    %v2395 = vpop.f32.mrb[0].mxu0
    %v2396 = vadd.f32 %v2175, %v2395
    %v2397 = vpop.f32.mrb[0].mxu0
    %v2398 = vpop.f32.mrb[0].mxu0
    %v2399 = vadd.f32 %v2175, %v2398
    %v2400 = vpop.f32.mrb[0].mxu0
    %2401 = vmatprep.mubr.bf16.mxu0 0
    %2402 = vmatmul.mubr.bf16.gmra.mrb[0].mxu0 %v2108
    %v2403 = vpop.f32.mrb[0].mxu0
    %v2404 = vadd.f32 %v2175, %v2403
    %v2405 = vpop.f32.mrb[0].mxu0
    %v2406 = vpop.f32.mrb[0].mxu0
    %v2407 = vadd.f32 %v2175, %v2406
    %v2408 = vpop.f32.mrb[0].mxu0
    %2409 = vmatprep.mubr.bf16.mxu0 0
    %2410 = vmatmul.mubr.bf16.gmra.mrb[0].mxu0 %v2109
    %v2411 = vpop.f32.mrb[0].mxu0
    %v2412 = vadd.f32 %v2175, %v2411
    %v2413 = vpop.f32.mrb[0].mxu0
    %v2414 = vpop.f32.mrb[0].mxu0
    %v2415 = vadd.f32 %v2175, %v2414
    %v2416 = vpop.f32.mrb[0].mxu0
    %2417 = vmatprep.mubr.bf16.mxu0 0
    %2418 = vmatmul.mubr.bf16.gmra.mrb[0].mxu0 %v2110
    %v2419 = vpop.f32.mrb[0].mxu0
    %v2420 = vadd.f32 %v2175, %v2419
    %v2421 = vpop.f32.mrb[0].mxu0
    %v2422 = vpop.f32.mrb[0].mxu0
    %v2423 = vadd.f32 %v2175, %v2422
    %v2424 = vpop.f32.mrb[0].mxu0
    %2425 = vmatprep.mubr.bf16.mxu0 0
    %2426 = vmatmul.mubr.bf16.gmra.mrb[0].mxu0 %v2111
    %v2427 = vpop.f32.mrb[0].mxu0
    %v2428 = vadd.f32 %v2175, %v2427
    %v2429 = vpop.f32.mrb[0].mxu0
    %v2430 = vpop.f32.mrb[0].mxu0
    %v2431 = vadd.f32 %v2175, %v2430
    %v2432 = vpop.f32.mrb[0].mxu0
    %2433 = vmatprep.mubr.bf16.mxu0 0
    %2434 = vmatmul.mubr.bf16.gmra.mrb[0].mxu0 %v2112
    %v2435 = vpop.f32.mrb[0].mxu0
    %v2436 = vadd.f32 %v2175, %v2435
    %v2437 = vpop.f32.mrb[0].mxu0
    %v2438 = vpop.f32.mrb[0].mxu0
    %v2439 = vadd.f32 %v2175, %v2438
    %v2440 = vpop.f32.mrb[0].mxu0
    %2441 = vmatprep.mubr.bf16.mxu0 0
    %2442 = vmatmul.mubr.bf16.gmra.mrb[0].mxu0 %v2113
    %v2443 = vpop.f32.mrb[0].mxu0
    %v2444 = vadd.f32 %v2175, %v2443
    %v2445 = vpop.f32.mrb[0].mxu0
    %v2446 = vpop.f32.mrb[0].mxu0
    %v2447 = vadd.f32 %v2175, %v2446
    %v2448 = vpop.f32.mrb[0].mxu0
    %2449 = vmatprep.mubr.bf16.mxu0 0
    %2450 = vmatmul.mubr.bf16.gmra.mrb[0].mxu0 %v2114
    %v2451 = vpop.f32.mrb[0].mxu0
    %v2452 = vadd.f32 %v2175, %v2451
    %v2453 = vpop.f32.mrb[0].mxu0
    %v2454 = vpop.f32.mrb[0].mxu0
    %v2455 = vadd.f32 %v2175, %v2454
    %v2456 = vpop.f32.mrb[0].mxu0
    %2457 = vmatprep.mubr.bf16.mxu0 0
    %2458 = vmatmul.mubr.bf16.gmra.mrb[0].mxu0 %v2115
    %v2459 = vpop.f32.mrb[0].mxu0
    %v2460 = vadd.f32 %v2175, %v2459
    %v2461 = vpop.f32.mrb[0].mxu0
    %v2462 = vpop.f32.mrb[0].mxu0
    %v2463 = vadd.f32 %v2175, %v2462
    %v2464 = vpop.f32.mrb[0].mxu0
    %2465 = vmatprep.mubr.bf16.mxu0 0
    %2466 = vmatmul.mubr.bf16.gmra.mrb[0].mxu0 %v2116
    %v2467 = vpop.f32.mrb[0].mxu0
    %v2468 = vadd.f32 %v2175, %v2467
    %v2469 = vpop.f32.mrb[0].mxu0
    %v2470 = vpop.f32.mrb[0].mxu0
    %v2471 = vadd.f32 %v2175, %v2470
    %v2472 = vpop.f32.mrb[0].mxu0
    %2473 = vmatprep.mubr.bf16.mxu0 0
    %2474 = vmatmul.mubr.bf16.gmra.mrb[0].mxu0 %v2117
    %v2475 = vpop.f32.mrb[0].mxu0
    %v2476 = vadd.f32 %v2175, %v2475
    %v2477 = vpop.f32.mrb[0].mxu0
    %v2478 = vpop.f32.mrb[0].mxu0
    %v2479 = vadd.f32 %v2175, %v2478
    %v2480 = vpop.f32.mrb[0].mxu0
    %2481 = vmatprep.mubr.bf16.mxu0 0
    %2482 = vmatmul.mubr.bf16.gmra.mrb[0].mxu0 %v2118
    %v2483 = vpop.f32.mrb[0].mxu0
    %v2484 = vadd.f32 %v2175, %v2483
    %v2485 = vpop.f32.mrb[0].mxu0
    %v2486 = vpop.f32.mrb[0].mxu0
    %v2487 = vadd.f32 %v2175, %v2486
    %v2488 = vpop.f32.mrb[0].mxu0
    %2489 = vmatprep.mubr.bf16.mxu0 0
    %2490 = vmatmul.mubr.bf16.gmra.mrb[0].mxu0 %v2119
    %v2491 = vpop.f32.mrb[0].mxu0
    %v2492 = vadd.f32 %v2175, %v2491
    %v2493 = vpop.f32.mrb[0].mxu0
    %v2494 = vpop.f32.mrb[0].mxu0
    %v2495 = vadd.f32 %v2175, %v2494
    %v2496 = vpop.f32.mrb[0].mxu0
    %2497 = vmatprep.mubr.bf16.mxu0 0
    %2498 = vmatmul.mubr.bf16.gmra.mrb[0].mxu0 %v2120
    %v2499 = vpop.f32.mrb[0].mxu0
    %v2500 = vadd.f32 %v2175, %v2499
    %v2501 = vpop.f32.mrb[0].mxu0
    %v2502 = vpop.f32.mrb[0].mxu0
    %v2503 = vadd.f32 %v2175, %v2502
    %v2504 = vpop.f32.mrb[0].mxu0
    %2505 = vmatprep.mubr.bf16.mxu0 0
    %2506 = vmatmul.mubr.bf16.gmra.mrb[0].mxu0 %v2121
    %v2507 = vpop.f32.mrb[0].mxu0
    %v2508 = vadd.f32 %v2175, %v2507
    %v2509 = vpop.f32.mrb[0].mxu0
    %v2510 = vpop.f32.mrb[0].mxu0
    %v2511 = vadd.f32 %v2175, %v2510
    %v2512 = vpop.f32.mrb[0].mxu0
    %2513 = vmatprep.mubr.bf16.mxu0 0
    %2514 = vmatmul.mubr.bf16.gmra.mrb[0].mxu0 %v2122
    %v2515 = vpop.f32.mrb[0].mxu0
    %v2516 = vadd.f32 %v2175, %v2515
    %v2517 = vpop.f32.mrb[0].mxu0
    %v2518 = vpop.f32.mrb[0].mxu0
    %v2519 = vadd.f32 %v2175, %v2518
    %v2520 = vpop.f32.mrb[0].mxu0
    %2521 = vmatprep.mubr.bf16.mxu0 0
    %2522 = vmatmul.mubr.bf16.gmra.mrb[0].mxu0 %v2123
    %v2523 = vpop.f32.mrb[0].mxu0
    %v2524 = vadd.f32 %v2175, %v2523
    %v2525 = vpop.f32.mrb[0].mxu0
    %v2526 = vpop.f32.mrb[0].mxu0
    %v2527 = vadd.f32 %v2175, %v2526
    %v2528 = vpop.f32.mrb[0].mxu0
    %2529 = vmatprep.mubr.bf16.mxu0 0
    %2530 = vmatmul.mubr.bf16.gmra.mrb[0].mxu0 %v2124
    %v2531 = vpop.f32.mrb[0].mxu0
    %v2532 = vadd.f32 %v2175, %v2531
    %v2533 = vpop.f32.mrb[0].mxu0
    %v2534 = vpop.f32.mrb[0].mxu0
    %v2535 = vadd.f32 %v2175, %v2534
    %v2536 = vpop.f32.mrb[0].mxu0
    %2537 = vmatprep.mubr.bf16.mxu0 0
    %2538 = vmatmul.mubr.bf16.gmra.mrb[0].mxu0 %v2125
    %v2539 = vpop.f32.mrb[0].mxu0
    %v2540 = vadd.f32 %v2175, %v2539
    %v2541 = vpop.f32.mrb[0].mxu0
    %v2542 = vpop.f32.mrb[0].mxu0
    %v2543 = vadd.f32 %v2175, %v2542
    %v2544 = vpop.f32.mrb[0].mxu0
    %2545 = vmatprep.mubr.bf16.mxu0 0
    %2546 = vmatmul.mubr.bf16.gmra.mrb[0].mxu0 %v2126
    %v2547 = vpop.f32.mrb[0].mxu0
    %v2548 = vadd.f32 %v2175, %v2547
    %v2549 = vpop.f32.mrb[0].mxu0
    %v2550 = vpop.f32.mrb[0].mxu0
    %v2551 = vadd.f32 %v2175, %v2550
    %v2552 = vpop.f32.mrb[0].mxu0
    %2553 = vmatprep.mubr.bf16.mxu0 0
    %2554 = vmatmul.mubr.bf16.gmra.mrb[0].mxu0 %v2127
    %v2555 = vpop.f32.mrb[0].mxu0
    %v2556 = vadd.f32 %v2175, %v2555
    %v2557 = vpop.f32.mrb[0].mxu0
    %v2558 = vpop.f32.mrb[0].mxu0
    %v2559 = vadd.f32 %v2175, %v2558
    %v2560 = vpop.f32.mrb[0].mxu0
    %2561 = vmatprep.mubr.bf16.mxu0 0
    %2562 = vmatmul.mubr.bf16.gmra.mrb[0].mxu0 %v2128
    %v2563 = vpop.f32.mrb[0].mxu0
    %v2564 = vadd.f32 %v2175, %v2563
    %v2565 = vpop.f32.mrb[0].mxu0
    %v2566 = vpop.f32.mrb[0].mxu0
    %v2567 = vadd.f32 %v2175, %v2566
    %v2568 = vpop.f32.mrb[0].mxu0
    %2569 = vmatprep.mubr.bf16.mxu0 0
    %2570 = vmatmul.mubr.bf16.gmra.mrb[0].mxu0 %v2129
    %v2571 = vpop.f32.mrb[0].mxu0
    %v2572 = vadd.f32 %v2175, %v2571
    %v2573 = vpop.f32.mrb[0].mxu0
    %v2574 = vpop.f32.mrb[0].mxu0
    %v2575 = vadd.f32 %v2175, %v2574
    %v2576 = vpop.f32.mrb[0].mxu0
    %2577 = vmatprep.mubr.bf16.mxu0 0
    %2578 = vmatmul.mubr.bf16.gmra.mrb[0].mxu0 %v2130
    %v2579 = vpop.f32.mrb[0].mxu0
    %v2580 = vadd.f32 %v2175, %v2579
    %v2581 = vpop.f32.mrb[0].mxu0
    %v2582 = vpop.f32.mrb[0].mxu0
    %v2583 = vadd.f32 %v2175, %v2582
    %v2584 = vpop.f32.mrb[0].mxu0
    %2585 = vmatprep.mubr.bf16.mxu0 0
    %2586 = vmatmul.mubr.bf16.gmra.mrb[0].mxu0 %v2131
    %v2587 = vpop.f32.mrb[0].mxu0
    %v2588 = vadd.f32 %v2175, %v2587
    %v2589 = vpop.f32.mrb[0].mxu0
    %v2590 = vpop.f32.mrb[0].mxu0
    %v2591 = vadd.f32 %v2175, %v2590
    %v2592 = vpop.f32.mrb[0].mxu0
    %2593 = vmatprep.mubr.bf16.mxu0 0
    %2594 = vmatmul.mubr.bf16.gmra.mrb[0].mxu0 %v2132
    %v2595 = vpop.f32.mrb[0].mxu0
    %v2596 = vadd.f32 %v2175, %v2595
    %v2597 = vpop.f32.mrb[0].mxu0
    %v2598 = vpop.f32.mrb[0].mxu0
    %v2599 = vadd.f32 %v2175, %v2598
    %v2600 = vpop.f32.mrb[0].mxu0
    %2601 = vmatprep.mubr.bf16.mxu0 0
    %2602 = vmatmul.mubr.bf16.gmra.mrb[0].mxu0 %v2133
    %v2603 = vpop.f32.mrb[0].mxu0
    %v2604 = vadd.f32 %v2175, %v2603
    %v2605 = vpop.f32.mrb[0].mxu0
    %v2606 = vpop.f32.mrb[0].mxu0
    %v2607 = vadd.f32 %v2175, %v2606
    %v2608 = vpop.f32.mrb[0].mxu0
    %2609 = vmatprep.mubr.bf16.mxu0 0
    %2610 = vmatmul.mubr.bf16.gmra.mrb[0].mxu0 %v2134
    %v2611 = vpop.f32.mrb[0].mxu0
    %v2612 = vadd.f32 %v2175, %v2611
    %v2613 = vpop.f32.mrb[0].mxu0
    %v2614 = vpop.f32.mrb[0].mxu0
    %v2615 = vadd.f32 %v2175, %v2614
    %v2616 = vpop.f32.mrb[0].mxu0
    %2617 = vmatprep.mubr.bf16.mxu0 0
    %2618 = vmatmul.mubr.bf16.gmra.mrb[0].mxu0 %v2135
    %v2619 = vpop.f32.mrb[0].mxu0
    %v2620 = vadd.f32 %v2175, %v2619
    %v2621 = vpop.f32.mrb[0].mxu0
    %v2622 = vpop.f32.mrb[0].mxu0
    %v2623 = vadd.f32 %v2175, %v2622
    %v2624 = vpop.f32.mrb[0].mxu0
    %2625 = vmatprep.mubr.bf16.mxu0 0
    %2626 = vmatmul.mubr.bf16.gmra.mrb[0].mxu0 %v2136
    %v2627 = vpop.f32.mrb[0].mxu0
    %v2628 = vadd.f32 %v2175, %v2627
    %v2629 = vpop.f32.mrb[0].mxu0
    %v2630 = vpop.f32.mrb[0].mxu0
    %v2631 = vadd.f32 %v2175, %v2630
    %v2632 = vpop.f32.mrb[0].mxu0
    %2633 = vmatprep.mubr.bf16.mxu0 0
    %2634 = vmatmul.mubr.bf16.gmra.mrb[0].mxu0 %v2137
    %v2635 = vpop.f32.mrb[0].mxu0
    %v2636 = vadd.f32 %v2175, %v2635
    %v2637 = vpop.f32.mrb[0].mxu0
    %v2638 = vpop.f32.mrb[0].mxu0
    %v2639 = vadd.f32 %v2175, %v2638
    %v2640 = vpop.f32.mrb[0].mxu0
    %2641 = vmatprep.mubr.bf16.mxu0 0
    %2642 = vmatmul.mubr.bf16.gmra.mrb[0].mxu0 %v2138
    %v2643 = vpop.f32.mrb[0].mxu0
    %v2644 = vadd.f32 %v2175, %v2643
    %v2645 = vpop.f32.mrb[0].mxu0
    %v2646 = vpop.f32.mrb[0].mxu0
    %v2647 = vadd.f32 %v2175, %v2646
    %v2648 = vpop.f32.mrb[0].mxu0
    %2649 = vmatprep.mubr.bf16.mxu0 0
    %2650 = vmatmul.mubr.bf16.gmra.mrb[0].mxu0 %v2139
    %v2651 = vpop.f32.mrb[0].mxu0
    %v2652 = vadd.f32 %v2175, %v2651
    %v2653 = vpop.f32.mrb[0].mxu0
    %v2654 = vpop.f32.mrb[0].mxu0
    %v2655 = vadd.f32 %v2175, %v2654
    %v2656 = vpop.f32.mrb[0].mxu0
    %2657 = vmatprep.mubr.bf16.mxu0 0
    %2658 = vmatmul.mubr.bf16.gmra.mrb[0].mxu0 %v2140
    %v2659 = vpop.f32.mrb[0].mxu0
    %v2660 = vadd.f32 %v2175, %v2659
    %v2661 = vpop.f32.mrb[0].mxu0
    %v2662 = vpop.f32.mrb[0].mxu0
    %v2663 = vadd.f32 %v2175, %v2662
    %v2664 = vpop.f32.mrb[0].mxu0
    %2665 = vmatprep.mubr.bf16.mxu0 0
    %2666 = vmatmul.mubr.bf16.gmra.mrb[0].mxu0 %v2141
    %v2667 = vpop.f32.mrb[0].mxu0
    %v2668 = vadd.f32 %v2175, %v2667
    %v2669 = vpop.f32.mrb[0].mxu0
    %v2670 = vpop.f32.mrb[0].mxu0
    %v2671 = vadd.f32 %v2175, %v2670
    %v2672 = vpop.f32.mrb[0].mxu0
    %2673 = vmatprep.mubr.bf16.mxu0 0
    %2674 = vmatmul.mubr.bf16.gmra.mrb[0].mxu0 %v2142
    %v2675 = vpop.f32.mrb[0].mxu0
    %v2676 = vadd.f32 %v2175, %v2675
    %v2677 = vpop.f32.mrb[0].mxu0
    %v2678 = vpop.f32.mrb[0].mxu0
    %v2679 = vadd.f32 %v2175, %v2678
    %v2680 = vpop.f32.mrb[0].mxu0
    %2681 = vmatprep.mubr.bf16.mxu0 0
    %2682 = vmatmul.mubr.bf16.gmra.mrb[0].mxu0 %v2143
    %v2683 = vpop.f32.mrb[0].mxu0
    %v2684 = vadd.f32 %v2175, %v2683
    %v2685 = vpop.f32.mrb[0].mxu0
    %v2686 = vpop.f32.mrb[0].mxu0
    %v2687 = vadd.f32 %v2175, %v2686
    %v2688 = vpop.f32.mrb[0].mxu0
    %2689 = vmatprep.mubr.bf16.mxu0 0
    %2690 = vmatmul.mubr.bf16.gmra.mrb[0].mxu0 %v2144
    %v2691 = vpop.f32.mrb[0].mxu0
    %v2692 = vadd.f32 %v2175, %v2691
    %v2693 = vpop.f32.mrb[0].mxu0
    %v2694 = vpop.f32.mrb[0].mxu0
    %v2695 = vadd.f32 %v2175, %v2694
    %v2696 = vpop.f32.mrb[0].mxu0
    %2697 = vmatprep.mubr.bf16.mxu0 0
    %2698 = vmatmul.mubr.bf16.gmra.mrb[0].mxu0 %v2145
    %v2699 = vpop.f32.mrb[0].mxu0
    %v2700 = vadd.f32 %v2175, %v2699
    %v2701 = vpop.f32.mrb[0].mxu0
    %v2702 = vpop.f32.mrb[0].mxu0
    %v2703 = vadd.f32 %v2175, %v2702
    %v2704 = vpop.f32.mrb[0].mxu0
    %2705 = vmatprep.mubr.bf16.mxu0 0
    %2706 = vmatmul.mubr.bf16.gmra.mrb[0].mxu0 %v2146
    %v2707 = vpop.f32.mrb[0].mxu0
    %v2708 = vadd.f32 %v2175, %v2707
    %v2709 = vpop.f32.mrb[0].mxu0
    %v2710 = vpop.f32.mrb[0].mxu0
    %v2711 = vadd.f32 %v2175, %v2710
    %v2712 = vpop.f32.mrb[0].mxu0
    %2713 = vmatprep.mubr.bf16.mxu0 0
    %2714 = vmatmul.mubr.bf16.gmra.mrb[0].mxu0 %v2147
    %v2715 = vpop.f32.mrb[0].mxu0
    %v2716 = vadd.f32 %v2175, %v2715
    %v2717 = vpop.f32.mrb[0].mxu0
    %v2718 = vpop.f32.mrb[0].mxu0
    %v2719 = vadd.f32 %v2175, %v2718
    %v2720 = vpop.f32.mrb[0].mxu0
    %2721 = vmatprep.mubr.bf16.mxu0 0
    %2722 = vmatmul.mubr.bf16.gmra.mrb[0].mxu0 %v2148
    %v2723 = vpop.f32.mrb[0].mxu0
    %v2724 = vadd.f32 %v2175, %v2723
    %v2725 = vpop.f32.mrb[0].mxu0
    %v2726 = vpop.f32.mrb[0].mxu0
    %v2727 = vadd.f32 %v2175, %v2726
    %v2728 = vpop.f32.mrb[0].mxu0
    %2729 = vmatprep.mubr.bf16.mxu0 0
    %2730 = vmatmul.mubr.bf16.gmra.mrb[0].mxu0 %v2149
    %v2731 = vpop.f32.mrb[0].mxu0
    %v2732 = vadd.f32 %v2175, %v2731
    %v2733 = vpop.f32.mrb[0].mxu0
    %v2734 = vpop.f32.mrb[0].mxu0
    %v2735 = vadd.f32 %v2175, %v2734
    %v2736 = vpop.f32.mrb[0].mxu0
    %2737 = vmatprep.mubr.bf16.mxu0 0
    %2738 = vmatmul.mubr.bf16.gmra.mrb[0].mxu0 %v2150
    %v2739 = vpop.f32.mrb[0].mxu0
    %v2740 = vadd.f32 %v2175, %v2739
    %v2741 = vpop.f32.mrb[0].mxu0
    %v2742 = vpop.f32.mrb[0].mxu0
    %v2743 = vadd.f32 %v2175, %v2742
    %v2744 = vpop.f32.mrb[0].mxu0
    %2745 = vmatprep.mubr.bf16.mxu0 0
    %2746 = vmatmul.mubr.bf16.gmra.mrb[0].mxu0 %v2151
    %v2747 = vpop.f32.mrb[0].mxu0
    %v2748 = vadd.f32 %v2175, %v2747
    %v2749 = vpop.f32.mrb[0].mxu0
    %v2750 = vpop.f32.mrb[0].mxu0
    %v2751 = vadd.f32 %v2175, %v2750
    %v2752 = vpop.f32.mrb[0].mxu0
    %2753 = vmatprep.mubr.bf16.mxu0 0
    %2754 = vmatmul.mubr.bf16.gmra.mrb[0].mxu0 %v2152
    %v2755 = vpop.f32.mrb[0].mxu0
    %v2756 = vadd.f32 %v2175, %v2755
    %v2757 = vpop.f32.mrb[0].mxu0
    %v2758 = vpop.f32.mrb[0].mxu0
    %v2759 = vadd.f32 %v2175, %v2758
    %v2760 = vpop.f32.mrb[0].mxu0
    %2761 = vmatprep.mubr.bf16.mxu0 0
    %2762 = vmatmul.mubr.bf16.gmra.mrb[0].mxu0 %v2153
    %v2763 = vpop.f32.mrb[0].mxu0
    %v2764 = vadd.f32 %v2175, %v2763
    %v2765 = vpop.f32.mrb[0].mxu0
    %v2766 = vpop.f32.mrb[0].mxu0
    %v2767 = vadd.f32 %v2175, %v2766
    %v2768 = vpop.f32.mrb[0].mxu0
    %2769 = vdwg.mxu0
    %v2770 = vmax.f32 %v2260, 0.0
    %v2771 = vmax.f32 %v2263, 0.0
    %v2772 = vmax.f32 %v2268, 0.0
    %v2773 = vmax.f32 %v2271, 0.0
    %v2774 = vmax.f32 %v2276, 0.0
    %v2775 = vmax.f32 %v2279, 0.0
    %v2776 = vmax.f32 %v2284, 0.0
    %v2777 = vmax.f32 %v2287, 0.0
    %v2778 = vmax.f32 %v2292, 0.0
    %v2779 = vmax.f32 %v2295, 0.0
    %v2780 = vmax.f32 %v2300, 0.0
    %v2781 = vmax.f32 %v2303, 0.0
    %v2782 = vmax.f32 %v2308, 0.0
    %v2783 = vmax.f32 %v2311, 0.0
    %v2784 = vmax.f32 %v2316, 0.0
    %v2785 = vmax.f32 %v2319, 0.0
    %v2786 = vmax.f32 %v2324, 0.0
    %v2787 = vmax.f32 %v2327, 0.0
    %v2788 = vmax.f32 %v2332, 0.0
    %v2789 = vmax.f32 %v2335, 0.0
    %v2790 = vmax.f32 %v2340, 0.0
    %v2791 = vmax.f32 %v2343, 0.0
    %v2792 = vmax.f32 %v2348, 0.0
    %v2793 = vmax.f32 %v2351, 0.0
    %v2794 = vmax.f32 %v2356, 0.0
    %v2795 = vmax.f32 %v2359, 0.0
    %v2796 = vmax.f32 %v2364, 0.0
    %v2797 = vmax.f32 %v2367, 0.0
    %v2798 = vmax.f32 %v2372, 0.0
    %v2799 = vmax.f32 %v2375, 0.0
    %v2800 = vmax.f32 %v2380, 0.0
    %v2801 = vmax.f32 %v2383, 0.0
    %v2802 = vmax.f32 %v2388, 0.0
    %v2803 = vmax.f32 %v2391, 0.0
    %v2804 = vmax.f32 %v2396, 0.0
    %v2805 = vmax.f32 %v2399, 0.0
    %v2806 = vmax.f32 %v2404, 0.0
    %v2807 = vmax.f32 %v2407, 0.0
    %v2808 = vmax.f32 %v2412, 0.0
    %v2809 = vmax.f32 %v2415, 0.0
    %v2810 = vmax.f32 %v2420, 0.0
    %v2811 = vmax.f32 %v2423, 0.0
    %v2812 = vmax.f32 %v2428, 0.0
    %v2813 = vmax.f32 %v2431, 0.0
    %v2814 = vmax.f32 %v2436, 0.0
    %v2815 = vmax.f32 %v2439, 0.0
    %v2816 = vmax.f32 %v2444, 0.0
    %v2817 = vmax.f32 %v2447, 0.0
    %v2818 = vmax.f32 %v2452, 0.0
    %v2819 = vmax.f32 %v2455, 0.0
    %v2820 = vmax.f32 %v2460, 0.0
    %v2821 = vmax.f32 %v2463, 0.0
    %v2822 = vmax.f32 %v2468, 0.0
    %v2823 = vmax.f32 %v2471, 0.0
    %v2824 = vmax.f32 %v2476, 0.0
    %v2825 = vmax.f32 %v2479, 0.0
    %v2826 = vmax.f32 %v2484, 0.0
    %v2827 = vmax.f32 %v2487, 0.0
    %v2828 = vmax.f32 %v2492, 0.0
    %v2829 = vmax.f32 %v2495, 0.0
    %v2830 = vmax.f32 %v2500, 0.0
    %v2831 = vmax.f32 %v2503, 0.0
    %v2832 = vmax.f32 %v2508, 0.0
    %v2833 = vmax.f32 %v2511, 0.0
    %v2834 = vmax.f32 %v2516, 0.0
    %v2835 = vmax.f32 %v2519, 0.0
    %v2836 = vmax.f32 %v2524, 0.0
    %v2837 = vmax.f32 %v2527, 0.0
    %v2838 = vmax.f32 %v2532, 0.0
    %v2839 = vmax.f32 %v2535, 0.0
    %v2840 = vmax.f32 %v2540, 0.0
    %v2841 = vmax.f32 %v2543, 0.0
    %v2842 = vmax.f32 %v2548, 0.0
    %v2843 = vmax.f32 %v2551, 0.0
    %v2844 = vmax.f32 %v2556, 0.0
    %v2845 = vmax.f32 %v2559, 0.0
    %v2846 = vmax.f32 %v2564, 0.0
    %v2847 = vmax.f32 %v2567, 0.0
    %v2848 = vmax.f32 %v2572, 0.0
    %v2849 = vmax.f32 %v2575, 0.0
    %v2850 = vmax.f32 %v2580, 0.0
    %v2851 = vmax.f32 %v2583, 0.0
    %v2852 = vmax.f32 %v2588, 0.0
    %v2853 = vmax.f32 %v2591, 0.0
    %v2854 = vmax.f32 %v2596, 0.0
    %v2855 = vmax.f32 %v2599, 0.0
    %v2856 = vmax.f32 %v2604, 0.0
    %v2857 = vmax.f32 %v2607, 0.0
    %v2858 = vmax.f32 %v2612, 0.0
    %v2859 = vmax.f32 %v2615, 0.0
    %v2860 = vmax.f32 %v2620, 0.0
    %v2861 = vmax.f32 %v2623, 0.0
    %v2862 = vmax.f32 %v2628, 0.0
    %v2863 = vmax.f32 %v2631, 0.0
    %v2864 = vmax.f32 %v2636, 0.0
    %v2865 = vmax.f32 %v2639, 0.0
    %v2866 = vmax.f32 %v2644, 0.0
    %v2867 = vmax.f32 %v2647, 0.0
    %v2868 = vmax.f32 %v2652, 0.0
    %v2869 = vmax.f32 %v2655, 0.0
    %v2870 = vmax.f32 %v2660, 0.0
    %v2871 = vmax.f32 %v2663, 0.0
    %v2872 = vmax.f32 %v2668, 0.0
    %v2873 = vmax.f32 %v2671, 0.0
    %v2874 = vmax.f32 %v2676, 0.0
    %v2875 = vmax.f32 %v2679, 0.0
    %v2876 = vmax.f32 %v2684, 0.0
    %v2877 = vmax.f32 %v2687, 0.0
    %v2878 = vmax.f32 %v2692, 0.0
    %v2879 = vmax.f32 %v2695, 0.0
    %v2880 = vmax.f32 %v2700, 0.0
    %v2881 = vmax.f32 %v2703, 0.0
    %v2882 = vmax.f32 %v2708, 0.0
    %v2883 = vmax.f32 %v2711, 0.0
    %v2884 = vmax.f32 %v2716, 0.0
    %v2885 = vmax.f32 %v2719, 0.0
    %v2886 = vmax.f32 %v2724, 0.0
    %v2887 = vmax.f32 %v2727, 0.0
    %v2888 = vmax.f32 %v2732, 0.0
    %v2889 = vmax.f32 %v2735, 0.0
    %v2890 = vmax.f32 %v2740, 0.0
    %v2891 = vmax.f32 %v2743, 0.0
    %v2892 = vmax.f32 %v2748, 0.0
    %v2893 = vmax.f32 %v2751, 0.0
    %v2894 = vmax.f32 %v2756, 0.0
    %v2895 = vmax.f32 %v2759, 0.0
    %v2896 = vmax.f32 %v2764, 0.0
    %v2897 = vmax.f32 %v2767, 0.0
    %v2898 = vpack.c.bf16 %v2771, %v2770
    %v2899 = vpack.c.bf16 %v2773, %v2772
    %v2900 = vpack.c.bf16 %v2775, %v2774
    %v2901 = vpack.c.bf16 %v2777, %v2776
    %v2902 = vpack.c.bf16 %v2779, %v2778
    %v2903 = vpack.c.bf16 %v2781, %v2780
    %v2904 = vpack.c.bf16 %v2783, %v2782
    %v2905 = vpack.c.bf16 %v2785, %v2784
    %v2906 = vpack.c.bf16 %v2787, %v2786
    %v2907 = vpack.c.bf16 %v2789, %v2788
    %v2908 = vpack.c.bf16 %v2791, %v2790
    %v2909 = vpack.c.bf16 %v2793, %v2792
    %v2910 = vpack.c.bf16 %v2795, %v2794
    %v2911 = vpack.c.bf16 %v2797, %v2796
    %v2912 = vpack.c.bf16 %v2799, %v2798
    %v2913 = vpack.c.bf16 %v2801, %v2800
    %v2914 = vpack.c.bf16 %v2803, %v2802
    %v2915 = vpack.c.bf16 %v2805, %v2804
    %v2916 = vpack.c.bf16 %v2807, %v2806
    %v2917 = vpack.c.bf16 %v2809, %v2808
    %v2918 = vpack.c.bf16 %v2811, %v2810
    %v2919 = vpack.c.bf16 %v2813, %v2812
    %v2920 = vpack.c.bf16 %v2815, %v2814
    %v2921 = vpack.c.bf16 %v2817, %v2816
    %v2922 = vpack.c.bf16 %v2819, %v2818
    %v2923 = vpack.c.bf16 %v2821, %v2820
    %v2924 = vpack.c.bf16 %v2823, %v2822
    %v2925 = vpack.c.bf16 %v2825, %v2824
    %v2926 = vpack.c.bf16 %v2827, %v2826
    %v2927 = vpack.c.bf16 %v2829, %v2828
    %v2928 = vpack.c.bf16 %v2831, %v2830
    %v2929 = vpack.c.bf16 %v2833, %v2832
    %v2930 = vpack.c.bf16 %v2835, %v2834
    %v2931 = vpack.c.bf16 %v2837, %v2836
    %v2932 = vpack.c.bf16 %v2839, %v2838
    %v2933 = vpack.c.bf16 %v2841, %v2840
    %v2934 = vpack.c.bf16 %v2843, %v2842
    %v2935 = vpack.c.bf16 %v2845, %v2844
    %v2936 = vpack.c.bf16 %v2847, %v2846
    %v2937 = vpack.c.bf16 %v2849, %v2848
    %v2938 = vpack.c.bf16 %v2851, %v2850
    %v2939 = vpack.c.bf16 %v2853, %v2852
    %v2940 = vpack.c.bf16 %v2855, %v2854
    %v2941 = vpack.c.bf16 %v2857, %v2856
    %v2942 = vpack.c.bf16 %v2859, %v2858
    %v2943 = vpack.c.bf16 %v2861, %v2860
    %v2944 = vpack.c.bf16 %v2863, %v2862
    %v2945 = vpack.c.bf16 %v2865, %v2864
    %v2946 = vpack.c.bf16 %v2867, %v2866
    %v2947 = vpack.c.bf16 %v2869, %v2868
    %v2948 = vpack.c.bf16 %v2871, %v2870
    %v2949 = vpack.c.bf16 %v2873, %v2872
    %v2950 = vpack.c.bf16 %v2875, %v2874
    %v2951 = vpack.c.bf16 %v2877, %v2876
    %v2952 = vpack.c.bf16 %v2879, %v2878
    %v2953 = vpack.c.bf16 %v2881, %v2880
    %v2954 = vpack.c.bf16 %v2883, %v2882
    %v2955 = vpack.c.bf16 %v2885, %v2884
    %v2956 = vpack.c.bf16 %v2887, %v2886
    %v2957 = vpack.c.bf16 %v2889, %v2888
    %v2958 = vpack.c.bf16 %v2891, %v2890
    %v2959 = vpack.c.bf16 %v2893, %v2892
    %v2960 = vpack.c.bf16 %v2895, %v2894
    %v2961 = vpack.c.bf16 %v2897, %v2896
    %s2962 = scalar_lea.vmem %s5, 64
    %v2963 = vld [vmem:[%s2962] sm:$0xf]
    %v2964 = vld [vmem:[%s2962 + $0x4] sm:$0xf]
    %v2965 = vld [vmem:[%s2962 + $0x8] sm:$0xf]
    %v2966 = vld [vmem:[%s2962 + $0xc] sm:$0xf]
    %v2967 = vld [vmem:[%s2962 + $0x10] sm:$0xf]
    %v2968 = vld [vmem:[%s2962 + $0x14] sm:$0xf]
    %v2969 = vld [vmem:[%s2962 + $0x18] sm:$0xf]
    %v2970 = vld [vmem:[%s2962 + $0x1c] sm:$0xf]
    %v2971 = vld [vmem:[%s2962 + $0x20] sm:$0xf]
    %v2972 = vld [vmem:[%s2962 + $0x24] sm:$0xf]
    %v2973 = vld [vmem:[%s2962 + $0x28] sm:$0xf]
    %v2974 = vld [vmem:[%s2962 + $0x2c] sm:$0xf]
    %v2975 = vld [vmem:[%s2962 + $0x30] sm:$0xf]
    %v2976 = vld [vmem:[%s2962 + $0x34] sm:$0xf]
    %v2977 = vld [vmem:[%s2962 + $0x38] sm:$0xf]
    %v2978 = vld [vmem:[%s2962 + $0x3c] sm:$0xf]
    %s2979 = scalar_lea.vmem %s6, 1
    %v2980 = vld [vmem:[%s2979] sm:$0x1]
    %v2982 = vlaneseq
    %v2983 = vshrl.u32 %v2982, 7
    %v2984 = vsub.s32 0, %v2983
    %v2985 = vrot.slane %v2980, %v2984
    %v3003 = vunpack.c.l.b16 %v2963
    %v3004 = vunpack.c.l.b16 %v2964
    %v3005 = vunpack.c.l.b16 %v2965
    %v3006 = vunpack.c.l.b16 %v2966
    %v3007 = vunpack.c.l.b16 %v2967
    %v3008 = vunpack.c.l.b16 %v2968
    %v3009 = vunpack.c.l.b16 %v2969
    %v3010 = vunpack.c.l.b16 %v2970
    %v3011 = vunpack.c.l.b16 %v2971
    %v3012 = vunpack.c.l.b16 %v2972
    %v3013 = vunpack.c.l.b16 %v2973
    %v3014 = vunpack.c.l.b16 %v2974
    %v3015 = vunpack.c.l.b16 %v2975
    %v3016 = vunpack.c.l.b16 %v2976
    %v3017 = vunpack.c.l.b16 %v2977
    %v3018 = vunpack.c.l.b16 %v2978
    %v3019 = vpack.c.b16 %v3004, %v3003
    %v3020 = vpack.c.b16 %v3006, %v3005
    %v3021 = vpack.c.b16 %v3008, %v3007
    %v3022 = vpack.c.b16 %v3010, %v3009
    %v3023 = vpack.c.b16 %v3012, %v3011
    %v3024 = vpack.c.b16 %v3014, %v3013
    %v3025 = vpack.c.b16 %v3016, %v3015
    %v3026 = vpack.c.b16 %v3018, %v3017
    %3035 = vmatprep.subr.bf16.mxu0 0
    %3036 = vmatpush1.bf16.msra.mxu0 %v3019
    %3037 = vmatprep.subr.bf16.mxu0 0
    %3038 = vmatpush1.bf16.msra.mxu0 %v3020
    %3039 = vmatprep.subr.bf16.mxu0 0
    %3040 = vmatpush1.bf16.msra.mxu0 %v3021
    %3041 = vmatprep.subr.bf16.mxu0 0
    %3042 = vmatpush1.bf16.msra.mxu0 %v3022
    %3043 = vmatprep.subr.bf16.mxu0 0
    %3044 = vmatpush1.bf16.msra.mxu0 %v3023
    %3045 = vmatprep.subr.bf16.mxu0 0
    %3046 = vmatpush1.bf16.msra.mxu0 %v3024
    %3047 = vmatprep.subr.bf16.mxu0 0
    %3048 = vmatpush1.bf16.msra.mxu0 %v3025
    %3049 = vmatprep.subr.bf16.mxu0 0
    %3050 = vmatpush1.bf16.msra.mxu0 %v3026
    %3051 = vmatprep.subr.bf16.mxu0 0
    %3052 = vmatpush1.bf16.msra.mxu0 0
    %3053 = vmatprep.subr.bf16.mxu0 0
    %3054 = vmatpush1.bf16.msra.mxu0 0
    %3055 = vmatprep.subr.bf16.mxu0 0
    %3056 = vmatpush1.bf16.msra.mxu0 0
    %3057 = vmatprep.subr.bf16.mxu0 0
    %3058 = vmatpush1.bf16.msra.mxu0 0
    %3059 = vmatprep.subr.bf16.mxu0 0
    %3060 = vmatpush1.bf16.msra.mxu0 0
    %3061 = vmatprep.subr.bf16.mxu0 0
    %3062 = vmatpush1.bf16.msra.mxu0 0
    %3063 = vmatprep.subr.bf16.mxu0 0
    %3064 = vmatpush1.bf16.msra.mxu0 0
    %3065 = vmatprep.subr.bf16.mxu0 0
    %3066 = vmatpush1.bf16.msra.mxu0 0
    %3067 = vmatprep.mubr.bf16.mxu0 0
    %3068 = vmatmul.mubr.bf16.gmra.mrb[0].mxu0 %v2898
    %v3069 = vpop.f32.mrb[0].mxu0
    %v3070 = vadd.f32 %v2985, %v3069
    %v3071 = vpop.f32.mrb[0].mxu0
    %v3072 = vpop.f32.mrb[0].mxu0
    %v3073 = vadd.f32 %v2985, %v3072
    %v3074 = vpop.f32.mrb[0].mxu0
    %3075 = vmatprep.mubr.bf16.mxu0 0
    %3076 = vmatmul.mubr.bf16.gmra.mrb[0].mxu0 %v2899
    %v3077 = vpop.f32.mrb[0].mxu0
    %v3078 = vadd.f32 %v2985, %v3077
    %v3079 = vpop.f32.mrb[0].mxu0
    %v3080 = vpop.f32.mrb[0].mxu0
    %v3081 = vadd.f32 %v2985, %v3080
    %v3082 = vpop.f32.mrb[0].mxu0
    %3083 = vmatprep.mubr.bf16.mxu0 0
    %3084 = vmatmul.mubr.bf16.gmra.mrb[0].mxu0 %v2900
    %v3085 = vpop.f32.mrb[0].mxu0
    %v3086 = vadd.f32 %v2985, %v3085
    %v3087 = vpop.f32.mrb[0].mxu0
    %v3088 = vpop.f32.mrb[0].mxu0
    %v3089 = vadd.f32 %v2985, %v3088
    %v3090 = vpop.f32.mrb[0].mxu0
    %3091 = vmatprep.mubr.bf16.mxu0 0
    %3092 = vmatmul.mubr.bf16.gmra.mrb[0].mxu0 %v2901
    %v3093 = vpop.f32.mrb[0].mxu0
    %v3094 = vadd.f32 %v2985, %v3093
    %v3095 = vpop.f32.mrb[0].mxu0
    %v3096 = vpop.f32.mrb[0].mxu0
    %v3097 = vadd.f32 %v2985, %v3096
    %v3098 = vpop.f32.mrb[0].mxu0
    %3099 = vmatprep.mubr.bf16.mxu0 0
    %3100 = vmatmul.mubr.bf16.gmra.mrb[0].mxu0 %v2902
    %v3101 = vpop.f32.mrb[0].mxu0
    %v3102 = vadd.f32 %v2985, %v3101
    %v3103 = vpop.f32.mrb[0].mxu0
    %v3104 = vpop.f32.mrb[0].mxu0
    %v3105 = vadd.f32 %v2985, %v3104
    %v3106 = vpop.f32.mrb[0].mxu0
    %3107 = vmatprep.mubr.bf16.mxu0 0
    %3108 = vmatmul.mubr.bf16.gmra.mrb[0].mxu0 %v2903
    %v3109 = vpop.f32.mrb[0].mxu0
    %v3110 = vadd.f32 %v2985, %v3109
    %v3111 = vpop.f32.mrb[0].mxu0
    %v3112 = vpop.f32.mrb[0].mxu0
    %v3113 = vadd.f32 %v2985, %v3112
    %v3114 = vpop.f32.mrb[0].mxu0
    %3115 = vmatprep.mubr.bf16.mxu0 0
    %3116 = vmatmul.mubr.bf16.gmra.mrb[0].mxu0 %v2904
    %v3117 = vpop.f32.mrb[0].mxu0
    %v3118 = vadd.f32 %v2985, %v3117
    %v3119 = vpop.f32.mrb[0].mxu0
    %v3120 = vpop.f32.mrb[0].mxu0
    %v3121 = vadd.f32 %v2985, %v3120
    %v3122 = vpop.f32.mrb[0].mxu0
    %3123 = vmatprep.mubr.bf16.mxu0 0
    %3124 = vmatmul.mubr.bf16.gmra.mrb[0].mxu0 %v2905
    %v3125 = vpop.f32.mrb[0].mxu0
    %v3126 = vadd.f32 %v2985, %v3125
    %v3127 = vpop.f32.mrb[0].mxu0
    %v3128 = vpop.f32.mrb[0].mxu0
    %v3129 = vadd.f32 %v2985, %v3128
    %v3130 = vpop.f32.mrb[0].mxu0
    %3131 = vmatprep.mubr.bf16.mxu0 0
    %3132 = vmatmul.mubr.bf16.gmra.mrb[0].mxu0 %v2906
    %v3133 = vpop.f32.mrb[0].mxu0
    %v3134 = vadd.f32 %v2985, %v3133
    %v3135 = vpop.f32.mrb[0].mxu0
    %v3136 = vpop.f32.mrb[0].mxu0
    %v3137 = vadd.f32 %v2985, %v3136
    %v3138 = vpop.f32.mrb[0].mxu0
    %3139 = vmatprep.mubr.bf16.mxu0 0
    %3140 = vmatmul.mubr.bf16.gmra.mrb[0].mxu0 %v2907
    %v3141 = vpop.f32.mrb[0].mxu0
    %v3142 = vadd.f32 %v2985, %v3141
    %v3143 = vpop.f32.mrb[0].mxu0
    %v3144 = vpop.f32.mrb[0].mxu0
    %v3145 = vadd.f32 %v2985, %v3144
    %v3146 = vpop.f32.mrb[0].mxu0
    %3147 = vmatprep.mubr.bf16.mxu0 0
    %3148 = vmatmul.mubr.bf16.gmra.mrb[0].mxu0 %v2908
    %v3149 = vpop.f32.mrb[0].mxu0
    %v3150 = vadd.f32 %v2985, %v3149
    %v3151 = vpop.f32.mrb[0].mxu0
    %v3152 = vpop.f32.mrb[0].mxu0
    %v3153 = vadd.f32 %v2985, %v3152
    %v3154 = vpop.f32.mrb[0].mxu0
    %3155 = vmatprep.mubr.bf16.mxu0 0
    %3156 = vmatmul.mubr.bf16.gmra.mrb[0].mxu0 %v2909
    %v3157 = vpop.f32.mrb[0].mxu0
    %v3158 = vadd.f32 %v2985, %v3157
    %v3159 = vpop.f32.mrb[0].mxu0
    %v3160 = vpop.f32.mrb[0].mxu0
    %v3161 = vadd.f32 %v2985, %v3160
    %v3162 = vpop.f32.mrb[0].mxu0
    %3163 = vmatprep.mubr.bf16.mxu0 0
    %3164 = vmatmul.mubr.bf16.gmra.mrb[0].mxu0 %v2910
    %v3165 = vpop.f32.mrb[0].mxu0
    %v3166 = vadd.f32 %v2985, %v3165
    %v3167 = vpop.f32.mrb[0].mxu0
    %v3168 = vpop.f32.mrb[0].mxu0
    %v3169 = vadd.f32 %v2985, %v3168
    %v3170 = vpop.f32.mrb[0].mxu0
    %3171 = vmatprep.mubr.bf16.mxu0 0
    %3172 = vmatmul.mubr.bf16.gmra.mrb[0].mxu0 %v2911
    %v3173 = vpop.f32.mrb[0].mxu0
    %v3174 = vadd.f32 %v2985, %v3173
    %v3175 = vpop.f32.mrb[0].mxu0
    %v3176 = vpop.f32.mrb[0].mxu0
    %v3177 = vadd.f32 %v2985, %v3176
    %v3178 = vpop.f32.mrb[0].mxu0
    %3179 = vmatprep.mubr.bf16.mxu0 0
    %3180 = vmatmul.mubr.bf16.gmra.mrb[0].mxu0 %v2912
    %v3181 = vpop.f32.mrb[0].mxu0
    %v3182 = vadd.f32 %v2985, %v3181
    %v3183 = vpop.f32.mrb[0].mxu0
    %v3184 = vpop.f32.mrb[0].mxu0
    %v3185 = vadd.f32 %v2985, %v3184
    %v3186 = vpop.f32.mrb[0].mxu0
    %3187 = vmatprep.mubr.bf16.mxu0 0
    %3188 = vmatmul.mubr.bf16.gmra.mrb[0].mxu0 %v2913
    %v3189 = vpop.f32.mrb[0].mxu0
    %v3190 = vadd.f32 %v2985, %v3189
    %v3191 = vpop.f32.mrb[0].mxu0
    %v3192 = vpop.f32.mrb[0].mxu0
    %v3193 = vadd.f32 %v2985, %v3192
    %v3194 = vpop.f32.mrb[0].mxu0
    %3195 = vmatprep.mubr.bf16.mxu0 0
    %3196 = vmatmul.mubr.bf16.gmra.mrb[0].mxu0 %v2914
    %v3197 = vpop.f32.mrb[0].mxu0
    %v3198 = vadd.f32 %v2985, %v3197
    %v3199 = vpop.f32.mrb[0].mxu0
    %v3200 = vpop.f32.mrb[0].mxu0
    %v3201 = vadd.f32 %v2985, %v3200
    %v3202 = vpop.f32.mrb[0].mxu0
    %3203 = vmatprep.mubr.bf16.mxu0 0
    %3204 = vmatmul.mubr.bf16.gmra.mrb[0].mxu0 %v2915
    %v3205 = vpop.f32.mrb[0].mxu0
    %v3206 = vadd.f32 %v2985, %v3205
    %v3207 = vpop.f32.mrb[0].mxu0
    %v3208 = vpop.f32.mrb[0].mxu0
    %v3209 = vadd.f32 %v2985, %v3208
    %v3210 = vpop.f32.mrb[0].mxu0
    %3211 = vmatprep.mubr.bf16.mxu0 0
    %3212 = vmatmul.mubr.bf16.gmra.mrb[0].mxu0 %v2916
    %v3213 = vpop.f32.mrb[0].mxu0
    %v3214 = vadd.f32 %v2985, %v3213
    %v3215 = vpop.f32.mrb[0].mxu0
    %v3216 = vpop.f32.mrb[0].mxu0
    %v3217 = vadd.f32 %v2985, %v3216
    %v3218 = vpop.f32.mrb[0].mxu0
    %3219 = vmatprep.mubr.bf16.mxu0 0
    %3220 = vmatmul.mubr.bf16.gmra.mrb[0].mxu0 %v2917
    %v3221 = vpop.f32.mrb[0].mxu0
    %v3222 = vadd.f32 %v2985, %v3221
    %v3223 = vpop.f32.mrb[0].mxu0
    %v3224 = vpop.f32.mrb[0].mxu0
    %v3225 = vadd.f32 %v2985, %v3224
    %v3226 = vpop.f32.mrb[0].mxu0
    %3227 = vmatprep.mubr.bf16.mxu0 0
    %3228 = vmatmul.mubr.bf16.gmra.mrb[0].mxu0 %v2918
    %v3229 = vpop.f32.mrb[0].mxu0
    %v3230 = vadd.f32 %v2985, %v3229
    %v3231 = vpop.f32.mrb[0].mxu0
    %v3232 = vpop.f32.mrb[0].mxu0
    %v3233 = vadd.f32 %v2985, %v3232
    %v3234 = vpop.f32.mrb[0].mxu0
    %3235 = vmatprep.mubr.bf16.mxu0 0
    %3236 = vmatmul.mubr.bf16.gmra.mrb[0].mxu0 %v2919
    %v3237 = vpop.f32.mrb[0].mxu0
    %v3238 = vadd.f32 %v2985, %v3237
    %v3239 = vpop.f32.mrb[0].mxu0
    %v3240 = vpop.f32.mrb[0].mxu0
    %v3241 = vadd.f32 %v2985, %v3240
    %v3242 = vpop.f32.mrb[0].mxu0
    %3243 = vmatprep.mubr.bf16.mxu0 0
    %3244 = vmatmul.mubr.bf16.gmra.mrb[0].mxu0 %v2920
    %v3245 = vpop.f32.mrb[0].mxu0
    %v3246 = vadd.f32 %v2985, %v3245
    %v3247 = vpop.f32.mrb[0].mxu0
    %v3248 = vpop.f32.mrb[0].mxu0
    %v3249 = vadd.f32 %v2985, %v3248
    %v3250 = vpop.f32.mrb[0].mxu0
    %3251 = vmatprep.mubr.bf16.mxu0 0
    %3252 = vmatmul.mubr.bf16.gmra.mrb[0].mxu0 %v2921
    %v3253 = vpop.f32.mrb[0].mxu0
    %v3254 = vadd.f32 %v2985, %v3253
    %v3255 = vpop.f32.mrb[0].mxu0
    %v3256 = vpop.f32.mrb[0].mxu0
    %v3257 = vadd.f32 %v2985, %v3256
    %v3258 = vpop.f32.mrb[0].mxu0
    %3259 = vmatprep.mubr.bf16.mxu0 0
    %3260 = vmatmul.mubr.bf16.gmra.mrb[0].mxu0 %v2922
    %v3261 = vpop.f32.mrb[0].mxu0
    %v3262 = vadd.f32 %v2985, %v3261
    %v3263 = vpop.f32.mrb[0].mxu0
    %v3264 = vpop.f32.mrb[0].mxu0
    %v3265 = vadd.f32 %v2985, %v3264
    %v3266 = vpop.f32.mrb[0].mxu0
    %3267 = vmatprep.mubr.bf16.mxu0 0
    %3268 = vmatmul.mubr.bf16.gmra.mrb[0].mxu0 %v2923
    %v3269 = vpop.f32.mrb[0].mxu0
    %v3270 = vadd.f32 %v2985, %v3269
    %v3271 = vpop.f32.mrb[0].mxu0
    %v3272 = vpop.f32.mrb[0].mxu0
    %v3273 = vadd.f32 %v2985, %v3272
    %v3274 = vpop.f32.mrb[0].mxu0
    %3275 = vmatprep.mubr.bf16.mxu0 0
    %3276 = vmatmul.mubr.bf16.gmra.mrb[0].mxu0 %v2924
    %v3277 = vpop.f32.mrb[0].mxu0
    %v3278 = vadd.f32 %v2985, %v3277
    %v3279 = vpop.f32.mrb[0].mxu0
    %v3280 = vpop.f32.mrb[0].mxu0
    %v3281 = vadd.f32 %v2985, %v3280
    %v3282 = vpop.f32.mrb[0].mxu0
    %3283 = vmatprep.mubr.bf16.mxu0 0
    %3284 = vmatmul.mubr.bf16.gmra.mrb[0].mxu0 %v2925
    %v3285 = vpop.f32.mrb[0].mxu0
    %v3286 = vadd.f32 %v2985, %v3285
    %v3287 = vpop.f32.mrb[0].mxu0
    %v3288 = vpop.f32.mrb[0].mxu0
    %v3289 = vadd.f32 %v2985, %v3288
    %v3290 = vpop.f32.mrb[0].mxu0
    %3291 = vmatprep.mubr.bf16.mxu0 0
    %3292 = vmatmul.mubr.bf16.gmra.mrb[0].mxu0 %v2926
    %v3293 = vpop.f32.mrb[0].mxu0
    %v3294 = vadd.f32 %v2985, %v3293
    %v3295 = vpop.f32.mrb[0].mxu0
    %v3296 = vpop.f32.mrb[0].mxu0
    %v3297 = vadd.f32 %v2985, %v3296
    %v3298 = vpop.f32.mrb[0].mxu0
    %3299 = vmatprep.mubr.bf16.mxu0 0
    %3300 = vmatmul.mubr.bf16.gmra.mrb[0].mxu0 %v2927
    %v3301 = vpop.f32.mrb[0].mxu0
    %v3302 = vadd.f32 %v2985, %v3301
    %v3303 = vpop.f32.mrb[0].mxu0
    %v3304 = vpop.f32.mrb[0].mxu0
    %v3305 = vadd.f32 %v2985, %v3304
    %v3306 = vpop.f32.mrb[0].mxu0
    %3307 = vmatprep.mubr.bf16.mxu0 0
    %3308 = vmatmul.mubr.bf16.gmra.mrb[0].mxu0 %v2928
    %v3309 = vpop.f32.mrb[0].mxu0
    %v3310 = vadd.f32 %v2985, %v3309
    %v3311 = vpop.f32.mrb[0].mxu0
    %v3312 = vpop.f32.mrb[0].mxu0
    %v3313 = vadd.f32 %v2985, %v3312
    %v3314 = vpop.f32.mrb[0].mxu0
    %3315 = vmatprep.mubr.bf16.mxu0 0
    %3316 = vmatmul.mubr.bf16.gmra.mrb[0].mxu0 %v2929
    %v3317 = vpop.f32.mrb[0].mxu0
    %v3318 = vadd.f32 %v2985, %v3317
    %v3319 = vpop.f32.mrb[0].mxu0
    %v3320 = vpop.f32.mrb[0].mxu0
    %v3321 = vadd.f32 %v2985, %v3320
    %v3322 = vpop.f32.mrb[0].mxu0
    %3323 = vmatprep.mubr.bf16.mxu0 0
    %3324 = vmatmul.mubr.bf16.gmra.mrb[0].mxu0 %v2930
    %v3325 = vpop.f32.mrb[0].mxu0
    %v3326 = vadd.f32 %v2985, %v3325
    %v3327 = vpop.f32.mrb[0].mxu0
    %v3328 = vpop.f32.mrb[0].mxu0
    %v3329 = vadd.f32 %v2985, %v3328
    %v3330 = vpop.f32.mrb[0].mxu0
    %3331 = vmatprep.mubr.bf16.mxu0 0
    %3332 = vmatmul.mubr.bf16.gmra.mrb[0].mxu0 %v2931
    %v3333 = vpop.f32.mrb[0].mxu0
    %v3334 = vadd.f32 %v2985, %v3333
    %v3335 = vpop.f32.mrb[0].mxu0
    %v3336 = vpop.f32.mrb[0].mxu0
    %v3337 = vadd.f32 %v2985, %v3336
    %v3338 = vpop.f32.mrb[0].mxu0
    %3339 = vmatprep.mubr.bf16.mxu0 0
    %3340 = vmatmul.mubr.bf16.gmra.mrb[0].mxu0 %v2932
    %v3341 = vpop.f32.mrb[0].mxu0
    %v3342 = vadd.f32 %v2985, %v3341
    %v3343 = vpop.f32.mrb[0].mxu0
    %v3344 = vpop.f32.mrb[0].mxu0
    %v3345 = vadd.f32 %v2985, %v3344
    %v3346 = vpop.f32.mrb[0].mxu0
    %3347 = vmatprep.mubr.bf16.mxu0 0
    %3348 = vmatmul.mubr.bf16.gmra.mrb[0].mxu0 %v2933
    %v3349 = vpop.f32.mrb[0].mxu0
    %v3350 = vadd.f32 %v2985, %v3349
    %v3351 = vpop.f32.mrb[0].mxu0
    %v3352 = vpop.f32.mrb[0].mxu0
    %v3353 = vadd.f32 %v2985, %v3352
    %v3354 = vpop.f32.mrb[0].mxu0
    %3355 = vmatprep.mubr.bf16.mxu0 0
    %3356 = vmatmul.mubr.bf16.gmra.mrb[0].mxu0 %v2934
    %v3357 = vpop.f32.mrb[0].mxu0
    %v3358 = vadd.f32 %v2985, %v3357
    %v3359 = vpop.f32.mrb[0].mxu0
    %v3360 = vpop.f32.mrb[0].mxu0
    %v3361 = vadd.f32 %v2985, %v3360
    %v3362 = vpop.f32.mrb[0].mxu0
    %3363 = vmatprep.mubr.bf16.mxu0 0
    %3364 = vmatmul.mubr.bf16.gmra.mrb[0].mxu0 %v2935
    %v3365 = vpop.f32.mrb[0].mxu0
    %v3366 = vadd.f32 %v2985, %v3365
    %v3367 = vpop.f32.mrb[0].mxu0
    %v3368 = vpop.f32.mrb[0].mxu0
    %v3369 = vadd.f32 %v2985, %v3368
    %v3370 = vpop.f32.mrb[0].mxu0
    %3371 = vmatprep.mubr.bf16.mxu0 0
    %3372 = vmatmul.mubr.bf16.gmra.mrb[0].mxu0 %v2936
    %v3373 = vpop.f32.mrb[0].mxu0
    %v3374 = vadd.f32 %v2985, %v3373
    %v3375 = vpop.f32.mrb[0].mxu0
    %v3376 = vpop.f32.mrb[0].mxu0
    %v3377 = vadd.f32 %v2985, %v3376
    %v3378 = vpop.f32.mrb[0].mxu0
    %3379 = vmatprep.mubr.bf16.mxu0 0
    %3380 = vmatmul.mubr.bf16.gmra.mrb[0].mxu0 %v2937
    %v3381 = vpop.f32.mrb[0].mxu0
    %v3382 = vadd.f32 %v2985, %v3381
    %v3383 = vpop.f32.mrb[0].mxu0
    %v3384 = vpop.f32.mrb[0].mxu0
    %v3385 = vadd.f32 %v2985, %v3384
    %v3386 = vpop.f32.mrb[0].mxu0
    %3387 = vmatprep.mubr.bf16.mxu0 0
    %3388 = vmatmul.mubr.bf16.gmra.mrb[0].mxu0 %v2938
    %v3389 = vpop.f32.mrb[0].mxu0
    %v3390 = vadd.f32 %v2985, %v3389
    %v3391 = vpop.f32.mrb[0].mxu0
    %v3392 = vpop.f32.mrb[0].mxu0
    %v3393 = vadd.f32 %v2985, %v3392
    %v3394 = vpop.f32.mrb[0].mxu0
    %3395 = vmatprep.mubr.bf16.mxu0 0
    %3396 = vmatmul.mubr.bf16.gmra.mrb[0].mxu0 %v2939
    %v3397 = vpop.f32.mrb[0].mxu0
    %v3398 = vadd.f32 %v2985, %v3397
    %v3399 = vpop.f32.mrb[0].mxu0
    %v3400 = vpop.f32.mrb[0].mxu0
    %v3401 = vadd.f32 %v2985, %v3400
    %v3402 = vpop.f32.mrb[0].mxu0
    %3403 = vmatprep.mubr.bf16.mxu0 0
    %3404 = vmatmul.mubr.bf16.gmra.mrb[0].mxu0 %v2940
    %v3405 = vpop.f32.mrb[0].mxu0
    %v3406 = vadd.f32 %v2985, %v3405
    %v3407 = vpop.f32.mrb[0].mxu0
    %v3408 = vpop.f32.mrb[0].mxu0
    %v3409 = vadd.f32 %v2985, %v3408
    %v3410 = vpop.f32.mrb[0].mxu0
    %3411 = vmatprep.mubr.bf16.mxu0 0
    %3412 = vmatmul.mubr.bf16.gmra.mrb[0].mxu0 %v2941
    %v3413 = vpop.f32.mrb[0].mxu0
    %v3414 = vadd.f32 %v2985, %v3413
    %v3415 = vpop.f32.mrb[0].mxu0
    %v3416 = vpop.f32.mrb[0].mxu0
    %v3417 = vadd.f32 %v2985, %v3416
    %v3418 = vpop.f32.mrb[0].mxu0
    %3419 = vmatprep.mubr.bf16.mxu0 0
    %3420 = vmatmul.mubr.bf16.gmra.mrb[0].mxu0 %v2942
    %v3421 = vpop.f32.mrb[0].mxu0
    %v3422 = vadd.f32 %v2985, %v3421
    %v3423 = vpop.f32.mrb[0].mxu0
    %v3424 = vpop.f32.mrb[0].mxu0
    %v3425 = vadd.f32 %v2985, %v3424
    %v3426 = vpop.f32.mrb[0].mxu0
    %3427 = vmatprep.mubr.bf16.mxu0 0
    %3428 = vmatmul.mubr.bf16.gmra.mrb[0].mxu0 %v2943
    %v3429 = vpop.f32.mrb[0].mxu0
    %v3430 = vadd.f32 %v2985, %v3429
    %v3431 = vpop.f32.mrb[0].mxu0
    %v3432 = vpop.f32.mrb[0].mxu0
    %v3433 = vadd.f32 %v2985, %v3432
    %v3434 = vpop.f32.mrb[0].mxu0
    %3435 = vmatprep.mubr.bf16.mxu0 0
    %3436 = vmatmul.mubr.bf16.gmra.mrb[0].mxu0 %v2944
    %v3437 = vpop.f32.mrb[0].mxu0
    %v3438 = vadd.f32 %v2985, %v3437
    %v3439 = vpop.f32.mrb[0].mxu0
    %v3440 = vpop.f32.mrb[0].mxu0
    %v3441 = vadd.f32 %v2985, %v3440
    %v3442 = vpop.f32.mrb[0].mxu0
    %3443 = vmatprep.mubr.bf16.mxu0 0
    %3444 = vmatmul.mubr.bf16.gmra.mrb[0].mxu0 %v2945
    %v3445 = vpop.f32.mrb[0].mxu0
    %v3446 = vadd.f32 %v2985, %v3445
    %v3447 = vpop.f32.mrb[0].mxu0
    %v3448 = vpop.f32.mrb[0].mxu0
    %v3449 = vadd.f32 %v2985, %v3448
    %v3450 = vpop.f32.mrb[0].mxu0
    %3451 = vmatprep.mubr.bf16.mxu0 0
    %3452 = vmatmul.mubr.bf16.gmra.mrb[0].mxu0 %v2946
    %v3453 = vpop.f32.mrb[0].mxu0
    %v3454 = vadd.f32 %v2985, %v3453
    %v3455 = vpop.f32.mrb[0].mxu0
    %v3456 = vpop.f32.mrb[0].mxu0
    %v3457 = vadd.f32 %v2985, %v3456
    %v3458 = vpop.f32.mrb[0].mxu0
    %3459 = vmatprep.mubr.bf16.mxu0 0
    %3460 = vmatmul.mubr.bf16.gmra.mrb[0].mxu0 %v2947
    %v3461 = vpop.f32.mrb[0].mxu0
    %v3462 = vadd.f32 %v2985, %v3461
    %v3463 = vpop.f32.mrb[0].mxu0
    %v3464 = vpop.f32.mrb[0].mxu0
    %v3465 = vadd.f32 %v2985, %v3464
    %v3466 = vpop.f32.mrb[0].mxu0
    %3467 = vmatprep.mubr.bf16.mxu0 0
    %3468 = vmatmul.mubr.bf16.gmra.mrb[0].mxu0 %v2948
    %v3469 = vpop.f32.mrb[0].mxu0
    %v3470 = vadd.f32 %v2985, %v3469
    %v3471 = vpop.f32.mrb[0].mxu0
    %v3472 = vpop.f32.mrb[0].mxu0
    %v3473 = vadd.f32 %v2985, %v3472
    %v3474 = vpop.f32.mrb[0].mxu0
    %3475 = vmatprep.mubr.bf16.mxu0 0
    %3476 = vmatmul.mubr.bf16.gmra.mrb[0].mxu0 %v2949
    %v3477 = vpop.f32.mrb[0].mxu0
    %v3478 = vadd.f32 %v2985, %v3477
    %v3479 = vpop.f32.mrb[0].mxu0
    %v3480 = vpop.f32.mrb[0].mxu0
    %v3481 = vadd.f32 %v2985, %v3480
    %v3482 = vpop.f32.mrb[0].mxu0
    %3483 = vmatprep.mubr.bf16.mxu0 0
    %3484 = vmatmul.mubr.bf16.gmra.mrb[0].mxu0 %v2950
    %v3485 = vpop.f32.mrb[0].mxu0
    %v3486 = vadd.f32 %v2985, %v3485
    %v3487 = vpop.f32.mrb[0].mxu0
    %v3488 = vpop.f32.mrb[0].mxu0
    %v3489 = vadd.f32 %v2985, %v3488
    %v3490 = vpop.f32.mrb[0].mxu0
    %3491 = vmatprep.mubr.bf16.mxu0 0
    %3492 = vmatmul.mubr.bf16.gmra.mrb[0].mxu0 %v2951
    %v3493 = vpop.f32.mrb[0].mxu0
    %v3494 = vadd.f32 %v2985, %v3493
    %v3495 = vpop.f32.mrb[0].mxu0
    %v3496 = vpop.f32.mrb[0].mxu0
    %v3497 = vadd.f32 %v2985, %v3496
    %v3498 = vpop.f32.mrb[0].mxu0
    %3499 = vmatprep.mubr.bf16.mxu0 0
    %3500 = vmatmul.mubr.bf16.gmra.mrb[0].mxu0 %v2952
    %v3501 = vpop.f32.mrb[0].mxu0
    %v3502 = vadd.f32 %v2985, %v3501
    %v3503 = vpop.f32.mrb[0].mxu0
    %v3504 = vpop.f32.mrb[0].mxu0
    %v3505 = vadd.f32 %v2985, %v3504
    %v3506 = vpop.f32.mrb[0].mxu0
    %3507 = vmatprep.mubr.bf16.mxu0 0
    %3508 = vmatmul.mubr.bf16.gmra.mrb[0].mxu0 %v2953
    %v3509 = vpop.f32.mrb[0].mxu0
    %v3510 = vadd.f32 %v2985, %v3509
    %v3511 = vpop.f32.mrb[0].mxu0
    %v3512 = vpop.f32.mrb[0].mxu0
    %v3513 = vadd.f32 %v2985, %v3512
    %v3514 = vpop.f32.mrb[0].mxu0
    %3515 = vmatprep.mubr.bf16.mxu0 0
    %3516 = vmatmul.mubr.bf16.gmra.mrb[0].mxu0 %v2954
    %v3517 = vpop.f32.mrb[0].mxu0
    %v3518 = vadd.f32 %v2985, %v3517
    %v3519 = vpop.f32.mrb[0].mxu0
    %v3520 = vpop.f32.mrb[0].mxu0
    %v3521 = vadd.f32 %v2985, %v3520
    %v3522 = vpop.f32.mrb[0].mxu0
    %3523 = vmatprep.mubr.bf16.mxu0 0
    %3524 = vmatmul.mubr.bf16.gmra.mrb[0].mxu0 %v2955
    %v3525 = vpop.f32.mrb[0].mxu0
    %v3526 = vadd.f32 %v2985, %v3525
    %v3527 = vpop.f32.mrb[0].mxu0
    %v3528 = vpop.f32.mrb[0].mxu0
    %v3529 = vadd.f32 %v2985, %v3528
    %v3530 = vpop.f32.mrb[0].mxu0
    %3531 = vmatprep.mubr.bf16.mxu0 0
    %3532 = vmatmul.mubr.bf16.gmra.mrb[0].mxu0 %v2956
    %v3533 = vpop.f32.mrb[0].mxu0
    %v3534 = vadd.f32 %v2985, %v3533
    %v3535 = vpop.f32.mrb[0].mxu0
    %v3536 = vpop.f32.mrb[0].mxu0
    %v3537 = vadd.f32 %v2985, %v3536
    %v3538 = vpop.f32.mrb[0].mxu0
    %3539 = vmatprep.mubr.bf16.mxu0 0
    %3540 = vmatmul.mubr.bf16.gmra.mrb[0].mxu0 %v2957
    %v3541 = vpop.f32.mrb[0].mxu0
    %v3542 = vadd.f32 %v2985, %v3541
    %v3543 = vpop.f32.mrb[0].mxu0
    %v3544 = vpop.f32.mrb[0].mxu0
    %v3545 = vadd.f32 %v2985, %v3544
    %v3546 = vpop.f32.mrb[0].mxu0
    %3547 = vmatprep.mubr.bf16.mxu0 0
    %3548 = vmatmul.mubr.bf16.gmra.mrb[0].mxu0 %v2958
    %v3549 = vpop.f32.mrb[0].mxu0
    %v3550 = vadd.f32 %v2985, %v3549
    %v3551 = vpop.f32.mrb[0].mxu0
    %v3552 = vpop.f32.mrb[0].mxu0
    %v3553 = vadd.f32 %v2985, %v3552
    %v3554 = vpop.f32.mrb[0].mxu0
    %3555 = vmatprep.mubr.bf16.mxu0 0
    %3556 = vmatmul.mubr.bf16.gmra.mrb[0].mxu0 %v2959
    %v3557 = vpop.f32.mrb[0].mxu0
    %v3558 = vadd.f32 %v2985, %v3557
    %v3559 = vpop.f32.mrb[0].mxu0
    %v3560 = vpop.f32.mrb[0].mxu0
    %v3561 = vadd.f32 %v2985, %v3560
    %v3562 = vpop.f32.mrb[0].mxu0
    %3563 = vmatprep.mubr.bf16.mxu0 0
    %3564 = vmatmul.mubr.bf16.gmra.mrb[0].mxu0 %v2960
    %v3565 = vpop.f32.mrb[0].mxu0
    %v3566 = vadd.f32 %v2985, %v3565
    %v3567 = vpop.f32.mrb[0].mxu0
    %v3568 = vpop.f32.mrb[0].mxu0
    %v3569 = vadd.f32 %v2985, %v3568
    %v3570 = vpop.f32.mrb[0].mxu0
    %3571 = vmatprep.mubr.bf16.mxu0 0
    %3572 = vmatmul.mubr.bf16.gmra.mrb[0].mxu0 %v2961
    %v3573 = vpop.f32.mrb[0].mxu0
    %v3574 = vadd.f32 %v2985, %v3573
    %v3575 = vpop.f32.mrb[0].mxu0
    %v3576 = vpop.f32.mrb[0].mxu0
    %v3577 = vadd.f32 %v2985, %v3576
    %v3578 = vpop.f32.mrb[0].mxu0
    %3579 = vdwg.mxu0
    %v3580 = vmax.f32 %v3070, 0.0
    %v3581 = vmax.f32 %v3073, 0.0
    %v3582 = vmax.f32 %v3078, 0.0
    %v3583 = vmax.f32 %v3081, 0.0
    %v3584 = vmax.f32 %v3086, 0.0
    %v3585 = vmax.f32 %v3089, 0.0
    %v3586 = vmax.f32 %v3094, 0.0
    %v3587 = vmax.f32 %v3097, 0.0
    %v3588 = vmax.f32 %v3102, 0.0
    %v3589 = vmax.f32 %v3105, 0.0
    %v3590 = vmax.f32 %v3110, 0.0
    %v3591 = vmax.f32 %v3113, 0.0
    %v3592 = vmax.f32 %v3118, 0.0
    %v3593 = vmax.f32 %v3121, 0.0
    %v3594 = vmax.f32 %v3126, 0.0
    %v3595 = vmax.f32 %v3129, 0.0
    %v3596 = vmax.f32 %v3134, 0.0
    %v3597 = vmax.f32 %v3137, 0.0
    %v3598 = vmax.f32 %v3142, 0.0
    %v3599 = vmax.f32 %v3145, 0.0
    %v3600 = vmax.f32 %v3150, 0.0
    %v3601 = vmax.f32 %v3153, 0.0
    %v3602 = vmax.f32 %v3158, 0.0
    %v3603 = vmax.f32 %v3161, 0.0
    %v3604 = vmax.f32 %v3166, 0.0
    %v3605 = vmax.f32 %v3169, 0.0
    %v3606 = vmax.f32 %v3174, 0.0
    %v3607 = vmax.f32 %v3177, 0.0
    %v3608 = vmax.f32 %v3182, 0.0
    %v3609 = vmax.f32 %v3185, 0.0
    %v3610 = vmax.f32 %v3190, 0.0
    %v3611 = vmax.f32 %v3193, 0.0
    %v3612 = vmax.f32 %v3198, 0.0
    %v3613 = vmax.f32 %v3201, 0.0
    %v3614 = vmax.f32 %v3206, 0.0
    %v3615 = vmax.f32 %v3209, 0.0
    %v3616 = vmax.f32 %v3214, 0.0
    %v3617 = vmax.f32 %v3217, 0.0
    %v3618 = vmax.f32 %v3222, 0.0
    %v3619 = vmax.f32 %v3225, 0.0
    %v3620 = vmax.f32 %v3230, 0.0
    %v3621 = vmax.f32 %v3233, 0.0
    %v3622 = vmax.f32 %v3238, 0.0
    %v3623 = vmax.f32 %v3241, 0.0
    %v3624 = vmax.f32 %v3246, 0.0
    %v3625 = vmax.f32 %v3249, 0.0
    %v3626 = vmax.f32 %v3254, 0.0
    %v3627 = vmax.f32 %v3257, 0.0
    %v3628 = vmax.f32 %v3262, 0.0
    %v3629 = vmax.f32 %v3265, 0.0
    %v3630 = vmax.f32 %v3270, 0.0
    %v3631 = vmax.f32 %v3273, 0.0
    %v3632 = vmax.f32 %v3278, 0.0
    %v3633 = vmax.f32 %v3281, 0.0
    %v3634 = vmax.f32 %v3286, 0.0
    %v3635 = vmax.f32 %v3289, 0.0
    %v3636 = vmax.f32 %v3294, 0.0
    %v3637 = vmax.f32 %v3297, 0.0
    %v3638 = vmax.f32 %v3302, 0.0
    %v3639 = vmax.f32 %v3305, 0.0
    %v3640 = vmax.f32 %v3310, 0.0
    %v3641 = vmax.f32 %v3313, 0.0
    %v3642 = vmax.f32 %v3318, 0.0
    %v3643 = vmax.f32 %v3321, 0.0
    %v3644 = vmax.f32 %v3326, 0.0
    %v3645 = vmax.f32 %v3329, 0.0
    %v3646 = vmax.f32 %v3334, 0.0
    %v3647 = vmax.f32 %v3337, 0.0
    %v3648 = vmax.f32 %v3342, 0.0
    %v3649 = vmax.f32 %v3345, 0.0
    %v3650 = vmax.f32 %v3350, 0.0
    %v3651 = vmax.f32 %v3353, 0.0
    %v3652 = vmax.f32 %v3358, 0.0
    %v3653 = vmax.f32 %v3361, 0.0
    %v3654 = vmax.f32 %v3366, 0.0
    %v3655 = vmax.f32 %v3369, 0.0
    %v3656 = vmax.f32 %v3374, 0.0
    %v3657 = vmax.f32 %v3377, 0.0
    %v3658 = vmax.f32 %v3382, 0.0
    %v3659 = vmax.f32 %v3385, 0.0
    %v3660 = vmax.f32 %v3390, 0.0
    %v3661 = vmax.f32 %v3393, 0.0
    %v3662 = vmax.f32 %v3398, 0.0
    %v3663 = vmax.f32 %v3401, 0.0
    %v3664 = vmax.f32 %v3406, 0.0
    %v3665 = vmax.f32 %v3409, 0.0
    %v3666 = vmax.f32 %v3414, 0.0
    %v3667 = vmax.f32 %v3417, 0.0
    %v3668 = vmax.f32 %v3422, 0.0
    %v3669 = vmax.f32 %v3425, 0.0
    %v3670 = vmax.f32 %v3430, 0.0
    %v3671 = vmax.f32 %v3433, 0.0
    %v3672 = vmax.f32 %v3438, 0.0
    %v3673 = vmax.f32 %v3441, 0.0
    %v3674 = vmax.f32 %v3446, 0.0
    %v3675 = vmax.f32 %v3449, 0.0
    %v3676 = vmax.f32 %v3454, 0.0
    %v3677 = vmax.f32 %v3457, 0.0
    %v3678 = vmax.f32 %v3462, 0.0
    %v3679 = vmax.f32 %v3465, 0.0
    %v3680 = vmax.f32 %v3470, 0.0
    %v3681 = vmax.f32 %v3473, 0.0
    %v3682 = vmax.f32 %v3478, 0.0
    %v3683 = vmax.f32 %v3481, 0.0
    %v3684 = vmax.f32 %v3486, 0.0
    %v3685 = vmax.f32 %v3489, 0.0
    %v3686 = vmax.f32 %v3494, 0.0
    %v3687 = vmax.f32 %v3497, 0.0
    %v3688 = vmax.f32 %v3502, 0.0
    %v3689 = vmax.f32 %v3505, 0.0
    %v3690 = vmax.f32 %v3510, 0.0
    %v3691 = vmax.f32 %v3513, 0.0
    %v3692 = vmax.f32 %v3518, 0.0
    %v3693 = vmax.f32 %v3521, 0.0
    %v3694 = vmax.f32 %v3526, 0.0
    %v3695 = vmax.f32 %v3529, 0.0
    %v3696 = vmax.f32 %v3534, 0.0
    %v3697 = vmax.f32 %v3537, 0.0
    %v3698 = vmax.f32 %v3542, 0.0
    %v3699 = vmax.f32 %v3545, 0.0
    %v3700 = vmax.f32 %v3550, 0.0
    %v3701 = vmax.f32 %v3553, 0.0
    %v3702 = vmax.f32 %v3558, 0.0
    %v3703 = vmax.f32 %v3561, 0.0
    %v3704 = vmax.f32 %v3566, 0.0
    %v3705 = vmax.f32 %v3569, 0.0
    %v3706 = vmax.f32 %v3574, 0.0
    %v3707 = vmax.f32 %v3577, 0.0
    %v3708 = vpack.c.bf16 %v3581, %v3580
    %v3709 = vpack.c.bf16 %v3583, %v3582
    %v3710 = vpack.c.bf16 %v3585, %v3584
    %v3711 = vpack.c.bf16 %v3587, %v3586
    %v3712 = vpack.c.bf16 %v3589, %v3588
    %v3713 = vpack.c.bf16 %v3591, %v3590
    %v3714 = vpack.c.bf16 %v3593, %v3592
    %v3715 = vpack.c.bf16 %v3595, %v3594
    %v3716 = vpack.c.bf16 %v3597, %v3596
    %v3717 = vpack.c.bf16 %v3599, %v3598
    %v3718 = vpack.c.bf16 %v3601, %v3600
    %v3719 = vpack.c.bf16 %v3603, %v3602
    %v3720 = vpack.c.bf16 %v3605, %v3604
    %v3721 = vpack.c.bf16 %v3607, %v3606
    %v3722 = vpack.c.bf16 %v3609, %v3608
    %v3723 = vpack.c.bf16 %v3611, %v3610
    %v3724 = vpack.c.bf16 %v3613, %v3612
    %v3725 = vpack.c.bf16 %v3615, %v3614
    %v3726 = vpack.c.bf16 %v3617, %v3616
    %v3727 = vpack.c.bf16 %v3619, %v3618
    %v3728 = vpack.c.bf16 %v3621, %v3620
    %v3729 = vpack.c.bf16 %v3623, %v3622
    %v3730 = vpack.c.bf16 %v3625, %v3624
    %v3731 = vpack.c.bf16 %v3627, %v3626
    %v3732 = vpack.c.bf16 %v3629, %v3628
    %v3733 = vpack.c.bf16 %v3631, %v3630
    %v3734 = vpack.c.bf16 %v3633, %v3632
    %v3735 = vpack.c.bf16 %v3635, %v3634
    %v3736 = vpack.c.bf16 %v3637, %v3636
    %v3737 = vpack.c.bf16 %v3639, %v3638
    %v3738 = vpack.c.bf16 %v3641, %v3640
    %v3739 = vpack.c.bf16 %v3643, %v3642
    %v3740 = vpack.c.bf16 %v3645, %v3644
    %v3741 = vpack.c.bf16 %v3647, %v3646
    %v3742 = vpack.c.bf16 %v3649, %v3648
    %v3743 = vpack.c.bf16 %v3651, %v3650
    %v3744 = vpack.c.bf16 %v3653, %v3652
    %v3745 = vpack.c.bf16 %v3655, %v3654
    %v3746 = vpack.c.bf16 %v3657, %v3656
    %v3747 = vpack.c.bf16 %v3659, %v3658
    %v3748 = vpack.c.bf16 %v3661, %v3660
    %v3749 = vpack.c.bf16 %v3663, %v3662
    %v3750 = vpack.c.bf16 %v3665, %v3664
    %v3751 = vpack.c.bf16 %v3667, %v3666
    %v3752 = vpack.c.bf16 %v3669, %v3668
    %v3753 = vpack.c.bf16 %v3671, %v3670
    %v3754 = vpack.c.bf16 %v3673, %v3672
    %v3755 = vpack.c.bf16 %v3675, %v3674
    %v3756 = vpack.c.bf16 %v3677, %v3676
    %v3757 = vpack.c.bf16 %v3679, %v3678
    %v3758 = vpack.c.bf16 %v3681, %v3680
    %v3759 = vpack.c.bf16 %v3683, %v3682
    %v3760 = vpack.c.bf16 %v3685, %v3684
    %v3761 = vpack.c.bf16 %v3687, %v3686
    %v3762 = vpack.c.bf16 %v3689, %v3688
    %v3763 = vpack.c.bf16 %v3691, %v3690
    %v3764 = vpack.c.bf16 %v3693, %v3692
    %v3765 = vpack.c.bf16 %v3695, %v3694
    %v3766 = vpack.c.bf16 %v3697, %v3696
    %v3767 = vpack.c.bf16 %v3699, %v3698
    %v3768 = vpack.c.bf16 %v3701, %v3700
    %v3769 = vpack.c.bf16 %v3703, %v3702
    %v3770 = vpack.c.bf16 %v3705, %v3704
    %v3771 = vpack.c.bf16 %v3707, %v3706
    %s3772 = scalar_lea.vmem %s5, 128
    %v3773 = vld [vmem:[%s3772] sm:$0xf]
    %v3774 = vld [vmem:[%s3772 + $0x4] sm:$0xf]
    %v3775 = vld [vmem:[%s3772 + $0x8] sm:$0xf]
    %v3776 = vld [vmem:[%s3772 + $0xc] sm:$0xf]
    %v3777 = vld [vmem:[%s3772 + $0x10] sm:$0xf]
    %v3778 = vld [vmem:[%s3772 + $0x14] sm:$0xf]
    %v3779 = vld [vmem:[%s3772 + $0x18] sm:$0xf]
    %v3780 = vld [vmem:[%s3772 + $0x1c] sm:$0xf]
    %v3781 = vld [vmem:[%s3772 + $0x20] sm:$0xf]
    %v3782 = vld [vmem:[%s3772 + $0x24] sm:$0xf]
    %v3783 = vld [vmem:[%s3772 + $0x28] sm:$0xf]
    %v3784 = vld [vmem:[%s3772 + $0x2c] sm:$0xf]
    %v3785 = vld [vmem:[%s3772 + $0x30] sm:$0xf]
    %v3786 = vld [vmem:[%s3772 + $0x34] sm:$0xf]
    %v3787 = vld [vmem:[%s3772 + $0x38] sm:$0xf]
    %v3788 = vld [vmem:[%s3772 + $0x3c] sm:$0xf]
    %s3789 = scalar_lea.vmem %s6, 2
    %v3790 = vld [vmem:[%s3789] sm:$0x1]
    %v3792 = vlaneseq
    %v3793 = vshrl.u32 %v3792, 7
    %v3794 = vsub.s32 0, %v3793
    %v3795 = vrot.slane %v3790, %v3794
    %v3813 = vunpack.c.l.b16 %v3773
    %v3814 = vunpack.c.l.b16 %v3774
    %v3815 = vunpack.c.l.b16 %v3775
    %v3816 = vunpack.c.l.b16 %v3776
    %v3817 = vunpack.c.l.b16 %v3777
    %v3818 = vunpack.c.l.b16 %v3778
    %v3819 = vunpack.c.l.b16 %v3779
    %v3820 = vunpack.c.l.b16 %v3780
    %v3821 = vunpack.c.l.b16 %v3781
    %v3822 = vunpack.c.l.b16 %v3782
    %v3823 = vunpack.c.l.b16 %v3783
    %v3824 = vunpack.c.l.b16 %v3784
    %v3825 = vunpack.c.l.b16 %v3785
    %v3826 = vunpack.c.l.b16 %v3786
    %v3827 = vunpack.c.l.b16 %v3787
    %v3828 = vunpack.c.l.b16 %v3788
    %v3829 = vpack.c.b16 %v3814, %v3813
    %v3830 = vpack.c.b16 %v3816, %v3815
    %v3831 = vpack.c.b16 %v3818, %v3817
    %v3832 = vpack.c.b16 %v3820, %v3819
    %v3833 = vpack.c.b16 %v3822, %v3821
    %v3834 = vpack.c.b16 %v3824, %v3823
    %v3835 = vpack.c.b16 %v3826, %v3825
    %v3836 = vpack.c.b16 %v3828, %v3827
    %3845 = vmatprep.subr.bf16.mxu0 0
    %3846 = vmatpush1.bf16.msra.mxu0 %v3829
    %3847 = vmatprep.subr.bf16.mxu0 0
    %3848 = vmatpush1.bf16.msra.mxu0 %v3830
    %3849 = vmatprep.subr.bf16.mxu0 0
    %3850 = vmatpush1.bf16.msra.mxu0 %v3831
    %3851 = vmatprep.subr.bf16.mxu0 0
    %3852 = vmatpush1.bf16.msra.mxu0 %v3832
    %3853 = vmatprep.subr.bf16.mxu0 0
    %3854 = vmatpush1.bf16.msra.mxu0 %v3833
    %3855 = vmatprep.subr.bf16.mxu0 0
    %3856 = vmatpush1.bf16.msra.mxu0 %v3834
    %3857 = vmatprep.subr.bf16.mxu0 0
    %3858 = vmatpush1.bf16.msra.mxu0 %v3835
    %3859 = vmatprep.subr.bf16.mxu0 0
    %3860 = vmatpush1.bf16.msra.mxu0 %v3836
    %3861 = vmatprep.subr.bf16.mxu0 0
    %3862 = vmatpush1.bf16.msra.mxu0 0
    %3863 = vmatprep.subr.bf16.mxu0 0
    %3864 = vmatpush1.bf16.msra.mxu0 0
    %3865 = vmatprep.subr.bf16.mxu0 0
    %3866 = vmatpush1.bf16.msra.mxu0 0
    %3867 = vmatprep.subr.bf16.mxu0 0
    %3868 = vmatpush1.bf16.msra.mxu0 0
    %3869 = vmatprep.subr.bf16.mxu0 0
    %3870 = vmatpush1.bf16.msra.mxu0 0
    %3871 = vmatprep.subr.bf16.mxu0 0
    %3872 = vmatpush1.bf16.msra.mxu0 0
    %3873 = vmatprep.subr.bf16.mxu0 0
    %3874 = vmatpush1.bf16.msra.mxu0 0
    %3875 = vmatprep.subr.bf16.mxu0 0
    %3876 = vmatpush1.bf16.msra.mxu0 0
    %3877 = vmatprep.mubr.bf16.mxu0 0
    %3878 = vmatmul.mubr.bf16.gmra.mrb[0].mxu0 %v3708
    %v3879 = vpop.f32.mrb[0].mxu0
    %v3880 = vadd.f32 %v3795, %v3879
    %v3881 = vpop.f32.mrb[0].mxu0
    %v3882 = vpop.f32.mrb[0].mxu0
    %v3883 = vadd.f32 %v3795, %v3882
    %v3884 = vpop.f32.mrb[0].mxu0
    %3885 = vmatprep.mubr.bf16.mxu0 0
    %3886 = vmatmul.mubr.bf16.gmra.mrb[0].mxu0 %v3709
    %v3887 = vpop.f32.mrb[0].mxu0
    %v3888 = vadd.f32 %v3795, %v3887
    %v3889 = vpop.f32.mrb[0].mxu0
    %v3890 = vpop.f32.mrb[0].mxu0
    %v3891 = vadd.f32 %v3795, %v3890
    %v3892 = vpop.f32.mrb[0].mxu0
    %3893 = vmatprep.mubr.bf16.mxu0 0
    %3894 = vmatmul.mubr.bf16.gmra.mrb[0].mxu0 %v3710
    %v3895 = vpop.f32.mrb[0].mxu0
    %v3896 = vadd.f32 %v3795, %v3895
    %v3897 = vpop.f32.mrb[0].mxu0
    %v3898 = vpop.f32.mrb[0].mxu0
    %v3899 = vadd.f32 %v3795, %v3898
    %v3900 = vpop.f32.mrb[0].mxu0
    %3901 = vmatprep.mubr.bf16.mxu0 0
    %3902 = vmatmul.mubr.bf16.gmra.mrb[0].mxu0 %v3711
    %v3903 = vpop.f32.mrb[0].mxu0
    %v3904 = vadd.f32 %v3795, %v3903
    %v3905 = vpop.f32.mrb[0].mxu0
    %v3906 = vpop.f32.mrb[0].mxu0
    %v3907 = vadd.f32 %v3795, %v3906
    %v3908 = vpop.f32.mrb[0].mxu0
    %3909 = vmatprep.mubr.bf16.mxu0 0
    %3910 = vmatmul.mubr.bf16.gmra.mrb[0].mxu0 %v3712
    %v3911 = vpop.f32.mrb[0].mxu0
    %v3912 = vadd.f32 %v3795, %v3911
    %v3913 = vpop.f32.mrb[0].mxu0
    %v3914 = vpop.f32.mrb[0].mxu0
    %v3915 = vadd.f32 %v3795, %v3914
    %v3916 = vpop.f32.mrb[0].mxu0
    %3917 = vmatprep.mubr.bf16.mxu0 0
    %3918 = vmatmul.mubr.bf16.gmra.mrb[0].mxu0 %v3713
    %v3919 = vpop.f32.mrb[0].mxu0
    %v3920 = vadd.f32 %v3795, %v3919
    %v3921 = vpop.f32.mrb[0].mxu0
    %v3922 = vpop.f32.mrb[0].mxu0
    %v3923 = vadd.f32 %v3795, %v3922
    %v3924 = vpop.f32.mrb[0].mxu0
    %3925 = vmatprep.mubr.bf16.mxu0 0
    %3926 = vmatmul.mubr.bf16.gmra.mrb[0].mxu0 %v3714
    %v3927 = vpop.f32.mrb[0].mxu0
    %v3928 = vadd.f32 %v3795, %v3927
    %v3929 = vpop.f32.mrb[0].mxu0
    %v3930 = vpop.f32.mrb[0].mxu0
    %v3931 = vadd.f32 %v3795, %v3930
    %v3932 = vpop.f32.mrb[0].mxu0
    %3933 = vmatprep.mubr.bf16.mxu0 0
    %3934 = vmatmul.mubr.bf16.gmra.mrb[0].mxu0 %v3715
    %v3935 = vpop.f32.mrb[0].mxu0
    %v3936 = vadd.f32 %v3795, %v3935
    %v3937 = vpop.f32.mrb[0].mxu0
    %v3938 = vpop.f32.mrb[0].mxu0
    %v3939 = vadd.f32 %v3795, %v3938
    %v3940 = vpop.f32.mrb[0].mxu0
    %3941 = vmatprep.mubr.bf16.mxu0 0
    %3942 = vmatmul.mubr.bf16.gmra.mrb[0].mxu0 %v3716
    %v3943 = vpop.f32.mrb[0].mxu0
    %v3944 = vadd.f32 %v3795, %v3943
    %v3945 = vpop.f32.mrb[0].mxu0
    %v3946 = vpop.f32.mrb[0].mxu0
    %v3947 = vadd.f32 %v3795, %v3946
    %v3948 = vpop.f32.mrb[0].mxu0
    %3949 = vmatprep.mubr.bf16.mxu0 0
    %3950 = vmatmul.mubr.bf16.gmra.mrb[0].mxu0 %v3717
    %v3951 = vpop.f32.mrb[0].mxu0
    %v3952 = vadd.f32 %v3795, %v3951
    %v3953 = vpop.f32.mrb[0].mxu0
    %v3954 = vpop.f32.mrb[0].mxu0
    %v3955 = vadd.f32 %v3795, %v3954
    %v3956 = vpop.f32.mrb[0].mxu0
    %3957 = vmatprep.mubr.bf16.mxu0 0
    %3958 = vmatmul.mubr.bf16.gmra.mrb[0].mxu0 %v3718
    %v3959 = vpop.f32.mrb[0].mxu0
    %v3960 = vadd.f32 %v3795, %v3959
    %v3961 = vpop.f32.mrb[0].mxu0
    %v3962 = vpop.f32.mrb[0].mxu0
    %v3963 = vadd.f32 %v3795, %v3962
    %v3964 = vpop.f32.mrb[0].mxu0
    %3965 = vmatprep.mubr.bf16.mxu0 0
    %3966 = vmatmul.mubr.bf16.gmra.mrb[0].mxu0 %v3719
    %v3967 = vpop.f32.mrb[0].mxu0
    %v3968 = vadd.f32 %v3795, %v3967
    %v3969 = vpop.f32.mrb[0].mxu0
    %v3970 = vpop.f32.mrb[0].mxu0
    %v3971 = vadd.f32 %v3795, %v3970
    %v3972 = vpop.f32.mrb[0].mxu0
    %3973 = vmatprep.mubr.bf16.mxu0 0
    %3974 = vmatmul.mubr.bf16.gmra.mrb[0].mxu0 %v3720
    %v3975 = vpop.f32.mrb[0].mxu0
    %v3976 = vadd.f32 %v3795, %v3975
    %v3977 = vpop.f32.mrb[0].mxu0
    %v3978 = vpop.f32.mrb[0].mxu0
    %v3979 = vadd.f32 %v3795, %v3978
    %v3980 = vpop.f32.mrb[0].mxu0
    %3981 = vmatprep.mubr.bf16.mxu0 0
    %3982 = vmatmul.mubr.bf16.gmra.mrb[0].mxu0 %v3721
    %v3983 = vpop.f32.mrb[0].mxu0
    %v3984 = vadd.f32 %v3795, %v3983
    %v3985 = vpop.f32.mrb[0].mxu0
    %v3986 = vpop.f32.mrb[0].mxu0
    %v3987 = vadd.f32 %v3795, %v3986
    %v3988 = vpop.f32.mrb[0].mxu0
    %3989 = vmatprep.mubr.bf16.mxu0 0
    %3990 = vmatmul.mubr.bf16.gmra.mrb[0].mxu0 %v3722
    %v3991 = vpop.f32.mrb[0].mxu0
    %v3992 = vadd.f32 %v3795, %v3991
    %v3993 = vpop.f32.mrb[0].mxu0
    %v3994 = vpop.f32.mrb[0].mxu0
    %v3995 = vadd.f32 %v3795, %v3994
    %v3996 = vpop.f32.mrb[0].mxu0
    %3997 = vmatprep.mubr.bf16.mxu0 0
    %3998 = vmatmul.mubr.bf16.gmra.mrb[0].mxu0 %v3723
    %v3999 = vpop.f32.mrb[0].mxu0
    %v4000 = vadd.f32 %v3795, %v3999
    %v4001 = vpop.f32.mrb[0].mxu0
    %v4002 = vpop.f32.mrb[0].mxu0
    %v4003 = vadd.f32 %v3795, %v4002
    %v4004 = vpop.f32.mrb[0].mxu0
    %4005 = vmatprep.mubr.bf16.mxu0 0
    %4006 = vmatmul.mubr.bf16.gmra.mrb[0].mxu0 %v3724
    %v4007 = vpop.f32.mrb[0].mxu0
    %v4008 = vadd.f32 %v3795, %v4007
    %v4009 = vpop.f32.mrb[0].mxu0
    %v4010 = vpop.f32.mrb[0].mxu0
    %v4011 = vadd.f32 %v3795, %v4010
    %v4012 = vpop.f32.mrb[0].mxu0
    %4013 = vmatprep.mubr.bf16.mxu0 0
    %4014 = vmatmul.mubr.bf16.gmra.mrb[0].mxu0 %v3725
    %v4015 = vpop.f32.mrb[0].mxu0
    %v4016 = vadd.f32 %v3795, %v4015
    %v4017 = vpop.f32.mrb[0].mxu0
    %v4018 = vpop.f32.mrb[0].mxu0
    %v4019 = vadd.f32 %v3795, %v4018
    %v4020 = vpop.f32.mrb[0].mxu0
    %4021 = vmatprep.mubr.bf16.mxu0 0
    %4022 = vmatmul.mubr.bf16.gmra.mrb[0].mxu0 %v3726
    %v4023 = vpop.f32.mrb[0].mxu0
    %v4024 = vadd.f32 %v3795, %v4023
    %v4025 = vpop.f32.mrb[0].mxu0
    %v4026 = vpop.f32.mrb[0].mxu0
    %v4027 = vadd.f32 %v3795, %v4026
    %v4028 = vpop.f32.mrb[0].mxu0
    %4029 = vmatprep.mubr.bf16.mxu0 0
    %4030 = vmatmul.mubr.bf16.gmra.mrb[0].mxu0 %v3727
    %v4031 = vpop.f32.mrb[0].mxu0
    %v4032 = vadd.f32 %v3795, %v4031
    %v4033 = vpop.f32.mrb[0].mxu0
    %v4034 = vpop.f32.mrb[0].mxu0
    %v4035 = vadd.f32 %v3795, %v4034
    %v4036 = vpop.f32.mrb[0].mxu0
    %4037 = vmatprep.mubr.bf16.mxu0 0
    %4038 = vmatmul.mubr.bf16.gmra.mrb[0].mxu0 %v3728
    %v4039 = vpop.f32.mrb[0].mxu0
    %v4040 = vadd.f32 %v3795, %v4039
    %v4041 = vpop.f32.mrb[0].mxu0
    %v4042 = vpop.f32.mrb[0].mxu0
    %v4043 = vadd.f32 %v3795, %v4042
    %v4044 = vpop.f32.mrb[0].mxu0
    %4045 = vmatprep.mubr.bf16.mxu0 0
    %4046 = vmatmul.mubr.bf16.gmra.mrb[0].mxu0 %v3729
    %v4047 = vpop.f32.mrb[0].mxu0
    %v4048 = vadd.f32 %v3795, %v4047
    %v4049 = vpop.f32.mrb[0].mxu0
    %v4050 = vpop.f32.mrb[0].mxu0
    %v4051 = vadd.f32 %v3795, %v4050
    %v4052 = vpop.f32.mrb[0].mxu0
    %4053 = vmatprep.mubr.bf16.mxu0 0
    %4054 = vmatmul.mubr.bf16.gmra.mrb[0].mxu0 %v3730
    %v4055 = vpop.f32.mrb[0].mxu0
    %v4056 = vadd.f32 %v3795, %v4055
    %v4057 = vpop.f32.mrb[0].mxu0
    %v4058 = vpop.f32.mrb[0].mxu0
    %v4059 = vadd.f32 %v3795, %v4058
    %v4060 = vpop.f32.mrb[0].mxu0
    %4061 = vmatprep.mubr.bf16.mxu0 0
    %4062 = vmatmul.mubr.bf16.gmra.mrb[0].mxu0 %v3731
    %v4063 = vpop.f32.mrb[0].mxu0
    %v4064 = vadd.f32 %v3795, %v4063
    %v4065 = vpop.f32.mrb[0].mxu0
    %v4066 = vpop.f32.mrb[0].mxu0
    %v4067 = vadd.f32 %v3795, %v4066
    %v4068 = vpop.f32.mrb[0].mxu0
    %4069 = vmatprep.mubr.bf16.mxu0 0
    %4070 = vmatmul.mubr.bf16.gmra.mrb[0].mxu0 %v3732
    %v4071 = vpop.f32.mrb[0].mxu0
    %v4072 = vadd.f32 %v3795, %v4071
    %v4073 = vpop.f32.mrb[0].mxu0
    %v4074 = vpop.f32.mrb[0].mxu0
    %v4075 = vadd.f32 %v3795, %v4074
    %v4076 = vpop.f32.mrb[0].mxu0
    %4077 = vmatprep.mubr.bf16.mxu0 0
    %4078 = vmatmul.mubr.bf16.gmra.mrb[0].mxu0 %v3733
    %v4079 = vpop.f32.mrb[0].mxu0
    %v4080 = vadd.f32 %v3795, %v4079
    %v4081 = vpop.f32.mrb[0].mxu0
    %v4082 = vpop.f32.mrb[0].mxu0
    %v4083 = vadd.f32 %v3795, %v4082
    %v4084 = vpop.f32.mrb[0].mxu0
    %4085 = vmatprep.mubr.bf16.mxu0 0
    %4086 = vmatmul.mubr.bf16.gmra.mrb[0].mxu0 %v3734
    %v4087 = vpop.f32.mrb[0].mxu0
    %v4088 = vadd.f32 %v3795, %v4087
    %v4089 = vpop.f32.mrb[0].mxu0
    %v4090 = vpop.f32.mrb[0].mxu0
    %v4091 = vadd.f32 %v3795, %v4090
    %v4092 = vpop.f32.mrb[0].mxu0
    %4093 = vmatprep.mubr.bf16.mxu0 0
    %4094 = vmatmul.mubr.bf16.gmra.mrb[0].mxu0 %v3735
    %v4095 = vpop.f32.mrb[0].mxu0
    %v4096 = vadd.f32 %v3795, %v4095
    %v4097 = vpop.f32.mrb[0].mxu0
    %v4098 = vpop.f32.mrb[0].mxu0
    %v4099 = vadd.f32 %v3795, %v4098
    %v4100 = vpop.f32.mrb[0].mxu0
    %4101 = vmatprep.mubr.bf16.mxu0 0
    %4102 = vmatmul.mubr.bf16.gmra.mrb[0].mxu0 %v3736
    %v4103 = vpop.f32.mrb[0].mxu0
    %v4104 = vadd.f32 %v3795, %v4103
    %v4105 = vpop.f32.mrb[0].mxu0
    %v4106 = vpop.f32.mrb[0].mxu0
    %v4107 = vadd.f32 %v3795, %v4106
    %v4108 = vpop.f32.mrb[0].mxu0
    %4109 = vmatprep.mubr.bf16.mxu0 0
    %4110 = vmatmul.mubr.bf16.gmra.mrb[0].mxu0 %v3737
    %v4111 = vpop.f32.mrb[0].mxu0
    %v4112 = vadd.f32 %v3795, %v4111
    %v4113 = vpop.f32.mrb[0].mxu0
    %v4114 = vpop.f32.mrb[0].mxu0
    %v4115 = vadd.f32 %v3795, %v4114
    %v4116 = vpop.f32.mrb[0].mxu0
    %4117 = vmatprep.mubr.bf16.mxu0 0
    %4118 = vmatmul.mubr.bf16.gmra.mrb[0].mxu0 %v3738
    %v4119 = vpop.f32.mrb[0].mxu0
    %v4120 = vadd.f32 %v3795, %v4119
    %v4121 = vpop.f32.mrb[0].mxu0
    %v4122 = vpop.f32.mrb[0].mxu0
    %v4123 = vadd.f32 %v3795, %v4122
    %v4124 = vpop.f32.mrb[0].mxu0
    %4125 = vmatprep.mubr.bf16.mxu0 0
    %4126 = vmatmul.mubr.bf16.gmra.mrb[0].mxu0 %v3739
    %v4127 = vpop.f32.mrb[0].mxu0
    %v4128 = vadd.f32 %v3795, %v4127
    %v4129 = vpop.f32.mrb[0].mxu0
    %v4130 = vpop.f32.mrb[0].mxu0
    %v4131 = vadd.f32 %v3795, %v4130
    %v4132 = vpop.f32.mrb[0].mxu0
    %4133 = vmatprep.mubr.bf16.mxu0 0
    %4134 = vmatmul.mubr.bf16.gmra.mrb[0].mxu0 %v3740
    %v4135 = vpop.f32.mrb[0].mxu0
    %v4136 = vadd.f32 %v3795, %v4135
    %v4137 = vpop.f32.mrb[0].mxu0
    %v4138 = vpop.f32.mrb[0].mxu0
    %v4139 = vadd.f32 %v3795, %v4138
    %v4140 = vpop.f32.mrb[0].mxu0
    %4141 = vmatprep.mubr.bf16.mxu0 0
    %4142 = vmatmul.mubr.bf16.gmra.mrb[0].mxu0 %v3741
    %v4143 = vpop.f32.mrb[0].mxu0
    %v4144 = vadd.f32 %v3795, %v4143
    %v4145 = vpop.f32.mrb[0].mxu0
    %v4146 = vpop.f32.mrb[0].mxu0
    %v4147 = vadd.f32 %v3795, %v4146
    %v4148 = vpop.f32.mrb[0].mxu0
    %4149 = vmatprep.mubr.bf16.mxu0 0
    %4150 = vmatmul.mubr.bf16.gmra.mrb[0].mxu0 %v3742
    %v4151 = vpop.f32.mrb[0].mxu0
    %v4152 = vadd.f32 %v3795, %v4151
    %v4153 = vpop.f32.mrb[0].mxu0
    %v4154 = vpop.f32.mrb[0].mxu0
    %v4155 = vadd.f32 %v3795, %v4154
    %v4156 = vpop.f32.mrb[0].mxu0
    %4157 = vmatprep.mubr.bf16.mxu0 0
    %4158 = vmatmul.mubr.bf16.gmra.mrb[0].mxu0 %v3743
    %v4159 = vpop.f32.mrb[0].mxu0
    %v4160 = vadd.f32 %v3795, %v4159
    %v4161 = vpop.f32.mrb[0].mxu0
    %v4162 = vpop.f32.mrb[0].mxu0
    %v4163 = vadd.f32 %v3795, %v4162
    %v4164 = vpop.f32.mrb[0].mxu0
    %4165 = vmatprep.mubr.bf16.mxu0 0
    %4166 = vmatmul.mubr.bf16.gmra.mrb[0].mxu0 %v3744
    %v4167 = vpop.f32.mrb[0].mxu0
    %v4168 = vadd.f32 %v3795, %v4167
    %v4169 = vpop.f32.mrb[0].mxu0
    %v4170 = vpop.f32.mrb[0].mxu0
    %v4171 = vadd.f32 %v3795, %v4170
    %v4172 = vpop.f32.mrb[0].mxu0
    %4173 = vmatprep.mubr.bf16.mxu0 0
    %4174 = vmatmul.mubr.bf16.gmra.mrb[0].mxu0 %v3745
    %v4175 = vpop.f32.mrb[0].mxu0
    %v4176 = vadd.f32 %v3795, %v4175
    %v4177 = vpop.f32.mrb[0].mxu0
    %v4178 = vpop.f32.mrb[0].mxu0
    %v4179 = vadd.f32 %v3795, %v4178
    %v4180 = vpop.f32.mrb[0].mxu0
    %4181 = vmatprep.mubr.bf16.mxu0 0
    %4182 = vmatmul.mubr.bf16.gmra.mrb[0].mxu0 %v3746
    %v4183 = vpop.f32.mrb[0].mxu0
    %v4184 = vadd.f32 %v3795, %v4183
    %v4185 = vpop.f32.mrb[0].mxu0
    %v4186 = vpop.f32.mrb[0].mxu0
    %v4187 = vadd.f32 %v3795, %v4186
    %v4188 = vpop.f32.mrb[0].mxu0
    %4189 = vmatprep.mubr.bf16.mxu0 0
    %4190 = vmatmul.mubr.bf16.gmra.mrb[0].mxu0 %v3747
    %v4191 = vpop.f32.mrb[0].mxu0
    %v4192 = vadd.f32 %v3795, %v4191
    %v4193 = vpop.f32.mrb[0].mxu0
    %v4194 = vpop.f32.mrb[0].mxu0
    %v4195 = vadd.f32 %v3795, %v4194
    %v4196 = vpop.f32.mrb[0].mxu0
    %4197 = vmatprep.mubr.bf16.mxu0 0
    %4198 = vmatmul.mubr.bf16.gmra.mrb[0].mxu0 %v3748
    %v4199 = vpop.f32.mrb[0].mxu0
    %v4200 = vadd.f32 %v3795, %v4199
    %v4201 = vpop.f32.mrb[0].mxu0
    %v4202 = vpop.f32.mrb[0].mxu0
    %v4203 = vadd.f32 %v3795, %v4202
    %v4204 = vpop.f32.mrb[0].mxu0
    %4205 = vmatprep.mubr.bf16.mxu0 0
    %4206 = vmatmul.mubr.bf16.gmra.mrb[0].mxu0 %v3749
    %v4207 = vpop.f32.mrb[0].mxu0
    %v4208 = vadd.f32 %v3795, %v4207
    %v4209 = vpop.f32.mrb[0].mxu0
    %v4210 = vpop.f32.mrb[0].mxu0
    %v4211 = vadd.f32 %v3795, %v4210
    %v4212 = vpop.f32.mrb[0].mxu0
    %4213 = vmatprep.mubr.bf16.mxu0 0
    %4214 = vmatmul.mubr.bf16.gmra.mrb[0].mxu0 %v3750
    %v4215 = vpop.f32.mrb[0].mxu0
    %v4216 = vadd.f32 %v3795, %v4215
    %v4217 = vpop.f32.mrb[0].mxu0
    %v4218 = vpop.f32.mrb[0].mxu0
    %v4219 = vadd.f32 %v3795, %v4218
    %v4220 = vpop.f32.mrb[0].mxu0
    %4221 = vmatprep.mubr.bf16.mxu0 0
    %4222 = vmatmul.mubr.bf16.gmra.mrb[0].mxu0 %v3751
    %v4223 = vpop.f32.mrb[0].mxu0
    %v4224 = vadd.f32 %v3795, %v4223
    %v4225 = vpop.f32.mrb[0].mxu0
    %v4226 = vpop.f32.mrb[0].mxu0
    %v4227 = vadd.f32 %v3795, %v4226
    %v4228 = vpop.f32.mrb[0].mxu0
    %4229 = vmatprep.mubr.bf16.mxu0 0
    %4230 = vmatmul.mubr.bf16.gmra.mrb[0].mxu0 %v3752
    %v4231 = vpop.f32.mrb[0].mxu0
    %v4232 = vadd.f32 %v3795, %v4231
    %v4233 = vpop.f32.mrb[0].mxu0
    %v4234 = vpop.f32.mrb[0].mxu0
    %v4235 = vadd.f32 %v3795, %v4234
    %v4236 = vpop.f32.mrb[0].mxu0
    %4237 = vmatprep.mubr.bf16.mxu0 0
    %4238 = vmatmul.mubr.bf16.gmra.mrb[0].mxu0 %v3753
    %v4239 = vpop.f32.mrb[0].mxu0
    %v4240 = vadd.f32 %v3795, %v4239
    %v4241 = vpop.f32.mrb[0].mxu0
    %v4242 = vpop.f32.mrb[0].mxu0
    %v4243 = vadd.f32 %v3795, %v4242
    %v4244 = vpop.f32.mrb[0].mxu0
    %4245 = vmatprep.mubr.bf16.mxu0 0
    %4246 = vmatmul.mubr.bf16.gmra.mrb[0].mxu0 %v3754
    %v4247 = vpop.f32.mrb[0].mxu0
    %v4248 = vadd.f32 %v3795, %v4247
    %v4249 = vpop.f32.mrb[0].mxu0
    %v4250 = vpop.f32.mrb[0].mxu0
    %v4251 = vadd.f32 %v3795, %v4250
    %v4252 = vpop.f32.mrb[0].mxu0
    %4253 = vmatprep.mubr.bf16.mxu0 0
    %4254 = vmatmul.mubr.bf16.gmra.mrb[0].mxu0 %v3755
    %v4255 = vpop.f32.mrb[0].mxu0
    %v4256 = vadd.f32 %v3795, %v4255
    %v4257 = vpop.f32.mrb[0].mxu0
    %v4258 = vpop.f32.mrb[0].mxu0
    %v4259 = vadd.f32 %v3795, %v4258
    %v4260 = vpop.f32.mrb[0].mxu0
    %4261 = vmatprep.mubr.bf16.mxu0 0
    %4262 = vmatmul.mubr.bf16.gmra.mrb[0].mxu0 %v3756
    %v4263 = vpop.f32.mrb[0].mxu0
    %v4264 = vadd.f32 %v3795, %v4263
    %v4265 = vpop.f32.mrb[0].mxu0
    %v4266 = vpop.f32.mrb[0].mxu0
    %v4267 = vadd.f32 %v3795, %v4266
    %v4268 = vpop.f32.mrb[0].mxu0
    %4269 = vmatprep.mubr.bf16.mxu0 0
    %4270 = vmatmul.mubr.bf16.gmra.mrb[0].mxu0 %v3757
    %v4271 = vpop.f32.mrb[0].mxu0
    %v4272 = vadd.f32 %v3795, %v4271
    %v4273 = vpop.f32.mrb[0].mxu0
    %v4274 = vpop.f32.mrb[0].mxu0
    %v4275 = vadd.f32 %v3795, %v4274
    %v4276 = vpop.f32.mrb[0].mxu0
    %4277 = vmatprep.mubr.bf16.mxu0 0
    %4278 = vmatmul.mubr.bf16.gmra.mrb[0].mxu0 %v3758
    %v4279 = vpop.f32.mrb[0].mxu0
    %v4280 = vadd.f32 %v3795, %v4279
    %v4281 = vpop.f32.mrb[0].mxu0
    %v4282 = vpop.f32.mrb[0].mxu0
    %v4283 = vadd.f32 %v3795, %v4282
    %v4284 = vpop.f32.mrb[0].mxu0
    %4285 = vmatprep.mubr.bf16.mxu0 0
    %4286 = vmatmul.mubr.bf16.gmra.mrb[0].mxu0 %v3759
    %v4287 = vpop.f32.mrb[0].mxu0
    %v4288 = vadd.f32 %v3795, %v4287
    %v4289 = vpop.f32.mrb[0].mxu0
    %v4290 = vpop.f32.mrb[0].mxu0
    %v4291 = vadd.f32 %v3795, %v4290
    %v4292 = vpop.f32.mrb[0].mxu0
    %4293 = vmatprep.mubr.bf16.mxu0 0
    %4294 = vmatmul.mubr.bf16.gmra.mrb[0].mxu0 %v3760
    %v4295 = vpop.f32.mrb[0].mxu0
    %v4296 = vadd.f32 %v3795, %v4295
    %v4297 = vpop.f32.mrb[0].mxu0
    %v4298 = vpop.f32.mrb[0].mxu0
    %v4299 = vadd.f32 %v3795, %v4298
    %v4300 = vpop.f32.mrb[0].mxu0
    %4301 = vmatprep.mubr.bf16.mxu0 0
    %4302 = vmatmul.mubr.bf16.gmra.mrb[0].mxu0 %v3761
    %v4303 = vpop.f32.mrb[0].mxu0
    %v4304 = vadd.f32 %v3795, %v4303
    %v4305 = vpop.f32.mrb[0].mxu0
    %v4306 = vpop.f32.mrb[0].mxu0
    %v4307 = vadd.f32 %v3795, %v4306
    %v4308 = vpop.f32.mrb[0].mxu0
    %4309 = vmatprep.mubr.bf16.mxu0 0
    %4310 = vmatmul.mubr.bf16.gmra.mrb[0].mxu0 %v3762
    %v4311 = vpop.f32.mrb[0].mxu0
    %v4312 = vadd.f32 %v3795, %v4311
    %v4313 = vpop.f32.mrb[0].mxu0
    %v4314 = vpop.f32.mrb[0].mxu0
    %v4315 = vadd.f32 %v3795, %v4314
    %v4316 = vpop.f32.mrb[0].mxu0
    %4317 = vmatprep.mubr.bf16.mxu0 0
    %4318 = vmatmul.mubr.bf16.gmra.mrb[0].mxu0 %v3763
    %v4319 = vpop.f32.mrb[0].mxu0
    %v4320 = vadd.f32 %v3795, %v4319
    %v4321 = vpop.f32.mrb[0].mxu0
    %v4322 = vpop.f32.mrb[0].mxu0
    %v4323 = vadd.f32 %v3795, %v4322
    %v4324 = vpop.f32.mrb[0].mxu0
    %4325 = vmatprep.mubr.bf16.mxu0 0
    %4326 = vmatmul.mubr.bf16.gmra.mrb[0].mxu0 %v3764
    %v4327 = vpop.f32.mrb[0].mxu0
    %v4328 = vadd.f32 %v3795, %v4327
    %v4329 = vpop.f32.mrb[0].mxu0
    %v4330 = vpop.f32.mrb[0].mxu0
    %v4331 = vadd.f32 %v3795, %v4330
    %v4332 = vpop.f32.mrb[0].mxu0
    %4333 = vmatprep.mubr.bf16.mxu0 0
    %4334 = vmatmul.mubr.bf16.gmra.mrb[0].mxu0 %v3765
    %v4335 = vpop.f32.mrb[0].mxu0
    %v4336 = vadd.f32 %v3795, %v4335
    %v4337 = vpop.f32.mrb[0].mxu0
    %v4338 = vpop.f32.mrb[0].mxu0
    %v4339 = vadd.f32 %v3795, %v4338
    %v4340 = vpop.f32.mrb[0].mxu0
    %4341 = vmatprep.mubr.bf16.mxu0 0
    %4342 = vmatmul.mubr.bf16.gmra.mrb[0].mxu0 %v3766
    %v4343 = vpop.f32.mrb[0].mxu0
    %v4344 = vadd.f32 %v3795, %v4343
    %v4345 = vpop.f32.mrb[0].mxu0
    %v4346 = vpop.f32.mrb[0].mxu0
    %v4347 = vadd.f32 %v3795, %v4346
    %v4348 = vpop.f32.mrb[0].mxu0
    %4349 = vmatprep.mubr.bf16.mxu0 0
    %4350 = vmatmul.mubr.bf16.gmra.mrb[0].mxu0 %v3767
    %v4351 = vpop.f32.mrb[0].mxu0
    %v4352 = vadd.f32 %v3795, %v4351
    %v4353 = vpop.f32.mrb[0].mxu0
    %v4354 = vpop.f32.mrb[0].mxu0
    %v4355 = vadd.f32 %v3795, %v4354
    %v4356 = vpop.f32.mrb[0].mxu0
    %4357 = vmatprep.mubr.bf16.mxu0 0
    %4358 = vmatmul.mubr.bf16.gmra.mrb[0].mxu0 %v3768
    %v4359 = vpop.f32.mrb[0].mxu0
    %v4360 = vadd.f32 %v3795, %v4359
    %v4361 = vpop.f32.mrb[0].mxu0
    %v4362 = vpop.f32.mrb[0].mxu0
    %v4363 = vadd.f32 %v3795, %v4362
    %v4364 = vpop.f32.mrb[0].mxu0
    %4365 = vmatprep.mubr.bf16.mxu0 0
    %4366 = vmatmul.mubr.bf16.gmra.mrb[0].mxu0 %v3769
    %v4367 = vpop.f32.mrb[0].mxu0
    %v4368 = vadd.f32 %v3795, %v4367
    %v4369 = vpop.f32.mrb[0].mxu0
    %v4370 = vpop.f32.mrb[0].mxu0
    %v4371 = vadd.f32 %v3795, %v4370
    %v4372 = vpop.f32.mrb[0].mxu0
    %4373 = vmatprep.mubr.bf16.mxu0 0
    %4374 = vmatmul.mubr.bf16.gmra.mrb[0].mxu0 %v3770
    %v4375 = vpop.f32.mrb[0].mxu0
    %v4376 = vadd.f32 %v3795, %v4375
    %v4377 = vpop.f32.mrb[0].mxu0
    %v4378 = vpop.f32.mrb[0].mxu0
    %v4379 = vadd.f32 %v3795, %v4378
    %v4380 = vpop.f32.mrb[0].mxu0
    %4381 = vmatprep.mubr.bf16.mxu0 0
    %4382 = vmatmul.mubr.bf16.gmra.mrb[0].mxu0 %v3771
    %v4383 = vpop.f32.mrb[0].mxu0
    %v4384 = vadd.f32 %v3795, %v4383
    %v4385 = vpop.f32.mrb[0].mxu0
    %v4386 = vpop.f32.mrb[0].mxu0
    %v4387 = vadd.f32 %v3795, %v4386
    %v4388 = vpop.f32.mrb[0].mxu0
    %4389 = vdwg.mxu0
    %v4390 = vmax.f32 %v3880, 0.0
    %v4391 = vmax.f32 %v3883, 0.0
    %v4392 = vmax.f32 %v3888, 0.0
    %v4393 = vmax.f32 %v3891, 0.0
    %v4394 = vmax.f32 %v3896, 0.0
    %v4395 = vmax.f32 %v3899, 0.0
    %v4396 = vmax.f32 %v3904, 0.0
    %v4397 = vmax.f32 %v3907, 0.0
    %v4398 = vmax.f32 %v3912, 0.0
    %v4399 = vmax.f32 %v3915, 0.0
    %v4400 = vmax.f32 %v3920, 0.0
    %v4401 = vmax.f32 %v3923, 0.0
    %v4402 = vmax.f32 %v3928, 0.0
    %v4403 = vmax.f32 %v3931, 0.0
    %v4404 = vmax.f32 %v3936, 0.0
    %v4405 = vmax.f32 %v3939, 0.0
    %v4406 = vmax.f32 %v3944, 0.0
    %v4407 = vmax.f32 %v3947, 0.0
    %v4408 = vmax.f32 %v3952, 0.0
    %v4409 = vmax.f32 %v3955, 0.0
    %v4410 = vmax.f32 %v3960, 0.0
    %v4411 = vmax.f32 %v3963, 0.0
    %v4412 = vmax.f32 %v3968, 0.0
    %v4413 = vmax.f32 %v3971, 0.0
    %v4414 = vmax.f32 %v3976, 0.0
    %v4415 = vmax.f32 %v3979, 0.0
    %v4416 = vmax.f32 %v3984, 0.0
    %v4417 = vmax.f32 %v3987, 0.0
    %v4418 = vmax.f32 %v3992, 0.0
    %v4419 = vmax.f32 %v3995, 0.0
    %v4420 = vmax.f32 %v4000, 0.0
    %v4421 = vmax.f32 %v4003, 0.0
    %v4422 = vmax.f32 %v4008, 0.0
    %v4423 = vmax.f32 %v4011, 0.0
    %v4424 = vmax.f32 %v4016, 0.0
    %v4425 = vmax.f32 %v4019, 0.0
    %v4426 = vmax.f32 %v4024, 0.0
    %v4427 = vmax.f32 %v4027, 0.0
    %v4428 = vmax.f32 %v4032, 0.0
    %v4429 = vmax.f32 %v4035, 0.0
    %v4430 = vmax.f32 %v4040, 0.0
    %v4431 = vmax.f32 %v4043, 0.0
    %v4432 = vmax.f32 %v4048, 0.0
    %v4433 = vmax.f32 %v4051, 0.0
    %v4434 = vmax.f32 %v4056, 0.0
    %v4435 = vmax.f32 %v4059, 0.0
    %v4436 = vmax.f32 %v4064, 0.0
    %v4437 = vmax.f32 %v4067, 0.0
    %v4438 = vmax.f32 %v4072, 0.0
    %v4439 = vmax.f32 %v4075, 0.0
    %v4440 = vmax.f32 %v4080, 0.0
    %v4441 = vmax.f32 %v4083, 0.0
    %v4442 = vmax.f32 %v4088, 0.0
    %v4443 = vmax.f32 %v4091, 0.0
    %v4444 = vmax.f32 %v4096, 0.0
    %v4445 = vmax.f32 %v4099, 0.0
    %v4446 = vmax.f32 %v4104, 0.0
    %v4447 = vmax.f32 %v4107, 0.0
    %v4448 = vmax.f32 %v4112, 0.0
    %v4449 = vmax.f32 %v4115, 0.0
    %v4450 = vmax.f32 %v4120, 0.0
    %v4451 = vmax.f32 %v4123, 0.0
    %v4452 = vmax.f32 %v4128, 0.0
    %v4453 = vmax.f32 %v4131, 0.0
    %v4454 = vmax.f32 %v4136, 0.0
    %v4455 = vmax.f32 %v4139, 0.0
    %v4456 = vmax.f32 %v4144, 0.0
    %v4457 = vmax.f32 %v4147, 0.0
    %v4458 = vmax.f32 %v4152, 0.0
    %v4459 = vmax.f32 %v4155, 0.0
    %v4460 = vmax.f32 %v4160, 0.0
    %v4461 = vmax.f32 %v4163, 0.0
    %v4462 = vmax.f32 %v4168, 0.0
    %v4463 = vmax.f32 %v4171, 0.0
    %v4464 = vmax.f32 %v4176, 0.0
    %v4465 = vmax.f32 %v4179, 0.0
    %v4466 = vmax.f32 %v4184, 0.0
    %v4467 = vmax.f32 %v4187, 0.0
    %v4468 = vmax.f32 %v4192, 0.0
    %v4469 = vmax.f32 %v4195, 0.0
    %v4470 = vmax.f32 %v4200, 0.0
    %v4471 = vmax.f32 %v4203, 0.0
    %v4472 = vmax.f32 %v4208, 0.0
    %v4473 = vmax.f32 %v4211, 0.0
    %v4474 = vmax.f32 %v4216, 0.0
    %v4475 = vmax.f32 %v4219, 0.0
    %v4476 = vmax.f32 %v4224, 0.0
    %v4477 = vmax.f32 %v4227, 0.0
    %v4478 = vmax.f32 %v4232, 0.0
    %v4479 = vmax.f32 %v4235, 0.0
    %v4480 = vmax.f32 %v4240, 0.0
    %v4481 = vmax.f32 %v4243, 0.0
    %v4482 = vmax.f32 %v4248, 0.0
    %v4483 = vmax.f32 %v4251, 0.0
    %v4484 = vmax.f32 %v4256, 0.0
    %v4485 = vmax.f32 %v4259, 0.0
    %v4486 = vmax.f32 %v4264, 0.0
    %v4487 = vmax.f32 %v4267, 0.0
    %v4488 = vmax.f32 %v4272, 0.0
    %v4489 = vmax.f32 %v4275, 0.0
    %v4490 = vmax.f32 %v4280, 0.0
    %v4491 = vmax.f32 %v4283, 0.0
    %v4492 = vmax.f32 %v4288, 0.0
    %v4493 = vmax.f32 %v4291, 0.0
    %v4494 = vmax.f32 %v4296, 0.0
    %v4495 = vmax.f32 %v4299, 0.0
    %v4496 = vmax.f32 %v4304, 0.0
    %v4497 = vmax.f32 %v4307, 0.0
    %v4498 = vmax.f32 %v4312, 0.0
    %v4499 = vmax.f32 %v4315, 0.0
    %v4500 = vmax.f32 %v4320, 0.0
    %v4501 = vmax.f32 %v4323, 0.0
    %v4502 = vmax.f32 %v4328, 0.0
    %v4503 = vmax.f32 %v4331, 0.0
    %v4504 = vmax.f32 %v4336, 0.0
    %v4505 = vmax.f32 %v4339, 0.0
    %v4506 = vmax.f32 %v4344, 0.0
    %v4507 = vmax.f32 %v4347, 0.0
    %v4508 = vmax.f32 %v4352, 0.0
    %v4509 = vmax.f32 %v4355, 0.0
    %v4510 = vmax.f32 %v4360, 0.0
    %v4511 = vmax.f32 %v4363, 0.0
    %v4512 = vmax.f32 %v4368, 0.0
    %v4513 = vmax.f32 %v4371, 0.0
    %v4514 = vmax.f32 %v4376, 0.0
    %v4515 = vmax.f32 %v4379, 0.0
    %v4516 = vmax.f32 %v4384, 0.0
    %v4517 = vmax.f32 %v4387, 0.0
    %v4518 = vpack.c.bf16 %v4391, %v4390
    %v4519 = vpack.c.bf16 %v4393, %v4392
    %v4520 = vpack.c.bf16 %v4395, %v4394
    %v4521 = vpack.c.bf16 %v4397, %v4396
    %v4522 = vpack.c.bf16 %v4399, %v4398
    %v4523 = vpack.c.bf16 %v4401, %v4400
    %v4524 = vpack.c.bf16 %v4403, %v4402
    %v4525 = vpack.c.bf16 %v4405, %v4404
    %v4526 = vpack.c.bf16 %v4407, %v4406
    %v4527 = vpack.c.bf16 %v4409, %v4408
    %v4528 = vpack.c.bf16 %v4411, %v4410
    %v4529 = vpack.c.bf16 %v4413, %v4412
    %v4530 = vpack.c.bf16 %v4415, %v4414
    %v4531 = vpack.c.bf16 %v4417, %v4416
    %v4532 = vpack.c.bf16 %v4419, %v4418
    %v4533 = vpack.c.bf16 %v4421, %v4420
    %v4534 = vpack.c.bf16 %v4423, %v4422
    %v4535 = vpack.c.bf16 %v4425, %v4424
    %v4536 = vpack.c.bf16 %v4427, %v4426
    %v4537 = vpack.c.bf16 %v4429, %v4428
    %v4538 = vpack.c.bf16 %v4431, %v4430
    %v4539 = vpack.c.bf16 %v4433, %v4432
    %v4540 = vpack.c.bf16 %v4435, %v4434
    %v4541 = vpack.c.bf16 %v4437, %v4436
    %v4542 = vpack.c.bf16 %v4439, %v4438
    %v4543 = vpack.c.bf16 %v4441, %v4440
    %v4544 = vpack.c.bf16 %v4443, %v4442
    %v4545 = vpack.c.bf16 %v4445, %v4444
    %v4546 = vpack.c.bf16 %v4447, %v4446
    %v4547 = vpack.c.bf16 %v4449, %v4448
    %v4548 = vpack.c.bf16 %v4451, %v4450
    %v4549 = vpack.c.bf16 %v4453, %v4452
    %v4550 = vpack.c.bf16 %v4455, %v4454
    %v4551 = vpack.c.bf16 %v4457, %v4456
    %v4552 = vpack.c.bf16 %v4459, %v4458
    %v4553 = vpack.c.bf16 %v4461, %v4460
    %v4554 = vpack.c.bf16 %v4463, %v4462
    %v4555 = vpack.c.bf16 %v4465, %v4464
    %v4556 = vpack.c.bf16 %v4467, %v4466
    %v4557 = vpack.c.bf16 %v4469, %v4468
    %v4558 = vpack.c.bf16 %v4471, %v4470
    %v4559 = vpack.c.bf16 %v4473, %v4472
    %v4560 = vpack.c.bf16 %v4475, %v4474
    %v4561 = vpack.c.bf16 %v4477, %v4476
    %v4562 = vpack.c.bf16 %v4479, %v4478
    %v4563 = vpack.c.bf16 %v4481, %v4480
    %v4564 = vpack.c.bf16 %v4483, %v4482
    %v4565 = vpack.c.bf16 %v4485, %v4484
    %v4566 = vpack.c.bf16 %v4487, %v4486
    %v4567 = vpack.c.bf16 %v4489, %v4488
    %v4568 = vpack.c.bf16 %v4491, %v4490
    %v4569 = vpack.c.bf16 %v4493, %v4492
    %v4570 = vpack.c.bf16 %v4495, %v4494
    %v4571 = vpack.c.bf16 %v4497, %v4496
    %v4572 = vpack.c.bf16 %v4499, %v4498
    %v4573 = vpack.c.bf16 %v4501, %v4500
    %v4574 = vpack.c.bf16 %v4503, %v4502
    %v4575 = vpack.c.bf16 %v4505, %v4504
    %v4576 = vpack.c.bf16 %v4507, %v4506
    %v4577 = vpack.c.bf16 %v4509, %v4508
    %v4578 = vpack.c.bf16 %v4511, %v4510
    %v4579 = vpack.c.bf16 %v4513, %v4512
    %v4580 = vpack.c.bf16 %v4515, %v4514
    %v4581 = vpack.c.bf16 %v4517, %v4516
    %s4582 = scalar_lea.vmem %s5, 192
    %v4583 = vld [vmem:[%s4582] sm:$0xf]
    %v4584 = vld [vmem:[%s4582 + $0x4] sm:$0xf]
    %v4585 = vld [vmem:[%s4582 + $0x8] sm:$0xf]
    %v4586 = vld [vmem:[%s4582 + $0xc] sm:$0xf]
    %v4587 = vld [vmem:[%s4582 + $0x10] sm:$0xf]
    %v4588 = vld [vmem:[%s4582 + $0x14] sm:$0xf]
    %v4589 = vld [vmem:[%s4582 + $0x18] sm:$0xf]
    %v4590 = vld [vmem:[%s4582 + $0x1c] sm:$0xf]
    %v4591 = vld [vmem:[%s4582 + $0x20] sm:$0xf]
    %v4592 = vld [vmem:[%s4582 + $0x24] sm:$0xf]
    %v4593 = vld [vmem:[%s4582 + $0x28] sm:$0xf]
    %v4594 = vld [vmem:[%s4582 + $0x2c] sm:$0xf]
    %v4595 = vld [vmem:[%s4582 + $0x30] sm:$0xf]
    %v4596 = vld [vmem:[%s4582 + $0x34] sm:$0xf]
    %v4597 = vld [vmem:[%s4582 + $0x38] sm:$0xf]
    %v4598 = vld [vmem:[%s4582 + $0x3c] sm:$0xf]
    %s4599 = scalar_lea.vmem %s6, 3
    %v4600 = vld [vmem:[%s4599] sm:$0x1]
    %v4602 = vlaneseq
    %v4603 = vshrl.u32 %v4602, 7
    %v4604 = vsub.s32 0, %v4603
    %v4605 = vrot.slane %v4600, %v4604
    %v4623 = vunpack.c.l.b16 %v4583
    %v4624 = vunpack.c.l.b16 %v4584
    %v4625 = vunpack.c.l.b16 %v4585
    %v4626 = vunpack.c.l.b16 %v4586
    %v4627 = vunpack.c.l.b16 %v4587
    %v4628 = vunpack.c.l.b16 %v4588
    %v4629 = vunpack.c.l.b16 %v4589
    %v4630 = vunpack.c.l.b16 %v4590
    %v4631 = vunpack.c.l.b16 %v4591
    %v4632 = vunpack.c.l.b16 %v4592
    %v4633 = vunpack.c.l.b16 %v4593
    %v4634 = vunpack.c.l.b16 %v4594
    %v4635 = vunpack.c.l.b16 %v4595
    %v4636 = vunpack.c.l.b16 %v4596
    %v4637 = vunpack.c.l.b16 %v4597
    %v4638 = vunpack.c.l.b16 %v4598
    %v4639 = vpack.c.b16 %v4624, %v4623
    %v4640 = vpack.c.b16 %v4626, %v4625
    %v4641 = vpack.c.b16 %v4628, %v4627
    %v4642 = vpack.c.b16 %v4630, %v4629
    %v4643 = vpack.c.b16 %v4632, %v4631
    %v4644 = vpack.c.b16 %v4634, %v4633
    %v4645 = vpack.c.b16 %v4636, %v4635
    %v4646 = vpack.c.b16 %v4638, %v4637
    %4655 = vmatprep.subr.bf16.mxu0 0
    %4656 = vmatpush1.bf16.msra.mxu0 %v4639
    %4657 = vmatprep.subr.bf16.mxu0 0
    %4658 = vmatpush1.bf16.msra.mxu0 %v4640
    %4659 = vmatprep.subr.bf16.mxu0 0
    %4660 = vmatpush1.bf16.msra.mxu0 %v4641
    %4661 = vmatprep.subr.bf16.mxu0 0
    %4662 = vmatpush1.bf16.msra.mxu0 %v4642
    %4663 = vmatprep.subr.bf16.mxu0 0
    %4664 = vmatpush1.bf16.msra.mxu0 %v4643
    %4665 = vmatprep.subr.bf16.mxu0 0
    %4666 = vmatpush1.bf16.msra.mxu0 %v4644
    %4667 = vmatprep.subr.bf16.mxu0 0
    %4668 = vmatpush1.bf16.msra.mxu0 %v4645
    %4669 = vmatprep.subr.bf16.mxu0 0
    %4670 = vmatpush1.bf16.msra.mxu0 %v4646
    %4671 = vmatprep.subr.bf16.mxu0 0
    %4672 = vmatpush1.bf16.msra.mxu0 0
    %4673 = vmatprep.subr.bf16.mxu0 0
    %4674 = vmatpush1.bf16.msra.mxu0 0
    %4675 = vmatprep.subr.bf16.mxu0 0
    %4676 = vmatpush1.bf16.msra.mxu0 0
    %4677 = vmatprep.subr.bf16.mxu0 0
    %4678 = vmatpush1.bf16.msra.mxu0 0
    %4679 = vmatprep.subr.bf16.mxu0 0
    %4680 = vmatpush1.bf16.msra.mxu0 0
    %4681 = vmatprep.subr.bf16.mxu0 0
    %4682 = vmatpush1.bf16.msra.mxu0 0
    %4683 = vmatprep.subr.bf16.mxu0 0
    %4684 = vmatpush1.bf16.msra.mxu0 0
    %4685 = vmatprep.subr.bf16.mxu0 0
    %4686 = vmatpush1.bf16.msra.mxu0 0
    %4687 = vmatprep.mubr.bf16.mxu0 0
    %4688 = vmatmul.mubr.bf16.gmra.mrb[0].mxu0 %v4518
    %v4689 = vpop.f32.mrb[0].mxu0
    %v4690 = vadd.f32 %v4605, %v4689
    %v4691 = vpop.f32.mrb[0].mxu0
    %v4692 = vpop.f32.mrb[0].mxu0
    %v4693 = vadd.f32 %v4605, %v4692
    %v4694 = vpop.f32.mrb[0].mxu0
    %4695 = vmatprep.mubr.bf16.mxu0 0
    %4696 = vmatmul.mubr.bf16.gmra.mrb[0].mxu0 %v4519
    %v4697 = vpop.f32.mrb[0].mxu0
    %v4698 = vadd.f32 %v4605, %v4697
    %v4699 = vpop.f32.mrb[0].mxu0
    %v4700 = vpop.f32.mrb[0].mxu0
    %v4701 = vadd.f32 %v4605, %v4700
    %v4702 = vpop.f32.mrb[0].mxu0
    %4703 = vmatprep.mubr.bf16.mxu0 0
    %4704 = vmatmul.mubr.bf16.gmra.mrb[0].mxu0 %v4520
    %v4705 = vpop.f32.mrb[0].mxu0
    %v4706 = vadd.f32 %v4605, %v4705
    %v4707 = vpop.f32.mrb[0].mxu0
    %v4708 = vpop.f32.mrb[0].mxu0
    %v4709 = vadd.f32 %v4605, %v4708
    %v4710 = vpop.f32.mrb[0].mxu0
    %4711 = vmatprep.mubr.bf16.mxu0 0
    %4712 = vmatmul.mubr.bf16.gmra.mrb[0].mxu0 %v4521
    %v4713 = vpop.f32.mrb[0].mxu0
    %v4714 = vadd.f32 %v4605, %v4713
    %v4715 = vpop.f32.mrb[0].mxu0
    %v4716 = vpop.f32.mrb[0].mxu0
    %v4717 = vadd.f32 %v4605, %v4716
    %v4718 = vpop.f32.mrb[0].mxu0
    %4719 = vmatprep.mubr.bf16.mxu0 0
    %4720 = vmatmul.mubr.bf16.gmra.mrb[0].mxu0 %v4522
    %v4721 = vpop.f32.mrb[0].mxu0
    %v4722 = vadd.f32 %v4605, %v4721
    %v4723 = vpop.f32.mrb[0].mxu0
    %v4724 = vpop.f32.mrb[0].mxu0
    %v4725 = vadd.f32 %v4605, %v4724
    %v4726 = vpop.f32.mrb[0].mxu0
    %4727 = vmatprep.mubr.bf16.mxu0 0
    %4728 = vmatmul.mubr.bf16.gmra.mrb[0].mxu0 %v4523
    %v4729 = vpop.f32.mrb[0].mxu0
    %v4730 = vadd.f32 %v4605, %v4729
    %v4731 = vpop.f32.mrb[0].mxu0
    %v4732 = vpop.f32.mrb[0].mxu0
    %v4733 = vadd.f32 %v4605, %v4732
    %v4734 = vpop.f32.mrb[0].mxu0
    %4735 = vmatprep.mubr.bf16.mxu0 0
    %4736 = vmatmul.mubr.bf16.gmra.mrb[0].mxu0 %v4524
    %v4737 = vpop.f32.mrb[0].mxu0
    %v4738 = vadd.f32 %v4605, %v4737
    %v4739 = vpop.f32.mrb[0].mxu0
    %v4740 = vpop.f32.mrb[0].mxu0
    %v4741 = vadd.f32 %v4605, %v4740
    %v4742 = vpop.f32.mrb[0].mxu0
    %4743 = vmatprep.mubr.bf16.mxu0 0
    %4744 = vmatmul.mubr.bf16.gmra.mrb[0].mxu0 %v4525
    %v4745 = vpop.f32.mrb[0].mxu0
    %v4746 = vadd.f32 %v4605, %v4745
    %v4747 = vpop.f32.mrb[0].mxu0
    %v4748 = vpop.f32.mrb[0].mxu0
    %v4749 = vadd.f32 %v4605, %v4748
    %v4750 = vpop.f32.mrb[0].mxu0
    %4751 = vmatprep.mubr.bf16.mxu0 0
    %4752 = vmatmul.mubr.bf16.gmra.mrb[0].mxu0 %v4526
    %v4753 = vpop.f32.mrb[0].mxu0
    %v4754 = vadd.f32 %v4605, %v4753
    %v4755 = vpop.f32.mrb[0].mxu0
    %v4756 = vpop.f32.mrb[0].mxu0
    %v4757 = vadd.f32 %v4605, %v4756
    %v4758 = vpop.f32.mrb[0].mxu0
    %4759 = vmatprep.mubr.bf16.mxu0 0
    %4760 = vmatmul.mubr.bf16.gmra.mrb[0].mxu0 %v4527
    %v4761 = vpop.f32.mrb[0].mxu0
    %v4762 = vadd.f32 %v4605, %v4761
    %v4763 = vpop.f32.mrb[0].mxu0
    %v4764 = vpop.f32.mrb[0].mxu0
    %v4765 = vadd.f32 %v4605, %v4764
    %v4766 = vpop.f32.mrb[0].mxu0
    %4767 = vmatprep.mubr.bf16.mxu0 0
    %4768 = vmatmul.mubr.bf16.gmra.mrb[0].mxu0 %v4528
    %v4769 = vpop.f32.mrb[0].mxu0
    %v4770 = vadd.f32 %v4605, %v4769
    %v4771 = vpop.f32.mrb[0].mxu0
    %v4772 = vpop.f32.mrb[0].mxu0
    %v4773 = vadd.f32 %v4605, %v4772
    %v4774 = vpop.f32.mrb[0].mxu0
    %4775 = vmatprep.mubr.bf16.mxu0 0
    %4776 = vmatmul.mubr.bf16.gmra.mrb[0].mxu0 %v4529
    %v4777 = vpop.f32.mrb[0].mxu0
    %v4778 = vadd.f32 %v4605, %v4777
    %v4779 = vpop.f32.mrb[0].mxu0
    %v4780 = vpop.f32.mrb[0].mxu0
    %v4781 = vadd.f32 %v4605, %v4780
    %v4782 = vpop.f32.mrb[0].mxu0
    %4783 = vmatprep.mubr.bf16.mxu0 0
    %4784 = vmatmul.mubr.bf16.gmra.mrb[0].mxu0 %v4530
    %v4785 = vpop.f32.mrb[0].mxu0
    %v4786 = vadd.f32 %v4605, %v4785
    %v4787 = vpop.f32.mrb[0].mxu0
    %v4788 = vpop.f32.mrb[0].mxu0
    %v4789 = vadd.f32 %v4605, %v4788
    %v4790 = vpop.f32.mrb[0].mxu0
    %4791 = vmatprep.mubr.bf16.mxu0 0
    %4792 = vmatmul.mubr.bf16.gmra.mrb[0].mxu0 %v4531
    %v4793 = vpop.f32.mrb[0].mxu0
    %v4794 = vadd.f32 %v4605, %v4793
    %v4795 = vpop.f32.mrb[0].mxu0
    %v4796 = vpop.f32.mrb[0].mxu0
    %v4797 = vadd.f32 %v4605, %v4796
    %v4798 = vpop.f32.mrb[0].mxu0
    %4799 = vmatprep.mubr.bf16.mxu0 0
    %4800 = vmatmul.mubr.bf16.gmra.mrb[0].mxu0 %v4532
    %v4801 = vpop.f32.mrb[0].mxu0
    %v4802 = vadd.f32 %v4605, %v4801
    %v4803 = vpop.f32.mrb[0].mxu0
    %v4804 = vpop.f32.mrb[0].mxu0
    %v4805 = vadd.f32 %v4605, %v4804
    %v4806 = vpop.f32.mrb[0].mxu0
    %4807 = vmatprep.mubr.bf16.mxu0 0
    %4808 = vmatmul.mubr.bf16.gmra.mrb[0].mxu0 %v4533
    %v4809 = vpop.f32.mrb[0].mxu0
    %v4810 = vadd.f32 %v4605, %v4809
    %v4811 = vpop.f32.mrb[0].mxu0
    %v4812 = vpop.f32.mrb[0].mxu0
    %v4813 = vadd.f32 %v4605, %v4812
    %v4814 = vpop.f32.mrb[0].mxu0
    %4815 = vmatprep.mubr.bf16.mxu0 0
    %4816 = vmatmul.mubr.bf16.gmra.mrb[0].mxu0 %v4534
    %v4817 = vpop.f32.mrb[0].mxu0
    %v4818 = vadd.f32 %v4605, %v4817
    %v4819 = vpop.f32.mrb[0].mxu0
    %v4820 = vpop.f32.mrb[0].mxu0
    %v4821 = vadd.f32 %v4605, %v4820
    %v4822 = vpop.f32.mrb[0].mxu0
    %4823 = vmatprep.mubr.bf16.mxu0 0
    %4824 = vmatmul.mubr.bf16.gmra.mrb[0].mxu0 %v4535
    %v4825 = vpop.f32.mrb[0].mxu0
    %v4826 = vadd.f32 %v4605, %v4825
    %v4827 = vpop.f32.mrb[0].mxu0
    %v4828 = vpop.f32.mrb[0].mxu0
    %v4829 = vadd.f32 %v4605, %v4828
    %v4830 = vpop.f32.mrb[0].mxu0
    %4831 = vmatprep.mubr.bf16.mxu0 0
    %4832 = vmatmul.mubr.bf16.gmra.mrb[0].mxu0 %v4536
    %v4833 = vpop.f32.mrb[0].mxu0
    %v4834 = vadd.f32 %v4605, %v4833
    %v4835 = vpop.f32.mrb[0].mxu0
    %v4836 = vpop.f32.mrb[0].mxu0
    %v4837 = vadd.f32 %v4605, %v4836
    %v4838 = vpop.f32.mrb[0].mxu0
    %4839 = vmatprep.mubr.bf16.mxu0 0
    %4840 = vmatmul.mubr.bf16.gmra.mrb[0].mxu0 %v4537
    %v4841 = vpop.f32.mrb[0].mxu0
    %v4842 = vadd.f32 %v4605, %v4841
    %v4843 = vpop.f32.mrb[0].mxu0
    %v4844 = vpop.f32.mrb[0].mxu0
    %v4845 = vadd.f32 %v4605, %v4844
    %v4846 = vpop.f32.mrb[0].mxu0
    %4847 = vmatprep.mubr.bf16.mxu0 0
    %4848 = vmatmul.mubr.bf16.gmra.mrb[0].mxu0 %v4538
    %v4849 = vpop.f32.mrb[0].mxu0
    %v4850 = vadd.f32 %v4605, %v4849
    %v4851 = vpop.f32.mrb[0].mxu0
    %v4852 = vpop.f32.mrb[0].mxu0
    %v4853 = vadd.f32 %v4605, %v4852
    %v4854 = vpop.f32.mrb[0].mxu0
    %4855 = vmatprep.mubr.bf16.mxu0 0
    %4856 = vmatmul.mubr.bf16.gmra.mrb[0].mxu0 %v4539
    %v4857 = vpop.f32.mrb[0].mxu0
    %v4858 = vadd.f32 %v4605, %v4857
    %v4859 = vpop.f32.mrb[0].mxu0
    %v4860 = vpop.f32.mrb[0].mxu0
    %v4861 = vadd.f32 %v4605, %v4860
    %v4862 = vpop.f32.mrb[0].mxu0
    %4863 = vmatprep.mubr.bf16.mxu0 0
    %4864 = vmatmul.mubr.bf16.gmra.mrb[0].mxu0 %v4540
    %v4865 = vpop.f32.mrb[0].mxu0
    %v4866 = vadd.f32 %v4605, %v4865
    %v4867 = vpop.f32.mrb[0].mxu0
    %v4868 = vpop.f32.mrb[0].mxu0
    %v4869 = vadd.f32 %v4605, %v4868
    %v4870 = vpop.f32.mrb[0].mxu0
    %4871 = vmatprep.mubr.bf16.mxu0 0
    %4872 = vmatmul.mubr.bf16.gmra.mrb[0].mxu0 %v4541
    %v4873 = vpop.f32.mrb[0].mxu0
    %v4874 = vadd.f32 %v4605, %v4873
    %v4875 = vpop.f32.mrb[0].mxu0
    %v4876 = vpop.f32.mrb[0].mxu0
    %v4877 = vadd.f32 %v4605, %v4876
    %v4878 = vpop.f32.mrb[0].mxu0
    %4879 = vmatprep.mubr.bf16.mxu0 0
    %4880 = vmatmul.mubr.bf16.gmra.mrb[0].mxu0 %v4542
    %v4881 = vpop.f32.mrb[0].mxu0
    %v4882 = vadd.f32 %v4605, %v4881
    %v4883 = vpop.f32.mrb[0].mxu0
    %v4884 = vpop.f32.mrb[0].mxu0
    %v4885 = vadd.f32 %v4605, %v4884
    %v4886 = vpop.f32.mrb[0].mxu0
    %4887 = vmatprep.mubr.bf16.mxu0 0
    %4888 = vmatmul.mubr.bf16.gmra.mrb[0].mxu0 %v4543
    %v4889 = vpop.f32.mrb[0].mxu0
    %v4890 = vadd.f32 %v4605, %v4889
    %v4891 = vpop.f32.mrb[0].mxu0
    %v4892 = vpop.f32.mrb[0].mxu0
    %v4893 = vadd.f32 %v4605, %v4892
    %v4894 = vpop.f32.mrb[0].mxu0
    %4895 = vmatprep.mubr.bf16.mxu0 0
    %4896 = vmatmul.mubr.bf16.gmra.mrb[0].mxu0 %v4544
    %v4897 = vpop.f32.mrb[0].mxu0
    %v4898 = vadd.f32 %v4605, %v4897
    %v4899 = vpop.f32.mrb[0].mxu0
    %v4900 = vpop.f32.mrb[0].mxu0
    %v4901 = vadd.f32 %v4605, %v4900
    %v4902 = vpop.f32.mrb[0].mxu0
    %4903 = vmatprep.mubr.bf16.mxu0 0
    %4904 = vmatmul.mubr.bf16.gmra.mrb[0].mxu0 %v4545
    %v4905 = vpop.f32.mrb[0].mxu0
    %v4906 = vadd.f32 %v4605, %v4905
    %v4907 = vpop.f32.mrb[0].mxu0
    %v4908 = vpop.f32.mrb[0].mxu0
    %v4909 = vadd.f32 %v4605, %v4908
    %v4910 = vpop.f32.mrb[0].mxu0
    %4911 = vmatprep.mubr.bf16.mxu0 0
    %4912 = vmatmul.mubr.bf16.gmra.mrb[0].mxu0 %v4546
    %v4913 = vpop.f32.mrb[0].mxu0
    %v4914 = vadd.f32 %v4605, %v4913
    %v4915 = vpop.f32.mrb[0].mxu0
    %v4916 = vpop.f32.mrb[0].mxu0
    %v4917 = vadd.f32 %v4605, %v4916
    %v4918 = vpop.f32.mrb[0].mxu0
    %4919 = vmatprep.mubr.bf16.mxu0 0
    %4920 = vmatmul.mubr.bf16.gmra.mrb[0].mxu0 %v4547
    %v4921 = vpop.f32.mrb[0].mxu0
    %v4922 = vadd.f32 %v4605, %v4921
    %v4923 = vpop.f32.mrb[0].mxu0
    %v4924 = vpop.f32.mrb[0].mxu0
    %v4925 = vadd.f32 %v4605, %v4924
    %v4926 = vpop.f32.mrb[0].mxu0
    %4927 = vmatprep.mubr.bf16.mxu0 0
    %4928 = vmatmul.mubr.bf16.gmra.mrb[0].mxu0 %v4548
    %v4929 = vpop.f32.mrb[0].mxu0
    %v4930 = vadd.f32 %v4605, %v4929
    %v4931 = vpop.f32.mrb[0].mxu0
    %v4932 = vpop.f32.mrb[0].mxu0
    %v4933 = vadd.f32 %v4605, %v4932
    %v4934 = vpop.f32.mrb[0].mxu0
    %4935 = vmatprep.mubr.bf16.mxu0 0
    %4936 = vmatmul.mubr.bf16.gmra.mrb[0].mxu0 %v4549
    %v4937 = vpop.f32.mrb[0].mxu0
    %v4938 = vadd.f32 %v4605, %v4937
    %v4939 = vpop.f32.mrb[0].mxu0
    %v4940 = vpop.f32.mrb[0].mxu0
    %v4941 = vadd.f32 %v4605, %v4940
    %v4942 = vpop.f32.mrb[0].mxu0
    %4943 = vmatprep.mubr.bf16.mxu0 0
    %4944 = vmatmul.mubr.bf16.gmra.mrb[0].mxu0 %v4550
    %v4945 = vpop.f32.mrb[0].mxu0
    %v4946 = vadd.f32 %v4605, %v4945
    %v4947 = vpop.f32.mrb[0].mxu0
    %v4948 = vpop.f32.mrb[0].mxu0
    %v4949 = vadd.f32 %v4605, %v4948
    %v4950 = vpop.f32.mrb[0].mxu0
    %4951 = vmatprep.mubr.bf16.mxu0 0
    %4952 = vmatmul.mubr.bf16.gmra.mrb[0].mxu0 %v4551
    %v4953 = vpop.f32.mrb[0].mxu0
    %v4954 = vadd.f32 %v4605, %v4953
    %v4955 = vpop.f32.mrb[0].mxu0
    %v4956 = vpop.f32.mrb[0].mxu0
    %v4957 = vadd.f32 %v4605, %v4956
    %v4958 = vpop.f32.mrb[0].mxu0
    %4959 = vmatprep.mubr.bf16.mxu0 0
    %4960 = vmatmul.mubr.bf16.gmra.mrb[0].mxu0 %v4552
    %v4961 = vpop.f32.mrb[0].mxu0
    %v4962 = vadd.f32 %v4605, %v4961
    %v4963 = vpop.f32.mrb[0].mxu0
    %v4964 = vpop.f32.mrb[0].mxu0
    %v4965 = vadd.f32 %v4605, %v4964
    %v4966 = vpop.f32.mrb[0].mxu0
    %4967 = vmatprep.mubr.bf16.mxu0 0
    %4968 = vmatmul.mubr.bf16.gmra.mrb[0].mxu0 %v4553
    %v4969 = vpop.f32.mrb[0].mxu0
    %v4970 = vadd.f32 %v4605, %v4969
    %v4971 = vpop.f32.mrb[0].mxu0
    %v4972 = vpop.f32.mrb[0].mxu0
    %v4973 = vadd.f32 %v4605, %v4972
    %v4974 = vpop.f32.mrb[0].mxu0
    %4975 = vmatprep.mubr.bf16.mxu0 0
    %4976 = vmatmul.mubr.bf16.gmra.mrb[0].mxu0 %v4554
    %v4977 = vpop.f32.mrb[0].mxu0
    %v4978 = vadd.f32 %v4605, %v4977
    %v4979 = vpop.f32.mrb[0].mxu0
    %v4980 = vpop.f32.mrb[0].mxu0
    %v4981 = vadd.f32 %v4605, %v4980
    %v4982 = vpop.f32.mrb[0].mxu0
    %4983 = vmatprep.mubr.bf16.mxu0 0
    %4984 = vmatmul.mubr.bf16.gmra.mrb[0].mxu0 %v4555
    %v4985 = vpop.f32.mrb[0].mxu0
    %v4986 = vadd.f32 %v4605, %v4985
    %v4987 = vpop.f32.mrb[0].mxu0
    %v4988 = vpop.f32.mrb[0].mxu0
    %v4989 = vadd.f32 %v4605, %v4988
    %v4990 = vpop.f32.mrb[0].mxu0
    %4991 = vmatprep.mubr.bf16.mxu0 0
    %4992 = vmatmul.mubr.bf16.gmra.mrb[0].mxu0 %v4556
    %v4993 = vpop.f32.mrb[0].mxu0
    %v4994 = vadd.f32 %v4605, %v4993
    %v4995 = vpop.f32.mrb[0].mxu0
    %v4996 = vpop.f32.mrb[0].mxu0
    %v4997 = vadd.f32 %v4605, %v4996
    %v4998 = vpop.f32.mrb[0].mxu0
    %4999 = vmatprep.mubr.bf16.mxu0 0
    %5000 = vmatmul.mubr.bf16.gmra.mrb[0].mxu0 %v4557
    %v5001 = vpop.f32.mrb[0].mxu0
    %v5002 = vadd.f32 %v4605, %v5001
    %v5003 = vpop.f32.mrb[0].mxu0
    %v5004 = vpop.f32.mrb[0].mxu0
    %v5005 = vadd.f32 %v4605, %v5004
    %v5006 = vpop.f32.mrb[0].mxu0
    %5007 = vmatprep.mubr.bf16.mxu0 0
    %5008 = vmatmul.mubr.bf16.gmra.mrb[0].mxu0 %v4558
    %v5009 = vpop.f32.mrb[0].mxu0
    %v5010 = vadd.f32 %v4605, %v5009
    %v5011 = vpop.f32.mrb[0].mxu0
    %v5012 = vpop.f32.mrb[0].mxu0
    %v5013 = vadd.f32 %v4605, %v5012
    %v5014 = vpop.f32.mrb[0].mxu0
    %5015 = vmatprep.mubr.bf16.mxu0 0
    %5016 = vmatmul.mubr.bf16.gmra.mrb[0].mxu0 %v4559
    %v5017 = vpop.f32.mrb[0].mxu0
    %v5018 = vadd.f32 %v4605, %v5017
    %v5019 = vpop.f32.mrb[0].mxu0
    %v5020 = vpop.f32.mrb[0].mxu0
    %v5021 = vadd.f32 %v4605, %v5020
    %v5022 = vpop.f32.mrb[0].mxu0
    %5023 = vmatprep.mubr.bf16.mxu0 0
    %5024 = vmatmul.mubr.bf16.gmra.mrb[0].mxu0 %v4560
    %v5025 = vpop.f32.mrb[0].mxu0
    %v5026 = vadd.f32 %v4605, %v5025
    %v5027 = vpop.f32.mrb[0].mxu0
    %v5028 = vpop.f32.mrb[0].mxu0
    %v5029 = vadd.f32 %v4605, %v5028
    %v5030 = vpop.f32.mrb[0].mxu0
    %5031 = vmatprep.mubr.bf16.mxu0 0
    %5032 = vmatmul.mubr.bf16.gmra.mrb[0].mxu0 %v4561
    %v5033 = vpop.f32.mrb[0].mxu0
    %v5034 = vadd.f32 %v4605, %v5033
    %v5035 = vpop.f32.mrb[0].mxu0
    %v5036 = vpop.f32.mrb[0].mxu0
    %v5037 = vadd.f32 %v4605, %v5036
    %v5038 = vpop.f32.mrb[0].mxu0
    %5039 = vmatprep.mubr.bf16.mxu0 0
    %5040 = vmatmul.mubr.bf16.gmra.mrb[0].mxu0 %v4562
    %v5041 = vpop.f32.mrb[0].mxu0
    %v5042 = vadd.f32 %v4605, %v5041
    %v5043 = vpop.f32.mrb[0].mxu0
    %v5044 = vpop.f32.mrb[0].mxu0
    %v5045 = vadd.f32 %v4605, %v5044
    %v5046 = vpop.f32.mrb[0].mxu0
    %5047 = vmatprep.mubr.bf16.mxu0 0
    %5048 = vmatmul.mubr.bf16.gmra.mrb[0].mxu0 %v4563
    %v5049 = vpop.f32.mrb[0].mxu0
    %v5050 = vadd.f32 %v4605, %v5049
    %v5051 = vpop.f32.mrb[0].mxu0
    %v5052 = vpop.f32.mrb[0].mxu0
    %v5053 = vadd.f32 %v4605, %v5052
    %v5054 = vpop.f32.mrb[0].mxu0
    %5055 = vmatprep.mubr.bf16.mxu0 0
    %5056 = vmatmul.mubr.bf16.gmra.mrb[0].mxu0 %v4564
    %v5057 = vpop.f32.mrb[0].mxu0
    %v5058 = vadd.f32 %v4605, %v5057
    %v5059 = vpop.f32.mrb[0].mxu0
    %v5060 = vpop.f32.mrb[0].mxu0
    %v5061 = vadd.f32 %v4605, %v5060
    %v5062 = vpop.f32.mrb[0].mxu0
    %5063 = vmatprep.mubr.bf16.mxu0 0
    %5064 = vmatmul.mubr.bf16.gmra.mrb[0].mxu0 %v4565
    %v5065 = vpop.f32.mrb[0].mxu0
    %v5066 = vadd.f32 %v4605, %v5065
    %v5067 = vpop.f32.mrb[0].mxu0
    %v5068 = vpop.f32.mrb[0].mxu0
    %v5069 = vadd.f32 %v4605, %v5068
    %v5070 = vpop.f32.mrb[0].mxu0
    %5071 = vmatprep.mubr.bf16.mxu0 0
    %5072 = vmatmul.mubr.bf16.gmra.mrb[0].mxu0 %v4566
    %v5073 = vpop.f32.mrb[0].mxu0
    %v5074 = vadd.f32 %v4605, %v5073
    %v5075 = vpop.f32.mrb[0].mxu0
    %v5076 = vpop.f32.mrb[0].mxu0
    %v5077 = vadd.f32 %v4605, %v5076
    %v5078 = vpop.f32.mrb[0].mxu0
    %5079 = vmatprep.mubr.bf16.mxu0 0
    %5080 = vmatmul.mubr.bf16.gmra.mrb[0].mxu0 %v4567
    %v5081 = vpop.f32.mrb[0].mxu0
    %v5082 = vadd.f32 %v4605, %v5081
    %v5083 = vpop.f32.mrb[0].mxu0
    %v5084 = vpop.f32.mrb[0].mxu0
    %v5085 = vadd.f32 %v4605, %v5084
    %v5086 = vpop.f32.mrb[0].mxu0
    %5087 = vmatprep.mubr.bf16.mxu0 0
    %5088 = vmatmul.mubr.bf16.gmra.mrb[0].mxu0 %v4568
    %v5089 = vpop.f32.mrb[0].mxu0
    %v5090 = vadd.f32 %v4605, %v5089
    %v5091 = vpop.f32.mrb[0].mxu0
    %v5092 = vpop.f32.mrb[0].mxu0
    %v5093 = vadd.f32 %v4605, %v5092
    %v5094 = vpop.f32.mrb[0].mxu0
    %5095 = vmatprep.mubr.bf16.mxu0 0
    %5096 = vmatmul.mubr.bf16.gmra.mrb[0].mxu0 %v4569
    %v5097 = vpop.f32.mrb[0].mxu0
    %v5098 = vadd.f32 %v4605, %v5097
    %v5099 = vpop.f32.mrb[0].mxu0
    %v5100 = vpop.f32.mrb[0].mxu0
    %v5101 = vadd.f32 %v4605, %v5100
    %v5102 = vpop.f32.mrb[0].mxu0
    %5103 = vmatprep.mubr.bf16.mxu0 0
    %5104 = vmatmul.mubr.bf16.gmra.mrb[0].mxu0 %v4570
    %v5105 = vpop.f32.mrb[0].mxu0
    %v5106 = vadd.f32 %v4605, %v5105
    %v5107 = vpop.f32.mrb[0].mxu0
    %v5108 = vpop.f32.mrb[0].mxu0
    %v5109 = vadd.f32 %v4605, %v5108
    %v5110 = vpop.f32.mrb[0].mxu0
    %5111 = vmatprep.mubr.bf16.mxu0 0
    %5112 = vmatmul.mubr.bf16.gmra.mrb[0].mxu0 %v4571
    %v5113 = vpop.f32.mrb[0].mxu0
    %v5114 = vadd.f32 %v4605, %v5113
    %v5115 = vpop.f32.mrb[0].mxu0
    %v5116 = vpop.f32.mrb[0].mxu0
    %v5117 = vadd.f32 %v4605, %v5116
    %v5118 = vpop.f32.mrb[0].mxu0
    %5119 = vmatprep.mubr.bf16.mxu0 0
    %5120 = vmatmul.mubr.bf16.gmra.mrb[0].mxu0 %v4572
    %v5121 = vpop.f32.mrb[0].mxu0
    %v5122 = vadd.f32 %v4605, %v5121
    %v5123 = vpop.f32.mrb[0].mxu0
    %v5124 = vpop.f32.mrb[0].mxu0
    %v5125 = vadd.f32 %v4605, %v5124
    %v5126 = vpop.f32.mrb[0].mxu0
    %5127 = vmatprep.mubr.bf16.mxu0 0
    %5128 = vmatmul.mubr.bf16.gmra.mrb[0].mxu0 %v4573
    %v5129 = vpop.f32.mrb[0].mxu0
    %v5130 = vadd.f32 %v4605, %v5129
    %v5131 = vpop.f32.mrb[0].mxu0
    %v5132 = vpop.f32.mrb[0].mxu0
    %v5133 = vadd.f32 %v4605, %v5132
    %v5134 = vpop.f32.mrb[0].mxu0
    %5135 = vmatprep.mubr.bf16.mxu0 0
    %5136 = vmatmul.mubr.bf16.gmra.mrb[0].mxu0 %v4574
    %v5137 = vpop.f32.mrb[0].mxu0
    %v5138 = vadd.f32 %v4605, %v5137
    %v5139 = vpop.f32.mrb[0].mxu0
    %v5140 = vpop.f32.mrb[0].mxu0
    %v5141 = vadd.f32 %v4605, %v5140
    %v5142 = vpop.f32.mrb[0].mxu0
    %5143 = vmatprep.mubr.bf16.mxu0 0
    %5144 = vmatmul.mubr.bf16.gmra.mrb[0].mxu0 %v4575
    %v5145 = vpop.f32.mrb[0].mxu0
    %v5146 = vadd.f32 %v4605, %v5145
    %v5147 = vpop.f32.mrb[0].mxu0
    %v5148 = vpop.f32.mrb[0].mxu0
    %v5149 = vadd.f32 %v4605, %v5148
    %v5150 = vpop.f32.mrb[0].mxu0
    %5151 = vmatprep.mubr.bf16.mxu0 0
    %5152 = vmatmul.mubr.bf16.gmra.mrb[0].mxu0 %v4576
    %v5153 = vpop.f32.mrb[0].mxu0
    %v5154 = vadd.f32 %v4605, %v5153
    %v5155 = vpop.f32.mrb[0].mxu0
    %v5156 = vpop.f32.mrb[0].mxu0
    %v5157 = vadd.f32 %v4605, %v5156
    %v5158 = vpop.f32.mrb[0].mxu0
    %5159 = vmatprep.mubr.bf16.mxu0 0
    %5160 = vmatmul.mubr.bf16.gmra.mrb[0].mxu0 %v4577
    %v5161 = vpop.f32.mrb[0].mxu0
    %v5162 = vadd.f32 %v4605, %v5161
    %v5163 = vpop.f32.mrb[0].mxu0
    %v5164 = vpop.f32.mrb[0].mxu0
    %v5165 = vadd.f32 %v4605, %v5164
    %v5166 = vpop.f32.mrb[0].mxu0
    %5167 = vmatprep.mubr.bf16.mxu0 0
    %5168 = vmatmul.mubr.bf16.gmra.mrb[0].mxu0 %v4578
    %v5169 = vpop.f32.mrb[0].mxu0
    %v5170 = vadd.f32 %v4605, %v5169
    %v5171 = vpop.f32.mrb[0].mxu0
    %v5172 = vpop.f32.mrb[0].mxu0
    %v5173 = vadd.f32 %v4605, %v5172
    %v5174 = vpop.f32.mrb[0].mxu0
    %5175 = vmatprep.mubr.bf16.mxu0 0
    %5176 = vmatmul.mubr.bf16.gmra.mrb[0].mxu0 %v4579
    %v5177 = vpop.f32.mrb[0].mxu0
    %v5178 = vadd.f32 %v4605, %v5177
    %v5179 = vpop.f32.mrb[0].mxu0
    %v5180 = vpop.f32.mrb[0].mxu0
    %v5181 = vadd.f32 %v4605, %v5180
    %v5182 = vpop.f32.mrb[0].mxu0
    %5183 = vmatprep.mubr.bf16.mxu0 0
    %5184 = vmatmul.mubr.bf16.gmra.mrb[0].mxu0 %v4580
    %v5185 = vpop.f32.mrb[0].mxu0
    %v5186 = vadd.f32 %v4605, %v5185
    %v5187 = vpop.f32.mrb[0].mxu0
    %v5188 = vpop.f32.mrb[0].mxu0
    %v5189 = vadd.f32 %v4605, %v5188
    %v5190 = vpop.f32.mrb[0].mxu0
    %5191 = vmatprep.mubr.bf16.mxu0 0
    %5192 = vmatmul.mubr.bf16.gmra.mrb[0].mxu0 %v4581
    %v5193 = vpop.f32.mrb[0].mxu0
    %v5194 = vadd.f32 %v4605, %v5193
    %v5195 = vpop.f32.mrb[0].mxu0
    %v5196 = vpop.f32.mrb[0].mxu0
    %v5197 = vadd.f32 %v4605, %v5196
    %v5198 = vpop.f32.mrb[0].mxu0
    %5199 = vdwg.mxu0
    %v5200 = vmax.f32 %v4690, 0.0
    %v5201 = vmax.f32 %v4693, 0.0
    %v5202 = vmax.f32 %v4698, 0.0
    %v5203 = vmax.f32 %v4701, 0.0
    %v5204 = vmax.f32 %v4706, 0.0
    %v5205 = vmax.f32 %v4709, 0.0
    %v5206 = vmax.f32 %v4714, 0.0
    %v5207 = vmax.f32 %v4717, 0.0
    %v5208 = vmax.f32 %v4722, 0.0
    %v5209 = vmax.f32 %v4725, 0.0
    %v5210 = vmax.f32 %v4730, 0.0
    %v5211 = vmax.f32 %v4733, 0.0
    %v5212 = vmax.f32 %v4738, 0.0
    %v5213 = vmax.f32 %v4741, 0.0
    %v5214 = vmax.f32 %v4746, 0.0
    %v5215 = vmax.f32 %v4749, 0.0
    %v5216 = vmax.f32 %v4754, 0.0
    %v5217 = vmax.f32 %v4757, 0.0
    %v5218 = vmax.f32 %v4762, 0.0
    %v5219 = vmax.f32 %v4765, 0.0
    %v5220 = vmax.f32 %v4770, 0.0
    %v5221 = vmax.f32 %v4773, 0.0
    %v5222 = vmax.f32 %v4778, 0.0
    %v5223 = vmax.f32 %v4781, 0.0
    %v5224 = vmax.f32 %v4786, 0.0
    %v5225 = vmax.f32 %v4789, 0.0
    %v5226 = vmax.f32 %v4794, 0.0
    %v5227 = vmax.f32 %v4797, 0.0
    %v5228 = vmax.f32 %v4802, 0.0
    %v5229 = vmax.f32 %v4805, 0.0
    %v5230 = vmax.f32 %v4810, 0.0
    %v5231 = vmax.f32 %v4813, 0.0
    %v5232 = vmax.f32 %v4818, 0.0
    %v5233 = vmax.f32 %v4821, 0.0
    %v5234 = vmax.f32 %v4826, 0.0
    %v5235 = vmax.f32 %v4829, 0.0
    %v5236 = vmax.f32 %v4834, 0.0
    %v5237 = vmax.f32 %v4837, 0.0
    %v5238 = vmax.f32 %v4842, 0.0
    %v5239 = vmax.f32 %v4845, 0.0
    %v5240 = vmax.f32 %v4850, 0.0
    %v5241 = vmax.f32 %v4853, 0.0
    %v5242 = vmax.f32 %v4858, 0.0
    %v5243 = vmax.f32 %v4861, 0.0
    %v5244 = vmax.f32 %v4866, 0.0
    %v5245 = vmax.f32 %v4869, 0.0
    %v5246 = vmax.f32 %v4874, 0.0
    %v5247 = vmax.f32 %v4877, 0.0
    %v5248 = vmax.f32 %v4882, 0.0
    %v5249 = vmax.f32 %v4885, 0.0
    %v5250 = vmax.f32 %v4890, 0.0
    %v5251 = vmax.f32 %v4893, 0.0
    %v5252 = vmax.f32 %v4898, 0.0
    %v5253 = vmax.f32 %v4901, 0.0
    %v5254 = vmax.f32 %v4906, 0.0
    %v5255 = vmax.f32 %v4909, 0.0
    %v5256 = vmax.f32 %v4914, 0.0
    %v5257 = vmax.f32 %v4917, 0.0
    %v5258 = vmax.f32 %v4922, 0.0
    %v5259 = vmax.f32 %v4925, 0.0
    %v5260 = vmax.f32 %v4930, 0.0
    %v5261 = vmax.f32 %v4933, 0.0
    %v5262 = vmax.f32 %v4938, 0.0
    %v5263 = vmax.f32 %v4941, 0.0
    %v5264 = vmax.f32 %v4946, 0.0
    %v5265 = vmax.f32 %v4949, 0.0
    %v5266 = vmax.f32 %v4954, 0.0
    %v5267 = vmax.f32 %v4957, 0.0
    %v5268 = vmax.f32 %v4962, 0.0
    %v5269 = vmax.f32 %v4965, 0.0
    %v5270 = vmax.f32 %v4970, 0.0
    %v5271 = vmax.f32 %v4973, 0.0
    %v5272 = vmax.f32 %v4978, 0.0
    %v5273 = vmax.f32 %v4981, 0.0
    %v5274 = vmax.f32 %v4986, 0.0
    %v5275 = vmax.f32 %v4989, 0.0
    %v5276 = vmax.f32 %v4994, 0.0
    %v5277 = vmax.f32 %v4997, 0.0
    %v5278 = vmax.f32 %v5002, 0.0
    %v5279 = vmax.f32 %v5005, 0.0
    %v5280 = vmax.f32 %v5010, 0.0
    %v5281 = vmax.f32 %v5013, 0.0
    %v5282 = vmax.f32 %v5018, 0.0
    %v5283 = vmax.f32 %v5021, 0.0
    %v5284 = vmax.f32 %v5026, 0.0
    %v5285 = vmax.f32 %v5029, 0.0
    %v5286 = vmax.f32 %v5034, 0.0
    %v5287 = vmax.f32 %v5037, 0.0
    %v5288 = vmax.f32 %v5042, 0.0
    %v5289 = vmax.f32 %v5045, 0.0
    %v5290 = vmax.f32 %v5050, 0.0
    %v5291 = vmax.f32 %v5053, 0.0
    %v5292 = vmax.f32 %v5058, 0.0
    %v5293 = vmax.f32 %v5061, 0.0
    %v5294 = vmax.f32 %v5066, 0.0
    %v5295 = vmax.f32 %v5069, 0.0
    %v5296 = vmax.f32 %v5074, 0.0
    %v5297 = vmax.f32 %v5077, 0.0
    %v5298 = vmax.f32 %v5082, 0.0
    %v5299 = vmax.f32 %v5085, 0.0
    %v5300 = vmax.f32 %v5090, 0.0
    %v5301 = vmax.f32 %v5093, 0.0
    %v5302 = vmax.f32 %v5098, 0.0
    %v5303 = vmax.f32 %v5101, 0.0
    %v5304 = vmax.f32 %v5106, 0.0
    %v5305 = vmax.f32 %v5109, 0.0
    %v5306 = vmax.f32 %v5114, 0.0
    %v5307 = vmax.f32 %v5117, 0.0
    %v5308 = vmax.f32 %v5122, 0.0
    %v5309 = vmax.f32 %v5125, 0.0
    %v5310 = vmax.f32 %v5130, 0.0
    %v5311 = vmax.f32 %v5133, 0.0
    %v5312 = vmax.f32 %v5138, 0.0
    %v5313 = vmax.f32 %v5141, 0.0
    %v5314 = vmax.f32 %v5146, 0.0
    %v5315 = vmax.f32 %v5149, 0.0
    %v5316 = vmax.f32 %v5154, 0.0
    %v5317 = vmax.f32 %v5157, 0.0
    %v5318 = vmax.f32 %v5162, 0.0
    %v5319 = vmax.f32 %v5165, 0.0
    %v5320 = vmax.f32 %v5170, 0.0
    %v5321 = vmax.f32 %v5173, 0.0
    %v5322 = vmax.f32 %v5178, 0.0
    %v5323 = vmax.f32 %v5181, 0.0
    %v5324 = vmax.f32 %v5186, 0.0
    %v5325 = vmax.f32 %v5189, 0.0
    %v5326 = vmax.f32 %v5194, 0.0
    %v5327 = vmax.f32 %v5197, 0.0
    %v5328 = vpack.c.bf16 %v5201, %v5200
    %v5329 = vpack.c.bf16 %v5203, %v5202
    %v5330 = vpack.c.bf16 %v5205, %v5204
    %v5331 = vpack.c.bf16 %v5207, %v5206
    %v5332 = vpack.c.bf16 %v5209, %v5208
    %v5333 = vpack.c.bf16 %v5211, %v5210
    %v5334 = vpack.c.bf16 %v5213, %v5212
    %v5335 = vpack.c.bf16 %v5215, %v5214
    %v5336 = vpack.c.bf16 %v5217, %v5216
    %v5337 = vpack.c.bf16 %v5219, %v5218
    %v5338 = vpack.c.bf16 %v5221, %v5220
    %v5339 = vpack.c.bf16 %v5223, %v5222
    %v5340 = vpack.c.bf16 %v5225, %v5224
    %v5341 = vpack.c.bf16 %v5227, %v5226
    %v5342 = vpack.c.bf16 %v5229, %v5228
    %v5343 = vpack.c.bf16 %v5231, %v5230
    %v5344 = vpack.c.bf16 %v5233, %v5232
    %v5345 = vpack.c.bf16 %v5235, %v5234
    %v5346 = vpack.c.bf16 %v5237, %v5236
    %v5347 = vpack.c.bf16 %v5239, %v5238
    %v5348 = vpack.c.bf16 %v5241, %v5240
    %v5349 = vpack.c.bf16 %v5243, %v5242
    %v5350 = vpack.c.bf16 %v5245, %v5244
    %v5351 = vpack.c.bf16 %v5247, %v5246
    %v5352 = vpack.c.bf16 %v5249, %v5248
    %v5353 = vpack.c.bf16 %v5251, %v5250
    %v5354 = vpack.c.bf16 %v5253, %v5252
    %v5355 = vpack.c.bf16 %v5255, %v5254
    %v5356 = vpack.c.bf16 %v5257, %v5256
    %v5357 = vpack.c.bf16 %v5259, %v5258
    %v5358 = vpack.c.bf16 %v5261, %v5260
    %v5359 = vpack.c.bf16 %v5263, %v5262
    %v5360 = vpack.c.bf16 %v5265, %v5264
    %v5361 = vpack.c.bf16 %v5267, %v5266
    %v5362 = vpack.c.bf16 %v5269, %v5268
    %v5363 = vpack.c.bf16 %v5271, %v5270
    %v5364 = vpack.c.bf16 %v5273, %v5272
    %v5365 = vpack.c.bf16 %v5275, %v5274
    %v5366 = vpack.c.bf16 %v5277, %v5276
    %v5367 = vpack.c.bf16 %v5279, %v5278
    %v5368 = vpack.c.bf16 %v5281, %v5280
    %v5369 = vpack.c.bf16 %v5283, %v5282
    %v5370 = vpack.c.bf16 %v5285, %v5284
    %v5371 = vpack.c.bf16 %v5287, %v5286
    %v5372 = vpack.c.bf16 %v5289, %v5288
    %v5373 = vpack.c.bf16 %v5291, %v5290
    %v5374 = vpack.c.bf16 %v5293, %v5292
    %v5375 = vpack.c.bf16 %v5295, %v5294
    %v5376 = vpack.c.bf16 %v5297, %v5296
    %v5377 = vpack.c.bf16 %v5299, %v5298
    %v5378 = vpack.c.bf16 %v5301, %v5300
    %v5379 = vpack.c.bf16 %v5303, %v5302
    %v5380 = vpack.c.bf16 %v5305, %v5304
    %v5381 = vpack.c.bf16 %v5307, %v5306
    %v5382 = vpack.c.bf16 %v5309, %v5308
    %v5383 = vpack.c.bf16 %v5311, %v5310
    %v5384 = vpack.c.bf16 %v5313, %v5312
    %v5385 = vpack.c.bf16 %v5315, %v5314
    %v5386 = vpack.c.bf16 %v5317, %v5316
    %v5387 = vpack.c.bf16 %v5319, %v5318
    %v5388 = vpack.c.bf16 %v5321, %v5320
    %v5389 = vpack.c.bf16 %v5323, %v5322
    %v5390 = vpack.c.bf16 %v5325, %v5324
    %v5391 = vpack.c.bf16 %v5327, %v5326
    %s5392 = scalar_lea.vmem %s5, 256
    %v5393 = vld [vmem:[%s5392] sm:$0xf]
    %v5394 = vld [vmem:[%s5392 + $0x4] sm:$0xf]
    %v5395 = vld [vmem:[%s5392 + $0x8] sm:$0xf]
    %v5396 = vld [vmem:[%s5392 + $0xc] sm:$0xf]
    %v5397 = vld [vmem:[%s5392 + $0x10] sm:$0xf]
    %v5398 = vld [vmem:[%s5392 + $0x14] sm:$0xf]
    %v5399 = vld [vmem:[%s5392 + $0x18] sm:$0xf]
    %v5400 = vld [vmem:[%s5392 + $0x1c] sm:$0xf]
    %v5401 = vld [vmem:[%s5392 + $0x20] sm:$0xf]
    %v5402 = vld [vmem:[%s5392 + $0x24] sm:$0xf]
    %v5403 = vld [vmem:[%s5392 + $0x28] sm:$0xf]
    %v5404 = vld [vmem:[%s5392 + $0x2c] sm:$0xf]
    %v5405 = vld [vmem:[%s5392 + $0x30] sm:$0xf]
    %v5406 = vld [vmem:[%s5392 + $0x34] sm:$0xf]
    %v5407 = vld [vmem:[%s5392 + $0x38] sm:$0xf]
    %v5408 = vld [vmem:[%s5392 + $0x3c] sm:$0xf]
    %s5409 = scalar_lea.vmem %s6, 4
    %v5410 = vld [vmem:[%s5409] sm:$0x1]
    %v5412 = vlaneseq
    %v5413 = vshrl.u32 %v5412, 7
    %v5414 = vsub.s32 0, %v5413
    %v5415 = vrot.slane %v5410, %v5414
    %v5433 = vunpack.c.l.b16 %v5393
    %v5434 = vunpack.c.l.b16 %v5394
    %v5435 = vunpack.c.l.b16 %v5395
    %v5436 = vunpack.c.l.b16 %v5396
    %v5437 = vunpack.c.l.b16 %v5397
    %v5438 = vunpack.c.l.b16 %v5398
    %v5439 = vunpack.c.l.b16 %v5399
    %v5440 = vunpack.c.l.b16 %v5400
    %v5441 = vunpack.c.l.b16 %v5401
    %v5442 = vunpack.c.l.b16 %v5402
    %v5443 = vunpack.c.l.b16 %v5403
    %v5444 = vunpack.c.l.b16 %v5404
    %v5445 = vunpack.c.l.b16 %v5405
    %v5446 = vunpack.c.l.b16 %v5406
    %v5447 = vunpack.c.l.b16 %v5407
    %v5448 = vunpack.c.l.b16 %v5408
    %v5449 = vpack.c.b16 %v5434, %v5433
    %v5450 = vpack.c.b16 %v5436, %v5435
    %v5451 = vpack.c.b16 %v5438, %v5437
    %v5452 = vpack.c.b16 %v5440, %v5439
    %v5453 = vpack.c.b16 %v5442, %v5441
    %v5454 = vpack.c.b16 %v5444, %v5443
    %v5455 = vpack.c.b16 %v5446, %v5445
    %v5456 = vpack.c.b16 %v5448, %v5447
    %5465 = vmatprep.subr.bf16.mxu0 0
    %5466 = vmatpush1.bf16.msra.mxu0 %v5449
    %5467 = vmatprep.subr.bf16.mxu0 0
    %5468 = vmatpush1.bf16.msra.mxu0 %v5450
    %5469 = vmatprep.subr.bf16.mxu0 0
    %5470 = vmatpush1.bf16.msra.mxu0 %v5451
    %5471 = vmatprep.subr.bf16.mxu0 0
    %5472 = vmatpush1.bf16.msra.mxu0 %v5452
    %5473 = vmatprep.subr.bf16.mxu0 0
    %5474 = vmatpush1.bf16.msra.mxu0 %v5453
    %5475 = vmatprep.subr.bf16.mxu0 0
    %5476 = vmatpush1.bf16.msra.mxu0 %v5454
    %5477 = vmatprep.subr.bf16.mxu0 0
    %5478 = vmatpush1.bf16.msra.mxu0 %v5455
    %5479 = vmatprep.subr.bf16.mxu0 0
    %5480 = vmatpush1.bf16.msra.mxu0 %v5456
    %5481 = vmatprep.subr.bf16.mxu0 0
    %5482 = vmatpush1.bf16.msra.mxu0 0
    %5483 = vmatprep.subr.bf16.mxu0 0
    %5484 = vmatpush1.bf16.msra.mxu0 0
    %5485 = vmatprep.subr.bf16.mxu0 0
    %5486 = vmatpush1.bf16.msra.mxu0 0
    %5487 = vmatprep.subr.bf16.mxu0 0
    %5488 = vmatpush1.bf16.msra.mxu0 0
    %5489 = vmatprep.subr.bf16.mxu0 0
    %5490 = vmatpush1.bf16.msra.mxu0 0
    %5491 = vmatprep.subr.bf16.mxu0 0
    %5492 = vmatpush1.bf16.msra.mxu0 0
    %5493 = vmatprep.subr.bf16.mxu0 0
    %5494 = vmatpush1.bf16.msra.mxu0 0
    %5495 = vmatprep.subr.bf16.mxu0 0
    %5496 = vmatpush1.bf16.msra.mxu0 0
    %5497 = vmatprep.mubr.bf16.mxu0 0
    %5498 = vmatmul.mubr.bf16.gmra.mrb[0].mxu0 %v5328
    %v5499 = vpop.f32.mrb[0].mxu0
    %v5500 = vadd.f32 %v5415, %v5499
    %v5501 = vpop.f32.mrb[0].mxu0
    %v5502 = vpop.f32.mrb[0].mxu0
    %v5503 = vadd.f32 %v5415, %v5502
    %v5504 = vpop.f32.mrb[0].mxu0
    %5505 = vmatprep.mubr.bf16.mxu0 0
    %5506 = vmatmul.mubr.bf16.gmra.mrb[0].mxu0 %v5329
    %v5507 = vpop.f32.mrb[0].mxu0
    %v5508 = vadd.f32 %v5415, %v5507
    %v5509 = vpop.f32.mrb[0].mxu0
    %v5510 = vpop.f32.mrb[0].mxu0
    %v5511 = vadd.f32 %v5415, %v5510
    %v5512 = vpop.f32.mrb[0].mxu0
    %5513 = vmatprep.mubr.bf16.mxu0 0
    %5514 = vmatmul.mubr.bf16.gmra.mrb[0].mxu0 %v5330
    %v5515 = vpop.f32.mrb[0].mxu0
    %v5516 = vadd.f32 %v5415, %v5515
    %v5517 = vpop.f32.mrb[0].mxu0
    %v5518 = vpop.f32.mrb[0].mxu0
    %v5519 = vadd.f32 %v5415, %v5518
    %v5520 = vpop.f32.mrb[0].mxu0
    %5521 = vmatprep.mubr.bf16.mxu0 0
    %5522 = vmatmul.mubr.bf16.gmra.mrb[0].mxu0 %v5331
    %v5523 = vpop.f32.mrb[0].mxu0
    %v5524 = vadd.f32 %v5415, %v5523
    %v5525 = vpop.f32.mrb[0].mxu0
    %v5526 = vpop.f32.mrb[0].mxu0
    %v5527 = vadd.f32 %v5415, %v5526
    %v5528 = vpop.f32.mrb[0].mxu0
    %5529 = vmatprep.mubr.bf16.mxu0 0
    %5530 = vmatmul.mubr.bf16.gmra.mrb[0].mxu0 %v5332
    %v5531 = vpop.f32.mrb[0].mxu0
    %v5532 = vadd.f32 %v5415, %v5531
    %v5533 = vpop.f32.mrb[0].mxu0
    %v5534 = vpop.f32.mrb[0].mxu0
    %v5535 = vadd.f32 %v5415, %v5534
    %v5536 = vpop.f32.mrb[0].mxu0
    %5537 = vmatprep.mubr.bf16.mxu0 0
    %5538 = vmatmul.mubr.bf16.gmra.mrb[0].mxu0 %v5333
    %v5539 = vpop.f32.mrb[0].mxu0
    %v5540 = vadd.f32 %v5415, %v5539
    %v5541 = vpop.f32.mrb[0].mxu0
    %v5542 = vpop.f32.mrb[0].mxu0
    %v5543 = vadd.f32 %v5415, %v5542
    %v5544 = vpop.f32.mrb[0].mxu0
    %5545 = vmatprep.mubr.bf16.mxu0 0
    %5546 = vmatmul.mubr.bf16.gmra.mrb[0].mxu0 %v5334
    %v5547 = vpop.f32.mrb[0].mxu0
    %v5548 = vadd.f32 %v5415, %v5547
    %v5549 = vpop.f32.mrb[0].mxu0
    %v5550 = vpop.f32.mrb[0].mxu0
    %v5551 = vadd.f32 %v5415, %v5550
    %v5552 = vpop.f32.mrb[0].mxu0
    %5553 = vmatprep.mubr.bf16.mxu0 0
    %5554 = vmatmul.mubr.bf16.gmra.mrb[0].mxu0 %v5335
    %v5555 = vpop.f32.mrb[0].mxu0
    %v5556 = vadd.f32 %v5415, %v5555
    %v5557 = vpop.f32.mrb[0].mxu0
    %v5558 = vpop.f32.mrb[0].mxu0
    %v5559 = vadd.f32 %v5415, %v5558
    %v5560 = vpop.f32.mrb[0].mxu0
    %5561 = vmatprep.mubr.bf16.mxu0 0
    %5562 = vmatmul.mubr.bf16.gmra.mrb[0].mxu0 %v5336
    %v5563 = vpop.f32.mrb[0].mxu0
    %v5564 = vadd.f32 %v5415, %v5563
    %v5565 = vpop.f32.mrb[0].mxu0
    %v5566 = vpop.f32.mrb[0].mxu0
    %v5567 = vadd.f32 %v5415, %v5566
    %v5568 = vpop.f32.mrb[0].mxu0
    %5569 = vmatprep.mubr.bf16.mxu0 0
    %5570 = vmatmul.mubr.bf16.gmra.mrb[0].mxu0 %v5337
    %v5571 = vpop.f32.mrb[0].mxu0
    %v5572 = vadd.f32 %v5415, %v5571
    %v5573 = vpop.f32.mrb[0].mxu0
    %v5574 = vpop.f32.mrb[0].mxu0
    %v5575 = vadd.f32 %v5415, %v5574
    %v5576 = vpop.f32.mrb[0].mxu0
    %5577 = vmatprep.mubr.bf16.mxu0 0
    %5578 = vmatmul.mubr.bf16.gmra.mrb[0].mxu0 %v5338
    %v5579 = vpop.f32.mrb[0].mxu0
    %v5580 = vadd.f32 %v5415, %v5579
    %v5581 = vpop.f32.mrb[0].mxu0
    %v5582 = vpop.f32.mrb[0].mxu0
    %v5583 = vadd.f32 %v5415, %v5582
    %v5584 = vpop.f32.mrb[0].mxu0
    %5585 = vmatprep.mubr.bf16.mxu0 0
    %5586 = vmatmul.mubr.bf16.gmra.mrb[0].mxu0 %v5339
    %v5587 = vpop.f32.mrb[0].mxu0
    %v5588 = vadd.f32 %v5415, %v5587
    %v5589 = vpop.f32.mrb[0].mxu0
    %v5590 = vpop.f32.mrb[0].mxu0
    %v5591 = vadd.f32 %v5415, %v5590
    %v5592 = vpop.f32.mrb[0].mxu0
    %5593 = vmatprep.mubr.bf16.mxu0 0
    %5594 = vmatmul.mubr.bf16.gmra.mrb[0].mxu0 %v5340
    %v5595 = vpop.f32.mrb[0].mxu0
    %v5596 = vadd.f32 %v5415, %v5595
    %v5597 = vpop.f32.mrb[0].mxu0
    %v5598 = vpop.f32.mrb[0].mxu0
    %v5599 = vadd.f32 %v5415, %v5598
    %v5600 = vpop.f32.mrb[0].mxu0
    %5601 = vmatprep.mubr.bf16.mxu0 0
    %5602 = vmatmul.mubr.bf16.gmra.mrb[0].mxu0 %v5341
    %v5603 = vpop.f32.mrb[0].mxu0
    %v5604 = vadd.f32 %v5415, %v5603
    %v5605 = vpop.f32.mrb[0].mxu0
    %v5606 = vpop.f32.mrb[0].mxu0
    %v5607 = vadd.f32 %v5415, %v5606
    %v5608 = vpop.f32.mrb[0].mxu0
    %5609 = vmatprep.mubr.bf16.mxu0 0
    %5610 = vmatmul.mubr.bf16.gmra.mrb[0].mxu0 %v5342
    %v5611 = vpop.f32.mrb[0].mxu0
    %v5612 = vadd.f32 %v5415, %v5611
    %v5613 = vpop.f32.mrb[0].mxu0
    %v5614 = vpop.f32.mrb[0].mxu0
    %v5615 = vadd.f32 %v5415, %v5614
    %v5616 = vpop.f32.mrb[0].mxu0
    %5617 = vmatprep.mubr.bf16.mxu0 0
    %5618 = vmatmul.mubr.bf16.gmra.mrb[0].mxu0 %v5343
    %v5619 = vpop.f32.mrb[0].mxu0
    %v5620 = vadd.f32 %v5415, %v5619
    %v5621 = vpop.f32.mrb[0].mxu0
    %v5622 = vpop.f32.mrb[0].mxu0
    %v5623 = vadd.f32 %v5415, %v5622
    %v5624 = vpop.f32.mrb[0].mxu0
    %5625 = vmatprep.mubr.bf16.mxu0 0
    %5626 = vmatmul.mubr.bf16.gmra.mrb[0].mxu0 %v5344
    %v5627 = vpop.f32.mrb[0].mxu0
    %v5628 = vadd.f32 %v5415, %v5627
    %v5629 = vpop.f32.mrb[0].mxu0
    %v5630 = vpop.f32.mrb[0].mxu0
    %v5631 = vadd.f32 %v5415, %v5630
    %v5632 = vpop.f32.mrb[0].mxu0
    %5633 = vmatprep.mubr.bf16.mxu0 0
    %5634 = vmatmul.mubr.bf16.gmra.mrb[0].mxu0 %v5345
    %v5635 = vpop.f32.mrb[0].mxu0
    %v5636 = vadd.f32 %v5415, %v5635
    %v5637 = vpop.f32.mrb[0].mxu0
    %v5638 = vpop.f32.mrb[0].mxu0
    %v5639 = vadd.f32 %v5415, %v5638
    %v5640 = vpop.f32.mrb[0].mxu0
    %5641 = vmatprep.mubr.bf16.mxu0 0
    %5642 = vmatmul.mubr.bf16.gmra.mrb[0].mxu0 %v5346
    %v5643 = vpop.f32.mrb[0].mxu0
    %v5644 = vadd.f32 %v5415, %v5643
    %v5645 = vpop.f32.mrb[0].mxu0
    %v5646 = vpop.f32.mrb[0].mxu0
    %v5647 = vadd.f32 %v5415, %v5646
    %v5648 = vpop.f32.mrb[0].mxu0
    %5649 = vmatprep.mubr.bf16.mxu0 0
    %5650 = vmatmul.mubr.bf16.gmra.mrb[0].mxu0 %v5347
    %v5651 = vpop.f32.mrb[0].mxu0
    %v5652 = vadd.f32 %v5415, %v5651
    %v5653 = vpop.f32.mrb[0].mxu0
    %v5654 = vpop.f32.mrb[0].mxu0
    %v5655 = vadd.f32 %v5415, %v5654
    %v5656 = vpop.f32.mrb[0].mxu0
    %5657 = vmatprep.mubr.bf16.mxu0 0
    %5658 = vmatmul.mubr.bf16.gmra.mrb[0].mxu0 %v5348
    %v5659 = vpop.f32.mrb[0].mxu0
    %v5660 = vadd.f32 %v5415, %v5659
    %v5661 = vpop.f32.mrb[0].mxu0
    %v5662 = vpop.f32.mrb[0].mxu0
    %v5663 = vadd.f32 %v5415, %v5662
    %v5664 = vpop.f32.mrb[0].mxu0
    %5665 = vmatprep.mubr.bf16.mxu0 0
    %5666 = vmatmul.mubr.bf16.gmra.mrb[0].mxu0 %v5349
    %v5667 = vpop.f32.mrb[0].mxu0
    %v5668 = vadd.f32 %v5415, %v5667
    %v5669 = vpop.f32.mrb[0].mxu0
    %v5670 = vpop.f32.mrb[0].mxu0
    %v5671 = vadd.f32 %v5415, %v5670
    %v5672 = vpop.f32.mrb[0].mxu0
    %5673 = vmatprep.mubr.bf16.mxu0 0
    %5674 = vmatmul.mubr.bf16.gmra.mrb[0].mxu0 %v5350
    %v5675 = vpop.f32.mrb[0].mxu0
    %v5676 = vadd.f32 %v5415, %v5675
    %v5677 = vpop.f32.mrb[0].mxu0
    %v5678 = vpop.f32.mrb[0].mxu0
    %v5679 = vadd.f32 %v5415, %v5678
    %v5680 = vpop.f32.mrb[0].mxu0
    %5681 = vmatprep.mubr.bf16.mxu0 0
    %5682 = vmatmul.mubr.bf16.gmra.mrb[0].mxu0 %v5351
    %v5683 = vpop.f32.mrb[0].mxu0
    %v5684 = vadd.f32 %v5415, %v5683
    %v5685 = vpop.f32.mrb[0].mxu0
    %v5686 = vpop.f32.mrb[0].mxu0
    %v5687 = vadd.f32 %v5415, %v5686
    %v5688 = vpop.f32.mrb[0].mxu0
    %5689 = vmatprep.mubr.bf16.mxu0 0
    %5690 = vmatmul.mubr.bf16.gmra.mrb[0].mxu0 %v5352
    %v5691 = vpop.f32.mrb[0].mxu0
    %v5692 = vadd.f32 %v5415, %v5691
    %v5693 = vpop.f32.mrb[0].mxu0
    %v5694 = vpop.f32.mrb[0].mxu0
    %v5695 = vadd.f32 %v5415, %v5694
    %v5696 = vpop.f32.mrb[0].mxu0
    %5697 = vmatprep.mubr.bf16.mxu0 0
    %5698 = vmatmul.mubr.bf16.gmra.mrb[0].mxu0 %v5353
    %v5699 = vpop.f32.mrb[0].mxu0
    %v5700 = vadd.f32 %v5415, %v5699
    %v5701 = vpop.f32.mrb[0].mxu0
    %v5702 = vpop.f32.mrb[0].mxu0
    %v5703 = vadd.f32 %v5415, %v5702
    %v5704 = vpop.f32.mrb[0].mxu0
    %5705 = vmatprep.mubr.bf16.mxu0 0
    %5706 = vmatmul.mubr.bf16.gmra.mrb[0].mxu0 %v5354
    %v5707 = vpop.f32.mrb[0].mxu0
    %v5708 = vadd.f32 %v5415, %v5707
    %v5709 = vpop.f32.mrb[0].mxu0
    %v5710 = vpop.f32.mrb[0].mxu0
    %v5711 = vadd.f32 %v5415, %v5710
    %v5712 = vpop.f32.mrb[0].mxu0
    %5713 = vmatprep.mubr.bf16.mxu0 0
    %5714 = vmatmul.mubr.bf16.gmra.mrb[0].mxu0 %v5355
    %v5715 = vpop.f32.mrb[0].mxu0
    %v5716 = vadd.f32 %v5415, %v5715
    %v5717 = vpop.f32.mrb[0].mxu0
    %v5718 = vpop.f32.mrb[0].mxu0
    %v5719 = vadd.f32 %v5415, %v5718
    %v5720 = vpop.f32.mrb[0].mxu0
    %5721 = vmatprep.mubr.bf16.mxu0 0
    %5722 = vmatmul.mubr.bf16.gmra.mrb[0].mxu0 %v5356
    %v5723 = vpop.f32.mrb[0].mxu0
    %v5724 = vadd.f32 %v5415, %v5723
    %v5725 = vpop.f32.mrb[0].mxu0
    %v5726 = vpop.f32.mrb[0].mxu0
    %v5727 = vadd.f32 %v5415, %v5726
    %v5728 = vpop.f32.mrb[0].mxu0
    %5729 = vmatprep.mubr.bf16.mxu0 0
    %5730 = vmatmul.mubr.bf16.gmra.mrb[0].mxu0 %v5357
    %v5731 = vpop.f32.mrb[0].mxu0
    %v5732 = vadd.f32 %v5415, %v5731
    %v5733 = vpop.f32.mrb[0].mxu0
    %v5734 = vpop.f32.mrb[0].mxu0
    %v5735 = vadd.f32 %v5415, %v5734
    %v5736 = vpop.f32.mrb[0].mxu0
    %5737 = vmatprep.mubr.bf16.mxu0 0
    %5738 = vmatmul.mubr.bf16.gmra.mrb[0].mxu0 %v5358
    %v5739 = vpop.f32.mrb[0].mxu0
    %v5740 = vadd.f32 %v5415, %v5739
    %v5741 = vpop.f32.mrb[0].mxu0
    %v5742 = vpop.f32.mrb[0].mxu0
    %v5743 = vadd.f32 %v5415, %v5742
    %v5744 = vpop.f32.mrb[0].mxu0
    %5745 = vmatprep.mubr.bf16.mxu0 0
    %5746 = vmatmul.mubr.bf16.gmra.mrb[0].mxu0 %v5359
    %v5747 = vpop.f32.mrb[0].mxu0
    %v5748 = vadd.f32 %v5415, %v5747
    %v5749 = vpop.f32.mrb[0].mxu0
    %v5750 = vpop.f32.mrb[0].mxu0
    %v5751 = vadd.f32 %v5415, %v5750
    %v5752 = vpop.f32.mrb[0].mxu0
    %5753 = vmatprep.mubr.bf16.mxu0 0
    %5754 = vmatmul.mubr.bf16.gmra.mrb[0].mxu0 %v5360
    %v5755 = vpop.f32.mrb[0].mxu0
    %v5756 = vadd.f32 %v5415, %v5755
    %v5757 = vpop.f32.mrb[0].mxu0
    %v5758 = vpop.f32.mrb[0].mxu0
    %v5759 = vadd.f32 %v5415, %v5758
    %v5760 = vpop.f32.mrb[0].mxu0
    %5761 = vmatprep.mubr.bf16.mxu0 0
    %5762 = vmatmul.mubr.bf16.gmra.mrb[0].mxu0 %v5361
    %v5763 = vpop.f32.mrb[0].mxu0
    %v5764 = vadd.f32 %v5415, %v5763
    %v5765 = vpop.f32.mrb[0].mxu0
    %v5766 = vpop.f32.mrb[0].mxu0
    %v5767 = vadd.f32 %v5415, %v5766
    %v5768 = vpop.f32.mrb[0].mxu0
    %5769 = vmatprep.mubr.bf16.mxu0 0
    %5770 = vmatmul.mubr.bf16.gmra.mrb[0].mxu0 %v5362
    %v5771 = vpop.f32.mrb[0].mxu0
    %v5772 = vadd.f32 %v5415, %v5771
    %v5773 = vpop.f32.mrb[0].mxu0
    %v5774 = vpop.f32.mrb[0].mxu0
    %v5775 = vadd.f32 %v5415, %v5774
    %v5776 = vpop.f32.mrb[0].mxu0
    %5777 = vmatprep.mubr.bf16.mxu0 0
    %5778 = vmatmul.mubr.bf16.gmra.mrb[0].mxu0 %v5363
    %v5779 = vpop.f32.mrb[0].mxu0
    %v5780 = vadd.f32 %v5415, %v5779
    %v5781 = vpop.f32.mrb[0].mxu0
    %v5782 = vpop.f32.mrb[0].mxu0
    %v5783 = vadd.f32 %v5415, %v5782
    %v5784 = vpop.f32.mrb[0].mxu0
    %5785 = vmatprep.mubr.bf16.mxu0 0
    %5786 = vmatmul.mubr.bf16.gmra.mrb[0].mxu0 %v5364
    %v5787 = vpop.f32.mrb[0].mxu0
    %v5788 = vadd.f32 %v5415, %v5787
    %v5789 = vpop.f32.mrb[0].mxu0
    %v5790 = vpop.f32.mrb[0].mxu0
    %v5791 = vadd.f32 %v5415, %v5790
    %v5792 = vpop.f32.mrb[0].mxu0
    %5793 = vmatprep.mubr.bf16.mxu0 0
    %5794 = vmatmul.mubr.bf16.gmra.mrb[0].mxu0 %v5365
    %v5795 = vpop.f32.mrb[0].mxu0
    %v5796 = vadd.f32 %v5415, %v5795
    %v5797 = vpop.f32.mrb[0].mxu0
    %v5798 = vpop.f32.mrb[0].mxu0
    %v5799 = vadd.f32 %v5415, %v5798
    %v5800 = vpop.f32.mrb[0].mxu0
    %5801 = vmatprep.mubr.bf16.mxu0 0
    %5802 = vmatmul.mubr.bf16.gmra.mrb[0].mxu0 %v5366
    %v5803 = vpop.f32.mrb[0].mxu0
    %v5804 = vadd.f32 %v5415, %v5803
    %v5805 = vpop.f32.mrb[0].mxu0
    %v5806 = vpop.f32.mrb[0].mxu0
    %v5807 = vadd.f32 %v5415, %v5806
    %v5808 = vpop.f32.mrb[0].mxu0
    %5809 = vmatprep.mubr.bf16.mxu0 0
    %5810 = vmatmul.mubr.bf16.gmra.mrb[0].mxu0 %v5367
    %v5811 = vpop.f32.mrb[0].mxu0
    %v5812 = vadd.f32 %v5415, %v5811
    %v5813 = vpop.f32.mrb[0].mxu0
    %v5814 = vpop.f32.mrb[0].mxu0
    %v5815 = vadd.f32 %v5415, %v5814
    %v5816 = vpop.f32.mrb[0].mxu0
    %5817 = vmatprep.mubr.bf16.mxu0 0
    %5818 = vmatmul.mubr.bf16.gmra.mrb[0].mxu0 %v5368
    %v5819 = vpop.f32.mrb[0].mxu0
    %v5820 = vadd.f32 %v5415, %v5819
    %v5821 = vpop.f32.mrb[0].mxu0
    %v5822 = vpop.f32.mrb[0].mxu0
    %v5823 = vadd.f32 %v5415, %v5822
    %v5824 = vpop.f32.mrb[0].mxu0
    %5825 = vmatprep.mubr.bf16.mxu0 0
    %5826 = vmatmul.mubr.bf16.gmra.mrb[0].mxu0 %v5369
    %v5827 = vpop.f32.mrb[0].mxu0
    %v5828 = vadd.f32 %v5415, %v5827
    %v5829 = vpop.f32.mrb[0].mxu0
    %v5830 = vpop.f32.mrb[0].mxu0
    %v5831 = vadd.f32 %v5415, %v5830
    %v5832 = vpop.f32.mrb[0].mxu0
    %5833 = vmatprep.mubr.bf16.mxu0 0
    %5834 = vmatmul.mubr.bf16.gmra.mrb[0].mxu0 %v5370
    %v5835 = vpop.f32.mrb[0].mxu0
    %v5836 = vadd.f32 %v5415, %v5835
    %v5837 = vpop.f32.mrb[0].mxu0
    %v5838 = vpop.f32.mrb[0].mxu0
    %v5839 = vadd.f32 %v5415, %v5838
    %v5840 = vpop.f32.mrb[0].mxu0
    %5841 = vmatprep.mubr.bf16.mxu0 0
    %5842 = vmatmul.mubr.bf16.gmra.mrb[0].mxu0 %v5371
    %v5843 = vpop.f32.mrb[0].mxu0
    %v5844 = vadd.f32 %v5415, %v5843
    %v5845 = vpop.f32.mrb[0].mxu0
    %v5846 = vpop.f32.mrb[0].mxu0
    %v5847 = vadd.f32 %v5415, %v5846
    %v5848 = vpop.f32.mrb[0].mxu0
    %5849 = vmatprep.mubr.bf16.mxu0 0
    %5850 = vmatmul.mubr.bf16.gmra.mrb[0].mxu0 %v5372
    %v5851 = vpop.f32.mrb[0].mxu0
    %v5852 = vadd.f32 %v5415, %v5851
    %v5853 = vpop.f32.mrb[0].mxu0
    %v5854 = vpop.f32.mrb[0].mxu0
    %v5855 = vadd.f32 %v5415, %v5854
    %v5856 = vpop.f32.mrb[0].mxu0
    %5857 = vmatprep.mubr.bf16.mxu0 0
    %5858 = vmatmul.mubr.bf16.gmra.mrb[0].mxu0 %v5373
    %v5859 = vpop.f32.mrb[0].mxu0
    %v5860 = vadd.f32 %v5415, %v5859
    %v5861 = vpop.f32.mrb[0].mxu0
    %v5862 = vpop.f32.mrb[0].mxu0
    %v5863 = vadd.f32 %v5415, %v5862
    %v5864 = vpop.f32.mrb[0].mxu0
    %5865 = vmatprep.mubr.bf16.mxu0 0
    %5866 = vmatmul.mubr.bf16.gmra.mrb[0].mxu0 %v5374
    %v5867 = vpop.f32.mrb[0].mxu0
    %v5868 = vadd.f32 %v5415, %v5867
    %v5869 = vpop.f32.mrb[0].mxu0
    %v5870 = vpop.f32.mrb[0].mxu0
    %v5871 = vadd.f32 %v5415, %v5870
    %v5872 = vpop.f32.mrb[0].mxu0
    %5873 = vmatprep.mubr.bf16.mxu0 0
    %5874 = vmatmul.mubr.bf16.gmra.mrb[0].mxu0 %v5375
    %v5875 = vpop.f32.mrb[0].mxu0
    %v5876 = vadd.f32 %v5415, %v5875
    %v5877 = vpop.f32.mrb[0].mxu0
    %v5878 = vpop.f32.mrb[0].mxu0
    %v5879 = vadd.f32 %v5415, %v5878
    %v5880 = vpop.f32.mrb[0].mxu0
    %5881 = vmatprep.mubr.bf16.mxu0 0
    %5882 = vmatmul.mubr.bf16.gmra.mrb[0].mxu0 %v5376
    %v5883 = vpop.f32.mrb[0].mxu0
    %v5884 = vadd.f32 %v5415, %v5883
    %v5885 = vpop.f32.mrb[0].mxu0
    %v5886 = vpop.f32.mrb[0].mxu0
    %v5887 = vadd.f32 %v5415, %v5886
    %v5888 = vpop.f32.mrb[0].mxu0
    %5889 = vmatprep.mubr.bf16.mxu0 0
    %5890 = vmatmul.mubr.bf16.gmra.mrb[0].mxu0 %v5377
    %v5891 = vpop.f32.mrb[0].mxu0
    %v5892 = vadd.f32 %v5415, %v5891
    %v5893 = vpop.f32.mrb[0].mxu0
    %v5894 = vpop.f32.mrb[0].mxu0
    %v5895 = vadd.f32 %v5415, %v5894
    %v5896 = vpop.f32.mrb[0].mxu0
    %5897 = vmatprep.mubr.bf16.mxu0 0
    %5898 = vmatmul.mubr.bf16.gmra.mrb[0].mxu0 %v5378
    %v5899 = vpop.f32.mrb[0].mxu0
    %v5900 = vadd.f32 %v5415, %v5899
    %v5901 = vpop.f32.mrb[0].mxu0
    %v5902 = vpop.f32.mrb[0].mxu0
    %v5903 = vadd.f32 %v5415, %v5902
    %v5904 = vpop.f32.mrb[0].mxu0
    %5905 = vmatprep.mubr.bf16.mxu0 0
    %5906 = vmatmul.mubr.bf16.gmra.mrb[0].mxu0 %v5379
    %v5907 = vpop.f32.mrb[0].mxu0
    %v5908 = vadd.f32 %v5415, %v5907
    %v5909 = vpop.f32.mrb[0].mxu0
    %v5910 = vpop.f32.mrb[0].mxu0
    %v5911 = vadd.f32 %v5415, %v5910
    %v5912 = vpop.f32.mrb[0].mxu0
    %5913 = vmatprep.mubr.bf16.mxu0 0
    %5914 = vmatmul.mubr.bf16.gmra.mrb[0].mxu0 %v5380
    %v5915 = vpop.f32.mrb[0].mxu0
    %v5916 = vadd.f32 %v5415, %v5915
    %v5917 = vpop.f32.mrb[0].mxu0
    %v5918 = vpop.f32.mrb[0].mxu0
    %v5919 = vadd.f32 %v5415, %v5918
    %v5920 = vpop.f32.mrb[0].mxu0
    %5921 = vmatprep.mubr.bf16.mxu0 0
    %5922 = vmatmul.mubr.bf16.gmra.mrb[0].mxu0 %v5381
    %v5923 = vpop.f32.mrb[0].mxu0
    %v5924 = vadd.f32 %v5415, %v5923
    %v5925 = vpop.f32.mrb[0].mxu0
    %v5926 = vpop.f32.mrb[0].mxu0
    %v5927 = vadd.f32 %v5415, %v5926
    %v5928 = vpop.f32.mrb[0].mxu0
    %5929 = vmatprep.mubr.bf16.mxu0 0
    %5930 = vmatmul.mubr.bf16.gmra.mrb[0].mxu0 %v5382
    %v5931 = vpop.f32.mrb[0].mxu0
    %v5932 = vadd.f32 %v5415, %v5931
    %v5933 = vpop.f32.mrb[0].mxu0
    %v5934 = vpop.f32.mrb[0].mxu0
    %v5935 = vadd.f32 %v5415, %v5934
    %v5936 = vpop.f32.mrb[0].mxu0
    %5937 = vmatprep.mubr.bf16.mxu0 0
    %5938 = vmatmul.mubr.bf16.gmra.mrb[0].mxu0 %v5383
    %v5939 = vpop.f32.mrb[0].mxu0
    %v5940 = vadd.f32 %v5415, %v5939
    %v5941 = vpop.f32.mrb[0].mxu0
    %v5942 = vpop.f32.mrb[0].mxu0
    %v5943 = vadd.f32 %v5415, %v5942
    %v5944 = vpop.f32.mrb[0].mxu0
    %5945 = vmatprep.mubr.bf16.mxu0 0
    %5946 = vmatmul.mubr.bf16.gmra.mrb[0].mxu0 %v5384
    %v5947 = vpop.f32.mrb[0].mxu0
    %v5948 = vadd.f32 %v5415, %v5947
    %v5949 = vpop.f32.mrb[0].mxu0
    %v5950 = vpop.f32.mrb[0].mxu0
    %v5951 = vadd.f32 %v5415, %v5950
    %v5952 = vpop.f32.mrb[0].mxu0
    %5953 = vmatprep.mubr.bf16.mxu0 0
    %5954 = vmatmul.mubr.bf16.gmra.mrb[0].mxu0 %v5385
    %v5955 = vpop.f32.mrb[0].mxu0
    %v5956 = vadd.f32 %v5415, %v5955
    %v5957 = vpop.f32.mrb[0].mxu0
    %v5958 = vpop.f32.mrb[0].mxu0
    %v5959 = vadd.f32 %v5415, %v5958
    %v5960 = vpop.f32.mrb[0].mxu0
    %5961 = vmatprep.mubr.bf16.mxu0 0
    %5962 = vmatmul.mubr.bf16.gmra.mrb[0].mxu0 %v5386
    %v5963 = vpop.f32.mrb[0].mxu0
    %v5964 = vadd.f32 %v5415, %v5963
    %v5965 = vpop.f32.mrb[0].mxu0
    %v5966 = vpop.f32.mrb[0].mxu0
    %v5967 = vadd.f32 %v5415, %v5966
    %v5968 = vpop.f32.mrb[0].mxu0
    %5969 = vmatprep.mubr.bf16.mxu0 0
    %5970 = vmatmul.mubr.bf16.gmra.mrb[0].mxu0 %v5387
    %v5971 = vpop.f32.mrb[0].mxu0
    %v5972 = vadd.f32 %v5415, %v5971
    %v5973 = vpop.f32.mrb[0].mxu0
    %v5974 = vpop.f32.mrb[0].mxu0
    %v5975 = vadd.f32 %v5415, %v5974
    %v5976 = vpop.f32.mrb[0].mxu0
    %5977 = vmatprep.mubr.bf16.mxu0 0
    %5978 = vmatmul.mubr.bf16.gmra.mrb[0].mxu0 %v5388
    %v5979 = vpop.f32.mrb[0].mxu0
    %v5980 = vadd.f32 %v5415, %v5979
    %v5981 = vpop.f32.mrb[0].mxu0
    %v5982 = vpop.f32.mrb[0].mxu0
    %v5983 = vadd.f32 %v5415, %v5982
    %v5984 = vpop.f32.mrb[0].mxu0
    %5985 = vmatprep.mubr.bf16.mxu0 0
    %5986 = vmatmul.mubr.bf16.gmra.mrb[0].mxu0 %v5389
    %v5987 = vpop.f32.mrb[0].mxu0
    %v5988 = vadd.f32 %v5415, %v5987
    %v5989 = vpop.f32.mrb[0].mxu0
    %v5990 = vpop.f32.mrb[0].mxu0
    %v5991 = vadd.f32 %v5415, %v5990
    %v5992 = vpop.f32.mrb[0].mxu0
    %5993 = vmatprep.mubr.bf16.mxu0 0
    %5994 = vmatmul.mubr.bf16.gmra.mrb[0].mxu0 %v5390
    %v5995 = vpop.f32.mrb[0].mxu0
    %v5996 = vadd.f32 %v5415, %v5995
    %v5997 = vpop.f32.mrb[0].mxu0
    %v5998 = vpop.f32.mrb[0].mxu0
    %v5999 = vadd.f32 %v5415, %v5998
    %v6000 = vpop.f32.mrb[0].mxu0
    %6001 = vmatprep.mubr.bf16.mxu0 0
    %6002 = vmatmul.mubr.bf16.gmra.mrb[0].mxu0 %v5391
    %v6003 = vpop.f32.mrb[0].mxu0
    %v6004 = vadd.f32 %v5415, %v6003
    %v6005 = vpop.f32.mrb[0].mxu0
    %v6006 = vpop.f32.mrb[0].mxu0
    %v6007 = vadd.f32 %v5415, %v6006
    %v6008 = vpop.f32.mrb[0].mxu0
    %6009 = vdwg.mxu0
    %v6010 = vmax.f32 %v5500, 0.0
    %v6011 = vmax.f32 %v5503, 0.0
    %v6012 = vmax.f32 %v5508, 0.0
    %v6013 = vmax.f32 %v5511, 0.0
    %v6014 = vmax.f32 %v5516, 0.0
    %v6015 = vmax.f32 %v5519, 0.0
    %v6016 = vmax.f32 %v5524, 0.0
    %v6017 = vmax.f32 %v5527, 0.0
    %v6018 = vmax.f32 %v5532, 0.0
    %v6019 = vmax.f32 %v5535, 0.0
    %v6020 = vmax.f32 %v5540, 0.0
    %v6021 = vmax.f32 %v5543, 0.0
    %v6022 = vmax.f32 %v5548, 0.0
    %v6023 = vmax.f32 %v5551, 0.0
    %v6024 = vmax.f32 %v5556, 0.0
    %v6025 = vmax.f32 %v5559, 0.0
    %v6026 = vmax.f32 %v5564, 0.0
    %v6027 = vmax.f32 %v5567, 0.0
    %v6028 = vmax.f32 %v5572, 0.0
    %v6029 = vmax.f32 %v5575, 0.0
    %v6030 = vmax.f32 %v5580, 0.0
    %v6031 = vmax.f32 %v5583, 0.0
    %v6032 = vmax.f32 %v5588, 0.0
    %v6033 = vmax.f32 %v5591, 0.0
    %v6034 = vmax.f32 %v5596, 0.0
    %v6035 = vmax.f32 %v5599, 0.0
    %v6036 = vmax.f32 %v5604, 0.0
    %v6037 = vmax.f32 %v5607, 0.0
    %v6038 = vmax.f32 %v5612, 0.0
    %v6039 = vmax.f32 %v5615, 0.0
    %v6040 = vmax.f32 %v5620, 0.0
    %v6041 = vmax.f32 %v5623, 0.0
    %v6042 = vmax.f32 %v5628, 0.0
    %v6043 = vmax.f32 %v5631, 0.0
    %v6044 = vmax.f32 %v5636, 0.0
    %v6045 = vmax.f32 %v5639, 0.0
    %v6046 = vmax.f32 %v5644, 0.0
    %v6047 = vmax.f32 %v5647, 0.0
    %v6048 = vmax.f32 %v5652, 0.0
    %v6049 = vmax.f32 %v5655, 0.0
    %v6050 = vmax.f32 %v5660, 0.0
    %v6051 = vmax.f32 %v5663, 0.0
    %v6052 = vmax.f32 %v5668, 0.0
    %v6053 = vmax.f32 %v5671, 0.0
    %v6054 = vmax.f32 %v5676, 0.0
    %v6055 = vmax.f32 %v5679, 0.0
    %v6056 = vmax.f32 %v5684, 0.0
    %v6057 = vmax.f32 %v5687, 0.0
    %v6058 = vmax.f32 %v5692, 0.0
    %v6059 = vmax.f32 %v5695, 0.0
    %v6060 = vmax.f32 %v5700, 0.0
    %v6061 = vmax.f32 %v5703, 0.0
    %v6062 = vmax.f32 %v5708, 0.0
    %v6063 = vmax.f32 %v5711, 0.0
    %v6064 = vmax.f32 %v5716, 0.0
    %v6065 = vmax.f32 %v5719, 0.0
    %v6066 = vmax.f32 %v5724, 0.0
    %v6067 = vmax.f32 %v5727, 0.0
    %v6068 = vmax.f32 %v5732, 0.0
    %v6069 = vmax.f32 %v5735, 0.0
    %v6070 = vmax.f32 %v5740, 0.0
    %v6071 = vmax.f32 %v5743, 0.0
    %v6072 = vmax.f32 %v5748, 0.0
    %v6073 = vmax.f32 %v5751, 0.0
    %v6074 = vmax.f32 %v5756, 0.0
    %v6075 = vmax.f32 %v5759, 0.0
    %v6076 = vmax.f32 %v5764, 0.0
    %v6077 = vmax.f32 %v5767, 0.0
    %v6078 = vmax.f32 %v5772, 0.0
    %v6079 = vmax.f32 %v5775, 0.0
    %v6080 = vmax.f32 %v5780, 0.0
    %v6081 = vmax.f32 %v5783, 0.0
    %v6082 = vmax.f32 %v5788, 0.0
    %v6083 = vmax.f32 %v5791, 0.0
    %v6084 = vmax.f32 %v5796, 0.0
    %v6085 = vmax.f32 %v5799, 0.0
    %v6086 = vmax.f32 %v5804, 0.0
    %v6087 = vmax.f32 %v5807, 0.0
    %v6088 = vmax.f32 %v5812, 0.0
    %v6089 = vmax.f32 %v5815, 0.0
    %v6090 = vmax.f32 %v5820, 0.0
    %v6091 = vmax.f32 %v5823, 0.0
    %v6092 = vmax.f32 %v5828, 0.0
    %v6093 = vmax.f32 %v5831, 0.0
    %v6094 = vmax.f32 %v5836, 0.0
    %v6095 = vmax.f32 %v5839, 0.0
    %v6096 = vmax.f32 %v5844, 0.0
    %v6097 = vmax.f32 %v5847, 0.0
    %v6098 = vmax.f32 %v5852, 0.0
    %v6099 = vmax.f32 %v5855, 0.0
    %v6100 = vmax.f32 %v5860, 0.0
    %v6101 = vmax.f32 %v5863, 0.0
    %v6102 = vmax.f32 %v5868, 0.0
    %v6103 = vmax.f32 %v5871, 0.0
    %v6104 = vmax.f32 %v5876, 0.0
    %v6105 = vmax.f32 %v5879, 0.0
    %v6106 = vmax.f32 %v5884, 0.0
    %v6107 = vmax.f32 %v5887, 0.0
    %v6108 = vmax.f32 %v5892, 0.0
    %v6109 = vmax.f32 %v5895, 0.0
    %v6110 = vmax.f32 %v5900, 0.0
    %v6111 = vmax.f32 %v5903, 0.0
    %v6112 = vmax.f32 %v5908, 0.0
    %v6113 = vmax.f32 %v5911, 0.0
    %v6114 = vmax.f32 %v5916, 0.0
    %v6115 = vmax.f32 %v5919, 0.0
    %v6116 = vmax.f32 %v5924, 0.0
    %v6117 = vmax.f32 %v5927, 0.0
    %v6118 = vmax.f32 %v5932, 0.0
    %v6119 = vmax.f32 %v5935, 0.0
    %v6120 = vmax.f32 %v5940, 0.0
    %v6121 = vmax.f32 %v5943, 0.0
    %v6122 = vmax.f32 %v5948, 0.0
    %v6123 = vmax.f32 %v5951, 0.0
    %v6124 = vmax.f32 %v5956, 0.0
    %v6125 = vmax.f32 %v5959, 0.0
    %v6126 = vmax.f32 %v5964, 0.0
    %v6127 = vmax.f32 %v5967, 0.0
    %v6128 = vmax.f32 %v5972, 0.0
    %v6129 = vmax.f32 %v5975, 0.0
    %v6130 = vmax.f32 %v5980, 0.0
    %v6131 = vmax.f32 %v5983, 0.0
    %v6132 = vmax.f32 %v5988, 0.0
    %v6133 = vmax.f32 %v5991, 0.0
    %v6134 = vmax.f32 %v5996, 0.0
    %v6135 = vmax.f32 %v5999, 0.0
    %v6136 = vmax.f32 %v6004, 0.0
    %v6137 = vmax.f32 %v6007, 0.0
    %v6138 = vpack.c.bf16 %v6011, %v6010
    %v6139 = vpack.c.bf16 %v6013, %v6012
    %v6140 = vpack.c.bf16 %v6015, %v6014
    %v6141 = vpack.c.bf16 %v6017, %v6016
    %v6142 = vpack.c.bf16 %v6019, %v6018
    %v6143 = vpack.c.bf16 %v6021, %v6020
    %v6144 = vpack.c.bf16 %v6023, %v6022
    %v6145 = vpack.c.bf16 %v6025, %v6024
    %v6146 = vpack.c.bf16 %v6027, %v6026
    %v6147 = vpack.c.bf16 %v6029, %v6028
    %v6148 = vpack.c.bf16 %v6031, %v6030
    %v6149 = vpack.c.bf16 %v6033, %v6032
    %v6150 = vpack.c.bf16 %v6035, %v6034
    %v6151 = vpack.c.bf16 %v6037, %v6036
    %v6152 = vpack.c.bf16 %v6039, %v6038
    %v6153 = vpack.c.bf16 %v6041, %v6040
    %v6154 = vpack.c.bf16 %v6043, %v6042
    %v6155 = vpack.c.bf16 %v6045, %v6044
    %v6156 = vpack.c.bf16 %v6047, %v6046
    %v6157 = vpack.c.bf16 %v6049, %v6048
    %v6158 = vpack.c.bf16 %v6051, %v6050
    %v6159 = vpack.c.bf16 %v6053, %v6052
    %v6160 = vpack.c.bf16 %v6055, %v6054
    %v6161 = vpack.c.bf16 %v6057, %v6056
    %v6162 = vpack.c.bf16 %v6059, %v6058
    %v6163 = vpack.c.bf16 %v6061, %v6060
    %v6164 = vpack.c.bf16 %v6063, %v6062
    %v6165 = vpack.c.bf16 %v6065, %v6064
    %v6166 = vpack.c.bf16 %v6067, %v6066
    %v6167 = vpack.c.bf16 %v6069, %v6068
    %v6168 = vpack.c.bf16 %v6071, %v6070
    %v6169 = vpack.c.bf16 %v6073, %v6072
    %v6170 = vpack.c.bf16 %v6075, %v6074
    %v6171 = vpack.c.bf16 %v6077, %v6076
    %v6172 = vpack.c.bf16 %v6079, %v6078
    %v6173 = vpack.c.bf16 %v6081, %v6080
    %v6174 = vpack.c.bf16 %v6083, %v6082
    %v6175 = vpack.c.bf16 %v6085, %v6084
    %v6176 = vpack.c.bf16 %v6087, %v6086
    %v6177 = vpack.c.bf16 %v6089, %v6088
    %v6178 = vpack.c.bf16 %v6091, %v6090
    %v6179 = vpack.c.bf16 %v6093, %v6092
    %v6180 = vpack.c.bf16 %v6095, %v6094
    %v6181 = vpack.c.bf16 %v6097, %v6096
    %v6182 = vpack.c.bf16 %v6099, %v6098
    %v6183 = vpack.c.bf16 %v6101, %v6100
    %v6184 = vpack.c.bf16 %v6103, %v6102
    %v6185 = vpack.c.bf16 %v6105, %v6104
    %v6186 = vpack.c.bf16 %v6107, %v6106
    %v6187 = vpack.c.bf16 %v6109, %v6108
    %v6188 = vpack.c.bf16 %v6111, %v6110
    %v6189 = vpack.c.bf16 %v6113, %v6112
    %v6190 = vpack.c.bf16 %v6115, %v6114
    %v6191 = vpack.c.bf16 %v6117, %v6116
    %v6192 = vpack.c.bf16 %v6119, %v6118
    %v6193 = vpack.c.bf16 %v6121, %v6120
    %v6194 = vpack.c.bf16 %v6123, %v6122
    %v6195 = vpack.c.bf16 %v6125, %v6124
    %v6196 = vpack.c.bf16 %v6127, %v6126
    %v6197 = vpack.c.bf16 %v6129, %v6128
    %v6198 = vpack.c.bf16 %v6131, %v6130
    %v6199 = vpack.c.bf16 %v6133, %v6132
    %v6200 = vpack.c.bf16 %v6135, %v6134
    %v6201 = vpack.c.bf16 %v6137, %v6136
    %s6202 = scalar_lea.vmem %s5, 320
    %v6203 = vld [vmem:[%s6202] sm:$0xf]
    %v6204 = vld [vmem:[%s6202 + $0x4] sm:$0xf]
    %v6205 = vld [vmem:[%s6202 + $0x8] sm:$0xf]
    %v6206 = vld [vmem:[%s6202 + $0xc] sm:$0xf]
    %v6207 = vld [vmem:[%s6202 + $0x10] sm:$0xf]
    %v6208 = vld [vmem:[%s6202 + $0x14] sm:$0xf]
    %v6209 = vld [vmem:[%s6202 + $0x18] sm:$0xf]
    %v6210 = vld [vmem:[%s6202 + $0x1c] sm:$0xf]
    %v6211 = vld [vmem:[%s6202 + $0x20] sm:$0xf]
    %v6212 = vld [vmem:[%s6202 + $0x24] sm:$0xf]
    %v6213 = vld [vmem:[%s6202 + $0x28] sm:$0xf]
    %v6214 = vld [vmem:[%s6202 + $0x2c] sm:$0xf]
    %v6215 = vld [vmem:[%s6202 + $0x30] sm:$0xf]
    %v6216 = vld [vmem:[%s6202 + $0x34] sm:$0xf]
    %v6217 = vld [vmem:[%s6202 + $0x38] sm:$0xf]
    %v6218 = vld [vmem:[%s6202 + $0x3c] sm:$0xf]
    %s6219 = scalar_lea.vmem %s6, 5
    %v6220 = vld [vmem:[%s6219] sm:$0x1]
    %v6222 = vlaneseq
    %v6223 = vshrl.u32 %v6222, 7
    %v6224 = vsub.s32 0, %v6223
    %v6225 = vrot.slane %v6220, %v6224
    %v6243 = vunpack.c.l.b16 %v6203
    %v6244 = vunpack.c.l.b16 %v6204
    %v6245 = vunpack.c.l.b16 %v6205
    %v6246 = vunpack.c.l.b16 %v6206
    %v6247 = vunpack.c.l.b16 %v6207
    %v6248 = vunpack.c.l.b16 %v6208
    %v6249 = vunpack.c.l.b16 %v6209
    %v6250 = vunpack.c.l.b16 %v6210
    %v6251 = vunpack.c.l.b16 %v6211
    %v6252 = vunpack.c.l.b16 %v6212
    %v6253 = vunpack.c.l.b16 %v6213
    %v6254 = vunpack.c.l.b16 %v6214
    %v6255 = vunpack.c.l.b16 %v6215
    %v6256 = vunpack.c.l.b16 %v6216
    %v6257 = vunpack.c.l.b16 %v6217
    %v6258 = vunpack.c.l.b16 %v6218
    %v6259 = vpack.c.b16 %v6244, %v6243
    %v6260 = vpack.c.b16 %v6246, %v6245
    %v6261 = vpack.c.b16 %v6248, %v6247
    %v6262 = vpack.c.b16 %v6250, %v6249
    %v6263 = vpack.c.b16 %v6252, %v6251
    %v6264 = vpack.c.b16 %v6254, %v6253
    %v6265 = vpack.c.b16 %v6256, %v6255
    %v6266 = vpack.c.b16 %v6258, %v6257
    %6275 = vmatprep.subr.bf16.mxu0 0
    %6276 = vmatpush1.bf16.msra.mxu0 %v6259
    %6277 = vmatprep.subr.bf16.mxu0 0
    %6278 = vmatpush1.bf16.msra.mxu0 %v6260
    %6279 = vmatprep.subr.bf16.mxu0 0
    %6280 = vmatpush1.bf16.msra.mxu0 %v6261
    %6281 = vmatprep.subr.bf16.mxu0 0
    %6282 = vmatpush1.bf16.msra.mxu0 %v6262
    %6283 = vmatprep.subr.bf16.mxu0 0
    %6284 = vmatpush1.bf16.msra.mxu0 %v6263
    %6285 = vmatprep.subr.bf16.mxu0 0
    %6286 = vmatpush1.bf16.msra.mxu0 %v6264
    %6287 = vmatprep.subr.bf16.mxu0 0
    %6288 = vmatpush1.bf16.msra.mxu0 %v6265
    %6289 = vmatprep.subr.bf16.mxu0 0
    %6290 = vmatpush1.bf16.msra.mxu0 %v6266
    %6291 = vmatprep.subr.bf16.mxu0 0
    %6292 = vmatpush1.bf16.msra.mxu0 0
    %6293 = vmatprep.subr.bf16.mxu0 0
    %6294 = vmatpush1.bf16.msra.mxu0 0
    %6295 = vmatprep.subr.bf16.mxu0 0
    %6296 = vmatpush1.bf16.msra.mxu0 0
    %6297 = vmatprep.subr.bf16.mxu0 0
    %6298 = vmatpush1.bf16.msra.mxu0 0
    %6299 = vmatprep.subr.bf16.mxu0 0
    %6300 = vmatpush1.bf16.msra.mxu0 0
    %6301 = vmatprep.subr.bf16.mxu0 0
    %6302 = vmatpush1.bf16.msra.mxu0 0
    %6303 = vmatprep.subr.bf16.mxu0 0
    %6304 = vmatpush1.bf16.msra.mxu0 0
    %6305 = vmatprep.subr.bf16.mxu0 0
    %6306 = vmatpush1.bf16.msra.mxu0 0
    %6307 = vmatprep.mubr.bf16.mxu0 0
    %6308 = vmatmul.mubr.bf16.gmra.mrb[0].mxu0 %v6138
    %v6309 = vpop.f32.mrb[0].mxu0
    %v6310 = vadd.f32 %v6225, %v6309
    %v6311 = vpop.f32.mrb[0].mxu0
    %v6312 = vpop.f32.mrb[0].mxu0
    %v6313 = vadd.f32 %v6225, %v6312
    %v6314 = vpop.f32.mrb[0].mxu0
    %6315 = vmatprep.mubr.bf16.mxu0 0
    %6316 = vmatmul.mubr.bf16.gmra.mrb[0].mxu0 %v6139
    %v6317 = vpop.f32.mrb[0].mxu0
    %v6318 = vadd.f32 %v6225, %v6317
    %v6319 = vpop.f32.mrb[0].mxu0
    %v6320 = vpop.f32.mrb[0].mxu0
    %v6321 = vadd.f32 %v6225, %v6320
    %v6322 = vpop.f32.mrb[0].mxu0
    %6323 = vmatprep.mubr.bf16.mxu0 0
    %6324 = vmatmul.mubr.bf16.gmra.mrb[0].mxu0 %v6140
    %v6325 = vpop.f32.mrb[0].mxu0
    %v6326 = vadd.f32 %v6225, %v6325
    %v6327 = vpop.f32.mrb[0].mxu0
    %v6328 = vpop.f32.mrb[0].mxu0
    %v6329 = vadd.f32 %v6225, %v6328
    %v6330 = vpop.f32.mrb[0].mxu0
    %6331 = vmatprep.mubr.bf16.mxu0 0
    %6332 = vmatmul.mubr.bf16.gmra.mrb[0].mxu0 %v6141
    %v6333 = vpop.f32.mrb[0].mxu0
    %v6334 = vadd.f32 %v6225, %v6333
    %v6335 = vpop.f32.mrb[0].mxu0
    %v6336 = vpop.f32.mrb[0].mxu0
    %v6337 = vadd.f32 %v6225, %v6336
    %v6338 = vpop.f32.mrb[0].mxu0
    %6339 = vmatprep.mubr.bf16.mxu0 0
    %6340 = vmatmul.mubr.bf16.gmra.mrb[0].mxu0 %v6142
    %v6341 = vpop.f32.mrb[0].mxu0
    %v6342 = vadd.f32 %v6225, %v6341
    %v6343 = vpop.f32.mrb[0].mxu0
    %v6344 = vpop.f32.mrb[0].mxu0
    %v6345 = vadd.f32 %v6225, %v6344
    %v6346 = vpop.f32.mrb[0].mxu0
    %6347 = vmatprep.mubr.bf16.mxu0 0
    %6348 = vmatmul.mubr.bf16.gmra.mrb[0].mxu0 %v6143
    %v6349 = vpop.f32.mrb[0].mxu0
    %v6350 = vadd.f32 %v6225, %v6349
    %v6351 = vpop.f32.mrb[0].mxu0
    %v6352 = vpop.f32.mrb[0].mxu0
    %v6353 = vadd.f32 %v6225, %v6352
    %v6354 = vpop.f32.mrb[0].mxu0
    %6355 = vmatprep.mubr.bf16.mxu0 0
    %6356 = vmatmul.mubr.bf16.gmra.mrb[0].mxu0 %v6144
    %v6357 = vpop.f32.mrb[0].mxu0
    %v6358 = vadd.f32 %v6225, %v6357
    %v6359 = vpop.f32.mrb[0].mxu0
    %v6360 = vpop.f32.mrb[0].mxu0
    %v6361 = vadd.f32 %v6225, %v6360
    %v6362 = vpop.f32.mrb[0].mxu0
    %6363 = vmatprep.mubr.bf16.mxu0 0
    %6364 = vmatmul.mubr.bf16.gmra.mrb[0].mxu0 %v6145
    %v6365 = vpop.f32.mrb[0].mxu0
    %v6366 = vadd.f32 %v6225, %v6365
    %v6367 = vpop.f32.mrb[0].mxu0
    %v6368 = vpop.f32.mrb[0].mxu0
    %v6369 = vadd.f32 %v6225, %v6368
    %v6370 = vpop.f32.mrb[0].mxu0
    %6371 = vmatprep.mubr.bf16.mxu0 0
    %6372 = vmatmul.mubr.bf16.gmra.mrb[0].mxu0 %v6146
    %v6373 = vpop.f32.mrb[0].mxu0
    %v6374 = vadd.f32 %v6225, %v6373
    %v6375 = vpop.f32.mrb[0].mxu0
    %v6376 = vpop.f32.mrb[0].mxu0
    %v6377 = vadd.f32 %v6225, %v6376
    %v6378 = vpop.f32.mrb[0].mxu0
    %6379 = vmatprep.mubr.bf16.mxu0 0
    %6380 = vmatmul.mubr.bf16.gmra.mrb[0].mxu0 %v6147
    %v6381 = vpop.f32.mrb[0].mxu0
    %v6382 = vadd.f32 %v6225, %v6381
    %v6383 = vpop.f32.mrb[0].mxu0
    %v6384 = vpop.f32.mrb[0].mxu0
    %v6385 = vadd.f32 %v6225, %v6384
    %v6386 = vpop.f32.mrb[0].mxu0
    %6387 = vmatprep.mubr.bf16.mxu0 0
    %6388 = vmatmul.mubr.bf16.gmra.mrb[0].mxu0 %v6148
    %v6389 = vpop.f32.mrb[0].mxu0
    %v6390 = vadd.f32 %v6225, %v6389
    %v6391 = vpop.f32.mrb[0].mxu0
    %v6392 = vpop.f32.mrb[0].mxu0
    %v6393 = vadd.f32 %v6225, %v6392
    %v6394 = vpop.f32.mrb[0].mxu0
    %6395 = vmatprep.mubr.bf16.mxu0 0
    %6396 = vmatmul.mubr.bf16.gmra.mrb[0].mxu0 %v6149
    %v6397 = vpop.f32.mrb[0].mxu0
    %v6398 = vadd.f32 %v6225, %v6397
    %v6399 = vpop.f32.mrb[0].mxu0
    %v6400 = vpop.f32.mrb[0].mxu0
    %v6401 = vadd.f32 %v6225, %v6400
    %v6402 = vpop.f32.mrb[0].mxu0
    %6403 = vmatprep.mubr.bf16.mxu0 0
    %6404 = vmatmul.mubr.bf16.gmra.mrb[0].mxu0 %v6150
    %v6405 = vpop.f32.mrb[0].mxu0
    %v6406 = vadd.f32 %v6225, %v6405
    %v6407 = vpop.f32.mrb[0].mxu0
    %v6408 = vpop.f32.mrb[0].mxu0
    %v6409 = vadd.f32 %v6225, %v6408
    %v6410 = vpop.f32.mrb[0].mxu0
    %6411 = vmatprep.mubr.bf16.mxu0 0
    %6412 = vmatmul.mubr.bf16.gmra.mrb[0].mxu0 %v6151
    %v6413 = vpop.f32.mrb[0].mxu0
    %v6414 = vadd.f32 %v6225, %v6413
    %v6415 = vpop.f32.mrb[0].mxu0
    %v6416 = vpop.f32.mrb[0].mxu0
    %v6417 = vadd.f32 %v6225, %v6416
    %v6418 = vpop.f32.mrb[0].mxu0
    %6419 = vmatprep.mubr.bf16.mxu0 0
    %6420 = vmatmul.mubr.bf16.gmra.mrb[0].mxu0 %v6152
    %v6421 = vpop.f32.mrb[0].mxu0
    %v6422 = vadd.f32 %v6225, %v6421
    %v6423 = vpop.f32.mrb[0].mxu0
    %v6424 = vpop.f32.mrb[0].mxu0
    %v6425 = vadd.f32 %v6225, %v6424
    %v6426 = vpop.f32.mrb[0].mxu0
    %6427 = vmatprep.mubr.bf16.mxu0 0
    %6428 = vmatmul.mubr.bf16.gmra.mrb[0].mxu0 %v6153
    %v6429 = vpop.f32.mrb[0].mxu0
    %v6430 = vadd.f32 %v6225, %v6429
    %v6431 = vpop.f32.mrb[0].mxu0
    %v6432 = vpop.f32.mrb[0].mxu0
    %v6433 = vadd.f32 %v6225, %v6432
    %v6434 = vpop.f32.mrb[0].mxu0
    %6435 = vmatprep.mubr.bf16.mxu0 0
    %6436 = vmatmul.mubr.bf16.gmra.mrb[0].mxu0 %v6154
    %v6437 = vpop.f32.mrb[0].mxu0
    %v6438 = vadd.f32 %v6225, %v6437
    %v6439 = vpop.f32.mrb[0].mxu0
    %v6440 = vpop.f32.mrb[0].mxu0
    %v6441 = vadd.f32 %v6225, %v6440
    %v6442 = vpop.f32.mrb[0].mxu0
    %6443 = vmatprep.mubr.bf16.mxu0 0
    %6444 = vmatmul.mubr.bf16.gmra.mrb[0].mxu0 %v6155
    %v6445 = vpop.f32.mrb[0].mxu0
    %v6446 = vadd.f32 %v6225, %v6445
    %v6447 = vpop.f32.mrb[0].mxu0
    %v6448 = vpop.f32.mrb[0].mxu0
    %v6449 = vadd.f32 %v6225, %v6448
    %v6450 = vpop.f32.mrb[0].mxu0
    %6451 = vmatprep.mubr.bf16.mxu0 0
    %6452 = vmatmul.mubr.bf16.gmra.mrb[0].mxu0 %v6156
    %v6453 = vpop.f32.mrb[0].mxu0
    %v6454 = vadd.f32 %v6225, %v6453
    %v6455 = vpop.f32.mrb[0].mxu0
    %v6456 = vpop.f32.mrb[0].mxu0
    %v6457 = vadd.f32 %v6225, %v6456
    %v6458 = vpop.f32.mrb[0].mxu0
    %6459 = vmatprep.mubr.bf16.mxu0 0
    %6460 = vmatmul.mubr.bf16.gmra.mrb[0].mxu0 %v6157
    %v6461 = vpop.f32.mrb[0].mxu0
    %v6462 = vadd.f32 %v6225, %v6461
    %v6463 = vpop.f32.mrb[0].mxu0
    %v6464 = vpop.f32.mrb[0].mxu0
    %v6465 = vadd.f32 %v6225, %v6464
    %v6466 = vpop.f32.mrb[0].mxu0
    %6467 = vmatprep.mubr.bf16.mxu0 0
    %6468 = vmatmul.mubr.bf16.gmra.mrb[0].mxu0 %v6158
    %v6469 = vpop.f32.mrb[0].mxu0
    %v6470 = vadd.f32 %v6225, %v6469
    %v6471 = vpop.f32.mrb[0].mxu0
    %v6472 = vpop.f32.mrb[0].mxu0
    %v6473 = vadd.f32 %v6225, %v6472
    %v6474 = vpop.f32.mrb[0].mxu0
    %6475 = vmatprep.mubr.bf16.mxu0 0
    %6476 = vmatmul.mubr.bf16.gmra.mrb[0].mxu0 %v6159
    %v6477 = vpop.f32.mrb[0].mxu0
    %v6478 = vadd.f32 %v6225, %v6477
    %v6479 = vpop.f32.mrb[0].mxu0
    %v6480 = vpop.f32.mrb[0].mxu0
    %v6481 = vadd.f32 %v6225, %v6480
    %v6482 = vpop.f32.mrb[0].mxu0
    %6483 = vmatprep.mubr.bf16.mxu0 0
    %6484 = vmatmul.mubr.bf16.gmra.mrb[0].mxu0 %v6160
    %v6485 = vpop.f32.mrb[0].mxu0
    %v6486 = vadd.f32 %v6225, %v6485
    %v6487 = vpop.f32.mrb[0].mxu0
    %v6488 = vpop.f32.mrb[0].mxu0
    %v6489 = vadd.f32 %v6225, %v6488
    %v6490 = vpop.f32.mrb[0].mxu0
    %6491 = vmatprep.mubr.bf16.mxu0 0
    %6492 = vmatmul.mubr.bf16.gmra.mrb[0].mxu0 %v6161
    %v6493 = vpop.f32.mrb[0].mxu0
    %v6494 = vadd.f32 %v6225, %v6493
    %v6495 = vpop.f32.mrb[0].mxu0
    %v6496 = vpop.f32.mrb[0].mxu0
    %v6497 = vadd.f32 %v6225, %v6496
    %v6498 = vpop.f32.mrb[0].mxu0
    %6499 = vmatprep.mubr.bf16.mxu0 0
    %6500 = vmatmul.mubr.bf16.gmra.mrb[0].mxu0 %v6162
    %v6501 = vpop.f32.mrb[0].mxu0
    %v6502 = vadd.f32 %v6225, %v6501
    %v6503 = vpop.f32.mrb[0].mxu0
    %v6504 = vpop.f32.mrb[0].mxu0
    %v6505 = vadd.f32 %v6225, %v6504
    %v6506 = vpop.f32.mrb[0].mxu0
    %6507 = vmatprep.mubr.bf16.mxu0 0
    %6508 = vmatmul.mubr.bf16.gmra.mrb[0].mxu0 %v6163
    %v6509 = vpop.f32.mrb[0].mxu0
    %v6510 = vadd.f32 %v6225, %v6509
    %v6511 = vpop.f32.mrb[0].mxu0
    %v6512 = vpop.f32.mrb[0].mxu0
    %v6513 = vadd.f32 %v6225, %v6512
    %v6514 = vpop.f32.mrb[0].mxu0
    %6515 = vmatprep.mubr.bf16.mxu0 0
    %6516 = vmatmul.mubr.bf16.gmra.mrb[0].mxu0 %v6164
    %v6517 = vpop.f32.mrb[0].mxu0
    %v6518 = vadd.f32 %v6225, %v6517
    %v6519 = vpop.f32.mrb[0].mxu0
    %v6520 = vpop.f32.mrb[0].mxu0
    %v6521 = vadd.f32 %v6225, %v6520
    %v6522 = vpop.f32.mrb[0].mxu0
    %6523 = vmatprep.mubr.bf16.mxu0 0
    %6524 = vmatmul.mubr.bf16.gmra.mrb[0].mxu0 %v6165
    %v6525 = vpop.f32.mrb[0].mxu0
    %v6526 = vadd.f32 %v6225, %v6525
    %v6527 = vpop.f32.mrb[0].mxu0
    %v6528 = vpop.f32.mrb[0].mxu0
    %v6529 = vadd.f32 %v6225, %v6528
    %v6530 = vpop.f32.mrb[0].mxu0
    %6531 = vmatprep.mubr.bf16.mxu0 0
    %6532 = vmatmul.mubr.bf16.gmra.mrb[0].mxu0 %v6166
    %v6533 = vpop.f32.mrb[0].mxu0
    %v6534 = vadd.f32 %v6225, %v6533
    %v6535 = vpop.f32.mrb[0].mxu0
    %v6536 = vpop.f32.mrb[0].mxu0
    %v6537 = vadd.f32 %v6225, %v6536
    %v6538 = vpop.f32.mrb[0].mxu0
    %6539 = vmatprep.mubr.bf16.mxu0 0
    %6540 = vmatmul.mubr.bf16.gmra.mrb[0].mxu0 %v6167
    %v6541 = vpop.f32.mrb[0].mxu0
    %v6542 = vadd.f32 %v6225, %v6541
    %v6543 = vpop.f32.mrb[0].mxu0
    %v6544 = vpop.f32.mrb[0].mxu0
    %v6545 = vadd.f32 %v6225, %v6544
    %v6546 = vpop.f32.mrb[0].mxu0
    %6547 = vmatprep.mubr.bf16.mxu0 0
    %6548 = vmatmul.mubr.bf16.gmra.mrb[0].mxu0 %v6168
    %v6549 = vpop.f32.mrb[0].mxu0
    %v6550 = vadd.f32 %v6225, %v6549
    %v6551 = vpop.f32.mrb[0].mxu0
    %v6552 = vpop.f32.mrb[0].mxu0
    %v6553 = vadd.f32 %v6225, %v6552
    %v6554 = vpop.f32.mrb[0].mxu0
    %6555 = vmatprep.mubr.bf16.mxu0 0
    %6556 = vmatmul.mubr.bf16.gmra.mrb[0].mxu0 %v6169
    %v6557 = vpop.f32.mrb[0].mxu0
    %v6558 = vadd.f32 %v6225, %v6557
    %v6559 = vpop.f32.mrb[0].mxu0
    %v6560 = vpop.f32.mrb[0].mxu0
    %v6561 = vadd.f32 %v6225, %v6560
    %v6562 = vpop.f32.mrb[0].mxu0
    %6563 = vmatprep.mubr.bf16.mxu0 0
    %6564 = vmatmul.mubr.bf16.gmra.mrb[0].mxu0 %v6170
    %v6565 = vpop.f32.mrb[0].mxu0
    %v6566 = vadd.f32 %v6225, %v6565
    %v6567 = vpop.f32.mrb[0].mxu0
    %v6568 = vpop.f32.mrb[0].mxu0
    %v6569 = vadd.f32 %v6225, %v6568
    %v6570 = vpop.f32.mrb[0].mxu0
    %6571 = vmatprep.mubr.bf16.mxu0 0
    %6572 = vmatmul.mubr.bf16.gmra.mrb[0].mxu0 %v6171
    %v6573 = vpop.f32.mrb[0].mxu0
    %v6574 = vadd.f32 %v6225, %v6573
    %v6575 = vpop.f32.mrb[0].mxu0
    %v6576 = vpop.f32.mrb[0].mxu0
    %v6577 = vadd.f32 %v6225, %v6576
    %v6578 = vpop.f32.mrb[0].mxu0
    %6579 = vmatprep.mubr.bf16.mxu0 0
    %6580 = vmatmul.mubr.bf16.gmra.mrb[0].mxu0 %v6172
    %v6581 = vpop.f32.mrb[0].mxu0
    %v6582 = vadd.f32 %v6225, %v6581
    %v6583 = vpop.f32.mrb[0].mxu0
    %v6584 = vpop.f32.mrb[0].mxu0
    %v6585 = vadd.f32 %v6225, %v6584
    %v6586 = vpop.f32.mrb[0].mxu0
    %6587 = vmatprep.mubr.bf16.mxu0 0
    %6588 = vmatmul.mubr.bf16.gmra.mrb[0].mxu0 %v6173
    %v6589 = vpop.f32.mrb[0].mxu0
    %v6590 = vadd.f32 %v6225, %v6589
    %v6591 = vpop.f32.mrb[0].mxu0
    %v6592 = vpop.f32.mrb[0].mxu0
    %v6593 = vadd.f32 %v6225, %v6592
    %v6594 = vpop.f32.mrb[0].mxu0
    %6595 = vmatprep.mubr.bf16.mxu0 0
    %6596 = vmatmul.mubr.bf16.gmra.mrb[0].mxu0 %v6174
    %v6597 = vpop.f32.mrb[0].mxu0
    %v6598 = vadd.f32 %v6225, %v6597
    %v6599 = vpop.f32.mrb[0].mxu0
    %v6600 = vpop.f32.mrb[0].mxu0
    %v6601 = vadd.f32 %v6225, %v6600
    %v6602 = vpop.f32.mrb[0].mxu0
    %6603 = vmatprep.mubr.bf16.mxu0 0
    %6604 = vmatmul.mubr.bf16.gmra.mrb[0].mxu0 %v6175
    %v6605 = vpop.f32.mrb[0].mxu0
    %v6606 = vadd.f32 %v6225, %v6605
    %v6607 = vpop.f32.mrb[0].mxu0
    %v6608 = vpop.f32.mrb[0].mxu0
    %v6609 = vadd.f32 %v6225, %v6608
    %v6610 = vpop.f32.mrb[0].mxu0
    %6611 = vmatprep.mubr.bf16.mxu0 0
    %6612 = vmatmul.mubr.bf16.gmra.mrb[0].mxu0 %v6176
    %v6613 = vpop.f32.mrb[0].mxu0
    %v6614 = vadd.f32 %v6225, %v6613
    %v6615 = vpop.f32.mrb[0].mxu0
    %v6616 = vpop.f32.mrb[0].mxu0
    %v6617 = vadd.f32 %v6225, %v6616
    %v6618 = vpop.f32.mrb[0].mxu0
    %6619 = vmatprep.mubr.bf16.mxu0 0
    %6620 = vmatmul.mubr.bf16.gmra.mrb[0].mxu0 %v6177
    %v6621 = vpop.f32.mrb[0].mxu0
    %v6622 = vadd.f32 %v6225, %v6621
    %v6623 = vpop.f32.mrb[0].mxu0
    %v6624 = vpop.f32.mrb[0].mxu0
    %v6625 = vadd.f32 %v6225, %v6624
    %v6626 = vpop.f32.mrb[0].mxu0
    %6627 = vmatprep.mubr.bf16.mxu0 0
    %6628 = vmatmul.mubr.bf16.gmra.mrb[0].mxu0 %v6178
    %v6629 = vpop.f32.mrb[0].mxu0
    %v6630 = vadd.f32 %v6225, %v6629
    %v6631 = vpop.f32.mrb[0].mxu0
    %v6632 = vpop.f32.mrb[0].mxu0
    %v6633 = vadd.f32 %v6225, %v6632
    %v6634 = vpop.f32.mrb[0].mxu0
    %6635 = vmatprep.mubr.bf16.mxu0 0
    %6636 = vmatmul.mubr.bf16.gmra.mrb[0].mxu0 %v6179
    %v6637 = vpop.f32.mrb[0].mxu0
    %v6638 = vadd.f32 %v6225, %v6637
    %v6639 = vpop.f32.mrb[0].mxu0
    %v6640 = vpop.f32.mrb[0].mxu0
    %v6641 = vadd.f32 %v6225, %v6640
    %v6642 = vpop.f32.mrb[0].mxu0
    %6643 = vmatprep.mubr.bf16.mxu0 0
    %6644 = vmatmul.mubr.bf16.gmra.mrb[0].mxu0 %v6180
    %v6645 = vpop.f32.mrb[0].mxu0
    %v6646 = vadd.f32 %v6225, %v6645
    %v6647 = vpop.f32.mrb[0].mxu0
    %v6648 = vpop.f32.mrb[0].mxu0
    %v6649 = vadd.f32 %v6225, %v6648
    %v6650 = vpop.f32.mrb[0].mxu0
    %6651 = vmatprep.mubr.bf16.mxu0 0
    %6652 = vmatmul.mubr.bf16.gmra.mrb[0].mxu0 %v6181
    %v6653 = vpop.f32.mrb[0].mxu0
    %v6654 = vadd.f32 %v6225, %v6653
    %v6655 = vpop.f32.mrb[0].mxu0
    %v6656 = vpop.f32.mrb[0].mxu0
    %v6657 = vadd.f32 %v6225, %v6656
    %v6658 = vpop.f32.mrb[0].mxu0
    %6659 = vmatprep.mubr.bf16.mxu0 0
    %6660 = vmatmul.mubr.bf16.gmra.mrb[0].mxu0 %v6182
    %v6661 = vpop.f32.mrb[0].mxu0
    %v6662 = vadd.f32 %v6225, %v6661
    %v6663 = vpop.f32.mrb[0].mxu0
    %v6664 = vpop.f32.mrb[0].mxu0
    %v6665 = vadd.f32 %v6225, %v6664
    %v6666 = vpop.f32.mrb[0].mxu0
    %6667 = vmatprep.mubr.bf16.mxu0 0
    %6668 = vmatmul.mubr.bf16.gmra.mrb[0].mxu0 %v6183
    %v6669 = vpop.f32.mrb[0].mxu0
    %v6670 = vadd.f32 %v6225, %v6669
    %v6671 = vpop.f32.mrb[0].mxu0
    %v6672 = vpop.f32.mrb[0].mxu0
    %v6673 = vadd.f32 %v6225, %v6672
    %v6674 = vpop.f32.mrb[0].mxu0
    %6675 = vmatprep.mubr.bf16.mxu0 0
    %6676 = vmatmul.mubr.bf16.gmra.mrb[0].mxu0 %v6184
    %v6677 = vpop.f32.mrb[0].mxu0
    %v6678 = vadd.f32 %v6225, %v6677
    %v6679 = vpop.f32.mrb[0].mxu0
    %v6680 = vpop.f32.mrb[0].mxu0
    %v6681 = vadd.f32 %v6225, %v6680
    %v6682 = vpop.f32.mrb[0].mxu0
    %6683 = vmatprep.mubr.bf16.mxu0 0
    %6684 = vmatmul.mubr.bf16.gmra.mrb[0].mxu0 %v6185
    %v6685 = vpop.f32.mrb[0].mxu0
    %v6686 = vadd.f32 %v6225, %v6685
    %v6687 = vpop.f32.mrb[0].mxu0
    %v6688 = vpop.f32.mrb[0].mxu0
    %v6689 = vadd.f32 %v6225, %v6688
    %v6690 = vpop.f32.mrb[0].mxu0
    %6691 = vmatprep.mubr.bf16.mxu0 0
    %6692 = vmatmul.mubr.bf16.gmra.mrb[0].mxu0 %v6186
    %v6693 = vpop.f32.mrb[0].mxu0
    %v6694 = vadd.f32 %v6225, %v6693
    %v6695 = vpop.f32.mrb[0].mxu0
    %v6696 = vpop.f32.mrb[0].mxu0
    %v6697 = vadd.f32 %v6225, %v6696
    %v6698 = vpop.f32.mrb[0].mxu0
    %6699 = vmatprep.mubr.bf16.mxu0 0
    %6700 = vmatmul.mubr.bf16.gmra.mrb[0].mxu0 %v6187
    %v6701 = vpop.f32.mrb[0].mxu0
    %v6702 = vadd.f32 %v6225, %v6701
    %v6703 = vpop.f32.mrb[0].mxu0
    %v6704 = vpop.f32.mrb[0].mxu0
    %v6705 = vadd.f32 %v6225, %v6704
    %v6706 = vpop.f32.mrb[0].mxu0
    %6707 = vmatprep.mubr.bf16.mxu0 0
    %6708 = vmatmul.mubr.bf16.gmra.mrb[0].mxu0 %v6188
    %v6709 = vpop.f32.mrb[0].mxu0
    %v6710 = vadd.f32 %v6225, %v6709
    %v6711 = vpop.f32.mrb[0].mxu0
    %v6712 = vpop.f32.mrb[0].mxu0
    %v6713 = vadd.f32 %v6225, %v6712
    %v6714 = vpop.f32.mrb[0].mxu0
    %6715 = vmatprep.mubr.bf16.mxu0 0
    %6716 = vmatmul.mubr.bf16.gmra.mrb[0].mxu0 %v6189
    %v6717 = vpop.f32.mrb[0].mxu0
    %v6718 = vadd.f32 %v6225, %v6717
    %v6719 = vpop.f32.mrb[0].mxu0
    %v6720 = vpop.f32.mrb[0].mxu0
    %v6721 = vadd.f32 %v6225, %v6720
    %v6722 = vpop.f32.mrb[0].mxu0
    %6723 = vmatprep.mubr.bf16.mxu0 0
    %6724 = vmatmul.mubr.bf16.gmra.mrb[0].mxu0 %v6190
    %v6725 = vpop.f32.mrb[0].mxu0
    %v6726 = vadd.f32 %v6225, %v6725
    %v6727 = vpop.f32.mrb[0].mxu0
    %v6728 = vpop.f32.mrb[0].mxu0
    %v6729 = vadd.f32 %v6225, %v6728
    %v6730 = vpop.f32.mrb[0].mxu0
    %6731 = vmatprep.mubr.bf16.mxu0 0
    %6732 = vmatmul.mubr.bf16.gmra.mrb[0].mxu0 %v6191
    %v6733 = vpop.f32.mrb[0].mxu0
    %v6734 = vadd.f32 %v6225, %v6733
    %v6735 = vpop.f32.mrb[0].mxu0
    %v6736 = vpop.f32.mrb[0].mxu0
    %v6737 = vadd.f32 %v6225, %v6736
    %v6738 = vpop.f32.mrb[0].mxu0
    %6739 = vmatprep.mubr.bf16.mxu0 0
    %6740 = vmatmul.mubr.bf16.gmra.mrb[0].mxu0 %v6192
    %v6741 = vpop.f32.mrb[0].mxu0
    %v6742 = vadd.f32 %v6225, %v6741
    %v6743 = vpop.f32.mrb[0].mxu0
    %v6744 = vpop.f32.mrb[0].mxu0
    %v6745 = vadd.f32 %v6225, %v6744
    %v6746 = vpop.f32.mrb[0].mxu0
    %6747 = vmatprep.mubr.bf16.mxu0 0
    %6748 = vmatmul.mubr.bf16.gmra.mrb[0].mxu0 %v6193
    %v6749 = vpop.f32.mrb[0].mxu0
    %v6750 = vadd.f32 %v6225, %v6749
    %v6751 = vpop.f32.mrb[0].mxu0
    %v6752 = vpop.f32.mrb[0].mxu0
    %v6753 = vadd.f32 %v6225, %v6752
    %v6754 = vpop.f32.mrb[0].mxu0
    %6755 = vmatprep.mubr.bf16.mxu0 0
    %6756 = vmatmul.mubr.bf16.gmra.mrb[0].mxu0 %v6194
    %v6757 = vpop.f32.mrb[0].mxu0
    %v6758 = vadd.f32 %v6225, %v6757
    %v6759 = vpop.f32.mrb[0].mxu0
    %v6760 = vpop.f32.mrb[0].mxu0
    %v6761 = vadd.f32 %v6225, %v6760
    %v6762 = vpop.f32.mrb[0].mxu0
    %6763 = vmatprep.mubr.bf16.mxu0 0
    %6764 = vmatmul.mubr.bf16.gmra.mrb[0].mxu0 %v6195
    %v6765 = vpop.f32.mrb[0].mxu0
    %v6766 = vadd.f32 %v6225, %v6765
    %v6767 = vpop.f32.mrb[0].mxu0
    %v6768 = vpop.f32.mrb[0].mxu0
    %v6769 = vadd.f32 %v6225, %v6768
    %v6770 = vpop.f32.mrb[0].mxu0
    %6771 = vmatprep.mubr.bf16.mxu0 0
    %6772 = vmatmul.mubr.bf16.gmra.mrb[0].mxu0 %v6196
    %v6773 = vpop.f32.mrb[0].mxu0
    %v6774 = vadd.f32 %v6225, %v6773
    %v6775 = vpop.f32.mrb[0].mxu0
    %v6776 = vpop.f32.mrb[0].mxu0
    %v6777 = vadd.f32 %v6225, %v6776
    %v6778 = vpop.f32.mrb[0].mxu0
    %6779 = vmatprep.mubr.bf16.mxu0 0
    %6780 = vmatmul.mubr.bf16.gmra.mrb[0].mxu0 %v6197
    %v6781 = vpop.f32.mrb[0].mxu0
    %v6782 = vadd.f32 %v6225, %v6781
    %v6783 = vpop.f32.mrb[0].mxu0
    %v6784 = vpop.f32.mrb[0].mxu0
    %v6785 = vadd.f32 %v6225, %v6784
    %v6786 = vpop.f32.mrb[0].mxu0
    %6787 = vmatprep.mubr.bf16.mxu0 0
    %6788 = vmatmul.mubr.bf16.gmra.mrb[0].mxu0 %v6198
    %v6789 = vpop.f32.mrb[0].mxu0
    %v6790 = vadd.f32 %v6225, %v6789
    %v6791 = vpop.f32.mrb[0].mxu0
    %v6792 = vpop.f32.mrb[0].mxu0
    %v6793 = vadd.f32 %v6225, %v6792
    %v6794 = vpop.f32.mrb[0].mxu0
    %6795 = vmatprep.mubr.bf16.mxu0 0
    %6796 = vmatmul.mubr.bf16.gmra.mrb[0].mxu0 %v6199
    %v6797 = vpop.f32.mrb[0].mxu0
    %v6798 = vadd.f32 %v6225, %v6797
    %v6799 = vpop.f32.mrb[0].mxu0
    %v6800 = vpop.f32.mrb[0].mxu0
    %v6801 = vadd.f32 %v6225, %v6800
    %v6802 = vpop.f32.mrb[0].mxu0
    %6803 = vmatprep.mubr.bf16.mxu0 0
    %6804 = vmatmul.mubr.bf16.gmra.mrb[0].mxu0 %v6200
    %v6805 = vpop.f32.mrb[0].mxu0
    %v6806 = vadd.f32 %v6225, %v6805
    %v6807 = vpop.f32.mrb[0].mxu0
    %v6808 = vpop.f32.mrb[0].mxu0
    %v6809 = vadd.f32 %v6225, %v6808
    %v6810 = vpop.f32.mrb[0].mxu0
    %6811 = vmatprep.mubr.bf16.mxu0 0
    %6812 = vmatmul.mubr.bf16.gmra.mrb[0].mxu0 %v6201
    %v6813 = vpop.f32.mrb[0].mxu0
    %v6814 = vadd.f32 %v6225, %v6813
    %v6815 = vpop.f32.mrb[0].mxu0
    %v6816 = vpop.f32.mrb[0].mxu0
    %v6817 = vadd.f32 %v6225, %v6816
    %v6818 = vpop.f32.mrb[0].mxu0
    %6819 = vdwg.mxu0
    %v6820 = vmax.f32 %v6310, 0.0
    %v6821 = vmax.f32 %v6313, 0.0
    %v6822 = vmax.f32 %v6318, 0.0
    %v6823 = vmax.f32 %v6321, 0.0
    %v6824 = vmax.f32 %v6326, 0.0
    %v6825 = vmax.f32 %v6329, 0.0
    %v6826 = vmax.f32 %v6334, 0.0
    %v6827 = vmax.f32 %v6337, 0.0
    %v6828 = vmax.f32 %v6342, 0.0
    %v6829 = vmax.f32 %v6345, 0.0
    %v6830 = vmax.f32 %v6350, 0.0
    %v6831 = vmax.f32 %v6353, 0.0
    %v6832 = vmax.f32 %v6358, 0.0
    %v6833 = vmax.f32 %v6361, 0.0
    %v6834 = vmax.f32 %v6366, 0.0
    %v6835 = vmax.f32 %v6369, 0.0
    %v6836 = vmax.f32 %v6374, 0.0
    %v6837 = vmax.f32 %v6377, 0.0
    %v6838 = vmax.f32 %v6382, 0.0
    %v6839 = vmax.f32 %v6385, 0.0
    %v6840 = vmax.f32 %v6390, 0.0
    %v6841 = vmax.f32 %v6393, 0.0
    %v6842 = vmax.f32 %v6398, 0.0
    %v6843 = vmax.f32 %v6401, 0.0
    %v6844 = vmax.f32 %v6406, 0.0
    %v6845 = vmax.f32 %v6409, 0.0
    %v6846 = vmax.f32 %v6414, 0.0
    %v6847 = vmax.f32 %v6417, 0.0
    %v6848 = vmax.f32 %v6422, 0.0
    %v6849 = vmax.f32 %v6425, 0.0
    %v6850 = vmax.f32 %v6430, 0.0
    %v6851 = vmax.f32 %v6433, 0.0
    %v6852 = vmax.f32 %v6438, 0.0
    %v6853 = vmax.f32 %v6441, 0.0
    %v6854 = vmax.f32 %v6446, 0.0
    %v6855 = vmax.f32 %v6449, 0.0
    %v6856 = vmax.f32 %v6454, 0.0
    %v6857 = vmax.f32 %v6457, 0.0
    %v6858 = vmax.f32 %v6462, 0.0
    %v6859 = vmax.f32 %v6465, 0.0
    %v6860 = vmax.f32 %v6470, 0.0
    %v6861 = vmax.f32 %v6473, 0.0
    %v6862 = vmax.f32 %v6478, 0.0
    %v6863 = vmax.f32 %v6481, 0.0
    %v6864 = vmax.f32 %v6486, 0.0
    %v6865 = vmax.f32 %v6489, 0.0
    %v6866 = vmax.f32 %v6494, 0.0
    %v6867 = vmax.f32 %v6497, 0.0
    %v6868 = vmax.f32 %v6502, 0.0
    %v6869 = vmax.f32 %v6505, 0.0
    %v6870 = vmax.f32 %v6510, 0.0
    %v6871 = vmax.f32 %v6513, 0.0
    %v6872 = vmax.f32 %v6518, 0.0
    %v6873 = vmax.f32 %v6521, 0.0
    %v6874 = vmax.f32 %v6526, 0.0
    %v6875 = vmax.f32 %v6529, 0.0
    %v6876 = vmax.f32 %v6534, 0.0
    %v6877 = vmax.f32 %v6537, 0.0
    %v6878 = vmax.f32 %v6542, 0.0
    %v6879 = vmax.f32 %v6545, 0.0
    %v6880 = vmax.f32 %v6550, 0.0
    %v6881 = vmax.f32 %v6553, 0.0
    %v6882 = vmax.f32 %v6558, 0.0
    %v6883 = vmax.f32 %v6561, 0.0
    %v6884 = vmax.f32 %v6566, 0.0
    %v6885 = vmax.f32 %v6569, 0.0
    %v6886 = vmax.f32 %v6574, 0.0
    %v6887 = vmax.f32 %v6577, 0.0
    %v6888 = vmax.f32 %v6582, 0.0
    %v6889 = vmax.f32 %v6585, 0.0
    %v6890 = vmax.f32 %v6590, 0.0
    %v6891 = vmax.f32 %v6593, 0.0
    %v6892 = vmax.f32 %v6598, 0.0
    %v6893 = vmax.f32 %v6601, 0.0
    %v6894 = vmax.f32 %v6606, 0.0
    %v6895 = vmax.f32 %v6609, 0.0
    %v6896 = vmax.f32 %v6614, 0.0
    %v6897 = vmax.f32 %v6617, 0.0
    %v6898 = vmax.f32 %v6622, 0.0
    %v6899 = vmax.f32 %v6625, 0.0
    %v6900 = vmax.f32 %v6630, 0.0
    %v6901 = vmax.f32 %v6633, 0.0
    %v6902 = vmax.f32 %v6638, 0.0
    %v6903 = vmax.f32 %v6641, 0.0
    %v6904 = vmax.f32 %v6646, 0.0
    %v6905 = vmax.f32 %v6649, 0.0
    %v6906 = vmax.f32 %v6654, 0.0
    %v6907 = vmax.f32 %v6657, 0.0
    %v6908 = vmax.f32 %v6662, 0.0
    %v6909 = vmax.f32 %v6665, 0.0
    %v6910 = vmax.f32 %v6670, 0.0
    %v6911 = vmax.f32 %v6673, 0.0
    %v6912 = vmax.f32 %v6678, 0.0
    %v6913 = vmax.f32 %v6681, 0.0
    %v6914 = vmax.f32 %v6686, 0.0
    %v6915 = vmax.f32 %v6689, 0.0
    %v6916 = vmax.f32 %v6694, 0.0
    %v6917 = vmax.f32 %v6697, 0.0
    %v6918 = vmax.f32 %v6702, 0.0
    %v6919 = vmax.f32 %v6705, 0.0
    %v6920 = vmax.f32 %v6710, 0.0
    %v6921 = vmax.f32 %v6713, 0.0
    %v6922 = vmax.f32 %v6718, 0.0
    %v6923 = vmax.f32 %v6721, 0.0
    %v6924 = vmax.f32 %v6726, 0.0
    %v6925 = vmax.f32 %v6729, 0.0
    %v6926 = vmax.f32 %v6734, 0.0
    %v6927 = vmax.f32 %v6737, 0.0
    %v6928 = vmax.f32 %v6742, 0.0
    %v6929 = vmax.f32 %v6745, 0.0
    %v6930 = vmax.f32 %v6750, 0.0
    %v6931 = vmax.f32 %v6753, 0.0
    %v6932 = vmax.f32 %v6758, 0.0
    %v6933 = vmax.f32 %v6761, 0.0
    %v6934 = vmax.f32 %v6766, 0.0
    %v6935 = vmax.f32 %v6769, 0.0
    %v6936 = vmax.f32 %v6774, 0.0
    %v6937 = vmax.f32 %v6777, 0.0
    %v6938 = vmax.f32 %v6782, 0.0
    %v6939 = vmax.f32 %v6785, 0.0
    %v6940 = vmax.f32 %v6790, 0.0
    %v6941 = vmax.f32 %v6793, 0.0
    %v6942 = vmax.f32 %v6798, 0.0
    %v6943 = vmax.f32 %v6801, 0.0
    %v6944 = vmax.f32 %v6806, 0.0
    %v6945 = vmax.f32 %v6809, 0.0
    %v6946 = vmax.f32 %v6814, 0.0
    %v6947 = vmax.f32 %v6817, 0.0
    %v6948 = vadd.f32 %v6820, %v6821
    %v6949 = vadd.f32 %v6948, %v6822
    %v6950 = vadd.f32 %v6949, %v6823
    %v6951 = vadd.f32 %v6950, %v6824
    %v6952 = vadd.f32 %v6951, %v6825
    %v6953 = vadd.f32 %v6952, %v6826
    %v6954 = vadd.f32 %v6953, %v6827
    %v6955 = vadd.f32 %v6954, %v6828
    %v6956 = vadd.f32 %v6955, %v6829
    %v6957 = vadd.f32 %v6956, %v6830
    %v6958 = vadd.f32 %v6957, %v6831
    %v6959 = vadd.f32 %v6958, %v6832
    %v6960 = vadd.f32 %v6959, %v6833
    %v6961 = vadd.f32 %v6960, %v6834
    %v6962 = vadd.f32 %v6961, %v6835
    %v6963 = vadd.f32 %v6962, %v6836
    %v6964 = vadd.f32 %v6963, %v6837
    %v6965 = vadd.f32 %v6964, %v6838
    %v6966 = vadd.f32 %v6965, %v6839
    %v6967 = vadd.f32 %v6966, %v6840
    %v6968 = vadd.f32 %v6967, %v6841
    %v6969 = vadd.f32 %v6968, %v6842
    %v6970 = vadd.f32 %v6969, %v6843
    %v6971 = vadd.f32 %v6970, %v6844
    %v6972 = vadd.f32 %v6971, %v6845
    %v6973 = vadd.f32 %v6972, %v6846
    %v6974 = vadd.f32 %v6973, %v6847
    %v6975 = vadd.f32 %v6974, %v6848
    %v6976 = vadd.f32 %v6975, %v6849
    %v6977 = vadd.f32 %v6976, %v6850
    %v6978 = vadd.f32 %v6977, %v6851
    %v6979 = vadd.f32 %v6978, %v6852
    %v6980 = vadd.f32 %v6979, %v6853
    %v6981 = vadd.f32 %v6980, %v6854
    %v6982 = vadd.f32 %v6981, %v6855
    %v6983 = vadd.f32 %v6982, %v6856
    %v6984 = vadd.f32 %v6983, %v6857
    %v6985 = vadd.f32 %v6984, %v6858
    %v6986 = vadd.f32 %v6985, %v6859
    %v6987 = vadd.f32 %v6986, %v6860
    %v6988 = vadd.f32 %v6987, %v6861
    %v6989 = vadd.f32 %v6988, %v6862
    %v6990 = vadd.f32 %v6989, %v6863
    %v6991 = vadd.f32 %v6990, %v6864
    %v6992 = vadd.f32 %v6991, %v6865
    %v6993 = vadd.f32 %v6992, %v6866
    %v6994 = vadd.f32 %v6993, %v6867
    %v6995 = vadd.f32 %v6994, %v6868
    %v6996 = vadd.f32 %v6995, %v6869
    %v6997 = vadd.f32 %v6996, %v6870
    %v6998 = vadd.f32 %v6997, %v6871
    %v6999 = vadd.f32 %v6998, %v6872
    %v7000 = vadd.f32 %v6999, %v6873
    %v7001 = vadd.f32 %v7000, %v6874
    %v7002 = vadd.f32 %v7001, %v6875
    %v7003 = vadd.f32 %v7002, %v6876
    %v7004 = vadd.f32 %v7003, %v6877
    %v7005 = vadd.f32 %v7004, %v6878
    %v7006 = vadd.f32 %v7005, %v6879
    %v7007 = vadd.f32 %v7006, %v6880
    %v7008 = vadd.f32 %v7007, %v6881
    %v7009 = vadd.f32 %v7008, %v6882
    %v7010 = vadd.f32 %v7009, %v6883
    %v7011 = vadd.f32 %v7010, %v6884
    %v7012 = vadd.f32 %v7011, %v6885
    %v7013 = vadd.f32 %v7012, %v6886
    %v7014 = vadd.f32 %v7013, %v6887
    %v7015 = vadd.f32 %v7014, %v6888
    %v7016 = vadd.f32 %v7015, %v6889
    %v7017 = vadd.f32 %v7016, %v6890
    %v7018 = vadd.f32 %v7017, %v6891
    %v7019 = vadd.f32 %v7018, %v6892
    %v7020 = vadd.f32 %v7019, %v6893
    %v7021 = vadd.f32 %v7020, %v6894
    %v7022 = vadd.f32 %v7021, %v6895
    %v7023 = vadd.f32 %v7022, %v6896
    %v7024 = vadd.f32 %v7023, %v6897
    %v7025 = vadd.f32 %v7024, %v6898
    %v7026 = vadd.f32 %v7025, %v6899
    %v7027 = vadd.f32 %v7026, %v6900
    %v7028 = vadd.f32 %v7027, %v6901
    %v7029 = vadd.f32 %v7028, %v6902
    %v7030 = vadd.f32 %v7029, %v6903
    %v7031 = vadd.f32 %v7030, %v6904
    %v7032 = vadd.f32 %v7031, %v6905
    %v7033 = vadd.f32 %v7032, %v6906
    %v7034 = vadd.f32 %v7033, %v6907
    %v7035 = vadd.f32 %v7034, %v6908
    %v7036 = vadd.f32 %v7035, %v6909
    %v7037 = vadd.f32 %v7036, %v6910
    %v7038 = vadd.f32 %v7037, %v6911
    %v7039 = vadd.f32 %v7038, %v6912
    %v7040 = vadd.f32 %v7039, %v6913
    %v7041 = vadd.f32 %v7040, %v6914
    %v7042 = vadd.f32 %v7041, %v6915
    %v7043 = vadd.f32 %v7042, %v6916
    %v7044 = vadd.f32 %v7043, %v6917
    %v7045 = vadd.f32 %v7044, %v6918
    %v7046 = vadd.f32 %v7045, %v6919
    %v7047 = vadd.f32 %v7046, %v6920
    %v7048 = vadd.f32 %v7047, %v6921
    %v7049 = vadd.f32 %v7048, %v6922
    %v7050 = vadd.f32 %v7049, %v6923
    %v7051 = vadd.f32 %v7050, %v6924
    %v7052 = vadd.f32 %v7051, %v6925
    %v7053 = vadd.f32 %v7052, %v6926
    %v7054 = vadd.f32 %v7053, %v6927
    %v7055 = vadd.f32 %v7054, %v6928
    %v7056 = vadd.f32 %v7055, %v6929
    %v7057 = vadd.f32 %v7056, %v6930
    %v7058 = vadd.f32 %v7057, %v6931
    %v7059 = vadd.f32 %v7058, %v6932
    %v7060 = vadd.f32 %v7059, %v6933
    %v7061 = vadd.f32 %v7060, %v6934
    %v7062 = vadd.f32 %v7061, %v6935
    %v7063 = vadd.f32 %v7062, %v6936
    %v7064 = vadd.f32 %v7063, %v6937
    %v7065 = vadd.f32 %v7064, %v6938
    %v7066 = vadd.f32 %v7065, %v6939
    %v7067 = vadd.f32 %v7066, %v6940
    %v7068 = vadd.f32 %v7067, %v6941
    %v7069 = vadd.f32 %v7068, %v6942
    %v7070 = vadd.f32 %v7069, %v6943
    %v7071 = vadd.f32 %v7070, %v6944
    %v7072 = vadd.f32 %v7071, %v6945
    %v7073 = vadd.f32 %v7072, %v6946
    %v7074 = vadd.f32 %v7073, %v6947
    %v7075 = vrot.slane %v7074, 4
    %v7076 = vadd.f32 %v7074, %v7075
    %v7077 = vrot.slane %v7076, 2
    %v7078 = vadd.f32 %v7076, %v7077
    %v7079 = vrot.slane %v7078, 1
    %v7080 = vadd.f32 %v7078, %v7079
    %v7081 = vmul.f32 %v6820, %v6820
    %v7082 = vmul.f32 %v6821, %v6821
    %v7083 = vmul.f32 %v6822, %v6822
    %v7084 = vmul.f32 %v6823, %v6823
    %v7085 = vmul.f32 %v6824, %v6824
    %v7086 = vmul.f32 %v6825, %v6825
    %v7087 = vmul.f32 %v6826, %v6826
    %v7088 = vmul.f32 %v6827, %v6827
    %v7089 = vmul.f32 %v6828, %v6828
    %v7090 = vmul.f32 %v6829, %v6829
    %v7091 = vmul.f32 %v6830, %v6830
    %v7092 = vmul.f32 %v6831, %v6831
    %v7093 = vmul.f32 %v6832, %v6832
    %v7094 = vmul.f32 %v6833, %v6833
    %v7095 = vmul.f32 %v6834, %v6834
    %v7096 = vmul.f32 %v6835, %v6835
    %v7097 = vmul.f32 %v6836, %v6836
    %v7098 = vmul.f32 %v6837, %v6837
    %v7099 = vmul.f32 %v6838, %v6838
    %v7100 = vmul.f32 %v6839, %v6839
    %v7101 = vmul.f32 %v6840, %v6840
    %v7102 = vmul.f32 %v6841, %v6841
    %v7103 = vmul.f32 %v6842, %v6842
    %v7104 = vmul.f32 %v6843, %v6843
    %v7105 = vmul.f32 %v6844, %v6844
    %v7106 = vmul.f32 %v6845, %v6845
    %v7107 = vmul.f32 %v6846, %v6846
    %v7108 = vmul.f32 %v6847, %v6847
    %v7109 = vmul.f32 %v6848, %v6848
    %v7110 = vmul.f32 %v6849, %v6849
    %v7111 = vmul.f32 %v6850, %v6850
    %v7112 = vmul.f32 %v6851, %v6851
    %v7113 = vmul.f32 %v6852, %v6852
    %v7114 = vmul.f32 %v6853, %v6853
    %v7115 = vmul.f32 %v6854, %v6854
    %v7116 = vmul.f32 %v6855, %v6855
    %v7117 = vmul.f32 %v6856, %v6856
    %v7118 = vmul.f32 %v6857, %v6857
    %v7119 = vmul.f32 %v6858, %v6858
    %v7120 = vmul.f32 %v6859, %v6859
    %v7121 = vmul.f32 %v6860, %v6860
    %v7122 = vmul.f32 %v6861, %v6861
    %v7123 = vmul.f32 %v6862, %v6862
    %v7124 = vmul.f32 %v6863, %v6863
    %v7125 = vmul.f32 %v6864, %v6864
    %v7126 = vmul.f32 %v6865, %v6865
    %v7127 = vmul.f32 %v6866, %v6866
    %v7128 = vmul.f32 %v6867, %v6867
    %v7129 = vmul.f32 %v6868, %v6868
    %v7130 = vmul.f32 %v6869, %v6869
    %v7131 = vmul.f32 %v6870, %v6870
    %v7132 = vmul.f32 %v6871, %v6871
    %v7133 = vmul.f32 %v6872, %v6872
    %v7134 = vmul.f32 %v6873, %v6873
    %v7135 = vmul.f32 %v6874, %v6874
    %v7136 = vmul.f32 %v6875, %v6875
    %v7137 = vmul.f32 %v6876, %v6876
    %v7138 = vmul.f32 %v6877, %v6877
    %v7139 = vmul.f32 %v6878, %v6878
    %v7140 = vmul.f32 %v6879, %v6879
    %v7141 = vmul.f32 %v6880, %v6880
    %v7142 = vmul.f32 %v6881, %v6881
    %v7143 = vmul.f32 %v6882, %v6882
    %v7144 = vmul.f32 %v6883, %v6883
    %v7145 = vmul.f32 %v6884, %v6884
    %v7146 = vmul.f32 %v6885, %v6885
    %v7147 = vmul.f32 %v6886, %v6886
    %v7148 = vmul.f32 %v6887, %v6887
    %v7149 = vmul.f32 %v6888, %v6888
    %v7150 = vmul.f32 %v6889, %v6889
    %v7151 = vmul.f32 %v6890, %v6890
    %v7152 = vmul.f32 %v6891, %v6891
    %v7153 = vmul.f32 %v6892, %v6892
    %v7154 = vmul.f32 %v6893, %v6893
    %v7155 = vmul.f32 %v6894, %v6894
    %v7156 = vmul.f32 %v6895, %v6895
    %v7157 = vmul.f32 %v6896, %v6896
    %v7158 = vmul.f32 %v6897, %v6897
    %v7159 = vmul.f32 %v6898, %v6898
    %v7160 = vmul.f32 %v6899, %v6899
    %v7161 = vmul.f32 %v6900, %v6900
    %v7162 = vmul.f32 %v6901, %v6901
    %v7163 = vmul.f32 %v6902, %v6902
    %v7164 = vmul.f32 %v6903, %v6903
    %v7165 = vmul.f32 %v6904, %v6904
    %v7166 = vmul.f32 %v6905, %v6905
    %v7167 = vmul.f32 %v6906, %v6906
    %v7168 = vmul.f32 %v6907, %v6907
    %v7169 = vmul.f32 %v6908, %v6908
    %v7170 = vmul.f32 %v6909, %v6909
    %v7171 = vmul.f32 %v6910, %v6910
    %v7172 = vmul.f32 %v6911, %v6911
    %v7173 = vmul.f32 %v6912, %v6912
    %v7174 = vmul.f32 %v6913, %v6913
    %v7175 = vmul.f32 %v6914, %v6914
    %v7176 = vmul.f32 %v6915, %v6915
    %v7177 = vmul.f32 %v6916, %v6916
    %v7178 = vmul.f32 %v6917, %v6917
    %v7179 = vmul.f32 %v6918, %v6918
    %v7180 = vmul.f32 %v6919, %v6919
    %v7181 = vmul.f32 %v6920, %v6920
    %v7182 = vmul.f32 %v6921, %v6921
    %v7183 = vmul.f32 %v6922, %v6922
    %v7184 = vmul.f32 %v6923, %v6923
    %v7185 = vmul.f32 %v6924, %v6924
    %v7186 = vmul.f32 %v6925, %v6925
    %v7187 = vmul.f32 %v6926, %v6926
    %v7188 = vmul.f32 %v6927, %v6927
    %v7189 = vmul.f32 %v6928, %v6928
    %v7190 = vmul.f32 %v6929, %v6929
    %v7191 = vmul.f32 %v6930, %v6930
    %v7192 = vmul.f32 %v6931, %v6931
    %v7193 = vmul.f32 %v6932, %v6932
    %v7194 = vmul.f32 %v6933, %v6933
    %v7195 = vmul.f32 %v6934, %v6934
    %v7196 = vmul.f32 %v6935, %v6935
    %v7197 = vmul.f32 %v6936, %v6936
    %v7198 = vmul.f32 %v6937, %v6937
    %v7199 = vmul.f32 %v6938, %v6938
    %v7200 = vmul.f32 %v6939, %v6939
    %v7201 = vmul.f32 %v6940, %v6940
    %v7202 = vmul.f32 %v6941, %v6941
    %v7203 = vmul.f32 %v6942, %v6942
    %v7204 = vmul.f32 %v6943, %v6943
    %v7205 = vmul.f32 %v6944, %v6944
    %v7206 = vmul.f32 %v6945, %v6945
    %v7207 = vmul.f32 %v6946, %v6946
    %v7208 = vmul.f32 %v6947, %v6947
    %v7209 = vadd.f32 %v7081, %v7082
    %v7210 = vadd.f32 %v7209, %v7083
    %v7211 = vadd.f32 %v7210, %v7084
    %v7212 = vadd.f32 %v7211, %v7085
    %v7213 = vadd.f32 %v7212, %v7086
    %v7214 = vadd.f32 %v7213, %v7087
    %v7215 = vadd.f32 %v7214, %v7088
    %v7216 = vadd.f32 %v7215, %v7089
    %v7217 = vadd.f32 %v7216, %v7090
    %v7218 = vadd.f32 %v7217, %v7091
    %v7219 = vadd.f32 %v7218, %v7092
    %v7220 = vadd.f32 %v7219, %v7093
    %v7221 = vadd.f32 %v7220, %v7094
    %v7222 = vadd.f32 %v7221, %v7095
    %v7223 = vadd.f32 %v7222, %v7096
    %v7224 = vadd.f32 %v7223, %v7097
    %v7225 = vadd.f32 %v7224, %v7098
    %v7226 = vadd.f32 %v7225, %v7099
    %v7227 = vadd.f32 %v7226, %v7100
    %v7228 = vadd.f32 %v7227, %v7101
    %v7229 = vadd.f32 %v7228, %v7102
    %v7230 = vadd.f32 %v7229, %v7103
    %v7231 = vadd.f32 %v7230, %v7104
    %v7232 = vadd.f32 %v7231, %v7105
    %v7233 = vadd.f32 %v7232, %v7106
    %v7234 = vadd.f32 %v7233, %v7107
    %v7235 = vadd.f32 %v7234, %v7108
    %v7236 = vadd.f32 %v7235, %v7109
    %v7237 = vadd.f32 %v7236, %v7110
    %v7238 = vadd.f32 %v7237, %v7111
    %v7239 = vadd.f32 %v7238, %v7112
    %v7240 = vadd.f32 %v7239, %v7113
    %v7241 = vadd.f32 %v7240, %v7114
    %v7242 = vadd.f32 %v7241, %v7115
    %v7243 = vadd.f32 %v7242, %v7116
    %v7244 = vadd.f32 %v7243, %v7117
    %v7245 = vadd.f32 %v7244, %v7118
    %v7246 = vadd.f32 %v7245, %v7119
    %v7247 = vadd.f32 %v7246, %v7120
    %v7248 = vadd.f32 %v7247, %v7121
    %v7249 = vadd.f32 %v7248, %v7122
    %v7250 = vadd.f32 %v7249, %v7123
    %v7251 = vadd.f32 %v7250, %v7124
    %v7252 = vadd.f32 %v7251, %v7125
    %v7253 = vadd.f32 %v7252, %v7126
    %v7254 = vadd.f32 %v7253, %v7127
    %v7255 = vadd.f32 %v7254, %v7128
    %v7256 = vadd.f32 %v7255, %v7129
    %v7257 = vadd.f32 %v7256, %v7130
    %v7258 = vadd.f32 %v7257, %v7131
    %v7259 = vadd.f32 %v7258, %v7132
    %v7260 = vadd.f32 %v7259, %v7133
    %v7261 = vadd.f32 %v7260, %v7134
    %v7262 = vadd.f32 %v7261, %v7135
    %v7263 = vadd.f32 %v7262, %v7136
    %v7264 = vadd.f32 %v7263, %v7137
    %v7265 = vadd.f32 %v7264, %v7138
    %v7266 = vadd.f32 %v7265, %v7139
    %v7267 = vadd.f32 %v7266, %v7140
    %v7268 = vadd.f32 %v7267, %v7141
    %v7269 = vadd.f32 %v7268, %v7142
    %v7270 = vadd.f32 %v7269, %v7143
    %v7271 = vadd.f32 %v7270, %v7144
    %v7272 = vadd.f32 %v7271, %v7145
    %v7273 = vadd.f32 %v7272, %v7146
    %v7274 = vadd.f32 %v7273, %v7147
    %v7275 = vadd.f32 %v7274, %v7148
    %v7276 = vadd.f32 %v7275, %v7149
    %v7277 = vadd.f32 %v7276, %v7150
    %v7278 = vadd.f32 %v7277, %v7151
    %v7279 = vadd.f32 %v7278, %v7152
    %v7280 = vadd.f32 %v7279, %v7153
    %v7281 = vadd.f32 %v7280, %v7154
    %v7282 = vadd.f32 %v7281, %v7155
    %v7283 = vadd.f32 %v7282, %v7156
    %v7284 = vadd.f32 %v7283, %v7157
    %v7285 = vadd.f32 %v7284, %v7158
    %v7286 = vadd.f32 %v7285, %v7159
    %v7287 = vadd.f32 %v7286, %v7160
    %v7288 = vadd.f32 %v7287, %v7161
    %v7289 = vadd.f32 %v7288, %v7162
    %v7290 = vadd.f32 %v7289, %v7163
    %v7291 = vadd.f32 %v7290, %v7164
    %v7292 = vadd.f32 %v7291, %v7165
    %v7293 = vadd.f32 %v7292, %v7166
    %v7294 = vadd.f32 %v7293, %v7167
    %v7295 = vadd.f32 %v7294, %v7168
    %v7296 = vadd.f32 %v7295, %v7169
    %v7297 = vadd.f32 %v7296, %v7170
    %v7298 = vadd.f32 %v7297, %v7171
    %v7299 = vadd.f32 %v7298, %v7172
    %v7300 = vadd.f32 %v7299, %v7173
    %v7301 = vadd.f32 %v7300, %v7174
    %v7302 = vadd.f32 %v7301, %v7175
    %v7303 = vadd.f32 %v7302, %v7176
    %v7304 = vadd.f32 %v7303, %v7177
    %v7305 = vadd.f32 %v7304, %v7178
    %v7306 = vadd.f32 %v7305, %v7179
    %v7307 = vadd.f32 %v7306, %v7180
    %v7308 = vadd.f32 %v7307, %v7181
    %v7309 = vadd.f32 %v7308, %v7182
    %v7310 = vadd.f32 %v7309, %v7183
    %v7311 = vadd.f32 %v7310, %v7184
    %v7312 = vadd.f32 %v7311, %v7185
    %v7313 = vadd.f32 %v7312, %v7186
    %v7314 = vadd.f32 %v7313, %v7187
    %v7315 = vadd.f32 %v7314, %v7188
    %v7316 = vadd.f32 %v7315, %v7189
    %v7317 = vadd.f32 %v7316, %v7190
    %v7318 = vadd.f32 %v7317, %v7191
    %v7319 = vadd.f32 %v7318, %v7192
    %v7320 = vadd.f32 %v7319, %v7193
    %v7321 = vadd.f32 %v7320, %v7194
    %v7322 = vadd.f32 %v7321, %v7195
    %v7323 = vadd.f32 %v7322, %v7196
    %v7324 = vadd.f32 %v7323, %v7197
    %v7325 = vadd.f32 %v7324, %v7198
    %v7326 = vadd.f32 %v7325, %v7199
    %v7327 = vadd.f32 %v7326, %v7200
    %v7328 = vadd.f32 %v7327, %v7201
    %v7329 = vadd.f32 %v7328, %v7202
    %v7330 = vadd.f32 %v7329, %v7203
    %v7331 = vadd.f32 %v7330, %v7204
    %v7332 = vadd.f32 %v7331, %v7205
    %v7333 = vadd.f32 %v7332, %v7206
    %v7334 = vadd.f32 %v7333, %v7207
    %v7335 = vadd.f32 %v7334, %v7208
    %v7336 = vrot.slane %v7335, 4
    %v7337 = vadd.f32 %v7335, %v7336
    %v7338 = vrot.slane %v7337, 2
    %v7339 = vadd.f32 %v7337, %v7338
    %v7340 = vrot.slane %v7339, 1
    %v7341 = vadd.f32 %v7339, %v7340
    %v7342 = vmul.f32 %v7080, 0.0009765625
    %v7343 = vmul.f32 %v7341, 0.0009765625
    %v7344 = vmul.f32 %v7342, %v7342
    %v7345 = vsub.f32 %v7343, %v7344
    %v7346 = vmax.f32 %v7345, 0.0
    %v7347 = vld [vmem:[%s7] sm:$0x1]
    %v7348 = vadd.f32 %v7346, 1e-05
    %v7349 = vrsqrt.pop %v7348
    %v7350 = vmul.f32 %v7347, %v7349
    %v7351 = vld [vmem:[%s8] sm:$0x1]
    %v7352 = vmul.f32 %v7342, %v7350
    %v7353 = vsub.f32 %v7351, %v7352
    %v7355 = vlaneseq
    %v7356 = vshrl.u32 %v7355, 7
    %v7357 = vsub.s32 0, %v7356
    %v7358 = vrot.slane %v7350, %v7357
    %v7360 = vmul.f32 %v6820, %v7358
    %v7361 = vmul.f32 %v6821, %v7358
    %v7362 = vmul.f32 %v6822, %v7358
    %v7363 = vmul.f32 %v6823, %v7358
    %v7364 = vmul.f32 %v6824, %v7358
    %v7365 = vmul.f32 %v6825, %v7358
    %v7366 = vmul.f32 %v6826, %v7358
    %v7367 = vmul.f32 %v6827, %v7358
    %v7368 = vmul.f32 %v6828, %v7358
    %v7369 = vmul.f32 %v6829, %v7358
    %v7370 = vmul.f32 %v6830, %v7358
    %v7371 = vmul.f32 %v6831, %v7358
    %v7372 = vmul.f32 %v6832, %v7358
    %v7373 = vmul.f32 %v6833, %v7358
    %v7374 = vmul.f32 %v6834, %v7358
    %v7375 = vmul.f32 %v6835, %v7358
    %v7376 = vmul.f32 %v6836, %v7358
    %v7377 = vmul.f32 %v6837, %v7358
    %v7378 = vmul.f32 %v6838, %v7358
    %v7379 = vmul.f32 %v6839, %v7358
    %v7380 = vmul.f32 %v6840, %v7358
    %v7381 = vmul.f32 %v6841, %v7358
    %v7382 = vmul.f32 %v6842, %v7358
    %v7383 = vmul.f32 %v6843, %v7358
    %v7384 = vmul.f32 %v6844, %v7358
    %v7385 = vmul.f32 %v6845, %v7358
    %v7386 = vmul.f32 %v6846, %v7358
    %v7387 = vmul.f32 %v6847, %v7358
    %v7388 = vmul.f32 %v6848, %v7358
    %v7389 = vmul.f32 %v6849, %v7358
    %v7390 = vmul.f32 %v6850, %v7358
    %v7391 = vmul.f32 %v6851, %v7358
    %v7392 = vmul.f32 %v6852, %v7358
    %v7393 = vmul.f32 %v6853, %v7358
    %v7394 = vmul.f32 %v6854, %v7358
    %v7395 = vmul.f32 %v6855, %v7358
    %v7396 = vmul.f32 %v6856, %v7358
    %v7397 = vmul.f32 %v6857, %v7358
    %v7398 = vmul.f32 %v6858, %v7358
    %v7399 = vmul.f32 %v6859, %v7358
    %v7400 = vmul.f32 %v6860, %v7358
    %v7401 = vmul.f32 %v6861, %v7358
    %v7402 = vmul.f32 %v6862, %v7358
    %v7403 = vmul.f32 %v6863, %v7358
    %v7404 = vmul.f32 %v6864, %v7358
    %v7405 = vmul.f32 %v6865, %v7358
    %v7406 = vmul.f32 %v6866, %v7358
    %v7407 = vmul.f32 %v6867, %v7358
    %v7408 = vmul.f32 %v6868, %v7358
    %v7409 = vmul.f32 %v6869, %v7358
    %v7410 = vmul.f32 %v6870, %v7358
    %v7411 = vmul.f32 %v6871, %v7358
    %v7412 = vmul.f32 %v6872, %v7358
    %v7413 = vmul.f32 %v6873, %v7358
    %v7414 = vmul.f32 %v6874, %v7358
    %v7415 = vmul.f32 %v6875, %v7358
    %v7416 = vmul.f32 %v6876, %v7358
    %v7417 = vmul.f32 %v6877, %v7358
    %v7418 = vmul.f32 %v6878, %v7358
    %v7419 = vmul.f32 %v6879, %v7358
    %v7420 = vmul.f32 %v6880, %v7358
    %v7421 = vmul.f32 %v6881, %v7358
    %v7422 = vmul.f32 %v6882, %v7358
    %v7423 = vmul.f32 %v6883, %v7358
    %v7424 = vmul.f32 %v6884, %v7358
    %v7425 = vmul.f32 %v6885, %v7358
    %v7426 = vmul.f32 %v6886, %v7358
    %v7427 = vmul.f32 %v6887, %v7358
    %v7428 = vmul.f32 %v6888, %v7358
    %v7429 = vmul.f32 %v6889, %v7358
    %v7430 = vmul.f32 %v6890, %v7358
    %v7431 = vmul.f32 %v6891, %v7358
    %v7432 = vmul.f32 %v6892, %v7358
    %v7433 = vmul.f32 %v6893, %v7358
    %v7434 = vmul.f32 %v6894, %v7358
    %v7435 = vmul.f32 %v6895, %v7358
    %v7436 = vmul.f32 %v6896, %v7358
    %v7437 = vmul.f32 %v6897, %v7358
    %v7438 = vmul.f32 %v6898, %v7358
    %v7439 = vmul.f32 %v6899, %v7358
    %v7440 = vmul.f32 %v6900, %v7358
    %v7441 = vmul.f32 %v6901, %v7358
    %v7442 = vmul.f32 %v6902, %v7358
    %v7443 = vmul.f32 %v6903, %v7358
    %v7444 = vmul.f32 %v6904, %v7358
    %v7445 = vmul.f32 %v6905, %v7358
    %v7446 = vmul.f32 %v6906, %v7358
    %v7447 = vmul.f32 %v6907, %v7358
    %v7448 = vmul.f32 %v6908, %v7358
    %v7449 = vmul.f32 %v6909, %v7358
    %v7450 = vmul.f32 %v6910, %v7358
    %v7451 = vmul.f32 %v6911, %v7358
    %v7452 = vmul.f32 %v6912, %v7358
    %v7453 = vmul.f32 %v6913, %v7358
    %v7454 = vmul.f32 %v6914, %v7358
    %v7455 = vmul.f32 %v6915, %v7358
    %v7456 = vmul.f32 %v6916, %v7358
    %v7457 = vmul.f32 %v6917, %v7358
    %v7458 = vmul.f32 %v6918, %v7358
    %v7459 = vmul.f32 %v6919, %v7358
    %v7460 = vmul.f32 %v6920, %v7358
    %v7461 = vmul.f32 %v6921, %v7358
    %v7462 = vmul.f32 %v6922, %v7358
    %v7463 = vmul.f32 %v6923, %v7358
    %v7464 = vmul.f32 %v6924, %v7358
    %v7465 = vmul.f32 %v6925, %v7358
    %v7466 = vmul.f32 %v6926, %v7358
    %v7467 = vmul.f32 %v6927, %v7358
    %v7468 = vmul.f32 %v6928, %v7358
    %v7469 = vmul.f32 %v6929, %v7358
    %v7470 = vmul.f32 %v6930, %v7358
    %v7471 = vmul.f32 %v6931, %v7358
    %v7472 = vmul.f32 %v6932, %v7358
    %v7473 = vmul.f32 %v6933, %v7358
    %v7474 = vmul.f32 %v6934, %v7358
    %v7475 = vmul.f32 %v6935, %v7358
    %v7476 = vmul.f32 %v6936, %v7358
    %v7477 = vmul.f32 %v6937, %v7358
    %v7478 = vmul.f32 %v6938, %v7358
    %v7479 = vmul.f32 %v6939, %v7358
    %v7480 = vmul.f32 %v6940, %v7358
    %v7481 = vmul.f32 %v6941, %v7358
    %v7482 = vmul.f32 %v6942, %v7358
    %v7483 = vmul.f32 %v6943, %v7358
    %v7484 = vmul.f32 %v6944, %v7358
    %v7485 = vmul.f32 %v6945, %v7358
    %v7486 = vmul.f32 %v6946, %v7358
    %v7487 = vmul.f32 %v6947, %v7358
    %v7489 = vlaneseq
    %v7490 = vshrl.u32 %v7489, 7
    %v7491 = vsub.s32 0, %v7490
    %v7492 = vrot.slane %v7353, %v7491
    %v7494 = vadd.f32 %v7360, %v7492
    %v7495 = vadd.f32 %v7361, %v7492
    %v7496 = vadd.f32 %v7362, %v7492
    %v7497 = vadd.f32 %v7363, %v7492
    %v7498 = vadd.f32 %v7364, %v7492
    %v7499 = vadd.f32 %v7365, %v7492
    %v7500 = vadd.f32 %v7366, %v7492
    %v7501 = vadd.f32 %v7367, %v7492
    %v7502 = vadd.f32 %v7368, %v7492
    %v7503 = vadd.f32 %v7369, %v7492
    %v7504 = vadd.f32 %v7370, %v7492
    %v7505 = vadd.f32 %v7371, %v7492
    %v7506 = vadd.f32 %v7372, %v7492
    %v7507 = vadd.f32 %v7373, %v7492
    %v7508 = vadd.f32 %v7374, %v7492
    %v7509 = vadd.f32 %v7375, %v7492
    %v7510 = vadd.f32 %v7376, %v7492
    %v7511 = vadd.f32 %v7377, %v7492
    %v7512 = vadd.f32 %v7378, %v7492
    %v7513 = vadd.f32 %v7379, %v7492
    %v7514 = vadd.f32 %v7380, %v7492
    %v7515 = vadd.f32 %v7381, %v7492
    %v7516 = vadd.f32 %v7382, %v7492
    %v7517 = vadd.f32 %v7383, %v7492
    %v7518 = vadd.f32 %v7384, %v7492
    %v7519 = vadd.f32 %v7385, %v7492
    %v7520 = vadd.f32 %v7386, %v7492
    %v7521 = vadd.f32 %v7387, %v7492
    %v7522 = vadd.f32 %v7388, %v7492
    %v7523 = vadd.f32 %v7389, %v7492
    %v7524 = vadd.f32 %v7390, %v7492
    %v7525 = vadd.f32 %v7391, %v7492
    %v7526 = vadd.f32 %v7392, %v7492
    %v7527 = vadd.f32 %v7393, %v7492
    %v7528 = vadd.f32 %v7394, %v7492
    %v7529 = vadd.f32 %v7395, %v7492
    %v7530 = vadd.f32 %v7396, %v7492
    %v7531 = vadd.f32 %v7397, %v7492
    %v7532 = vadd.f32 %v7398, %v7492
    %v7533 = vadd.f32 %v7399, %v7492
    %v7534 = vadd.f32 %v7400, %v7492
    %v7535 = vadd.f32 %v7401, %v7492
    %v7536 = vadd.f32 %v7402, %v7492
    %v7537 = vadd.f32 %v7403, %v7492
    %v7538 = vadd.f32 %v7404, %v7492
    %v7539 = vadd.f32 %v7405, %v7492
    %v7540 = vadd.f32 %v7406, %v7492
    %v7541 = vadd.f32 %v7407, %v7492
    %v7542 = vadd.f32 %v7408, %v7492
    %v7543 = vadd.f32 %v7409, %v7492
    %v7544 = vadd.f32 %v7410, %v7492
    %v7545 = vadd.f32 %v7411, %v7492
    %v7546 = vadd.f32 %v7412, %v7492
    %v7547 = vadd.f32 %v7413, %v7492
    %v7548 = vadd.f32 %v7414, %v7492
    %v7549 = vadd.f32 %v7415, %v7492
    %v7550 = vadd.f32 %v7416, %v7492
    %v7551 = vadd.f32 %v7417, %v7492
    %v7552 = vadd.f32 %v7418, %v7492
    %v7553 = vadd.f32 %v7419, %v7492
    %v7554 = vadd.f32 %v7420, %v7492
    %v7555 = vadd.f32 %v7421, %v7492
    %v7556 = vadd.f32 %v7422, %v7492
    %v7557 = vadd.f32 %v7423, %v7492
    %v7558 = vadd.f32 %v7424, %v7492
    %v7559 = vadd.f32 %v7425, %v7492
    %v7560 = vadd.f32 %v7426, %v7492
    %v7561 = vadd.f32 %v7427, %v7492
    %v7562 = vadd.f32 %v7428, %v7492
    %v7563 = vadd.f32 %v7429, %v7492
    %v7564 = vadd.f32 %v7430, %v7492
    %v7565 = vadd.f32 %v7431, %v7492
    %v7566 = vadd.f32 %v7432, %v7492
    %v7567 = vadd.f32 %v7433, %v7492
    %v7568 = vadd.f32 %v7434, %v7492
    %v7569 = vadd.f32 %v7435, %v7492
    %v7570 = vadd.f32 %v7436, %v7492
    %v7571 = vadd.f32 %v7437, %v7492
    %v7572 = vadd.f32 %v7438, %v7492
    %v7573 = vadd.f32 %v7439, %v7492
    %v7574 = vadd.f32 %v7440, %v7492
    %v7575 = vadd.f32 %v7441, %v7492
    %v7576 = vadd.f32 %v7442, %v7492
    %v7577 = vadd.f32 %v7443, %v7492
    %v7578 = vadd.f32 %v7444, %v7492
    %v7579 = vadd.f32 %v7445, %v7492
    %v7580 = vadd.f32 %v7446, %v7492
    %v7581 = vadd.f32 %v7447, %v7492
    %v7582 = vadd.f32 %v7448, %v7492
    %v7583 = vadd.f32 %v7449, %v7492
    %v7584 = vadd.f32 %v7450, %v7492
    %v7585 = vadd.f32 %v7451, %v7492
    %v7586 = vadd.f32 %v7452, %v7492
    %v7587 = vadd.f32 %v7453, %v7492
    %v7588 = vadd.f32 %v7454, %v7492
    %v7589 = vadd.f32 %v7455, %v7492
    %v7590 = vadd.f32 %v7456, %v7492
    %v7591 = vadd.f32 %v7457, %v7492
    %v7592 = vadd.f32 %v7458, %v7492
    %v7593 = vadd.f32 %v7459, %v7492
    %v7594 = vadd.f32 %v7460, %v7492
    %v7595 = vadd.f32 %v7461, %v7492
    %v7596 = vadd.f32 %v7462, %v7492
    %v7597 = vadd.f32 %v7463, %v7492
    %v7598 = vadd.f32 %v7464, %v7492
    %v7599 = vadd.f32 %v7465, %v7492
    %v7600 = vadd.f32 %v7466, %v7492
    %v7601 = vadd.f32 %v7467, %v7492
    %v7602 = vadd.f32 %v7468, %v7492
    %v7603 = vadd.f32 %v7469, %v7492
    %v7604 = vadd.f32 %v7470, %v7492
    %v7605 = vadd.f32 %v7471, %v7492
    %v7606 = vadd.f32 %v7472, %v7492
    %v7607 = vadd.f32 %v7473, %v7492
    %v7608 = vadd.f32 %v7474, %v7492
    %v7609 = vadd.f32 %v7475, %v7492
    %v7610 = vadd.f32 %v7476, %v7492
    %v7611 = vadd.f32 %v7477, %v7492
    %v7612 = vadd.f32 %v7478, %v7492
    %v7613 = vadd.f32 %v7479, %v7492
    %v7614 = vadd.f32 %v7480, %v7492
    %v7615 = vadd.f32 %v7481, %v7492
    %v7616 = vadd.f32 %v7482, %v7492
    %v7617 = vadd.f32 %v7483, %v7492
    %v7618 = vadd.f32 %v7484, %v7492
    %v7619 = vadd.f32 %v7485, %v7492
    %v7620 = vadd.f32 %v7486, %v7492
    %v7621 = vadd.f32 %v7487, %v7492
    %v7622 = vpack.c.bf16 %v7495, %v7494
    %v7623 = vpack.c.bf16 %v7497, %v7496
    %v7624 = vpack.c.bf16 %v7499, %v7498
    %v7625 = vpack.c.bf16 %v7501, %v7500
    %v7626 = vpack.c.bf16 %v7503, %v7502
    %v7627 = vpack.c.bf16 %v7505, %v7504
    %v7628 = vpack.c.bf16 %v7507, %v7506
    %v7629 = vpack.c.bf16 %v7509, %v7508
    %v7630 = vpack.c.bf16 %v7511, %v7510
    %v7631 = vpack.c.bf16 %v7513, %v7512
    %v7632 = vpack.c.bf16 %v7515, %v7514
    %v7633 = vpack.c.bf16 %v7517, %v7516
    %v7634 = vpack.c.bf16 %v7519, %v7518
    %v7635 = vpack.c.bf16 %v7521, %v7520
    %v7636 = vpack.c.bf16 %v7523, %v7522
    %v7637 = vpack.c.bf16 %v7525, %v7524
    %v7638 = vpack.c.bf16 %v7527, %v7526
    %v7639 = vpack.c.bf16 %v7529, %v7528
    %v7640 = vpack.c.bf16 %v7531, %v7530
    %v7641 = vpack.c.bf16 %v7533, %v7532
    %v7642 = vpack.c.bf16 %v7535, %v7534
    %v7643 = vpack.c.bf16 %v7537, %v7536
    %v7644 = vpack.c.bf16 %v7539, %v7538
    %v7645 = vpack.c.bf16 %v7541, %v7540
    %v7646 = vpack.c.bf16 %v7543, %v7542
    %v7647 = vpack.c.bf16 %v7545, %v7544
    %v7648 = vpack.c.bf16 %v7547, %v7546
    %v7649 = vpack.c.bf16 %v7549, %v7548
    %v7650 = vpack.c.bf16 %v7551, %v7550
    %v7651 = vpack.c.bf16 %v7553, %v7552
    %v7652 = vpack.c.bf16 %v7555, %v7554
    %v7653 = vpack.c.bf16 %v7557, %v7556
    %v7654 = vpack.c.bf16 %v7559, %v7558
    %v7655 = vpack.c.bf16 %v7561, %v7560
    %v7656 = vpack.c.bf16 %v7563, %v7562
    %v7657 = vpack.c.bf16 %v7565, %v7564
    %v7658 = vpack.c.bf16 %v7567, %v7566
    %v7659 = vpack.c.bf16 %v7569, %v7568
    %v7660 = vpack.c.bf16 %v7571, %v7570
    %v7661 = vpack.c.bf16 %v7573, %v7572
    %v7662 = vpack.c.bf16 %v7575, %v7574
    %v7663 = vpack.c.bf16 %v7577, %v7576
    %v7664 = vpack.c.bf16 %v7579, %v7578
    %v7665 = vpack.c.bf16 %v7581, %v7580
    %v7666 = vpack.c.bf16 %v7583, %v7582
    %v7667 = vpack.c.bf16 %v7585, %v7584
    %v7668 = vpack.c.bf16 %v7587, %v7586
    %v7669 = vpack.c.bf16 %v7589, %v7588
    %v7670 = vpack.c.bf16 %v7591, %v7590
    %v7671 = vpack.c.bf16 %v7593, %v7592
    %v7672 = vpack.c.bf16 %v7595, %v7594
    %v7673 = vpack.c.bf16 %v7597, %v7596
    %v7674 = vpack.c.bf16 %v7599, %v7598
    %v7675 = vpack.c.bf16 %v7601, %v7600
    %v7676 = vpack.c.bf16 %v7603, %v7602
    %v7677 = vpack.c.bf16 %v7605, %v7604
    %v7678 = vpack.c.bf16 %v7607, %v7606
    %v7679 = vpack.c.bf16 %v7609, %v7608
    %v7680 = vpack.c.bf16 %v7611, %v7610
    %v7681 = vpack.c.bf16 %v7613, %v7612
    %v7682 = vpack.c.bf16 %v7615, %v7614
    %v7683 = vpack.c.bf16 %v7617, %v7616
    %v7684 = vpack.c.bf16 %v7619, %v7618
    %v7685 = vpack.c.bf16 %v7621, %v7620
    %v7686 = vld [vmem:[%s9] sm:$0xf]
    %v7687 = vld [vmem:[%s9 + $0x4] sm:$0xf]
    %v7688 = vld [vmem:[%s9 + $0x8] sm:$0xf]
    %v7689 = vld [vmem:[%s9 + $0xc] sm:$0xf]
    %v7690 = vld [vmem:[%s9 + $0x10] sm:$0xf]
    %v7691 = vld [vmem:[%s9 + $0x14] sm:$0xf]
    %v7692 = vld [vmem:[%s9 + $0x18] sm:$0xf]
    %v7693 = vld [vmem:[%s9 + $0x1c] sm:$0xf]
    %v7694 = vld [vmem:[%s9 + $0x20] sm:$0xf]
    %v7695 = vld [vmem:[%s9 + $0x24] sm:$0xf]
    %v7696 = vld [vmem:[%s9 + $0x28] sm:$0xf]
    %v7697 = vld [vmem:[%s9 + $0x2c] sm:$0xf]
    %v7698 = vld [vmem:[%s9 + $0x30] sm:$0xf]
    %v7699 = vld [vmem:[%s9 + $0x34] sm:$0xf]
    %v7700 = vld [vmem:[%s9 + $0x38] sm:$0xf]
    %v7701 = vld [vmem:[%s9 + $0x3c] sm:$0xf]
    %v7702 = vld [vmem:[%s10] sm:$0x1]
    %v7704 = vlaneseq
    %v7705 = vshrl.u32 %v7704, 7
    %v7706 = vsub.s32 0, %v7705
    %v7707 = vrot.slane %v7702, %v7706
    %v7725 = vunpack.c.l.b16 %v7686
    %v7726 = vunpack.c.l.b16 %v7687
    %v7727 = vunpack.c.l.b16 %v7688
    %v7728 = vunpack.c.l.b16 %v7689
    %v7729 = vunpack.c.l.b16 %v7690
    %v7730 = vunpack.c.l.b16 %v7691
    %v7731 = vunpack.c.l.b16 %v7692
    %v7732 = vunpack.c.l.b16 %v7693
    %v7733 = vunpack.c.l.b16 %v7694
    %v7734 = vunpack.c.l.b16 %v7695
    %v7735 = vunpack.c.l.b16 %v7696
    %v7736 = vunpack.c.l.b16 %v7697
    %v7737 = vunpack.c.l.b16 %v7698
    %v7738 = vunpack.c.l.b16 %v7699
    %v7739 = vunpack.c.l.b16 %v7700
    %v7740 = vunpack.c.l.b16 %v7701
    %v7741 = vpack.c.b16 %v7726, %v7725
    %v7742 = vpack.c.b16 %v7728, %v7727
    %v7743 = vpack.c.b16 %v7730, %v7729
    %v7744 = vpack.c.b16 %v7732, %v7731
    %v7745 = vpack.c.b16 %v7734, %v7733
    %v7746 = vpack.c.b16 %v7736, %v7735
    %v7747 = vpack.c.b16 %v7738, %v7737
    %v7748 = vpack.c.b16 %v7740, %v7739
    %7757 = vmatprep.subr.bf16.mxu0 0
    %7758 = vmatpush1.bf16.msra.mxu0 %v7741
    %7759 = vmatprep.subr.bf16.mxu0 0
    %7760 = vmatpush1.bf16.msra.mxu0 %v7742
    %7761 = vmatprep.subr.bf16.mxu0 0
    %7762 = vmatpush1.bf16.msra.mxu0 %v7743
    %7763 = vmatprep.subr.bf16.mxu0 0
    %7764 = vmatpush1.bf16.msra.mxu0 %v7744
    %7765 = vmatprep.subr.bf16.mxu0 0
    %7766 = vmatpush1.bf16.msra.mxu0 %v7745
    %7767 = vmatprep.subr.bf16.mxu0 0
    %7768 = vmatpush1.bf16.msra.mxu0 %v7746
    %7769 = vmatprep.subr.bf16.mxu0 0
    %7770 = vmatpush1.bf16.msra.mxu0 %v7747
    %7771 = vmatprep.subr.bf16.mxu0 0
    %7772 = vmatpush1.bf16.msra.mxu0 %v7748
    %7773 = vmatprep.subr.bf16.mxu0 0
    %7774 = vmatpush1.bf16.msra.mxu0 0
    %7775 = vmatprep.subr.bf16.mxu0 0
    %7776 = vmatpush1.bf16.msra.mxu0 0
    %7777 = vmatprep.subr.bf16.mxu0 0
    %7778 = vmatpush1.bf16.msra.mxu0 0
    %7779 = vmatprep.subr.bf16.mxu0 0
    %7780 = vmatpush1.bf16.msra.mxu0 0
    %7781 = vmatprep.subr.bf16.mxu0 0
    %7782 = vmatpush1.bf16.msra.mxu0 0
    %7783 = vmatprep.subr.bf16.mxu0 0
    %7784 = vmatpush1.bf16.msra.mxu0 0
    %7785 = vmatprep.subr.bf16.mxu0 0
    %7786 = vmatpush1.bf16.msra.mxu0 0
    %7787 = vmatprep.subr.bf16.mxu0 0
    %7788 = vmatpush1.bf16.msra.mxu0 0
    %7789 = vmatprep.mubr.bf16.mxu0 0
    %7790 = vmatmul.mubr.bf16.gmra.mrb[0].mxu0 %v7622
    %v7791 = vpop.f32.mrb[0].mxu0
    %v7792 = vadd.f32 %v7707, %v7791
    %v7793 = vpop.f32.mrb[0].mxu0
    %v7794 = vpop.f32.mrb[0].mxu0
    %v7795 = vadd.f32 %v7707, %v7794
    %v7796 = vpop.f32.mrb[0].mxu0
    %7797 = vmatprep.mubr.bf16.mxu0 0
    %7798 = vmatmul.mubr.bf16.gmra.mrb[0].mxu0 %v7623
    %v7799 = vpop.f32.mrb[0].mxu0
    %v7800 = vadd.f32 %v7707, %v7799
    %v7801 = vpop.f32.mrb[0].mxu0
    %v7802 = vpop.f32.mrb[0].mxu0
    %v7803 = vadd.f32 %v7707, %v7802
    %v7804 = vpop.f32.mrb[0].mxu0
    %7805 = vmatprep.mubr.bf16.mxu0 0
    %7806 = vmatmul.mubr.bf16.gmra.mrb[0].mxu0 %v7624
    %v7807 = vpop.f32.mrb[0].mxu0
    %v7808 = vadd.f32 %v7707, %v7807
    %v7809 = vpop.f32.mrb[0].mxu0
    %v7810 = vpop.f32.mrb[0].mxu0
    %v7811 = vadd.f32 %v7707, %v7810
    %v7812 = vpop.f32.mrb[0].mxu0
    %7813 = vmatprep.mubr.bf16.mxu0 0
    %7814 = vmatmul.mubr.bf16.gmra.mrb[0].mxu0 %v7625
    %v7815 = vpop.f32.mrb[0].mxu0
    %v7816 = vadd.f32 %v7707, %v7815
    %v7817 = vpop.f32.mrb[0].mxu0
    %v7818 = vpop.f32.mrb[0].mxu0
    %v7819 = vadd.f32 %v7707, %v7818
    %v7820 = vpop.f32.mrb[0].mxu0
    %7821 = vmatprep.mubr.bf16.mxu0 0
    %7822 = vmatmul.mubr.bf16.gmra.mrb[0].mxu0 %v7626
    %v7823 = vpop.f32.mrb[0].mxu0
    %v7824 = vadd.f32 %v7707, %v7823
    %v7825 = vpop.f32.mrb[0].mxu0
    %v7826 = vpop.f32.mrb[0].mxu0
    %v7827 = vadd.f32 %v7707, %v7826
    %v7828 = vpop.f32.mrb[0].mxu0
    %7829 = vmatprep.mubr.bf16.mxu0 0
    %7830 = vmatmul.mubr.bf16.gmra.mrb[0].mxu0 %v7627
    %v7831 = vpop.f32.mrb[0].mxu0
    %v7832 = vadd.f32 %v7707, %v7831
    %v7833 = vpop.f32.mrb[0].mxu0
    %v7834 = vpop.f32.mrb[0].mxu0
    %v7835 = vadd.f32 %v7707, %v7834
    %v7836 = vpop.f32.mrb[0].mxu0
    %7837 = vmatprep.mubr.bf16.mxu0 0
    %7838 = vmatmul.mubr.bf16.gmra.mrb[0].mxu0 %v7628
    %v7839 = vpop.f32.mrb[0].mxu0
    %v7840 = vadd.f32 %v7707, %v7839
    %v7841 = vpop.f32.mrb[0].mxu0
    %v7842 = vpop.f32.mrb[0].mxu0
    %v7843 = vadd.f32 %v7707, %v7842
    %v7844 = vpop.f32.mrb[0].mxu0
    %7845 = vmatprep.mubr.bf16.mxu0 0
    %7846 = vmatmul.mubr.bf16.gmra.mrb[0].mxu0 %v7629
    %v7847 = vpop.f32.mrb[0].mxu0
    %v7848 = vadd.f32 %v7707, %v7847
    %v7849 = vpop.f32.mrb[0].mxu0
    %v7850 = vpop.f32.mrb[0].mxu0
    %v7851 = vadd.f32 %v7707, %v7850
    %v7852 = vpop.f32.mrb[0].mxu0
    %7853 = vmatprep.mubr.bf16.mxu0 0
    %7854 = vmatmul.mubr.bf16.gmra.mrb[0].mxu0 %v7630
    %v7855 = vpop.f32.mrb[0].mxu0
    %v7856 = vadd.f32 %v7707, %v7855
    %v7857 = vpop.f32.mrb[0].mxu0
    %v7858 = vpop.f32.mrb[0].mxu0
    %v7859 = vadd.f32 %v7707, %v7858
    %v7860 = vpop.f32.mrb[0].mxu0
    %7861 = vmatprep.mubr.bf16.mxu0 0
    %7862 = vmatmul.mubr.bf16.gmra.mrb[0].mxu0 %v7631
    %v7863 = vpop.f32.mrb[0].mxu0
    %v7864 = vadd.f32 %v7707, %v7863
    %v7865 = vpop.f32.mrb[0].mxu0
    %v7866 = vpop.f32.mrb[0].mxu0
    %v7867 = vadd.f32 %v7707, %v7866
    %v7868 = vpop.f32.mrb[0].mxu0
    %7869 = vmatprep.mubr.bf16.mxu0 0
    %7870 = vmatmul.mubr.bf16.gmra.mrb[0].mxu0 %v7632
    %v7871 = vpop.f32.mrb[0].mxu0
    %v7872 = vadd.f32 %v7707, %v7871
    %v7873 = vpop.f32.mrb[0].mxu0
    %v7874 = vpop.f32.mrb[0].mxu0
    %v7875 = vadd.f32 %v7707, %v7874
    %v7876 = vpop.f32.mrb[0].mxu0
    %7877 = vmatprep.mubr.bf16.mxu0 0
    %7878 = vmatmul.mubr.bf16.gmra.mrb[0].mxu0 %v7633
    %v7879 = vpop.f32.mrb[0].mxu0
    %v7880 = vadd.f32 %v7707, %v7879
    %v7881 = vpop.f32.mrb[0].mxu0
    %v7882 = vpop.f32.mrb[0].mxu0
    %v7883 = vadd.f32 %v7707, %v7882
    %v7884 = vpop.f32.mrb[0].mxu0
    %7885 = vmatprep.mubr.bf16.mxu0 0
    %7886 = vmatmul.mubr.bf16.gmra.mrb[0].mxu0 %v7634
    %v7887 = vpop.f32.mrb[0].mxu0
    %v7888 = vadd.f32 %v7707, %v7887
    %v7889 = vpop.f32.mrb[0].mxu0
    %v7890 = vpop.f32.mrb[0].mxu0
    %v7891 = vadd.f32 %v7707, %v7890
    %v7892 = vpop.f32.mrb[0].mxu0
    %7893 = vmatprep.mubr.bf16.mxu0 0
    %7894 = vmatmul.mubr.bf16.gmra.mrb[0].mxu0 %v7635
    %v7895 = vpop.f32.mrb[0].mxu0
    %v7896 = vadd.f32 %v7707, %v7895
    %v7897 = vpop.f32.mrb[0].mxu0
    %v7898 = vpop.f32.mrb[0].mxu0
    %v7899 = vadd.f32 %v7707, %v7898
    %v7900 = vpop.f32.mrb[0].mxu0
    %7901 = vmatprep.mubr.bf16.mxu0 0
    %7902 = vmatmul.mubr.bf16.gmra.mrb[0].mxu0 %v7636
    %v7903 = vpop.f32.mrb[0].mxu0
    %v7904 = vadd.f32 %v7707, %v7903
    %v7905 = vpop.f32.mrb[0].mxu0
    %v7906 = vpop.f32.mrb[0].mxu0
    %v7907 = vadd.f32 %v7707, %v7906
    %v7908 = vpop.f32.mrb[0].mxu0
    %7909 = vmatprep.mubr.bf16.mxu0 0
    %7910 = vmatmul.mubr.bf16.gmra.mrb[0].mxu0 %v7637
    %v7911 = vpop.f32.mrb[0].mxu0
    %v7912 = vadd.f32 %v7707, %v7911
    %v7913 = vpop.f32.mrb[0].mxu0
    %v7914 = vpop.f32.mrb[0].mxu0
    %v7915 = vadd.f32 %v7707, %v7914
    %v7916 = vpop.f32.mrb[0].mxu0
    %7917 = vmatprep.mubr.bf16.mxu0 0
    %7918 = vmatmul.mubr.bf16.gmra.mrb[0].mxu0 %v7638
    %v7919 = vpop.f32.mrb[0].mxu0
    %v7920 = vadd.f32 %v7707, %v7919
    %v7921 = vpop.f32.mrb[0].mxu0
    %v7922 = vpop.f32.mrb[0].mxu0
    %v7923 = vadd.f32 %v7707, %v7922
    %v7924 = vpop.f32.mrb[0].mxu0
    %7925 = vmatprep.mubr.bf16.mxu0 0
    %7926 = vmatmul.mubr.bf16.gmra.mrb[0].mxu0 %v7639
    %v7927 = vpop.f32.mrb[0].mxu0
    %v7928 = vadd.f32 %v7707, %v7927
    %v7929 = vpop.f32.mrb[0].mxu0
    %v7930 = vpop.f32.mrb[0].mxu0
    %v7931 = vadd.f32 %v7707, %v7930
    %v7932 = vpop.f32.mrb[0].mxu0
    %7933 = vmatprep.mubr.bf16.mxu0 0
    %7934 = vmatmul.mubr.bf16.gmra.mrb[0].mxu0 %v7640
    %v7935 = vpop.f32.mrb[0].mxu0
    %v7936 = vadd.f32 %v7707, %v7935
    %v7937 = vpop.f32.mrb[0].mxu0
    %v7938 = vpop.f32.mrb[0].mxu0
    %v7939 = vadd.f32 %v7707, %v7938
    %v7940 = vpop.f32.mrb[0].mxu0
    %7941 = vmatprep.mubr.bf16.mxu0 0
    %7942 = vmatmul.mubr.bf16.gmra.mrb[0].mxu0 %v7641
    %v7943 = vpop.f32.mrb[0].mxu0
    %v7944 = vadd.f32 %v7707, %v7943
    %v7945 = vpop.f32.mrb[0].mxu0
    %v7946 = vpop.f32.mrb[0].mxu0
    %v7947 = vadd.f32 %v7707, %v7946
    %v7948 = vpop.f32.mrb[0].mxu0
    %7949 = vmatprep.mubr.bf16.mxu0 0
    %7950 = vmatmul.mubr.bf16.gmra.mrb[0].mxu0 %v7642
    %v7951 = vpop.f32.mrb[0].mxu0
    %v7952 = vadd.f32 %v7707, %v7951
    %v7953 = vpop.f32.mrb[0].mxu0
    %v7954 = vpop.f32.mrb[0].mxu0
    %v7955 = vadd.f32 %v7707, %v7954
    %v7956 = vpop.f32.mrb[0].mxu0
    %7957 = vmatprep.mubr.bf16.mxu0 0
    %7958 = vmatmul.mubr.bf16.gmra.mrb[0].mxu0 %v7643
    %v7959 = vpop.f32.mrb[0].mxu0
    %v7960 = vadd.f32 %v7707, %v7959
    %v7961 = vpop.f32.mrb[0].mxu0
    %v7962 = vpop.f32.mrb[0].mxu0
    %v7963 = vadd.f32 %v7707, %v7962
    %v7964 = vpop.f32.mrb[0].mxu0
    %7965 = vmatprep.mubr.bf16.mxu0 0
    %7966 = vmatmul.mubr.bf16.gmra.mrb[0].mxu0 %v7644
    %v7967 = vpop.f32.mrb[0].mxu0
    %v7968 = vadd.f32 %v7707, %v7967
    %v7969 = vpop.f32.mrb[0].mxu0
    %v7970 = vpop.f32.mrb[0].mxu0
    %v7971 = vadd.f32 %v7707, %v7970
    %v7972 = vpop.f32.mrb[0].mxu0
    %7973 = vmatprep.mubr.bf16.mxu0 0
    %7974 = vmatmul.mubr.bf16.gmra.mrb[0].mxu0 %v7645
    %v7975 = vpop.f32.mrb[0].mxu0
    %v7976 = vadd.f32 %v7707, %v7975
    %v7977 = vpop.f32.mrb[0].mxu0
    %v7978 = vpop.f32.mrb[0].mxu0
    %v7979 = vadd.f32 %v7707, %v7978
    %v7980 = vpop.f32.mrb[0].mxu0
    %7981 = vmatprep.mubr.bf16.mxu0 0
    %7982 = vmatmul.mubr.bf16.gmra.mrb[0].mxu0 %v7646
    %v7983 = vpop.f32.mrb[0].mxu0
    %v7984 = vadd.f32 %v7707, %v7983
    %v7985 = vpop.f32.mrb[0].mxu0
    %v7986 = vpop.f32.mrb[0].mxu0
    %v7987 = vadd.f32 %v7707, %v7986
    %v7988 = vpop.f32.mrb[0].mxu0
    %7989 = vmatprep.mubr.bf16.mxu0 0
    %7990 = vmatmul.mubr.bf16.gmra.mrb[0].mxu0 %v7647
    %v7991 = vpop.f32.mrb[0].mxu0
    %v7992 = vadd.f32 %v7707, %v7991
    %v7993 = vpop.f32.mrb[0].mxu0
    %v7994 = vpop.f32.mrb[0].mxu0
    %v7995 = vadd.f32 %v7707, %v7994
    %v7996 = vpop.f32.mrb[0].mxu0
    %7997 = vmatprep.mubr.bf16.mxu0 0
    %7998 = vmatmul.mubr.bf16.gmra.mrb[0].mxu0 %v7648
    %v7999 = vpop.f32.mrb[0].mxu0
    %v8000 = vadd.f32 %v7707, %v7999
    %v8001 = vpop.f32.mrb[0].mxu0
    %v8002 = vpop.f32.mrb[0].mxu0
    %v8003 = vadd.f32 %v7707, %v8002
    %v8004 = vpop.f32.mrb[0].mxu0
    %8005 = vmatprep.mubr.bf16.mxu0 0
    %8006 = vmatmul.mubr.bf16.gmra.mrb[0].mxu0 %v7649
    %v8007 = vpop.f32.mrb[0].mxu0
    %v8008 = vadd.f32 %v7707, %v8007
    %v8009 = vpop.f32.mrb[0].mxu0
    %v8010 = vpop.f32.mrb[0].mxu0
    %v8011 = vadd.f32 %v7707, %v8010
    %v8012 = vpop.f32.mrb[0].mxu0
    %8013 = vmatprep.mubr.bf16.mxu0 0
    %8014 = vmatmul.mubr.bf16.gmra.mrb[0].mxu0 %v7650
    %v8015 = vpop.f32.mrb[0].mxu0
    %v8016 = vadd.f32 %v7707, %v8015
    %v8017 = vpop.f32.mrb[0].mxu0
    %v8018 = vpop.f32.mrb[0].mxu0
    %v8019 = vadd.f32 %v7707, %v8018
    %v8020 = vpop.f32.mrb[0].mxu0
    %8021 = vmatprep.mubr.bf16.mxu0 0
    %8022 = vmatmul.mubr.bf16.gmra.mrb[0].mxu0 %v7651
    %v8023 = vpop.f32.mrb[0].mxu0
    %v8024 = vadd.f32 %v7707, %v8023
    %v8025 = vpop.f32.mrb[0].mxu0
    %v8026 = vpop.f32.mrb[0].mxu0
    %v8027 = vadd.f32 %v7707, %v8026
    %v8028 = vpop.f32.mrb[0].mxu0
    %8029 = vmatprep.mubr.bf16.mxu0 0
    %8030 = vmatmul.mubr.bf16.gmra.mrb[0].mxu0 %v7652
    %v8031 = vpop.f32.mrb[0].mxu0
    %v8032 = vadd.f32 %v7707, %v8031
    %v8033 = vpop.f32.mrb[0].mxu0
    %v8034 = vpop.f32.mrb[0].mxu0
    %v8035 = vadd.f32 %v7707, %v8034
    %v8036 = vpop.f32.mrb[0].mxu0
    %8037 = vmatprep.mubr.bf16.mxu0 0
    %8038 = vmatmul.mubr.bf16.gmra.mrb[0].mxu0 %v7653
    %v8039 = vpop.f32.mrb[0].mxu0
    %v8040 = vadd.f32 %v7707, %v8039
    %v8041 = vpop.f32.mrb[0].mxu0
    %v8042 = vpop.f32.mrb[0].mxu0
    %v8043 = vadd.f32 %v7707, %v8042
    %v8044 = vpop.f32.mrb[0].mxu0
    %8045 = vmatprep.mubr.bf16.mxu0 0
    %8046 = vmatmul.mubr.bf16.gmra.mrb[0].mxu0 %v7654
    %v8047 = vpop.f32.mrb[0].mxu0
    %v8048 = vadd.f32 %v7707, %v8047
    %v8049 = vpop.f32.mrb[0].mxu0
    %v8050 = vpop.f32.mrb[0].mxu0
    %v8051 = vadd.f32 %v7707, %v8050
    %v8052 = vpop.f32.mrb[0].mxu0
    %8053 = vmatprep.mubr.bf16.mxu0 0
    %8054 = vmatmul.mubr.bf16.gmra.mrb[0].mxu0 %v7655
    %v8055 = vpop.f32.mrb[0].mxu0
    %v8056 = vadd.f32 %v7707, %v8055
    %v8057 = vpop.f32.mrb[0].mxu0
    %v8058 = vpop.f32.mrb[0].mxu0
    %v8059 = vadd.f32 %v7707, %v8058
    %v8060 = vpop.f32.mrb[0].mxu0
    %8061 = vmatprep.mubr.bf16.mxu0 0
    %8062 = vmatmul.mubr.bf16.gmra.mrb[0].mxu0 %v7656
    %v8063 = vpop.f32.mrb[0].mxu0
    %v8064 = vadd.f32 %v7707, %v8063
    %v8065 = vpop.f32.mrb[0].mxu0
    %v8066 = vpop.f32.mrb[0].mxu0
    %v8067 = vadd.f32 %v7707, %v8066
    %v8068 = vpop.f32.mrb[0].mxu0
    %8069 = vmatprep.mubr.bf16.mxu0 0
    %8070 = vmatmul.mubr.bf16.gmra.mrb[0].mxu0 %v7657
    %v8071 = vpop.f32.mrb[0].mxu0
    %v8072 = vadd.f32 %v7707, %v8071
    %v8073 = vpop.f32.mrb[0].mxu0
    %v8074 = vpop.f32.mrb[0].mxu0
    %v8075 = vadd.f32 %v7707, %v8074
    %v8076 = vpop.f32.mrb[0].mxu0
    %8077 = vmatprep.mubr.bf16.mxu0 0
    %8078 = vmatmul.mubr.bf16.gmra.mrb[0].mxu0 %v7658
    %v8079 = vpop.f32.mrb[0].mxu0
    %v8080 = vadd.f32 %v7707, %v8079
    %v8081 = vpop.f32.mrb[0].mxu0
    %v8082 = vpop.f32.mrb[0].mxu0
    %v8083 = vadd.f32 %v7707, %v8082
    %v8084 = vpop.f32.mrb[0].mxu0
    %8085 = vmatprep.mubr.bf16.mxu0 0
    %8086 = vmatmul.mubr.bf16.gmra.mrb[0].mxu0 %v7659
    %v8087 = vpop.f32.mrb[0].mxu0
    %v8088 = vadd.f32 %v7707, %v8087
    %v8089 = vpop.f32.mrb[0].mxu0
    %v8090 = vpop.f32.mrb[0].mxu0
    %v8091 = vadd.f32 %v7707, %v8090
    %v8092 = vpop.f32.mrb[0].mxu0
    %8093 = vmatprep.mubr.bf16.mxu0 0
    %8094 = vmatmul.mubr.bf16.gmra.mrb[0].mxu0 %v7660
    %v8095 = vpop.f32.mrb[0].mxu0
    %v8096 = vadd.f32 %v7707, %v8095
    %v8097 = vpop.f32.mrb[0].mxu0
    %v8098 = vpop.f32.mrb[0].mxu0
    %v8099 = vadd.f32 %v7707, %v8098
    %v8100 = vpop.f32.mrb[0].mxu0
    %8101 = vmatprep.mubr.bf16.mxu0 0
    %8102 = vmatmul.mubr.bf16.gmra.mrb[0].mxu0 %v7661
    %v8103 = vpop.f32.mrb[0].mxu0
    %v8104 = vadd.f32 %v7707, %v8103
    %v8105 = vpop.f32.mrb[0].mxu0
    %v8106 = vpop.f32.mrb[0].mxu0
    %v8107 = vadd.f32 %v7707, %v8106
    %v8108 = vpop.f32.mrb[0].mxu0
    %8109 = vmatprep.mubr.bf16.mxu0 0
    %8110 = vmatmul.mubr.bf16.gmra.mrb[0].mxu0 %v7662
    %v8111 = vpop.f32.mrb[0].mxu0
    %v8112 = vadd.f32 %v7707, %v8111
    %v8113 = vpop.f32.mrb[0].mxu0
    %v8114 = vpop.f32.mrb[0].mxu0
    %v8115 = vadd.f32 %v7707, %v8114
    %v8116 = vpop.f32.mrb[0].mxu0
    %8117 = vmatprep.mubr.bf16.mxu0 0
    %8118 = vmatmul.mubr.bf16.gmra.mrb[0].mxu0 %v7663
    %v8119 = vpop.f32.mrb[0].mxu0
    %v8120 = vadd.f32 %v7707, %v8119
    %v8121 = vpop.f32.mrb[0].mxu0
    %v8122 = vpop.f32.mrb[0].mxu0
    %v8123 = vadd.f32 %v7707, %v8122
    %v8124 = vpop.f32.mrb[0].mxu0
    %8125 = vmatprep.mubr.bf16.mxu0 0
    %8126 = vmatmul.mubr.bf16.gmra.mrb[0].mxu0 %v7664
    %v8127 = vpop.f32.mrb[0].mxu0
    %v8128 = vadd.f32 %v7707, %v8127
    %v8129 = vpop.f32.mrb[0].mxu0
    %v8130 = vpop.f32.mrb[0].mxu0
    %v8131 = vadd.f32 %v7707, %v8130
    %v8132 = vpop.f32.mrb[0].mxu0
    %8133 = vmatprep.mubr.bf16.mxu0 0
    %8134 = vmatmul.mubr.bf16.gmra.mrb[0].mxu0 %v7665
    %v8135 = vpop.f32.mrb[0].mxu0
    %v8136 = vadd.f32 %v7707, %v8135
    %v8137 = vpop.f32.mrb[0].mxu0
    %v8138 = vpop.f32.mrb[0].mxu0
    %v8139 = vadd.f32 %v7707, %v8138
    %v8140 = vpop.f32.mrb[0].mxu0
    %8141 = vmatprep.mubr.bf16.mxu0 0
    %8142 = vmatmul.mubr.bf16.gmra.mrb[0].mxu0 %v7666
    %v8143 = vpop.f32.mrb[0].mxu0
    %v8144 = vadd.f32 %v7707, %v8143
    %v8145 = vpop.f32.mrb[0].mxu0
    %v8146 = vpop.f32.mrb[0].mxu0
    %v8147 = vadd.f32 %v7707, %v8146
    %v8148 = vpop.f32.mrb[0].mxu0
    %8149 = vmatprep.mubr.bf16.mxu0 0
    %8150 = vmatmul.mubr.bf16.gmra.mrb[0].mxu0 %v7667
    %v8151 = vpop.f32.mrb[0].mxu0
    %v8152 = vadd.f32 %v7707, %v8151
    %v8153 = vpop.f32.mrb[0].mxu0
    %v8154 = vpop.f32.mrb[0].mxu0
    %v8155 = vadd.f32 %v7707, %v8154
    %v8156 = vpop.f32.mrb[0].mxu0
    %8157 = vmatprep.mubr.bf16.mxu0 0
    %8158 = vmatmul.mubr.bf16.gmra.mrb[0].mxu0 %v7668
    %v8159 = vpop.f32.mrb[0].mxu0
    %v8160 = vadd.f32 %v7707, %v8159
    %v8161 = vpop.f32.mrb[0].mxu0
    %v8162 = vpop.f32.mrb[0].mxu0
    %v8163 = vadd.f32 %v7707, %v8162
    %v8164 = vpop.f32.mrb[0].mxu0
    %8165 = vmatprep.mubr.bf16.mxu0 0
    %8166 = vmatmul.mubr.bf16.gmra.mrb[0].mxu0 %v7669
    %v8167 = vpop.f32.mrb[0].mxu0
    %v8168 = vadd.f32 %v7707, %v8167
    %v8169 = vpop.f32.mrb[0].mxu0
    %v8170 = vpop.f32.mrb[0].mxu0
    %v8171 = vadd.f32 %v7707, %v8170
    %v8172 = vpop.f32.mrb[0].mxu0
    %8173 = vmatprep.mubr.bf16.mxu0 0
    %8174 = vmatmul.mubr.bf16.gmra.mrb[0].mxu0 %v7670
    %v8175 = vpop.f32.mrb[0].mxu0
    %v8176 = vadd.f32 %v7707, %v8175
    %v8177 = vpop.f32.mrb[0].mxu0
    %v8178 = vpop.f32.mrb[0].mxu0
    %v8179 = vadd.f32 %v7707, %v8178
    %v8180 = vpop.f32.mrb[0].mxu0
    %8181 = vmatprep.mubr.bf16.mxu0 0
    %8182 = vmatmul.mubr.bf16.gmra.mrb[0].mxu0 %v7671
    %v8183 = vpop.f32.mrb[0].mxu0
    %v8184 = vadd.f32 %v7707, %v8183
    %v8185 = vpop.f32.mrb[0].mxu0
    %v8186 = vpop.f32.mrb[0].mxu0
    %v8187 = vadd.f32 %v7707, %v8186
    %v8188 = vpop.f32.mrb[0].mxu0
    %8189 = vmatprep.mubr.bf16.mxu0 0
    %8190 = vmatmul.mubr.bf16.gmra.mrb[0].mxu0 %v7672
    %v8191 = vpop.f32.mrb[0].mxu0
    %v8192 = vadd.f32 %v7707, %v8191
    %v8193 = vpop.f32.mrb[0].mxu0
    %v8194 = vpop.f32.mrb[0].mxu0
    %v8195 = vadd.f32 %v7707, %v8194
    %v8196 = vpop.f32.mrb[0].mxu0
    %8197 = vmatprep.mubr.bf16.mxu0 0
    %8198 = vmatmul.mubr.bf16.gmra.mrb[0].mxu0 %v7673
    %v8199 = vpop.f32.mrb[0].mxu0
    %v8200 = vadd.f32 %v7707, %v8199
    %v8201 = vpop.f32.mrb[0].mxu0
    %v8202 = vpop.f32.mrb[0].mxu0
    %v8203 = vadd.f32 %v7707, %v8202
    %v8204 = vpop.f32.mrb[0].mxu0
    %8205 = vmatprep.mubr.bf16.mxu0 0
    %8206 = vmatmul.mubr.bf16.gmra.mrb[0].mxu0 %v7674
    %v8207 = vpop.f32.mrb[0].mxu0
    %v8208 = vadd.f32 %v7707, %v8207
    %v8209 = vpop.f32.mrb[0].mxu0
    %v8210 = vpop.f32.mrb[0].mxu0
    %v8211 = vadd.f32 %v7707, %v8210
    %v8212 = vpop.f32.mrb[0].mxu0
    %8213 = vmatprep.mubr.bf16.mxu0 0
    %8214 = vmatmul.mubr.bf16.gmra.mrb[0].mxu0 %v7675
    %v8215 = vpop.f32.mrb[0].mxu0
    %v8216 = vadd.f32 %v7707, %v8215
    %v8217 = vpop.f32.mrb[0].mxu0
    %v8218 = vpop.f32.mrb[0].mxu0
    %v8219 = vadd.f32 %v7707, %v8218
    %v8220 = vpop.f32.mrb[0].mxu0
    %8221 = vmatprep.mubr.bf16.mxu0 0
    %8222 = vmatmul.mubr.bf16.gmra.mrb[0].mxu0 %v7676
    %v8223 = vpop.f32.mrb[0].mxu0
    %v8224 = vadd.f32 %v7707, %v8223
    %v8225 = vpop.f32.mrb[0].mxu0
    %v8226 = vpop.f32.mrb[0].mxu0
    %v8227 = vadd.f32 %v7707, %v8226
    %v8228 = vpop.f32.mrb[0].mxu0
    %8229 = vmatprep.mubr.bf16.mxu0 0
    %8230 = vmatmul.mubr.bf16.gmra.mrb[0].mxu0 %v7677
    %v8231 = vpop.f32.mrb[0].mxu0
    %v8232 = vadd.f32 %v7707, %v8231
    %v8233 = vpop.f32.mrb[0].mxu0
    %v8234 = vpop.f32.mrb[0].mxu0
    %v8235 = vadd.f32 %v7707, %v8234
    %v8236 = vpop.f32.mrb[0].mxu0
    %8237 = vmatprep.mubr.bf16.mxu0 0
    %8238 = vmatmul.mubr.bf16.gmra.mrb[0].mxu0 %v7678
    %v8239 = vpop.f32.mrb[0].mxu0
    %v8240 = vadd.f32 %v7707, %v8239
    %v8241 = vpop.f32.mrb[0].mxu0
    %v8242 = vpop.f32.mrb[0].mxu0
    %v8243 = vadd.f32 %v7707, %v8242
    %v8244 = vpop.f32.mrb[0].mxu0
    %8245 = vmatprep.mubr.bf16.mxu0 0
    %8246 = vmatmul.mubr.bf16.gmra.mrb[0].mxu0 %v7679
    %v8247 = vpop.f32.mrb[0].mxu0
    %v8248 = vadd.f32 %v7707, %v8247
    %v8249 = vpop.f32.mrb[0].mxu0
    %v8250 = vpop.f32.mrb[0].mxu0
    %v8251 = vadd.f32 %v7707, %v8250
    %v8252 = vpop.f32.mrb[0].mxu0
    %8253 = vmatprep.mubr.bf16.mxu0 0
    %8254 = vmatmul.mubr.bf16.gmra.mrb[0].mxu0 %v7680
    %v8255 = vpop.f32.mrb[0].mxu0
    %v8256 = vadd.f32 %v7707, %v8255
    %v8257 = vpop.f32.mrb[0].mxu0
    %v8258 = vpop.f32.mrb[0].mxu0
    %v8259 = vadd.f32 %v7707, %v8258
    %v8260 = vpop.f32.mrb[0].mxu0
    %8261 = vmatprep.mubr.bf16.mxu0 0
    %8262 = vmatmul.mubr.bf16.gmra.mrb[0].mxu0 %v7681
    %v8263 = vpop.f32.mrb[0].mxu0
    %v8264 = vadd.f32 %v7707, %v8263
    %v8265 = vpop.f32.mrb[0].mxu0
    %v8266 = vpop.f32.mrb[0].mxu0
    %v8267 = vadd.f32 %v7707, %v8266
    %v8268 = vpop.f32.mrb[0].mxu0
    %8269 = vmatprep.mubr.bf16.mxu0 0
    %8270 = vmatmul.mubr.bf16.gmra.mrb[0].mxu0 %v7682
    %v8271 = vpop.f32.mrb[0].mxu0
    %v8272 = vadd.f32 %v7707, %v8271
    %v8273 = vpop.f32.mrb[0].mxu0
    %v8274 = vpop.f32.mrb[0].mxu0
    %v8275 = vadd.f32 %v7707, %v8274
    %v8276 = vpop.f32.mrb[0].mxu0
    %8277 = vmatprep.mubr.bf16.mxu0 0
    %8278 = vmatmul.mubr.bf16.gmra.mrb[0].mxu0 %v7683
    %v8279 = vpop.f32.mrb[0].mxu0
    %v8280 = vadd.f32 %v7707, %v8279
    %v8281 = vpop.f32.mrb[0].mxu0
    %v8282 = vpop.f32.mrb[0].mxu0
    %v8283 = vadd.f32 %v7707, %v8282
    %v8284 = vpop.f32.mrb[0].mxu0
    %8285 = vmatprep.mubr.bf16.mxu0 0
    %8286 = vmatmul.mubr.bf16.gmra.mrb[0].mxu0 %v7684
    %v8287 = vpop.f32.mrb[0].mxu0
    %v8288 = vadd.f32 %v7707, %v8287
    %v8289 = vpop.f32.mrb[0].mxu0
    %v8290 = vpop.f32.mrb[0].mxu0
    %v8291 = vadd.f32 %v7707, %v8290
    %v8292 = vpop.f32.mrb[0].mxu0
    %8293 = vmatprep.mubr.bf16.mxu0 0
    %8294 = vmatmul.mubr.bf16.gmra.mrb[0].mxu0 %v7685
    %v8295 = vpop.f32.mrb[0].mxu0
    %v8296 = vadd.f32 %v7707, %v8295
    %v8297 = vpop.f32.mrb[0].mxu0
    %v8298 = vpop.f32.mrb[0].mxu0
    %v8299 = vadd.f32 %v7707, %v8298
    %v8300 = vpop.f32.mrb[0].mxu0
    %8301 = vdwg.mxu0
    %8302 = vst [vmem:[#allocation2] sm:$0xff] %v7792
    %8303 = vst [vmem:[#allocation2 + $0x8] sm:$0xff] %v7795
    %8304 = vst [vmem:[#allocation2 + $0x10] sm:$0xff] %v7800
    %8305 = vst [vmem:[#allocation2 + $0x18] sm:$0xff] %v7803
    %8306 = vst [vmem:[#allocation2 + $0x20] sm:$0xff] %v7808
    %8307 = vst [vmem:[#allocation2 + $0x28] sm:$0xff] %v7811
    %8308 = vst [vmem:[#allocation2 + $0x30] sm:$0xff] %v7816
    %8309 = vst [vmem:[#allocation2 + $0x38] sm:$0xff] %v7819
    %8310 = vst [vmem:[#allocation2 + $0x40] sm:$0xff] %v7824
    %8311 = vst [vmem:[#allocation2 + $0x48] sm:$0xff] %v7827
    %8312 = vst [vmem:[#allocation2 + $0x50] sm:$0xff] %v7832
    %8313 = vst [vmem:[#allocation2 + $0x58] sm:$0xff] %v7835
    %8314 = vst [vmem:[#allocation2 + $0x60] sm:$0xff] %v7840
    %8315 = vst [vmem:[#allocation2 + $0x68] sm:$0xff] %v7843
    %8316 = vst [vmem:[#allocation2 + $0x70] sm:$0xff] %v7848
    %8317 = vst [vmem:[#allocation2 + $0x78] sm:$0xff] %v7851
    %8318 = vst [vmem:[#allocation2 + $0x80] sm:$0xff] %v7856
    %8319 = vst [vmem:[#allocation2 + $0x88] sm:$0xff] %v7859
    %8320 = vst [vmem:[#allocation2 + $0x90] sm:$0xff] %v7864
    %8321 = vst [vmem:[#allocation2 + $0x98] sm:$0xff] %v7867
    %8322 = vst [vmem:[#allocation2 + $0xa0] sm:$0xff] %v7872
    %8323 = vst [vmem:[#allocation2 + $0xa8] sm:$0xff] %v7875
    %8324 = vst [vmem:[#allocation2 + $0xb0] sm:$0xff] %v7880
    %8325 = vst [vmem:[#allocation2 + $0xb8] sm:$0xff] %v7883
    %8326 = vst [vmem:[#allocation2 + $0xc0] sm:$0xff] %v7888
    %8327 = vst [vmem:[#allocation2 + $0xc8] sm:$0xff] %v7891
    %8328 = vst [vmem:[#allocation2 + $0xd0] sm:$0xff] %v7896
    %8329 = vst [vmem:[#allocation2 + $0xd8] sm:$0xff] %v7899
    %8330 = vst [vmem:[#allocation2 + $0xe0] sm:$0xff] %v7904
    %8331 = vst [vmem:[#allocation2 + $0xe8] sm:$0xff] %v7907
    %8332 = vst [vmem:[#allocation2 + $0xf0] sm:$0xff] %v7912
    %8333 = vst [vmem:[#allocation2 + $0xf8] sm:$0xff] %v7915
    %8334 = vst [vmem:[#allocation2 + $0x100] sm:$0xff] %v7920
    %8335 = vst [vmem:[#allocation2 + $0x108] sm:$0xff] %v7923
    %8336 = vst [vmem:[#allocation2 + $0x110] sm:$0xff] %v7928
    %8337 = vst [vmem:[#allocation2 + $0x118] sm:$0xff] %v7931
    %8338 = vst [vmem:[#allocation2 + $0x120] sm:$0xff] %v7936
    %8339 = vst [vmem:[#allocation2 + $0x128] sm:$0xff] %v7939
    %8340 = vst [vmem:[#allocation2 + $0x130] sm:$0xff] %v7944
    %8341 = vst [vmem:[#allocation2 + $0x138] sm:$0xff] %v7947
    %8342 = vst [vmem:[#allocation2 + $0x140] sm:$0xff] %v7952
    %8343 = vst [vmem:[#allocation2 + $0x148] sm:$0xff] %v7955
    %8344 = vst [vmem:[#allocation2 + $0x150] sm:$0xff] %v7960
    %8345 = vst [vmem:[#allocation2 + $0x158] sm:$0xff] %v7963
    %8346 = vst [vmem:[#allocation2 + $0x160] sm:$0xff] %v7968
    %8347 = vst [vmem:[#allocation2 + $0x168] sm:$0xff] %v7971
    %8348 = vst [vmem:[#allocation2 + $0x170] sm:$0xff] %v7976
    %8349 = vst [vmem:[#allocation2 + $0x178] sm:$0xff] %v7979
    %8350 = vst [vmem:[#allocation2 + $0x180] sm:$0xff] %v7984
    %8351 = vst [vmem:[#allocation2 + $0x188] sm:$0xff] %v7987
    %8352 = vst [vmem:[#allocation2 + $0x190] sm:$0xff] %v7992
    %8353 = vst [vmem:[#allocation2 + $0x198] sm:$0xff] %v7995
    %8354 = vst [vmem:[#allocation2 + $0x1a0] sm:$0xff] %v8000
    %8355 = vst [vmem:[#allocation2 + $0x1a8] sm:$0xff] %v8003
    %8356 = vst [vmem:[#allocation2 + $0x1b0] sm:$0xff] %v8008
    %8357 = vst [vmem:[#allocation2 + $0x1b8] sm:$0xff] %v8011
    %8358 = vst [vmem:[#allocation2 + $0x1c0] sm:$0xff] %v8016
    %8359 = vst [vmem:[#allocation2 + $0x1c8] sm:$0xff] %v8019
    %8360 = vst [vmem:[#allocation2 + $0x1d0] sm:$0xff] %v8024
    %8361 = vst [vmem:[#allocation2 + $0x1d8] sm:$0xff] %v8027
    %8362 = vst [vmem:[#allocation2 + $0x1e0] sm:$0xff] %v8032
    %8363 = vst [vmem:[#allocation2 + $0x1e8] sm:$0xff] %v8035
    %8364 = vst [vmem:[#allocation2 + $0x1f0] sm:$0xff] %v8040
    %8365 = vst [vmem:[#allocation2 + $0x1f8] sm:$0xff] %v8043
    %8366 = vst [vmem:[#allocation2 + $0x200] sm:$0xff] %v8048
    %8367 = vst [vmem:[#allocation2 + $0x208] sm:$0xff] %v8051
    %8368 = vst [vmem:[#allocation2 + $0x210] sm:$0xff] %v8056
    %8369 = vst [vmem:[#allocation2 + $0x218] sm:$0xff] %v8059
    %8370 = vst [vmem:[#allocation2 + $0x220] sm:$0xff] %v8064
    %8371 = vst [vmem:[#allocation2 + $0x228] sm:$0xff] %v8067
    %8372 = vst [vmem:[#allocation2 + $0x230] sm:$0xff] %v8072
    %8373 = vst [vmem:[#allocation2 + $0x238] sm:$0xff] %v8075
    %8374 = vst [vmem:[#allocation2 + $0x240] sm:$0xff] %v8080
    %8375 = vst [vmem:[#allocation2 + $0x248] sm:$0xff] %v8083
    %8376 = vst [vmem:[#allocation2 + $0x250] sm:$0xff] %v8088
    %8377 = vst [vmem:[#allocation2 + $0x258] sm:$0xff] %v8091
    %8378 = vst [vmem:[#allocation2 + $0x260] sm:$0xff] %v8096
    %8379 = vst [vmem:[#allocation2 + $0x268] sm:$0xff] %v8099
    %8380 = vst [vmem:[#allocation2 + $0x270] sm:$0xff] %v8104
    %8381 = vst [vmem:[#allocation2 + $0x278] sm:$0xff] %v8107
    %8382 = vst [vmem:[#allocation2 + $0x280] sm:$0xff] %v8112
    %8383 = vst [vmem:[#allocation2 + $0x288] sm:$0xff] %v8115
    %8384 = vst [vmem:[#allocation2 + $0x290] sm:$0xff] %v8120
    %8385 = vst [vmem:[#allocation2 + $0x298] sm:$0xff] %v8123
    %8386 = vst [vmem:[#allocation2 + $0x2a0] sm:$0xff] %v8128
    %8387 = vst [vmem:[#allocation2 + $0x2a8] sm:$0xff] %v8131
    %8388 = vst [vmem:[#allocation2 + $0x2b0] sm:$0xff] %v8136
    %8389 = vst [vmem:[#allocation2 + $0x2b8] sm:$0xff] %v8139
    %8390 = vst [vmem:[#allocation2 + $0x2c0] sm:$0xff] %v8144
    %8391 = vst [vmem:[#allocation2 + $0x2c8] sm:$0xff] %v8147
    %8392 = vst [vmem:[#allocation2 + $0x2d0] sm:$0xff] %v8152
    %8393 = vst [vmem:[#allocation2 + $0x2d8] sm:$0xff] %v8155
    %8394 = vst [vmem:[#allocation2 + $0x2e0] sm:$0xff] %v8160
    %8395 = vst [vmem:[#allocation2 + $0x2e8] sm:$0xff] %v8163
    %8396 = vst [vmem:[#allocation2 + $0x2f0] sm:$0xff] %v8168
    %8397 = vst [vmem:[#allocation2 + $0x2f8] sm:$0xff] %v8171
    %8398 = vst [vmem:[#allocation2 + $0x300] sm:$0xff] %v8176
    %8399 = vst [vmem:[#allocation2 + $0x308] sm:$0xff] %v8179
    %8400 = vst [vmem:[#allocation2 + $0x310] sm:$0xff] %v8184
    %8401 = vst [vmem:[#allocation2 + $0x318] sm:$0xff] %v8187
    %8402 = vst [vmem:[#allocation2 + $0x320] sm:$0xff] %v8192
    %8403 = vst [vmem:[#allocation2 + $0x328] sm:$0xff] %v8195
    %8404 = vst [vmem:[#allocation2 + $0x330] sm:$0xff] %v8200
    %8405 = vst [vmem:[#allocation2 + $0x338] sm:$0xff] %v8203
    %8406 = vst [vmem:[#allocation2 + $0x340] sm:$0xff] %v8208
    %8407 = vst [vmem:[#allocation2 + $0x348] sm:$0xff] %v8211
    %8408 = vst [vmem:[#allocation2 + $0x350] sm:$0xff] %v8216
    %8409 = vst [vmem:[#allocation2 + $0x358] sm:$0xff] %v8219
    %8410 = vst [vmem:[#allocation2 + $0x360] sm:$0xff] %v8224
    %8411 = vst [vmem:[#allocation2 + $0x368] sm:$0xff] %v8227
    %8412 = vst [vmem:[#allocation2 + $0x370] sm:$0xff] %v8232
    %8413 = vst [vmem:[#allocation2 + $0x378] sm:$0xff] %v8235
    %8414 = vst [vmem:[#allocation2 + $0x380] sm:$0xff] %v8240
    %8415 = vst [vmem:[#allocation2 + $0x388] sm:$0xff] %v8243
    %8416 = vst [vmem:[#allocation2 + $0x390] sm:$0xff] %v8248
    %8417 = vst [vmem:[#allocation2 + $0x398] sm:$0xff] %v8251
    %8418 = vst [vmem:[#allocation2 + $0x3a0] sm:$0xff] %v8256
    %8419 = vst [vmem:[#allocation2 + $0x3a8] sm:$0xff] %v8259
    %8420 = vst [vmem:[#allocation2 + $0x3b0] sm:$0xff] %v8264
    %8421 = vst [vmem:[#allocation2 + $0x3b8] sm:$0xff] %v8267
    %8422 = vst [vmem:[#allocation2 + $0x3c0] sm:$0xff] %v8272
    %8423 = vst [vmem:[#allocation2 + $0x3c8] sm:$0xff] %v8275
    %8424 = vst [vmem:[#allocation2 + $0x3d0] sm:$0xff] %v8280
    %8425 = vst [vmem:[#allocation2 + $0x3d8] sm:$0xff] %v8283
    %8426 = vst [vmem:[#allocation2 + $0x3e0] sm:$0xff] %v8288
    %8427 = vst [vmem:[#allocation2 + $0x3e8] sm:$0xff] %v8291
    %8428 = vst [vmem:[#allocation2 + $0x3f0] sm:$0xff] %v8296
    %8429 = vst [vmem:[#allocation2 + $0x3f8] sm:$0xff] %v8299
    // Predicated region
    $region46: #{tpu_custom_call.1} parent=1 // pred_check
      _
    $region47: #{tpu_custom_call.1} parent=1 // pred_check_branch
      %8431 = sbr.rel (0) target = $region49
    $region48: #{tpu_custom_call.1} parent=1 // pred_region
      %s8433 = ssub.s32 16384, 16384
      %8434 = vsyncadd [#allocation3], %s8433
      %s8435 = sshll.u32 [#allocation2], 4
      %s8436 = int_to_ptr.vmem [resolvable:$true] %s8435
      %8441 = dma.vmem_to_hbm [thread:$0]  %s8436, 16384, %s11, [#allocation3], 128, 128, 8
    $region49: #{tpu_custom_call.1} parent=1 // pred_fallthru
      _
    // Predicated region
    $region50: #{tpu_custom_call.1} parent=1 // pred_check
      _
    $region51: #{tpu_custom_call.1} parent=1 // pred_check_branch
      %8443 = sbr.rel (0) target = $region53
    $region52: #{tpu_custom_call.1} parent=1 // pred_region
      %8444 = dma.done [#allocation3], 16384
    $region53: #{tpu_custom_call.1} parent=1 // pred_fallthru
      _
    %8445 = vsyncpa [#allocation3], 1

</llo_original>
